<compile_context>
chip_gen: v7x
topology: tpu7x:2x2x1
jax: 0.10.0
libtpu: 0.0.40
codegen_flags: <defaults>
</compile_context>

<pallas_src>
import math
import functools

import jax
import jax.numpy as jnp
from jax import lax
from jax.experimental import pallas as pl
from jax.experimental.pallas import tpu as pltpu


def _attn_kernel(qi_steps_ref, ki_steps_ref, q_ref, k_ref, v_ref, o_ref,
                 q_sc, m_sc, l_sc, acc_sc, *, scale, group, tile, head_dim):
    """Causal flash attention, GQA-group fused, lower-triangle-compressed grid.

    Grid: (batch, kv_heads, n_steps) with n_steps = n*(n+1)/2 causal (qi, ki) pairs.
      qi_steps_ref / ki_steps_ref : SMEM int32[n_steps] scalar-prefetch step->tile lookups
      q_ref  : (1, group, tile, D)   -- the `group` q heads sharing this KV head
      k_ref  : (1, 1, tile, D)
      v_ref  : (1, 1, tile, D)
      o_ref  : (1, 1, tile, group*D) -- heads folded into the lane dim
      scratch: q_sc (group*tile, D) native dtype (hoisted scaled q),
               m/l (group*tile, 1) f32, acc (group*tile, D) f32
    """
    s_idx = pl.program_id(2)
    qi = qi_steps_ref[s_idx]
    ki = ki_steps_ref[s_idx]

    @pl.when(ki == 0)
    def _init():
        # Hoisted once-per-q-row work: stack the group's q heads into one (group*tile, D)
        # LHS and fold in the softmax scale; stays resident across every k step of this row.
        q_sc[...] = q_ref[0].reshape(group * tile, head_dim) * scale
        m_sc[...] = jnp.full_like(m_sc, -jnp.inf)
        l_sc[...] = jnp.zeros_like(l_sc)
        acc_sc[...] = jnp.zeros_like(acc_sc)

    def _update(masked):
        q = q_sc[...]                                               # (group*tile, D), native dtype
        k = k_ref[0, 0]                                             # (tile, D)
        v = v_ref[0, 0]                                             # (tile, D)

        # QK^T without an explicit transpose: contract the last axes of both operands.
        s = lax.dot_general(q, k, (((1,), (1,)), ((), ())),
                            preferred_element_type=jnp.float32)     # (group*tile, tile)

        if masked:
            # Diagonal tile only (qi == ki, tq == tk enforced by the wrapper): key col <= row.
            rows = lax.broadcasted_iota(jnp.int32, (tile, tile), 0)
            cols = lax.broadcasted_iota(jnp.int32, (tile, tile), 1)
            causal = cols <= rows
            s = jnp.where(causal[None, :, :],
                          s.reshape(group, tile, tile),
                          -jnp.inf).reshape(group * tile, tile)

        m_prev = m_sc[...]
        m_new = jnp.maximum(m_prev, s.max(axis=-1, keepdims=True))
        alpha = jnp.exp(m_prev - m_new)
        p = jnp.exp(s - m_new)
        l_sc[...] = alpha * l_sc[...] + p.sum(axis=-1, keepdims=True)
        acc_sc[...] = alpha * acc_sc[...] + jnp.dot(
            p.astype(v.dtype), v, preferred_element_type=jnp.float32)
        m_sc[...] = m_new

    # Interior (fully valid) tiles: no masking work at all.
    @pl.when(ki < qi)
    def _interior():
        _update(masked=False)

    # Diagonal tile: apply the causal mask and finalize (it is the last step of this q row
    # in the lower-triangle step ordering).  Upper-triangle tiles never appear in the grid.
    @pl.when(ki == qi)
    def _diag_and_finalize():
        _update(masked=True)
        inv_l = pl.reciprocal(l_sc[...], approx=False)   # exact; operand is (group*tile, 1)
        normed = acc_sc[...] * inv_l                     # (group*tile, D) f32
        # Fold heads into the lane dim with static slice stores (no concatenate temporary).
        for g in range(group):
            o_ref[0, 0, :, g * head_dim:(g + 1) * head_dim] = (
                normed[g * tile:(g + 1) * tile, :].astype(o_ref.dtype))


def _causal_sdpa_pallas(q, k, v, *, tile=256):
    """q: (B, HQ, S, D); k, v: (B, HKV, S, D) with HQ % HKV == 0 (GQA).

    Returns (B, HKV, S, group*D): last axis holds the `group` q heads mapped to each KV head
    in order (q head index = hkv*group + g), matching PyTorch's enable_gqa repeat pattern.
    """
    B, HQ, S, D = q.shape
    Bk, HKV, SK, Dk = k.shape
    assert B == Bk and S == SK and D == Dk and HQ % HKV == 0
    group = HQ // HKV
    scale = 1.0 / math.sqrt(D)

    tile = min(tile, S)
    # tq == tk is required by the causal skip / diagonal mask logic.
    assert S % tile == 0 and tile % 8 == 0, (S, tile)
    n = S // tile

    # Lower-triangle grid compression: linearize the causal (qi, ki) loop into n*(n+1)/2 steps.
    # The step->(qi, ki) tables are scalar-prefetched into SMEM and consumed by the index_maps
    # (data-dependent tiling) and by the kernel (init / mask / finalize phase selection).
    qi_list, ki_list = [], []
    for qi in range(n):
        for ki in range(qi + 1):
            qi_list.append(qi)
            ki_list.append(ki)
    qi_steps = jnp.asarray(qi_list, dtype=jnp.int32)
    ki_steps = jnp.asarray(ki_list, dtype=jnp.int32)
    n_steps = len(qi_list)

    kernel = functools.partial(_attn_kernel, scale=scale, group=group,
                               tile=tile, head_dim=D)

    grid = (B, HKV, n_steps)
    # VMEM at tile=256: q/acc scratch + f32 s/p temporaries are well under the 32 MiB default
    # scoped limit on every generation (re-budget and set vmem_limit_bytes before using tile=512,
    # especially on v7x's 64 MiB physical VMEM).
    return pl.pallas_call(
        kernel,
        out_shape=jax.ShapeDtypeStruct((B, HKV, S, group * D), q.dtype),
        grid_spec=pltpu.PrefetchScalarGridSpec(
            num_scalar_prefetch=2,
            grid=grid,
            in_specs=[
                # all `group` q heads that share KV head h
                pl.BlockSpec((1, group, tile, D),
                             lambda b, h, s, qi_s, ki_s: (b, h, qi_s[s], 0)),
                pl.BlockSpec((1, 1, tile, D),
                             lambda b, h, s, qi_s, ki_s: (b, h, ki_s[s], 0)),
                pl.BlockSpec((1, 1, tile, D),
                             lambda b, h, s, qi_s, ki_s: (b, h, ki_s[s], 0)),
            ],
            out_specs=pl.BlockSpec((1, 1, tile, group * D),
                                   lambda b, h, s, qi_s, ki_s: (b, h, qi_s[s], 0)),
            scratch_shapes=[
                pltpu.VMEM((group * tile, D), q.dtype),       # hoisted scaled q
                pltpu.VMEM((group * tile, 1), jnp.float32),   # running max
                pltpu.VMEM((group * tile, 1), jnp.float32),   # running denom
                pltpu.VMEM((group * tile, D), jnp.float32),   # output accumulator
            ],
        ),
        compiler_params=pltpu.CompilerParams(
            # The linearized causal axis carries the accumulator -> "arbitrary"; batch and
            # KV-head axes remain "parallel" for megacore sharding.
            dimension_semantics=("parallel", "parallel", "arbitrary"),
        ),
    )(qi_steps, ki_steps, q, k, v)


class CoreAttention:
    """JAX/Pallas port of deepspeed.runtime.domino.transformer.CoreAttention."""

    def __init__(self, kv_channels, num_attention_heads, attention_dropout=0.0,
                 layer_number=1, world_size=1):
        self.layer_number = max(1, layer_number)
        self.att_dropout_p = attention_dropout
        self.is_causal = True
        self.projection_size = kv_channels * num_attention_heads
        self.hidden_size_per_partition = self.projection_size // world_size
        # TODO(synk): stochastic attention dropout inside SDPA is not implemented; this config
        # uses attention_dropout=0.0 so the forward is exact.
        assert self.att_dropout_p == 0.0, "attention_dropout > 0 not supported in Pallas port"

    def __call__(self, query_layer, key_layer, value_layer, attention_mask=None):
        # query_layer: [sq, b, hq, d]; key/value_layer: [sk, b, hkv, d]
        # attention_mask is ignored, matching the PyTorch module (it passes attn_mask=None).
        q = jnp.transpose(query_layer, (1, 2, 0, 3))   # [b, hq, sq, d]
        k = jnp.transpose(key_layer, (1, 2, 0, 3))     # [b, hkv, sk, d]
        v = jnp.transpose(value_layer, (1, 2, 0, 3))   # [b, hkv, sk, d]

        ctx = _causal_sdpa_pallas(q, k, v)             # [b, hkv, sq, group*d]

        # [b, hkv, sq, group*d] -> [sq, b, hkv*group*d] == [sq, b, hq*d]
        ctx = jnp.transpose(ctx, (2, 0, 1, 3))          # [sq, b, hkv, group*d]
        sq, b = ctx.shape[0], ctx.shape[1]
        return ctx.reshape(sq, b, self.hidden_size_per_partition)


def _reference_core_attention(query_layer, key_layer, value_layer, hidden_per_partition):
    """Pure-JAX reference of the PyTorch forward (causal SDPA with GQA, no dropout)."""
    q = jnp.transpose(query_layer, (1, 2, 0, 3)).astype(jnp.float32)  # [b, hq, sq, d]
    k = jnp.transpose(key_layer, (1, 2, 0, 3)).astype(jnp.float32)    # [b, hkv, sk, d]
    v = jnp.transpose(value_layer, (1, 2, 0, 3)).astype(jnp.float32)
    B, HQ, S, D = q.shape
    HKV = k.shape[1]
    rep = HQ // HKV
    k = jnp.repeat(k, rep, axis=1)
    v = jnp.repeat(v, rep, axis=1)
    scale = 1.0 / math.sqrt(D)
    s = jnp.einsum("bhqd,bhkd->bhqk", q, k) * scale
    mask = jnp.tril(jnp.ones((S, S), dtype=bool))
    s = jnp.where(mask[None, None], s, -jnp.inf)
    p = jax.nn.softmax(s, axis=-1)
    ctx = jnp.einsum("bhqk,bhkd->bhqd", p, v)
    ctx = jnp.transpose(ctx, (2, 0, 1, 3))
    return ctx.reshape(S, B, hidden_per_partition)


def _ref_sdpa_blocked(q, k, v):
    """Reference in the kernel's native (B, HKV, S, group*D) output layout (f32)."""
    B, HQ, S, D = q.shape
    HKV = k.shape[1]
    group = HQ // HKV
    kr = jnp.repeat(k, group, axis=1).astype(jnp.float32)
    vr = jnp.repeat(v, group, axis=1).astype(jnp.float32)
    s = jnp.einsum("bhqd,bhkd->bhqk", q.astype(jnp.float32), kr) / math.sqrt(D)
    mask = jnp.tril(jnp.ones((S, S), dtype=bool))
    s = jnp.where(mask[None, None], s, -jnp.inf)
    p = jax.nn.softmax(s, axis=-1)
    ctx = jnp.einsum("bhqk,bhkd->bhqd", p, vr)               # (B, HQ, S, D) f32
    ctx = ctx.reshape(B, HKV, group, S, D)
    return jnp.transpose(ctx, (0, 1, 3, 2, 4)).reshape(B, HKV, S, group * D)


if __name__ == "__main__":
    # Small config consistent with the module's forward:
    #   seq = 256, batch = 2, num_attention_heads = 4, num_kv_heads = 2 (GQA), kv_channels = 32
    seq, batch = 256, 2
    num_heads, num_kv_heads, head_dim = 4, 2, 32

    key = jax.random.PRNGKey(0)
    kq, kk, kv = jax.random.split(key, 3)
    query_layer = jax.random.normal(kq, (seq, batch, num_heads, head_dim), dtype=jnp.float32)
    key_layer = jax.random.normal(kk, (seq, batch, num_kv_heads, head_dim), dtype=jnp.float32)
    value_layer = jax.random.normal(kv, (seq, batch, num_kv_heads, head_dim), dtype=jnp.float32)

    attn = CoreAttention(kv_channels=head_dim, num_attention_heads=num_heads,
                         attention_dropout=0.0, layer_number=1, world_size=1)

    out = attn(query_layer, key_layer, value_layer, attention_mask=None)
    out = jax.block_until_ready(out)

    ref = _reference_core_attention(query_layer, key_layer, value_layer,
                                    attn.hidden_size_per_partition)
    assert out.shape == (seq, batch, num_heads * head_dim), out.shape
    err = float(jnp.max(jnp.abs(out - ref)))
    assert jnp.allclose(out, ref, atol=1e-3, rtol=1e-3), err

    # Smaller tile so the compressed-grid multi-tile paths (unmasked interior tiles, diagonal
    # mask/finalize, per-row re-init) are exercised at runtime.
    qb = jnp.transpose(query_layer, (1, 2, 0, 3))
    kb = jnp.transpose(key_layer, (1, 2, 0, 3))
    vb = jnp.transpose(value_layer, (1, 2, 0, 3))
    out_small = jax.block_until_ready(_causal_sdpa_pallas(qb, kb, vb, tile=64))
    ref_small = _ref_sdpa_blocked(qb, kb, vb)
    err_small = float(jnp.max(jnp.abs(out_small - ref_small)))
    assert jnp.allclose(out_small, ref_small, atol=1e-3, rtol=1e-3), err_small

    # bf16 path: native-dtype matmuls feed the MXU bf16 operands (full-rate) with f32
    # accumulation; validated against the f32 reference of the same bf16 inputs with a
    # bf16-appropriate tolerance.
    qb16, kb16, vb16 = qb.astype(jnp.bfloat16), kb.astype(jnp.bfloat16), vb.astype(jnp.bfloat16)
    out_bf16 = jax.block_until_ready(_causal_sdpa_pallas(qb16, kb16, vb16, tile=64))
    ref_bf16 = _ref_sdpa_blocked(qb16, kb16, vb16)
    err_bf16 = float(jnp.max(jnp.abs(out_bf16.astype(jnp.float32) - ref_bf16)))
    assert err_bf16 < 3e-2, err_bf16

    print("KERNEL_OK")
</pallas_src>

<mosaic_0001>
module attributes {stable_mosaic.version = 11 : i64} {
  func.func @_attn_kernel(%arg0: i32, %arg1: i32, %arg2: i32, %arg3: memref<1xi32, #tpu.memory_space<smem>>, %arg4: memref<1xi32, #tpu.memory_space<smem>>, %arg5: memref<1x2x256x32xf32, #tpu.memory_space<vmem>>, %arg6: memref<1x1x256x32xf32, #tpu.memory_space<vmem>>, %arg7: memref<1x1x256x32xf32, #tpu.memory_space<vmem>>, %arg8: memref<1x1x256x64xf32, #tpu.memory_space<vmem>>, %arg9: memref<512x32xf32, #tpu.memory_space<vmem>>, %arg10: memref<512x1xf32, #tpu.memory_space<vmem>>, %arg11: memref<512x1xf32, #tpu.memory_space<vmem>>, %arg12: memref<512x32xf32, #tpu.memory_space<vmem>>) attributes {dimension_semantics = [#tpu.dimension_semantics<parallel>, #tpu.dimension_semantics<parallel>, #tpu.dimension_semantics<arbitrary>], iteration_bounds = array<i64: 2, 2, 1>, scalar_prefetch = 2 : i64, scratch_operands = 4 : i64, tpu.core_type = #tpu.core_type<tc>, window_params = [{transform_indices = @transform_0, window_bounds = array<i64: 1, 2, 256, 32>}, {transform_indices = @transform_1, window_bounds = array<i64: 1, 1, 256, 32>}, {transform_indices = @transform_2, window_bounds = array<i64: 1, 1, 256, 32>}, {transform_indices = @transform_3, window_bounds = array<i64: 1, 1, 256, 64>}]} {
    %0 = arith.index_cast %arg2 : i32 to index
    %1 = memref.load %arg3[%0] : memref<1xi32, #tpu.memory_space<smem>>
    %2 = arith.index_cast %arg2 : i32 to index
    %3 = memref.load %arg4[%2] : memref<1xi32, #tpu.memory_space<smem>>
    %c0_i32 = arith.constant 0 : i32
    %4 = arith.cmpi eq, %3, %c0_i32 : i32
    %5 = arith.extui %4 : i1 to i32
    %c0_i32_0 = arith.constant 0 : i32
    %6 = arith.cmpi ne, %5, %c0_i32_0 : i32
    scf.if %6 {
      %c0 = arith.constant 0 : index
      %c0_3 = arith.constant 0 : index
      %c0_4 = arith.constant 0 : index
      %c0_5 = arith.constant 0 : index
      %13 = vector.load %arg5[%c0, %c0_3, %c0_4, %c0_5] : memref<1x2x256x32xf32, #tpu.memory_space<vmem>>, vector<1x2x256x32xf32>
      %14 = vector.shape_cast %13 : vector<1x2x256x32xf32> to vector<2x256x32xf32>
      %15 = vector.shape_cast %14 : vector<2x256x32xf32> to vector<512x32xf32>
      %cst = arith.constant 0.176776692 : f32
      %16 = vector.broadcast %cst : f32 to vector<512x32xf32>
      %17 = arith.mulf %15, %16 : vector<512x32xf32>
      %c0_6 = arith.constant 0 : index
      %c0_7 = arith.constant 0 : index
      %18 = vector.load %arg9[%c0_6, %c0_7] : memref<512x32xf32, #tpu.memory_space<vmem>>, vector<512x32xf32>
      tpu.vector_store %arg9[%c0_6, %c0_7], %17 {strides = array<i32>} : memref<512x32xf32, #tpu.memory_space<vmem>>, vector<512x32xf32>,
      %cst_8 = arith.constant 0xFF800000 : f32
      %19 = vector.broadcast %cst_8 : f32 to vector<512x1xf32>
      %c0_9 = arith.constant 0 : index
      %c0_10 = arith.constant 0 : index
      %20 = vector.load %arg10[%c0_9, %c0_10] : memref<512x1xf32, #tpu.memory_space<vmem>>, vector<512x1xf32>
      tpu.vector_store %arg10[%c0_9, %c0_10], %19 {strides = array<i32>} : memref<512x1xf32, #tpu.memory_space<vmem>>, vector<512x1xf32>,
      %cst_11 = arith.constant 0.000000e+00 : f32
      %21 = vector.broadcast %cst_11 : f32 to vector<512x1xf32>
      %c0_12 = arith.constant 0 : index
      %c0_13 = arith.constant 0 : index
      %22 = vector.load %arg11[%c0_12, %c0_13] : memref<512x1xf32, #tpu.memory_space<vmem>>, vector<512x1xf32>
      tpu.vector_store %arg11[%c0_12, %c0_13], %21 {strides = array<i32>} : memref<512x1xf32, #tpu.memory_space<vmem>>, vector<512x1xf32>,
      %cst_14 = arith.constant 0.000000e+00 : f32
      %23 = vector.broadcast %cst_14 : f32 to vector<512x32xf32>
      %c0_15 = arith.constant 0 : index
      %c0_16 = arith.constant 0 : index
      %24 = vector.load %arg12[%c0_15, %c0_16] : memref<512x32xf32, #tpu.memory_space<vmem>>, vector<512x32xf32>
      tpu.vector_store %arg12[%c0_15, %c0_16], %23 {strides = array<i32>} : memref<512x32xf32, #tpu.memory_space<vmem>>, vector<512x32xf32>,
    } else {
    }
    %7 = arith.cmpi slt, %3, %1 : i32
    %8 = arith.extui %7 : i1 to i32
    %c0_i32_1 = arith.constant 0 : i32
    %9 = arith.cmpi ne, %8, %c0_i32_1 : i32
    scf.if %9 {
      %c0 = arith.constant 0 : index
      %c0_3 = arith.constant 0 : index
      %13 = vector.load %arg9[%c0, %c0_3] : memref<512x32xf32, #tpu.memory_space<vmem>>, vector<512x32xf32>
      %c0_4 = arith.constant 0 : index
      %c0_5 = arith.constant 0 : index
      %c0_6 = arith.constant 0 : index
      %c0_7 = arith.constant 0 : index
      %14 = vector.load %arg6[%c0_4, %c0_5, %c0_6, %c0_7] : memref<1x1x256x32xf32, #tpu.memory_space<vmem>>, vector<1x1x256x32xf32>
      %15 = vector.shape_cast %14 : vector<1x1x256x32xf32> to vector<256x32xf32>
      %c0_8 = arith.constant 0 : index
      %c0_9 = arith.constant 0 : index
      %c0_10 = arith.constant 0 : index
      %c0_11 = arith.constant 0 : index
      %16 = vector.load %arg7[%c0_8, %c0_9, %c0_10, %c0_11] : memref<1x1x256x32xf32, #tpu.memory_space<vmem>>, vector<1x1x256x32xf32>
      %17 = vector.shape_cast %16 : vector<1x1x256x32xf32> to vector<256x32xf32>
      %cst = arith.constant dense<0.000000e+00> : vector<512x256xf32>
      %18 = tpu.matmul %13, %15, %cst {dimension_numbers = #tpu.dot_dimension_numbers<[1], [1], [0], [0], [0, 0, 1, 0], [], []>} : vector<512x32xf32>, vector<256x32xf32>, vector<512x256xf32> -> vector<512x256xf32>
      %c0_12 = arith.constant 0 : index
      %c0_13 = arith.constant 0 : index
      %19 = vector.load %arg10[%c0_12, %c0_13] : memref<512x1xf32, #tpu.memory_space<vmem>>, vector<512x1xf32>
      %cst_14 = arith.constant dense<0xFF800000> : vector<512xf32>
      %20 = vector.multi_reduction <maximumf>, %18, %cst_14 [1] : vector<512x256xf32> to vector<512xf32>
      %21 = vector.shape_cast %20 : vector<512xf32> to vector<512x1xf32>
      %22 = arith.maximumf %19, %21 : vector<512x1xf32>
      %23 = arith.subf %19, %22 : vector<512x1xf32>
      %24 = math.exp %23 : vector<512x1xf32>
      %25 = vector.broadcast %22 : vector<512x1xf32> to vector<512x256xf32>
      %26 = arith.subf %18, %25 : vector<512x256xf32>
      %27 = math.exp %26 : vector<512x256xf32>
      %c0_15 = arith.constant 0 : index
      %c0_16 = arith.constant 0 : index
      %28 = vector.load %arg11[%c0_15, %c0_16] : memref<512x1xf32, #tpu.memory_space<vmem>>, vector<512x1xf32>
      %29 = arith.mulf %24, %28 : vector<512x1xf32>
      %cst_17 = arith.constant dense<0.000000e+00> : vector<512xf32>
      %30 = vector.multi_reduction <add>, %27, %cst_17 [1] : vector<512x256xf32> to vector<512xf32>
      %31 = vector.shape_cast %30 : vector<512xf32> to vector<512x1xf32>
      %32 = arith.addf %29, %31 : vector<512x1xf32>
      %c0_18 = arith.constant 0 : index
      %c0_19 = arith.constant 0 : index
      %33 = vector.load %arg11[%c0_18, %c0_19] : memref<512x1xf32, #tpu.memory_space<vmem>>, vector<512x1xf32>
      tpu.vector_store %arg11[%c0_18, %c0_19], %32 {strides = array<i32>} : memref<512x1xf32, #tpu.memory_space<vmem>>, vector<512x1xf32>,
      %c0_20 = arith.constant 0 : index
      %c0_21 = arith.constant 0 : index
      %34 = vector.load %arg12[%c0_20, %c0_21] : memref<512x32xf32, #tpu.memory_space<vmem>>, vector<512x32xf32>
      %35 = vector.broadcast %24 : vector<512x1xf32> to vector<512x32xf32>
      %36 = arith.mulf %35, %34 : vector<512x32xf32>
      %cst_22 = arith.constant dense<0.000000e+00> : vector<512x32xf32>
      %37 = tpu.matmul %27, %17, %cst_22 {dimension_numbers = #tpu.dot_dimension_numbers<[1], [0], [0], [1], [0, 0, 1, 1], [], []>} : vector<512x256xf32>, vector<256x32xf32>, vector<512x32xf32> -> vector<512x32xf32>
      %38 = arith.addf %36, %37 : vector<512x32xf32>
      %c0_23 = arith.constant 0 : index
      %c0_24 = arith.constant 0 : index
      %39 = vector.load %arg12[%c0_23, %c0_24] : memref<512x32xf32, #tpu.memory_space<vmem>>, vector<512x32xf32>
      tpu.vector_store %arg12[%c0_23, %c0_24], %38 {strides = array<i32>} : memref<512x32xf32, #tpu.memory_space<vmem>>, vector<512x32xf32>,
      %c0_25 = arith.constant 0 : index
      %c0_26 = arith.constant 0 : index
      %40 = vector.load %arg10[%c0_25, %c0_26] : memref<512x1xf32, #tpu.memory_space<vmem>>, vector<512x1xf32>
      tpu.vector_store %arg10[%c0_25, %c0_26], %22 {strides = array<i32>} : memref<512x1xf32, #tpu.memory_space<vmem>>, vector<512x1xf32>,
    } else {
    }
    %10 = arith.cmpi eq, %3, %1 : i32
    %11 = arith.extui %10 : i1 to i32
    %c0_i32_2 = arith.constant 0 : i32
    %12 = arith.cmpi ne, %11, %c0_i32_2 : i32
    scf.if %12 {
      %c0 = arith.constant 0 : index
      %c0_3 = arith.constant 0 : index
      %13 = vector.load %arg9[%c0, %c0_3] : memref<512x32xf32, #tpu.memory_space<vmem>>, vector<512x32xf32>
      %c0_4 = arith.constant 0 : index
      %c0_5 = arith.constant 0 : index
      %c0_6 = arith.constant 0 : index
      %c0_7 = arith.constant 0 : index
      %14 = vector.load %arg6[%c0_4, %c0_5, %c0_6, %c0_7] : memref<1x1x256x32xf32, #tpu.memory_space<vmem>>, vector<1x1x256x32xf32>
      %15 = vector.shape_cast %14 : vector<1x1x256x32xf32> to vector<256x32xf32>
      %c0_8 = arith.constant 0 : index
      %c0_9 = arith.constant 0 : index
      %c0_10 = arith.constant 0 : index
      %c0_11 = arith.constant 0 : index
      %16 = vector.load %arg7[%c0_8, %c0_9, %c0_10, %c0_11] : memref<1x1x256x32xf32, #tpu.memory_space<vmem>>, vector<1x1x256x32xf32>
      %17 = vector.shape_cast %16 : vector<1x1x256x32xf32> to vector<256x32xf32>
      %cst = arith.constant dense<0.000000e+00> : vector<512x256xf32>
      %18 = tpu.matmul %13, %15, %cst {dimension_numbers = #tpu.dot_dimension_numbers<[1], [1], [0], [0], [0, 0, 1, 0], [], []>} : vector<512x32xf32>, vector<256x32xf32>, vector<512x256xf32> -> vector<512x256xf32>
      %19 = tpu.iota {dimensions = array<i32: 0>} : vector<256x256xi32>
      %20 = tpu.iota {dimensions = array<i32: 1>} : vector<256x256xi32>
      %21 = arith.cmpi sle, %20, %19 : vector<256x256xi32>
      %22 = vector.shape_cast %21 : vector<256x256xi1> to vector<1x256x256xi1>
      %23 = vector.shape_cast %18 : vector<512x256xf32> to vector<2x256x256xf32>
      %cst_12 = arith.constant 0xFF800000 : f32
      %24 = vector.shape_cast %22 : vector<1x256x256xi1> to vector<1x256x256xi1>
      %25 = vector.broadcast %24 : vector<1x256x256xi1> to vector<2x256x256xi1>
      %26 = vector.broadcast %cst_12 : f32 to vector<2x256x256xf32>
      %27 = arith.select %25, %23, %26 : vector<2x256x256xi1>, vector<2x256x256xf32>
      %28 = vector.shape_cast %27 : vector<2x256x256xf32> to vector<512x256xf32>
      %c0_13 = arith.constant 0 : index
      %c0_14 = arith.constant 0 : index
      %29 = vector.load %arg10[%c0_13, %c0_14] : memref<512x1xf32, #tpu.memory_space<vmem>>, vector<512x1xf32>
      %cst_15 = arith.constant dense<0xFF800000> : vector<512xf32>
      %30 = vector.multi_reduction <maximumf>, %28, %cst_15 [1] : vector<512x256xf32> to vector<512xf32>
      %31 = vector.shape_cast %30 : vector<512xf32> to vector<512x1xf32>
      %32 = arith.maximumf %29, %31 : vector<512x1xf32>
      %33 = arith.subf %29, %32 : vector<512x1xf32>
      %34 = math.exp %33 : vector<512x1xf32>
      %35 = vector.broadcast %32 : vector<512x1xf32> to vector<512x256xf32>
      %36 = arith.subf %28, %35 : vector<512x256xf32>
      %37 = math.exp %36 : vector<512x256xf32>
      %c0_16 = arith.constant 0 : index
      %c0_17 = arith.constant 0 : index
      %38 = vector.load %arg11[%c0_16, %c0_17] : memref<512x1xf32, #tpu.memory_space<vmem>>, vector<512x1xf32>
      %39 = arith.mulf %34, %38 : vector<512x1xf32>
      %cst_18 = arith.constant dense<0.000000e+00> : vector<512xf32>
      %40 = vector.multi_reduction <add>, %37, %cst_18 [1] : vector<512x256xf32> to vector<512xf32>
      %41 = vector.shape_cast %40 : vector<512xf32> to vector<512x1xf32>
      %42 = arith.addf %39, %41 : vector<512x1xf32>
      %c0_19 = arith.constant 0 : index
      %c0_20 = arith.constant 0 : index
      %43 = vector.load %arg11[%c0_19, %c0_20] : memref<512x1xf32, #tpu.memory_space<vmem>>, vector<512x1xf32>
      tpu.vector_store %arg11[%c0_19, %c0_20], %42 {strides = array<i32>} : memref<512x1xf32, #tpu.memory_space<vmem>>, vector<512x1xf32>,
      %c0_21 = arith.constant 0 : index
      %c0_22 = arith.constant 0 : index
      %44 = vector.load %arg12[%c0_21, %c0_22] : memref<512x32xf32, #tpu.memory_space<vmem>>, vector<512x32xf32>
      %45 = vector.broadcast %34 : vector<512x1xf32> to vector<512x32xf32>
      %46 = arith.mulf %45, %44 : vector<512x32xf32>
      %cst_23 = arith.constant dense<0.000000e+00> : vector<512x32xf32>
      %47 = tpu.matmul %37, %17, %cst_23 {dimension_numbers = #tpu.dot_dimension_numbers<[1], [0], [0], [1], [0, 0, 1, 1], [], []>} : vector<512x256xf32>, vector<256x32xf32>, vector<512x32xf32> -> vector<512x32xf32>
      %48 = arith.addf %46, %47 : vector<512x32xf32>
      %c0_24 = arith.constant 0 : index
      %c0_25 = arith.constant 0 : index
      %49 = vector.load %arg12[%c0_24, %c0_25] : memref<512x32xf32, #tpu.memory_space<vmem>>, vector<512x32xf32>
      tpu.vector_store %arg12[%c0_24, %c0_25], %48 {strides = array<i32>} : memref<512x32xf32, #tpu.memory_space<vmem>>, vector<512x32xf32>,
      %c0_26 = arith.constant 0 : index
      %c0_27 = arith.constant 0 : index
      %50 = vector.load %arg10[%c0_26, %c0_27] : memref<512x1xf32, #tpu.memory_space<vmem>>, vector<512x1xf32>
      tpu.vector_store %arg10[%c0_26, %c0_27], %32 {strides = array<i32>} : memref<512x1xf32, #tpu.memory_space<vmem>>, vector<512x1xf32>,
      %c0_28 = arith.constant 0 : index
      %c0_29 = arith.constant 0 : index
      %51 = vector.load %arg11[%c0_28, %c0_29] : memref<512x1xf32, #tpu.memory_space<vmem>>, vector<512x1xf32>
      %52 = tpu.reciprocal %51 : vector<512x1xf32> -> vector<512x1xf32>
      %c0_30 = arith.constant 0 : index
      %c0_31 = arith.constant 0 : index
      %53 = vector.load %arg12[%c0_30, %c0_31] : memref<512x32xf32, #tpu.memory_space<vmem>>, vector<512x32xf32>
      %54 = vector.broadcast %52 : vector<512x1xf32> to vector<512x32xf32>
      %55 = arith.mulf %53, %54 : vector<512x32xf32>
      %56 = vector.extract_strided_slice %55 {offsets = [0, 0], sizes = [256, 32], strides = [1, 1]} : vector<512x32xf32> to vector<256x32xf32>
      %c0_32 = arith.constant 0 : index
      %c0_33 = arith.constant 0 : index
      %c0_34 = arith.constant 0 : index
      %c0_35 = arith.constant 0 : index
      %57 = vector.load %arg8[%c0_32, %c0_33, %c0_34, %c0_35] : memref<1x1x256x64xf32, #tpu.memory_space<vmem>>, vector<1x1x256x32xf32>
      %58 = vector.shape_cast %57 : vector<1x1x256x32xf32> to vector<256x32xf32>
      %59 = vector.shape_cast %56 : vector<256x32xf32> to vector<1x1x256x32xf32>
      tpu.vector_store %arg8[%c0_32, %c0_33, %c0_34, %c0_35], %59 {strides = array<i32>} : memref<1x1x256x64xf32, #tpu.memory_space<vmem>>, vector<1x1x256x32xf32>,
      %60 = vector.extract_strided_slice %55 {offsets = [256, 0], sizes = [256, 32], strides = [1, 1]} : vector<512x32xf32> to vector<256x32xf32>
      %c0_36 = arith.constant 0 : index
      %c0_37 = arith.constant 0 : index
      %c0_38 = arith.constant 0 : index
      %c32 = arith.constant 32 : index
      %61 = vector.load %arg8[%c0_36, %c0_37, %c0_38, %c32] : memref<1x1x256x64xf32, #tpu.memory_space<vmem>>, vector<1x1x256x32xf32>
      %62 = vector.shape_cast %61 : vector<1x1x256x32xf32> to vector<256x32xf32>
      %63 = vector.shape_cast %60 : vector<256x32xf32> to vector<1x1x256x32xf32>
      tpu.vector_store %arg8[%c0_36, %c0_37, %c0_38, %c32], %63 {strides = array<i32>} : memref<1x1x256x64xf32, #tpu.memory_space<vmem>>, vector<1x1x256x32xf32>,
    } else {
    }
    return
  }
  func.func @transform_0(%arg0: i32, %arg1: i32, %arg2: i32, %arg3: memref<1xi32, #tpu.memory_space<smem>>, %arg4: memref<1xi32, #tpu.memory_space<smem>>) -> (i32, i32, i32, i32) {
    %0 = arith.index_cast %arg2 : i32 to index
    %1 = memref.load %arg3[%0] : memref<1xi32, #tpu.memory_space<smem>>
    %c0_i32 = arith.constant 0 : i32
    %c0_i32_0 = arith.constant 0 : i32
    return %arg0, %arg1, %1, %c0_i32 : i32, i32, i32, i32
  }
  func.func @transform_1(%arg0: i32, %arg1: i32, %arg2: i32, %arg3: memref<1xi32, #tpu.memory_space<smem>>, %arg4: memref<1xi32, #tpu.memory_space<smem>>) -> (i32, i32, i32, i32) {
    %0 = arith.index_cast %arg2 : i32 to index
    %1 = memref.load %arg4[%0] : memref<1xi32, #tpu.memory_space<smem>>
    %c0_i32 = arith.constant 0 : i32
    %c0_i32_0 = arith.constant 0 : i32
    return %arg0, %arg1, %1, %c0_i32 : i32, i32, i32, i32
  }
  func.func @transform_2(%arg0: i32, %arg1: i32, %arg2: i32, %arg3: memref<1xi32, #tpu.memory_space<smem>>, %arg4: memref<1xi32, #tpu.memory_space<smem>>) -> (i32, i32, i32, i32) {
    %0 = arith.index_cast %arg2 : i32 to index
    %1 = memref.load %arg4[%0] : memref<1xi32, #tpu.memory_space<smem>>
    %c0_i32 = arith.constant 0 : i32
    %c0_i32_0 = arith.constant 0 : i32
    return %arg0, %arg1, %1, %c0_i32 : i32, i32, i32, i32
  }
  func.func @transform_3(%arg0: i32, %arg1: i32, %arg2: i32, %arg3: memref<1xi32, #tpu.memory_space<smem>>, %arg4: memref<1xi32, #tpu.memory_space<smem>>) -> (i32, i32, i32, i32) {
    %0 = arith.index_cast %arg2 : i32 to index
    %1 = memref.load %arg3[%0] : memref<1xi32, #tpu.memory_space<smem>>
    %c0_i32 = arith.constant 0 : i32
    %c0_i32_0 = arith.constant 0 : i32
    return %arg0, %arg1, %1, %c0_i32 : i32, i32, i32, i32
  }
}

</mosaic_0001>

<llo_original>
// kernel: tpu_custom_call.1
$region0: #{tpu_custom_call.1}
  #allocation0 [shape = 'u32[]', space=smem, size = 0x4, offset = 0x4, fixed_abs, tag = 'smem constant byte address 0x4 - core index']
  #allocation1 [shape = 'u32[144,128]{1,0:T(1,128)}', space=vmem, size = 0x12000, scoped, tag = 'internal scratch']
  #allocation2 [shape = 'f32[512,32]{1,0:T(8,128)}', space=vmem, size = 0x40000, scoped, tag = 'scratch operand']
  #allocation3 [shape = 'f32[512,1]{1,0:T(8,128)}', space=vmem, size = 0x40000, scoped, tag = 'scratch operand']
  #allocation4 [shape = 'f32[512,1]{1,0:T(8,128)}', space=vmem, size = 0x40000, scoped, tag = 'scratch operand']
  #allocation5 [shape = 'f32[512,32]{1,0:T(8,128)}', space=vmem, size = 0x40000, scoped, tag = 'scratch operand']
  #allocation6 [shape = 's32[1]{0}', space=sflag, size = 0x4, scoped, tag = 'scoped memory for tpu_custom_call.1']
  #allocation7 [shape = 's32[1]{0:T(128)S(6)}', space=smem, size = 0x200, scoped, tag = 'prefetched SMEM operand 0']
  #allocation8 [shape = 's32[1]{0:T(128)S(6)}', space=smem, size = 0x200, scoped, tag = 'prefetched SMEM operand 1']
  %s0 = inlined_call_operand.<no memory space> [shape: s32[1], index: 0, kind: input, shape index: {}]
  %s1 = inlined_call_operand.<no memory space> [shape: s32[1], index: 1, kind: input, shape index: {}]
  %s2 = inlined_call_operand.vmem [shape: f32[2,4,256,32], index: 2, kind: input, shape index: {}]
  %s3 = inlined_call_operand.vmem [shape: f32[2,2,256,32], index: 3, kind: input, shape index: {}]
  %s4 = inlined_call_operand.vmem [shape: f32[2,2,256,32], index: 4, kind: input, shape index: {}]
  %s5 = inlined_call_operand.vmem [shape: f32[2,2,256,64], index: 5, kind: output, shape index: {}]
  %s6 = sld [smem:[#allocation0]]
  $region57: #{tpu_custom_call.1} parent=0
    _
  %s8 = ssub.s32 1, %s6
  %s9 = scalar_select 0, %s8, %s6
  %10 = sst [smem:[#allocation7]] %s0
  %11 = sst [smem:[#allocation8]] %s1
  loop: start=0, step=1, limit=6
  $region2: #{tpu_custom_call.1} parent=0 // loop_pre_header
    _
  $region3: #{tpu_custom_call.1} parent=0 // loop_header
    %s13 = sphi 0, %s17
    %p14 = scmp.ge.s32.totalorder %s13, 6
    %s20 = sphi 0, %s39
    %s21 = sphi 0, %s35
    %s22 = sphi 0, %s31
    %s23 = sphi 0, %s20
    %s24 = sphi 0, %s21
    %s25 = sphi 0, %s22
    %s26 = sphi 0, %s23
    %s27 = sphi 0, %s24
    %s28 = sphi 0, %s25
    %s48 = sphi 0, %s50
    %s51 = sphi 0, %s48
    %s52 = sphi 0, %s51
    %s68 = sphi 0, %s52
    %s80 = sphi 0, %s82
    %s83 = sphi 0, %s80
    %s84 = sphi 0, %s83
    %s100 = sphi 0, %s84
    %s112 = sphi 0, %s114
    %s115 = sphi 0, %s112
    %s116 = sphi 0, %s115
    %s132 = sphi 0, %s116
    %s144 = sphi 0, %s146
    %s147 = sphi 0, %s144
    %s148 = sphi 0, %s147
    %s164 = sphi 0, %s148
  $region4: #{tpu_custom_call.1} parent=0 // loop_header_branch
    %16 = sbr.rel (%p14) target = $region8
  $region5: #{tpu_custom_call.1} parent=0 // loop_body
    %s18 = ssub.s32 %s13, 1
    %s19 = ssub.s32 %s13, 2
    %s29 = sadd.s32 1, %s22
    %p30 = scmp.ge.s32.totalorder %s29, 1
    %s31 = scalar_select %p30, 0, %s29
    %s32 = sadd.s32 1, %s21
    %s33 = scalar_select %p30, %s32, %s21
    %p34 = scmp.ge.s32.totalorder %s33, 2
    %s35 = scalar_select %p34, 0, %s33
    %s36 = sadd.s32 1, %s20
    %s37 = scalar_select %p34, %s36, %s20
    %p38 = scmp.ge.s32.totalorder %s37, 2
    %s39 = scalar_select %p38, 0, %s37
    %s40 = sld [smem:[#allocation7 + %s22]]
    %s41 = sld [smem:[#allocation7 + %s31]]
    %s42 = ssub.s32 %s20, %s39
    %s43 = ssub.s32 %s21, %s35
    %s44 = sor.u32 %s42, %s43
    %s45 = ssub.s32 %s40, %s41
    %s46 = sor.u32 %s44, %s45
    %p47 = scmp.eq.s32.totalorder %s46, 0
    %s49 = sadd.s32 %s48, 1
    %s50 = scalar_select %p47, %s48, %s49
    %p53 = pneg %p47
    %p54 = scmp.eq.s32.totalorder %s13, 3
    %p55 = por %p53, %p54
    %p56 = scmp.ne.s32.totalorder %s48, %s51
    %p57 = scmp.eq.s32.totalorder %s13, 0
    %p58 = por %p56, %p57
    %p59 = scmp.ne.s32.totalorder %s48, %s51
    %p60 = scmp.eq.s32.totalorder %s18, 3
    %p61 = por %p59, %p60
    %p62 = scmp.ne.s32.totalorder %s51, %s52
    %p63 = scmp.eq.s32.totalorder %s18, 0
    %p64 = por %p62, %p63
    %p65 = scmp.ne.s32.totalorder %s51, %s52
    %p66 = scmp.eq.s32.totalorder %s19, 3
    %p67 = por %p65, %p66
    %p69 = scmp.ne.s32.totalorder %s52, %s68
    %p70 = scmp.eq.s32.totalorder %s19, 0
    %p71 = por %p69, %p70
    %s72 = sld [smem:[#allocation8 + %s22]]
    %s73 = sld [smem:[#allocation8 + %s31]]
    %s74 = ssub.s32 %s20, %s39
    %s75 = ssub.s32 %s21, %s35
    %s76 = sor.u32 %s74, %s75
    %s77 = ssub.s32 %s72, %s73
    %s78 = sor.u32 %s76, %s77
    %p79 = scmp.eq.s32.totalorder %s78, 0
    %s81 = sadd.s32 %s80, 1
    %s82 = scalar_select %p79, %s80, %s81
    %p85 = pneg %p79
    %p86 = scmp.eq.s32.totalorder %s13, 3
    %p87 = por %p85, %p86
    %p88 = scmp.ne.s32.totalorder %s80, %s83
    %p89 = scmp.eq.s32.totalorder %s13, 0
    %p90 = por %p88, %p89
    %p91 = scmp.ne.s32.totalorder %s80, %s83
    %p92 = scmp.eq.s32.totalorder %s18, 3
    %p93 = por %p91, %p92
    %p94 = scmp.ne.s32.totalorder %s83, %s84
    %p95 = scmp.eq.s32.totalorder %s18, 0
    %p96 = por %p94, %p95
    %p97 = scmp.ne.s32.totalorder %s83, %s84
    %p98 = scmp.eq.s32.totalorder %s19, 3
    %p99 = por %p97, %p98
    %p101 = scmp.ne.s32.totalorder %s84, %s100
    %p102 = scmp.eq.s32.totalorder %s19, 0
    %p103 = por %p101, %p102
    %s104 = sld [smem:[#allocation8 + %s22]]
    %s105 = sld [smem:[#allocation8 + %s31]]
    %s106 = ssub.s32 %s20, %s39
    %s107 = ssub.s32 %s21, %s35
    %s108 = sor.u32 %s106, %s107
    %s109 = ssub.s32 %s104, %s105
    %s110 = sor.u32 %s108, %s109
    %p111 = scmp.eq.s32.totalorder %s110, 0
    %s113 = sadd.s32 %s112, 1
    %s114 = scalar_select %p111, %s112, %s113
    %p117 = pneg %p111
    %p118 = scmp.eq.s32.totalorder %s13, 3
    %p119 = por %p117, %p118
    %p120 = scmp.ne.s32.totalorder %s112, %s115
    %p121 = scmp.eq.s32.totalorder %s13, 0
    %p122 = por %p120, %p121
    %p123 = scmp.ne.s32.totalorder %s112, %s115
    %p124 = scmp.eq.s32.totalorder %s18, 3
    %p125 = por %p123, %p124
    %p126 = scmp.ne.s32.totalorder %s115, %s116
    %p127 = scmp.eq.s32.totalorder %s18, 0
    %p128 = por %p126, %p127
    %p129 = scmp.ne.s32.totalorder %s115, %s116
    %p130 = scmp.eq.s32.totalorder %s19, 3
    %p131 = por %p129, %p130
    %p133 = scmp.ne.s32.totalorder %s116, %s132
    %p134 = scmp.eq.s32.totalorder %s19, 0
    %p135 = por %p133, %p134
    %s136 = sld [smem:[#allocation7 + %s22]]
    %s137 = sld [smem:[#allocation7 + %s31]]
    %s138 = ssub.s32 %s20, %s39
    %s139 = ssub.s32 %s21, %s35
    %s140 = sor.u32 %s138, %s139
    %s141 = ssub.s32 %s136, %s137
    %s142 = sor.u32 %s140, %s141
    %p143 = scmp.eq.s32.totalorder %s142, 0
    %s145 = sadd.s32 %s144, 1
    %s146 = scalar_select %p143, %s144, %s145
    %p149 = pneg %p143
    %p150 = scmp.eq.s32.totalorder %s13, 3
    %p151 = por %p149, %p150
    %p152 = scmp.ne.s32.totalorder %s144, %s147
    %p153 = scmp.eq.s32.totalorder %s13, 0
    %p154 = por %p152, %p153
    %p155 = scmp.ne.s32.totalorder %s144, %s147
    %p156 = scmp.eq.s32.totalorder %s18, 3
    %p157 = por %p155, %p156
    %p158 = scmp.ne.s32.totalorder %s147, %s148
    %p159 = scmp.eq.s32.totalorder %s18, 0
    %p160 = por %p158, %p159
    %p161 = scmp.ne.s32.totalorder %s147, %s148
    %p162 = scmp.eq.s32.totalorder %s19, 3
    %p163 = por %p161, %p162
    %p165 = scmp.ne.s32.totalorder %s148, %s164
    %p166 = scmp.eq.s32.totalorder %s19, 0
    %p167 = por %p165, %p166
    %p168 = scmp.le.s32.totalorder 1, %s13
    %p169 = scmp.lt.s32.totalorder %s13, 5
    %p170 = pnand %p168, %p169
    %p171 = pneg %p170
    // Predicated region
    $region9: #{tpu_custom_call.1} parent=5 // pred_check
      _
    $region10: #{tpu_custom_call.1} parent=5 // pred_check_branch
      %173 = sbr.rel (%p170) target = $region12
    $region11: #{tpu_custom_call.1} parent=5 // pred_region
      %s174 = ssub.s32 %s13, 1
    $region12: #{tpu_custom_call.1} parent=5 // pred_fallthru
      _
    %p175 = scmp.lt.s32.totalorder %s13, 4
    // Predicated region
    $region13: #{tpu_custom_call.1} parent=5 // pred_check
      %p176 = pneg %p175
    $region14: #{tpu_custom_call.1} parent=5 // pred_check_branch
      %178 = sbr.rel (%p176) target = $region16
    $region15: #{tpu_custom_call.1} parent=5 // pred_region
      // Predicated region
      $region17: #{tpu_custom_call.1} parent=15 // pred_check
        %p179 = pneg %p58
      $region18: #{tpu_custom_call.1} parent=15 // pred_check_branch
        %181 = sbr.rel (%p179) target = $region20
      $region19: #{tpu_custom_call.1} parent=15 // pred_region
        %s182 = sld [smem:[#allocation7 + %s22]]
        %s183 = smul.u32 2, %s21
        %s184 = smul.u32 32, %s182
        %p185 = scmp.lt.s32.totalorder %s20, 1
        %s186 = scalar_select %p185, %s20, 1
        %p187 = scmp.lt.s32.totalorder %s183, 3
        %s188 = scalar_select %p187, %s183, 3
        %p189 = scmp.lt.s32.totalorder %s184, 31
        %s190 = scalar_select %p189, %s184, 31
        %s191 = smul.addr %s188, 32
        %s192 = sadd.s32 %s190, %s191
        %s193 = smul.addr %s186, 128
        %s194 = sadd.s32 %s192, %s193
        %s195 = smul.addr %s194, 8
        %s196 = scalar_lea.vmem %s2, %s195
        %s197 = sld [smem:[#allocation7 + %s22]]
        %s198 = smul.u32 2, %s21
        %s199 = smul.u32 32, %s197
      $region20: #{tpu_custom_call.1} parent=15 // pred_fallthru
        _
      // Predicated region
      $region21: #{tpu_custom_call.1} parent=15 // pred_check
        %p200 = pneg %p90
      $region22: #{tpu_custom_call.1} parent=15 // pred_check_branch
        %202 = sbr.rel (%p200) target = $region24
      $region23: #{tpu_custom_call.1} parent=15 // pred_region
        %s203 = sld [smem:[#allocation8 + %s22]]
        %s204 = smul.u32 32, %s203
        %p205 = scmp.lt.s32.totalorder %s20, 1
        %s206 = scalar_select %p205, %s20, 1
        %p207 = scmp.lt.s32.totalorder %s21, 1
        %s208 = scalar_select %p207, %s21, 1
        %p209 = scmp.lt.s32.totalorder %s204, 31
        %s210 = scalar_select %p209, %s204, 31
        %s211 = smul.addr %s208, 32
        %s212 = sadd.s32 %s210, %s211
        %s213 = smul.addr %s206, 64
        %s214 = sadd.s32 %s212, %s213
        %s215 = smul.addr %s214, 8
        %s216 = scalar_lea.vmem %s3, %s215
        %s217 = sld [smem:[#allocation8 + %s22]]
        %s218 = smul.u32 32, %s217
      $region24: #{tpu_custom_call.1} parent=15 // pred_fallthru
        _
      // Predicated region
      $region25: #{tpu_custom_call.1} parent=15 // pred_check
        %p219 = pneg %p122
      $region26: #{tpu_custom_call.1} parent=15 // pred_check_branch
        %221 = sbr.rel (%p219) target = $region28
      $region27: #{tpu_custom_call.1} parent=15 // pred_region
        %s222 = sld [smem:[#allocation8 + %s22]]
        %s223 = smul.u32 32, %s222
        %p224 = scmp.lt.s32.totalorder %s20, 1
        %s225 = scalar_select %p224, %s20, 1
        %p226 = scmp.lt.s32.totalorder %s21, 1
        %s227 = scalar_select %p226, %s21, 1
        %p228 = scmp.lt.s32.totalorder %s223, 31
        %s229 = scalar_select %p228, %s223, 31
        %s230 = smul.addr %s227, 32
        %s231 = sadd.s32 %s229, %s230
        %s232 = smul.addr %s225, 64
        %s233 = sadd.s32 %s231, %s232
        %s234 = smul.addr %s233, 8
        %s235 = scalar_lea.vmem %s4, %s234
        %s236 = sld [smem:[#allocation8 + %s22]]
        %s237 = smul.u32 32, %s236
      $region28: #{tpu_custom_call.1} parent=15 // pred_fallthru
        _
    $region16: #{tpu_custom_call.1} parent=5 // pred_fallthru
      _
    %p238 = scmp.le.s32.totalorder 1, %s13
    %p239 = scmp.lt.s32.totalorder %s13, 5
    %p240 = pnand %p238, %p239
    %p241 = pneg %p240
    // Predicated region
    $region29: #{tpu_custom_call.1} parent=5 // pred_check
      _
    $region30: #{tpu_custom_call.1} parent=5 // pred_check_branch
      %243 = sbr.rel (%p240) target = $region32
    $region31: #{tpu_custom_call.1} parent=5 // pred_region
      %s244 = ssub.s32 %s13, 1
      %s245 = sld [smem:[#allocation7 + %s25]]
      %s246 = smul.u32 2, %s24
      %s247 = smul.u32 32, %s245
      %p248 = scmp.lt.s32.totalorder %s23, 1
      %s249 = scalar_select %p248, %s23, 1
      %p250 = scmp.lt.s32.totalorder %s246, 3
      %s251 = scalar_select %p250, %s246, 3
      %p252 = scmp.lt.s32.totalorder %s247, 31
      %s253 = scalar_select %p252, %s247, 31
      %s254 = smul.addr %s251, 32
      %s255 = sadd.s32 %s253, %s254
      %s256 = smul.addr %s249, 128
      %s257 = sadd.s32 %s255, %s256
      %s258 = smul.addr %s257, 8
      %s259 = scalar_lea.vmem %s2, %s258
      %p260 = pneg %p64
      %p261 = pneg %p61
      %s262 = sld [smem:[#allocation8 + %s25]]
      %s263 = smul.u32 32, %s262
      %p264 = scmp.lt.s32.totalorder %s23, 1
      %s265 = scalar_select %p264, %s23, 1
      %p266 = scmp.lt.s32.totalorder %s24, 1
      %s267 = scalar_select %p266, %s24, 1
      %p268 = scmp.lt.s32.totalorder %s263, 31
      %s269 = scalar_select %p268, %s263, 31
      %s270 = smul.addr %s267, 32
      %s271 = sadd.s32 %s269, %s270
      %s272 = smul.addr %s265, 64
      %s273 = sadd.s32 %s271, %s272
      %s274 = smul.addr %s273, 8
      %s275 = scalar_lea.vmem %s3, %s274
      %p276 = pneg %p96
      %p277 = pneg %p93
      %s278 = sld [smem:[#allocation8 + %s25]]
      %s279 = smul.u32 32, %s278
      %p280 = scmp.lt.s32.totalorder %s23, 1
      %s281 = scalar_select %p280, %s23, 1
      %p282 = scmp.lt.s32.totalorder %s24, 1
      %s283 = scalar_select %p282, %s24, 1
      %p284 = scmp.lt.s32.totalorder %s279, 31
      %s285 = scalar_select %p284, %s279, 31
      %s286 = smul.addr %s283, 32
      %s287 = sadd.s32 %s285, %s286
      %s288 = smul.addr %s281, 64
      %s289 = sadd.s32 %s287, %s288
      %s290 = smul.addr %s289, 8
      %s291 = scalar_lea.vmem %s4, %s290
      %p292 = pneg %p128
      %p293 = pneg %p125
      %p294 = pneg %p160
      %p295 = pneg %p157
      %s296 = sld [smem:[#allocation7 + %s25]]
      %s297 = smul.u32 32, %s296
      %p298 = scmp.lt.s32.totalorder %s23, 1
      %s299 = scalar_select %p298, %s23, 1
      %p300 = scmp.lt.s32.totalorder %s24, 1
      %s301 = scalar_select %p300, %s24, 1
      %p302 = scmp.lt.s32.totalorder %s297, 31
      %s303 = scalar_select %p302, %s297, 31
      %s304 = smul.addr %s301, 32
      %s305 = sadd.s32 %s303, %s304
      %s306 = smul.addr %s299, 64
      %s307 = sadd.s32 %s305, %s306
      %s308 = smul.addr %s307, 8
      %s309 = scalar_lea.vmem %s5, %s308
      %s310 = sld [smem:[#allocation7 + %s25]]
      %s311 = smul.u32 2, %s24
      %s312 = smul.u32 32, %s310
      %p313 = scmp.lt.s32.totalorder %s23, 1
      %s314 = scalar_select %p313, %s23, 1
      %p315 = scmp.lt.s32.totalorder %s311, 3
      %s316 = scalar_select %p315, %s311, 3
      %p317 = scmp.lt.s32.totalorder %s312, 31
      %s318 = scalar_select %p317, %s312, 31
      %s319 = smul.addr %s316, 32
      %s320 = sadd.s32 %s318, %s319
      %s321 = smul.addr %s314, 128
      %s322 = sadd.s32 %s320, %s321
      %s323 = smul.addr %s322, 8
      %s324 = scalar_lea.vmem %s2, %s323
      %s325 = sld [smem:[#allocation7 + %s25]]
      %s326 = smul.u32 2, %s24
      %s327 = smul.u32 32, %s325
      %s328 = sld [smem:[#allocation8 + %s25]]
      %s329 = smul.u32 32, %s328
      %p330 = scmp.lt.s32.totalorder %s23, 1
      %s331 = scalar_select %p330, %s23, 1
      %p332 = scmp.lt.s32.totalorder %s24, 1
      %s333 = scalar_select %p332, %s24, 1
      %p334 = scmp.lt.s32.totalorder %s329, 31
      %s335 = scalar_select %p334, %s329, 31
      %s336 = smul.addr %s333, 32
      %s337 = sadd.s32 %s335, %s336
      %s338 = smul.addr %s331, 64
      %s339 = sadd.s32 %s337, %s338
      %s340 = smul.addr %s339, 8
      %s341 = scalar_lea.vmem %s3, %s340
      %s342 = sld [smem:[#allocation8 + %s25]]
      %s343 = smul.u32 32, %s342
      %s344 = sld [smem:[#allocation8 + %s25]]
      %s345 = smul.u32 32, %s344
      %p346 = scmp.lt.s32.totalorder %s23, 1
      %s347 = scalar_select %p346, %s23, 1
      %p348 = scmp.lt.s32.totalorder %s24, 1
      %s349 = scalar_select %p348, %s24, 1
      %p350 = scmp.lt.s32.totalorder %s345, 31
      %s351 = scalar_select %p350, %s345, 31
      %s352 = smul.addr %s349, 32
      %s353 = sadd.s32 %s351, %s352
      %s354 = smul.addr %s347, 64
      %s355 = sadd.s32 %s353, %s354
      %s356 = smul.addr %s355, 8
      %s357 = scalar_lea.vmem %s4, %s356
      %s358 = sld [smem:[#allocation8 + %s25]]
      %s359 = smul.u32 32, %s358
      %s360 = sld [smem:[#allocation7 + %s25]]
      %s361 = smul.u32 32, %s360
      %p362 = scmp.lt.s32.totalorder %s23, 1
      %s363 = scalar_select %p362, %s23, 1
      %p364 = scmp.lt.s32.totalorder %s24, 1
      %s365 = scalar_select %p364, %s24, 1
      %p366 = scmp.lt.s32.totalorder %s361, 31
      %s367 = scalar_select %p366, %s361, 31
      %s368 = smul.addr %s365, 32
      %s369 = sadd.s32 %s367, %s368
      %s370 = smul.addr %s363, 64
      %s371 = sadd.s32 %s369, %s370
      %s372 = smul.addr %s371, 8
      %s373 = scalar_lea.vmem %s5, %s372
      %s374 = sld [smem:[#allocation7 + %s25]]
      %s375 = smul.u32 32, %s374
      %s376 = sld [smem:[#allocation7 + %s25]]
      %s377 = sld [smem:[#allocation8 + %s25]]
      %p378 = scmp.eq.s32.totalorder %s377, 0
      // Predicated region
      $region33: #{tpu_custom_call.1} parent=31 // pred_check
        %p379 = pneg %p378
      $region34: #{tpu_custom_call.1} parent=31 // pred_check_branch
        %381 = sbr.rel (%p379) target = $region36
      $region35: #{tpu_custom_call.1} parent=31 // pred_region
        %v382 = vld [vmem:[%s324] sm:$0xff]
        %v383 = vld [vmem:[%s324 + $0x8] sm:$0xff]
        %v384 = vld [vmem:[%s324 + $0x10] sm:$0xff]
        %v385 = vld [vmem:[%s324 + $0x18] sm:$0xff]
        %v386 = vld [vmem:[%s324 + $0x20] sm:$0xff]
        %v387 = vld [vmem:[%s324 + $0x28] sm:$0xff]
        %v388 = vld [vmem:[%s324 + $0x30] sm:$0xff]
        %v389 = vld [vmem:[%s324 + $0x38] sm:$0xff]
        %v390 = vld [vmem:[%s324 + $0x40] sm:$0xff]
        %v391 = vld [vmem:[%s324 + $0x48] sm:$0xff]
        %v392 = vld [vmem:[%s324 + $0x50] sm:$0xff]
        %v393 = vld [vmem:[%s324 + $0x58] sm:$0xff]
        %v394 = vld [vmem:[%s324 + $0x60] sm:$0xff]
        %v395 = vld [vmem:[%s324 + $0x68] sm:$0xff]
        %v396 = vld [vmem:[%s324 + $0x70] sm:$0xff]
        %v397 = vld [vmem:[%s324 + $0x78] sm:$0xff]
        %v398 = vld [vmem:[%s324 + $0x80] sm:$0xff]
        %v399 = vld [vmem:[%s324 + $0x88] sm:$0xff]
        %v400 = vld [vmem:[%s324 + $0x90] sm:$0xff]
        %v401 = vld [vmem:[%s324 + $0x98] sm:$0xff]
        %v402 = vld [vmem:[%s324 + $0xa0] sm:$0xff]
        %v403 = vld [vmem:[%s324 + $0xa8] sm:$0xff]
        %v404 = vld [vmem:[%s324 + $0xb0] sm:$0xff]
        %v405 = vld [vmem:[%s324 + $0xb8] sm:$0xff]
        %v406 = vld [vmem:[%s324 + $0xc0] sm:$0xff]
        %v407 = vld [vmem:[%s324 + $0xc8] sm:$0xff]
        %v408 = vld [vmem:[%s324 + $0xd0] sm:$0xff]
        %v409 = vld [vmem:[%s324 + $0xd8] sm:$0xff]
        %v410 = vld [vmem:[%s324 + $0xe0] sm:$0xff]
        %v411 = vld [vmem:[%s324 + $0xe8] sm:$0xff]
        %v412 = vld [vmem:[%s324 + $0xf0] sm:$0xff]
        %v413 = vld [vmem:[%s324 + $0xf8] sm:$0xff]
        %v414 = vld [vmem:[%s324 + $0x100] sm:$0xff]
        %v415 = vld [vmem:[%s324 + $0x108] sm:$0xff]
        %v416 = vld [vmem:[%s324 + $0x110] sm:$0xff]
        %v417 = vld [vmem:[%s324 + $0x118] sm:$0xff]
        %v418 = vld [vmem:[%s324 + $0x120] sm:$0xff]
        %v419 = vld [vmem:[%s324 + $0x128] sm:$0xff]
        %v420 = vld [vmem:[%s324 + $0x130] sm:$0xff]
        %v421 = vld [vmem:[%s324 + $0x138] sm:$0xff]
        %v422 = vld [vmem:[%s324 + $0x140] sm:$0xff]
        %v423 = vld [vmem:[%s324 + $0x148] sm:$0xff]
        %v424 = vld [vmem:[%s324 + $0x150] sm:$0xff]
        %v425 = vld [vmem:[%s324 + $0x158] sm:$0xff]
        %v426 = vld [vmem:[%s324 + $0x160] sm:$0xff]
        %v427 = vld [vmem:[%s324 + $0x168] sm:$0xff]
        %v428 = vld [vmem:[%s324 + $0x170] sm:$0xff]
        %v429 = vld [vmem:[%s324 + $0x178] sm:$0xff]
        %v430 = vld [vmem:[%s324 + $0x180] sm:$0xff]
        %v431 = vld [vmem:[%s324 + $0x188] sm:$0xff]
        %v432 = vld [vmem:[%s324 + $0x190] sm:$0xff]
        %v433 = vld [vmem:[%s324 + $0x198] sm:$0xff]
        %v434 = vld [vmem:[%s324 + $0x1a0] sm:$0xff]
        %v435 = vld [vmem:[%s324 + $0x1a8] sm:$0xff]
        %v436 = vld [vmem:[%s324 + $0x1b0] sm:$0xff]
        %v437 = vld [vmem:[%s324 + $0x1b8] sm:$0xff]
        %v438 = vld [vmem:[%s324 + $0x1c0] sm:$0xff]
        %v439 = vld [vmem:[%s324 + $0x1c8] sm:$0xff]
        %v440 = vld [vmem:[%s324 + $0x1d0] sm:$0xff]
        %v441 = vld [vmem:[%s324 + $0x1d8] sm:$0xff]
        %v442 = vld [vmem:[%s324 + $0x1e0] sm:$0xff]
        %v443 = vld [vmem:[%s324 + $0x1e8] sm:$0xff]
        %v444 = vld [vmem:[%s324 + $0x1f0] sm:$0xff]
        %v445 = vld [vmem:[%s324 + $0x1f8] sm:$0xff]
        %v446 = vmul.f32 %v382, 0.17677669
        %v447 = vmul.f32 %v383, 0.17677669
        %v448 = vmul.f32 %v384, 0.17677669
        %v449 = vmul.f32 %v385, 0.17677669
        %v450 = vmul.f32 %v386, 0.17677669
        %v451 = vmul.f32 %v387, 0.17677669
        %v452 = vmul.f32 %v388, 0.17677669
        %v453 = vmul.f32 %v389, 0.17677669
        %v454 = vmul.f32 %v390, 0.17677669
        %v455 = vmul.f32 %v391, 0.17677669
        %v456 = vmul.f32 %v392, 0.17677669
        %v457 = vmul.f32 %v393, 0.17677669
        %v458 = vmul.f32 %v394, 0.17677669
        %v459 = vmul.f32 %v395, 0.17677669
        %v460 = vmul.f32 %v396, 0.17677669
        %v461 = vmul.f32 %v397, 0.17677669
        %v462 = vmul.f32 %v398, 0.17677669
        %v463 = vmul.f32 %v399, 0.17677669
        %v464 = vmul.f32 %v400, 0.17677669
        %v465 = vmul.f32 %v401, 0.17677669
        %v466 = vmul.f32 %v402, 0.17677669
        %v467 = vmul.f32 %v403, 0.17677669
        %v468 = vmul.f32 %v404, 0.17677669
        %v469 = vmul.f32 %v405, 0.17677669
        %v470 = vmul.f32 %v406, 0.17677669
        %v471 = vmul.f32 %v407, 0.17677669
        %v472 = vmul.f32 %v408, 0.17677669
        %v473 = vmul.f32 %v409, 0.17677669
        %v474 = vmul.f32 %v410, 0.17677669
        %v475 = vmul.f32 %v411, 0.17677669
        %v476 = vmul.f32 %v412, 0.17677669
        %v477 = vmul.f32 %v413, 0.17677669
        %v478 = vmul.f32 %v414, 0.17677669
        %v479 = vmul.f32 %v415, 0.17677669
        %v480 = vmul.f32 %v416, 0.17677669
        %v481 = vmul.f32 %v417, 0.17677669
        %v482 = vmul.f32 %v418, 0.17677669
        %v483 = vmul.f32 %v419, 0.17677669
        %v484 = vmul.f32 %v420, 0.17677669
        %v485 = vmul.f32 %v421, 0.17677669
        %v486 = vmul.f32 %v422, 0.17677669
        %v487 = vmul.f32 %v423, 0.17677669
        %v488 = vmul.f32 %v424, 0.17677669
        %v489 = vmul.f32 %v425, 0.17677669
        %v490 = vmul.f32 %v426, 0.17677669
        %v491 = vmul.f32 %v427, 0.17677669
        %v492 = vmul.f32 %v428, 0.17677669
        %v493 = vmul.f32 %v429, 0.17677669
        %v494 = vmul.f32 %v430, 0.17677669
        %v495 = vmul.f32 %v431, 0.17677669
        %v496 = vmul.f32 %v432, 0.17677669
        %v497 = vmul.f32 %v433, 0.17677669
        %v498 = vmul.f32 %v434, 0.17677669
        %v499 = vmul.f32 %v435, 0.17677669
        %v500 = vmul.f32 %v436, 0.17677669
        %v501 = vmul.f32 %v437, 0.17677669
        %v502 = vmul.f32 %v438, 0.17677669
        %v503 = vmul.f32 %v439, 0.17677669
        %v504 = vmul.f32 %v440, 0.17677669
        %v505 = vmul.f32 %v441, 0.17677669
        %v506 = vmul.f32 %v442, 0.17677669
        %v507 = vmul.f32 %v443, 0.17677669
        %v508 = vmul.f32 %v444, 0.17677669
        %v509 = vmul.f32 %v445, 0.17677669
        %vm510 = vcmask 261120
        %511 = vst.msk [vmem:[#allocation2] sm:$0xff] %vm510, %v446
        %512 = vst.msk [vmem:[#allocation2 + $0x8] sm:$0xff] %vm510, %v447
        %513 = vst.msk [vmem:[#allocation2 + $0x10] sm:$0xff] %vm510, %v448
        %514 = vst.msk [vmem:[#allocation2 + $0x18] sm:$0xff] %vm510, %v449
        %515 = vst.msk [vmem:[#allocation2 + $0x20] sm:$0xff] %vm510, %v450
        %516 = vst.msk [vmem:[#allocation2 + $0x28] sm:$0xff] %vm510, %v451
        %517 = vst.msk [vmem:[#allocation2 + $0x30] sm:$0xff] %vm510, %v452
        %518 = vst.msk [vmem:[#allocation2 + $0x38] sm:$0xff] %vm510, %v453
        %519 = vst.msk [vmem:[#allocation2 + $0x40] sm:$0xff] %vm510, %v454
        %520 = vst.msk [vmem:[#allocation2 + $0x48] sm:$0xff] %vm510, %v455
        %521 = vst.msk [vmem:[#allocation2 + $0x50] sm:$0xff] %vm510, %v456
        %522 = vst.msk [vmem:[#allocation2 + $0x58] sm:$0xff] %vm510, %v457
        %523 = vst.msk [vmem:[#allocation2 + $0x60] sm:$0xff] %vm510, %v458
        %524 = vst.msk [vmem:[#allocation2 + $0x68] sm:$0xff] %vm510, %v459
        %525 = vst.msk [vmem:[#allocation2 + $0x70] sm:$0xff] %vm510, %v460
        %526 = vst.msk [vmem:[#allocation2 + $0x78] sm:$0xff] %vm510, %v461
        %527 = vst.msk [vmem:[#allocation2 + $0x80] sm:$0xff] %vm510, %v462
        %528 = vst.msk [vmem:[#allocation2 + $0x88] sm:$0xff] %vm510, %v463
        %529 = vst.msk [vmem:[#allocation2 + $0x90] sm:$0xff] %vm510, %v464
        %530 = vst.msk [vmem:[#allocation2 + $0x98] sm:$0xff] %vm510, %v465
        %531 = vst.msk [vmem:[#allocation2 + $0xa0] sm:$0xff] %vm510, %v466
        %532 = vst.msk [vmem:[#allocation2 + $0xa8] sm:$0xff] %vm510, %v467
        %533 = vst.msk [vmem:[#allocation2 + $0xb0] sm:$0xff] %vm510, %v468
        %534 = vst.msk [vmem:[#allocation2 + $0xb8] sm:$0xff] %vm510, %v469
        %535 = vst.msk [vmem:[#allocation2 + $0xc0] sm:$0xff] %vm510, %v470
        %536 = vst.msk [vmem:[#allocation2 + $0xc8] sm:$0xff] %vm510, %v471
        %537 = vst.msk [vmem:[#allocation2 + $0xd0] sm:$0xff] %vm510, %v472
        %538 = vst.msk [vmem:[#allocation2 + $0xd8] sm:$0xff] %vm510, %v473
        %539 = vst.msk [vmem:[#allocation2 + $0xe0] sm:$0xff] %vm510, %v474
        %540 = vst.msk [vmem:[#allocation2 + $0xe8] sm:$0xff] %vm510, %v475
        %541 = vst.msk [vmem:[#allocation2 + $0xf0] sm:$0xff] %vm510, %v476
        %542 = vst.msk [vmem:[#allocation2 + $0xf8] sm:$0xff] %vm510, %v477
        %543 = vst.msk [vmem:[#allocation2 + $0x100] sm:$0xff] %vm510, %v478
        %544 = vst.msk [vmem:[#allocation2 + $0x108] sm:$0xff] %vm510, %v479
        %545 = vst.msk [vmem:[#allocation2 + $0x110] sm:$0xff] %vm510, %v480
        %546 = vst.msk [vmem:[#allocation2 + $0x118] sm:$0xff] %vm510, %v481
        %547 = vst.msk [vmem:[#allocation2 + $0x120] sm:$0xff] %vm510, %v482
        %548 = vst.msk [vmem:[#allocation2 + $0x128] sm:$0xff] %vm510, %v483
        %549 = vst.msk [vmem:[#allocation2 + $0x130] sm:$0xff] %vm510, %v484
        %550 = vst.msk [vmem:[#allocation2 + $0x138] sm:$0xff] %vm510, %v485
        %551 = vst.msk [vmem:[#allocation2 + $0x140] sm:$0xff] %vm510, %v486
        %552 = vst.msk [vmem:[#allocation2 + $0x148] sm:$0xff] %vm510, %v487
        %553 = vst.msk [vmem:[#allocation2 + $0x150] sm:$0xff] %vm510, %v488
        %554 = vst.msk [vmem:[#allocation2 + $0x158] sm:$0xff] %vm510, %v489
        %555 = vst.msk [vmem:[#allocation2 + $0x160] sm:$0xff] %vm510, %v490
        %556 = vst.msk [vmem:[#allocation2 + $0x168] sm:$0xff] %vm510, %v491
        %557 = vst.msk [vmem:[#allocation2 + $0x170] sm:$0xff] %vm510, %v492
        %558 = vst.msk [vmem:[#allocation2 + $0x178] sm:$0xff] %vm510, %v493
        %559 = vst.msk [vmem:[#allocation2 + $0x180] sm:$0xff] %vm510, %v494
        %560 = vst.msk [vmem:[#allocation2 + $0x188] sm:$0xff] %vm510, %v495
        %561 = vst.msk [vmem:[#allocation2 + $0x190] sm:$0xff] %vm510, %v496
        %562 = vst.msk [vmem:[#allocation2 + $0x198] sm:$0xff] %vm510, %v497
        %563 = vst.msk [vmem:[#allocation2 + $0x1a0] sm:$0xff] %vm510, %v498
        %564 = vst.msk [vmem:[#allocation2 + $0x1a8] sm:$0xff] %vm510, %v499
        %565 = vst.msk [vmem:[#allocation2 + $0x1b0] sm:$0xff] %vm510, %v500
        %566 = vst.msk [vmem:[#allocation2 + $0x1b8] sm:$0xff] %vm510, %v501
        %567 = vst.msk [vmem:[#allocation2 + $0x1c0] sm:$0xff] %vm510, %v502
        %568 = vst.msk [vmem:[#allocation2 + $0x1c8] sm:$0xff] %vm510, %v503
        %569 = vst.msk [vmem:[#allocation2 + $0x1d0] sm:$0xff] %vm510, %v504
        %570 = vst.msk [vmem:[#allocation2 + $0x1d8] sm:$0xff] %vm510, %v505
        %571 = vst.msk [vmem:[#allocation2 + $0x1e0] sm:$0xff] %vm510, %v506
        %572 = vst.msk [vmem:[#allocation2 + $0x1e8] sm:$0xff] %vm510, %v507
        %573 = vst.msk [vmem:[#allocation2 + $0x1f0] sm:$0xff] %vm510, %v508
        %574 = vst.msk [vmem:[#allocation2 + $0x1f8] sm:$0xff] %vm510, %v509
        %vm575 = vcmask 7168
        %576 = vst.msk [vmem:[#allocation3] sm:$0xff] %vm575, -inf
        %577 = vst.msk [vmem:[#allocation3 + $0x8] sm:$0xff] %vm575, -inf
        %578 = vst.msk [vmem:[#allocation3 + $0x10] sm:$0xff] %vm575, -inf
        %579 = vst.msk [vmem:[#allocation3 + $0x18] sm:$0xff] %vm575, -inf
        %580 = vst.msk [vmem:[#allocation3 + $0x20] sm:$0xff] %vm575, -inf
        %581 = vst.msk [vmem:[#allocation3 + $0x28] sm:$0xff] %vm575, -inf
        %582 = vst.msk [vmem:[#allocation3 + $0x30] sm:$0xff] %vm575, -inf
        %583 = vst.msk [vmem:[#allocation3 + $0x38] sm:$0xff] %vm575, -inf
        %584 = vst.msk [vmem:[#allocation3 + $0x40] sm:$0xff] %vm575, -inf
        %585 = vst.msk [vmem:[#allocation3 + $0x48] sm:$0xff] %vm575, -inf
        %586 = vst.msk [vmem:[#allocation3 + $0x50] sm:$0xff] %vm575, -inf
        %587 = vst.msk [vmem:[#allocation3 + $0x58] sm:$0xff] %vm575, -inf
        %588 = vst.msk [vmem:[#allocation3 + $0x60] sm:$0xff] %vm575, -inf
        %589 = vst.msk [vmem:[#allocation3 + $0x68] sm:$0xff] %vm575, -inf
        %590 = vst.msk [vmem:[#allocation3 + $0x70] sm:$0xff] %vm575, -inf
        %591 = vst.msk [vmem:[#allocation3 + $0x78] sm:$0xff] %vm575, -inf
        %592 = vst.msk [vmem:[#allocation3 + $0x80] sm:$0xff] %vm575, -inf
        %593 = vst.msk [vmem:[#allocation3 + $0x88] sm:$0xff] %vm575, -inf
        %594 = vst.msk [vmem:[#allocation3 + $0x90] sm:$0xff] %vm575, -inf
        %595 = vst.msk [vmem:[#allocation3 + $0x98] sm:$0xff] %vm575, -inf
        %596 = vst.msk [vmem:[#allocation3 + $0xa0] sm:$0xff] %vm575, -inf
        %597 = vst.msk [vmem:[#allocation3 + $0xa8] sm:$0xff] %vm575, -inf
        %598 = vst.msk [vmem:[#allocation3 + $0xb0] sm:$0xff] %vm575, -inf
        %599 = vst.msk [vmem:[#allocation3 + $0xb8] sm:$0xff] %vm575, -inf
        %600 = vst.msk [vmem:[#allocation3 + $0xc0] sm:$0xff] %vm575, -inf
        %601 = vst.msk [vmem:[#allocation3 + $0xc8] sm:$0xff] %vm575, -inf
        %602 = vst.msk [vmem:[#allocation3 + $0xd0] sm:$0xff] %vm575, -inf
        %603 = vst.msk [vmem:[#allocation3 + $0xd8] sm:$0xff] %vm575, -inf
        %604 = vst.msk [vmem:[#allocation3 + $0xe0] sm:$0xff] %vm575, -inf
        %605 = vst.msk [vmem:[#allocation3 + $0xe8] sm:$0xff] %vm575, -inf
        %606 = vst.msk [vmem:[#allocation3 + $0xf0] sm:$0xff] %vm575, -inf
        %607 = vst.msk [vmem:[#allocation3 + $0xf8] sm:$0xff] %vm575, -inf
        %608 = vst.msk [vmem:[#allocation3 + $0x100] sm:$0xff] %vm575, -inf
        %609 = vst.msk [vmem:[#allocation3 + $0x108] sm:$0xff] %vm575, -inf
        %610 = vst.msk [vmem:[#allocation3 + $0x110] sm:$0xff] %vm575, -inf
        %611 = vst.msk [vmem:[#allocation3 + $0x118] sm:$0xff] %vm575, -inf
        %612 = vst.msk [vmem:[#allocation3 + $0x120] sm:$0xff] %vm575, -inf
        %613 = vst.msk [vmem:[#allocation3 + $0x128] sm:$0xff] %vm575, -inf
        %614 = vst.msk [vmem:[#allocation3 + $0x130] sm:$0xff] %vm575, -inf
        %615 = vst.msk [vmem:[#allocation3 + $0x138] sm:$0xff] %vm575, -inf
        %616 = vst.msk [vmem:[#allocation3 + $0x140] sm:$0xff] %vm575, -inf
        %617 = vst.msk [vmem:[#allocation3 + $0x148] sm:$0xff] %vm575, -inf
        %618 = vst.msk [vmem:[#allocation3 + $0x150] sm:$0xff] %vm575, -inf
        %619 = vst.msk [vmem:[#allocation3 + $0x158] sm:$0xff] %vm575, -inf
        %620 = vst.msk [vmem:[#allocation3 + $0x160] sm:$0xff] %vm575, -inf
        %621 = vst.msk [vmem:[#allocation3 + $0x168] sm:$0xff] %vm575, -inf
        %622 = vst.msk [vmem:[#allocation3 + $0x170] sm:$0xff] %vm575, -inf
        %623 = vst.msk [vmem:[#allocation3 + $0x178] sm:$0xff] %vm575, -inf
        %624 = vst.msk [vmem:[#allocation3 + $0x180] sm:$0xff] %vm575, -inf
        %625 = vst.msk [vmem:[#allocation3 + $0x188] sm:$0xff] %vm575, -inf
        %626 = vst.msk [vmem:[#allocation3 + $0x190] sm:$0xff] %vm575, -inf
        %627 = vst.msk [vmem:[#allocation3 + $0x198] sm:$0xff] %vm575, -inf
        %628 = vst.msk [vmem:[#allocation3 + $0x1a0] sm:$0xff] %vm575, -inf
        %629 = vst.msk [vmem:[#allocation3 + $0x1a8] sm:$0xff] %vm575, -inf
        %630 = vst.msk [vmem:[#allocation3 + $0x1b0] sm:$0xff] %vm575, -inf
        %631 = vst.msk [vmem:[#allocation3 + $0x1b8] sm:$0xff] %vm575, -inf
        %632 = vst.msk [vmem:[#allocation3 + $0x1c0] sm:$0xff] %vm575, -inf
        %633 = vst.msk [vmem:[#allocation3 + $0x1c8] sm:$0xff] %vm575, -inf
        %634 = vst.msk [vmem:[#allocation3 + $0x1d0] sm:$0xff] %vm575, -inf
        %635 = vst.msk [vmem:[#allocation3 + $0x1d8] sm:$0xff] %vm575, -inf
        %636 = vst.msk [vmem:[#allocation3 + $0x1e0] sm:$0xff] %vm575, -inf
        %637 = vst.msk [vmem:[#allocation3 + $0x1e8] sm:$0xff] %vm575, -inf
        %638 = vst.msk [vmem:[#allocation3 + $0x1f0] sm:$0xff] %vm575, -inf
        %639 = vst.msk [vmem:[#allocation3 + $0x1f8] sm:$0xff] %vm575, -inf
        %640 = vst.msk [vmem:[#allocation4] sm:$0xff] %vm575, 0.0
        %641 = vst.msk [vmem:[#allocation4 + $0x8] sm:$0xff] %vm575, 0.0
        %642 = vst.msk [vmem:[#allocation4 + $0x10] sm:$0xff] %vm575, 0.0
        %643 = vst.msk [vmem:[#allocation4 + $0x18] sm:$0xff] %vm575, 0.0
        %644 = vst.msk [vmem:[#allocation4 + $0x20] sm:$0xff] %vm575, 0.0
        %645 = vst.msk [vmem:[#allocation4 + $0x28] sm:$0xff] %vm575, 0.0
        %646 = vst.msk [vmem:[#allocation4 + $0x30] sm:$0xff] %vm575, 0.0
        %647 = vst.msk [vmem:[#allocation4 + $0x38] sm:$0xff] %vm575, 0.0
        %648 = vst.msk [vmem:[#allocation4 + $0x40] sm:$0xff] %vm575, 0.0
        %649 = vst.msk [vmem:[#allocation4 + $0x48] sm:$0xff] %vm575, 0.0
        %650 = vst.msk [vmem:[#allocation4 + $0x50] sm:$0xff] %vm575, 0.0
        %651 = vst.msk [vmem:[#allocation4 + $0x58] sm:$0xff] %vm575, 0.0
        %652 = vst.msk [vmem:[#allocation4 + $0x60] sm:$0xff] %vm575, 0.0
        %653 = vst.msk [vmem:[#allocation4 + $0x68] sm:$0xff] %vm575, 0.0
        %654 = vst.msk [vmem:[#allocation4 + $0x70] sm:$0xff] %vm575, 0.0
        %655 = vst.msk [vmem:[#allocation4 + $0x78] sm:$0xff] %vm575, 0.0
        %656 = vst.msk [vmem:[#allocation4 + $0x80] sm:$0xff] %vm575, 0.0
        %657 = vst.msk [vmem:[#allocation4 + $0x88] sm:$0xff] %vm575, 0.0
        %658 = vst.msk [vmem:[#allocation4 + $0x90] sm:$0xff] %vm575, 0.0
        %659 = vst.msk [vmem:[#allocation4 + $0x98] sm:$0xff] %vm575, 0.0
        %660 = vst.msk [vmem:[#allocation4 + $0xa0] sm:$0xff] %vm575, 0.0
        %661 = vst.msk [vmem:[#allocation4 + $0xa8] sm:$0xff] %vm575, 0.0
        %662 = vst.msk [vmem:[#allocation4 + $0xb0] sm:$0xff] %vm575, 0.0
        %663 = vst.msk [vmem:[#allocation4 + $0xb8] sm:$0xff] %vm575, 0.0
        %664 = vst.msk [vmem:[#allocation4 + $0xc0] sm:$0xff] %vm575, 0.0
        %665 = vst.msk [vmem:[#allocation4 + $0xc8] sm:$0xff] %vm575, 0.0
        %666 = vst.msk [vmem:[#allocation4 + $0xd0] sm:$0xff] %vm575, 0.0
        %667 = vst.msk [vmem:[#allocation4 + $0xd8] sm:$0xff] %vm575, 0.0
        %668 = vst.msk [vmem:[#allocation4 + $0xe0] sm:$0xff] %vm575, 0.0
        %669 = vst.msk [vmem:[#allocation4 + $0xe8] sm:$0xff] %vm575, 0.0
        %670 = vst.msk [vmem:[#allocation4 + $0xf0] sm:$0xff] %vm575, 0.0
        %671 = vst.msk [vmem:[#allocation4 + $0xf8] sm:$0xff] %vm575, 0.0
        %672 = vst.msk [vmem:[#allocation4 + $0x100] sm:$0xff] %vm575, 0.0
        %673 = vst.msk [vmem:[#allocation4 + $0x108] sm:$0xff] %vm575, 0.0
        %674 = vst.msk [vmem:[#allocation4 + $0x110] sm:$0xff] %vm575, 0.0
        %675 = vst.msk [vmem:[#allocation4 + $0x118] sm:$0xff] %vm575, 0.0
        %676 = vst.msk [vmem:[#allocation4 + $0x120] sm:$0xff] %vm575, 0.0
        %677 = vst.msk [vmem:[#allocation4 + $0x128] sm:$0xff] %vm575, 0.0
        %678 = vst.msk [vmem:[#allocation4 + $0x130] sm:$0xff] %vm575, 0.0
        %679 = vst.msk [vmem:[#allocation4 + $0x138] sm:$0xff] %vm575, 0.0
        %680 = vst.msk [vmem:[#allocation4 + $0x140] sm:$0xff] %vm575, 0.0
        %681 = vst.msk [vmem:[#allocation4 + $0x148] sm:$0xff] %vm575, 0.0
        %682 = vst.msk [vmem:[#allocation4 + $0x150] sm:$0xff] %vm575, 0.0
        %683 = vst.msk [vmem:[#allocation4 + $0x158] sm:$0xff] %vm575, 0.0
        %684 = vst.msk [vmem:[#allocation4 + $0x160] sm:$0xff] %vm575, 0.0
        %685 = vst.msk [vmem:[#allocation4 + $0x168] sm:$0xff] %vm575, 0.0
        %686 = vst.msk [vmem:[#allocation4 + $0x170] sm:$0xff] %vm575, 0.0
        %687 = vst.msk [vmem:[#allocation4 + $0x178] sm:$0xff] %vm575, 0.0
        %688 = vst.msk [vmem:[#allocation4 + $0x180] sm:$0xff] %vm575, 0.0
        %689 = vst.msk [vmem:[#allocation4 + $0x188] sm:$0xff] %vm575, 0.0
        %690 = vst.msk [vmem:[#allocation4 + $0x190] sm:$0xff] %vm575, 0.0
        %691 = vst.msk [vmem:[#allocation4 + $0x198] sm:$0xff] %vm575, 0.0
        %692 = vst.msk [vmem:[#allocation4 + $0x1a0] sm:$0xff] %vm575, 0.0
        %693 = vst.msk [vmem:[#allocation4 + $0x1a8] sm:$0xff] %vm575, 0.0
        %694 = vst.msk [vmem:[#allocation4 + $0x1b0] sm:$0xff] %vm575, 0.0
        %695 = vst.msk [vmem:[#allocation4 + $0x1b8] sm:$0xff] %vm575, 0.0
        %696 = vst.msk [vmem:[#allocation4 + $0x1c0] sm:$0xff] %vm575, 0.0
        %697 = vst.msk [vmem:[#allocation4 + $0x1c8] sm:$0xff] %vm575, 0.0
        %698 = vst.msk [vmem:[#allocation4 + $0x1d0] sm:$0xff] %vm575, 0.0
        %699 = vst.msk [vmem:[#allocation4 + $0x1d8] sm:$0xff] %vm575, 0.0
        %700 = vst.msk [vmem:[#allocation4 + $0x1e0] sm:$0xff] %vm575, 0.0
        %701 = vst.msk [vmem:[#allocation4 + $0x1e8] sm:$0xff] %vm575, 0.0
        %702 = vst.msk [vmem:[#allocation4 + $0x1f0] sm:$0xff] %vm575, 0.0
        %703 = vst.msk [vmem:[#allocation4 + $0x1f8] sm:$0xff] %vm575, 0.0
        %704 = vst.msk [vmem:[#allocation5] sm:$0xff] %vm510, 0.0
        %705 = vst.msk [vmem:[#allocation5 + $0x8] sm:$0xff] %vm510, 0.0
        %706 = vst.msk [vmem:[#allocation5 + $0x10] sm:$0xff] %vm510, 0.0
        %707 = vst.msk [vmem:[#allocation5 + $0x18] sm:$0xff] %vm510, 0.0
        %708 = vst.msk [vmem:[#allocation5 + $0x20] sm:$0xff] %vm510, 0.0
        %709 = vst.msk [vmem:[#allocation5 + $0x28] sm:$0xff] %vm510, 0.0
        %710 = vst.msk [vmem:[#allocation5 + $0x30] sm:$0xff] %vm510, 0.0
        %711 = vst.msk [vmem:[#allocation5 + $0x38] sm:$0xff] %vm510, 0.0
        %712 = vst.msk [vmem:[#allocation5 + $0x40] sm:$0xff] %vm510, 0.0
        %713 = vst.msk [vmem:[#allocation5 + $0x48] sm:$0xff] %vm510, 0.0
        %714 = vst.msk [vmem:[#allocation5 + $0x50] sm:$0xff] %vm510, 0.0
        %715 = vst.msk [vmem:[#allocation5 + $0x58] sm:$0xff] %vm510, 0.0
        %716 = vst.msk [vmem:[#allocation5 + $0x60] sm:$0xff] %vm510, 0.0
        %717 = vst.msk [vmem:[#allocation5 + $0x68] sm:$0xff] %vm510, 0.0
        %718 = vst.msk [vmem:[#allocation5 + $0x70] sm:$0xff] %vm510, 0.0
        %719 = vst.msk [vmem:[#allocation5 + $0x78] sm:$0xff] %vm510, 0.0
        %720 = vst.msk [vmem:[#allocation5 + $0x80] sm:$0xff] %vm510, 0.0
        %721 = vst.msk [vmem:[#allocation5 + $0x88] sm:$0xff] %vm510, 0.0
        %722 = vst.msk [vmem:[#allocation5 + $0x90] sm:$0xff] %vm510, 0.0
        %723 = vst.msk [vmem:[#allocation5 + $0x98] sm:$0xff] %vm510, 0.0
        %724 = vst.msk [vmem:[#allocation5 + $0xa0] sm:$0xff] %vm510, 0.0
        %725 = vst.msk [vmem:[#allocation5 + $0xa8] sm:$0xff] %vm510, 0.0
        %726 = vst.msk [vmem:[#allocation5 + $0xb0] sm:$0xff] %vm510, 0.0
        %727 = vst.msk [vmem:[#allocation5 + $0xb8] sm:$0xff] %vm510, 0.0
        %728 = vst.msk [vmem:[#allocation5 + $0xc0] sm:$0xff] %vm510, 0.0
        %729 = vst.msk [vmem:[#allocation5 + $0xc8] sm:$0xff] %vm510, 0.0
        %730 = vst.msk [vmem:[#allocation5 + $0xd0] sm:$0xff] %vm510, 0.0
        %731 = vst.msk [vmem:[#allocation5 + $0xd8] sm:$0xff] %vm510, 0.0
        %732 = vst.msk [vmem:[#allocation5 + $0xe0] sm:$0xff] %vm510, 0.0
        %733 = vst.msk [vmem:[#allocation5 + $0xe8] sm:$0xff] %vm510, 0.0
        %734 = vst.msk [vmem:[#allocation5 + $0xf0] sm:$0xff] %vm510, 0.0
        %735 = vst.msk [vmem:[#allocation5 + $0xf8] sm:$0xff] %vm510, 0.0
        %736 = vst.msk [vmem:[#allocation5 + $0x100] sm:$0xff] %vm510, 0.0
        %737 = vst.msk [vmem:[#allocation5 + $0x108] sm:$0xff] %vm510, 0.0
        %738 = vst.msk [vmem:[#allocation5 + $0x110] sm:$0xff] %vm510, 0.0
        %739 = vst.msk [vmem:[#allocation5 + $0x118] sm:$0xff] %vm510, 0.0
        %740 = vst.msk [vmem:[#allocation5 + $0x120] sm:$0xff] %vm510, 0.0
        %741 = vst.msk [vmem:[#allocation5 + $0x128] sm:$0xff] %vm510, 0.0
        %742 = vst.msk [vmem:[#allocation5 + $0x130] sm:$0xff] %vm510, 0.0
        %743 = vst.msk [vmem:[#allocation5 + $0x138] sm:$0xff] %vm510, 0.0
        %744 = vst.msk [vmem:[#allocation5 + $0x140] sm:$0xff] %vm510, 0.0
        %745 = vst.msk [vmem:[#allocation5 + $0x148] sm:$0xff] %vm510, 0.0
        %746 = vst.msk [vmem:[#allocation5 + $0x150] sm:$0xff] %vm510, 0.0
        %747 = vst.msk [vmem:[#allocation5 + $0x158] sm:$0xff] %vm510, 0.0
        %748 = vst.msk [vmem:[#allocation5 + $0x160] sm:$0xff] %vm510, 0.0
        %749 = vst.msk [vmem:[#allocation5 + $0x168] sm:$0xff] %vm510, 0.0
        %750 = vst.msk [vmem:[#allocation5 + $0x170] sm:$0xff] %vm510, 0.0
        %751 = vst.msk [vmem:[#allocation5 + $0x178] sm:$0xff] %vm510, 0.0
        %752 = vst.msk [vmem:[#allocation5 + $0x180] sm:$0xff] %vm510, 0.0
        %753 = vst.msk [vmem:[#allocation5 + $0x188] sm:$0xff] %vm510, 0.0
        %754 = vst.msk [vmem:[#allocation5 + $0x190] sm:$0xff] %vm510, 0.0
        %755 = vst.msk [vmem:[#allocation5 + $0x198] sm:$0xff] %vm510, 0.0
        %756 = vst.msk [vmem:[#allocation5 + $0x1a0] sm:$0xff] %vm510, 0.0
        %757 = vst.msk [vmem:[#allocation5 + $0x1a8] sm:$0xff] %vm510, 0.0
        %758 = vst.msk [vmem:[#allocation5 + $0x1b0] sm:$0xff] %vm510, 0.0
        %759 = vst.msk [vmem:[#allocation5 + $0x1b8] sm:$0xff] %vm510, 0.0
        %760 = vst.msk [vmem:[#allocation5 + $0x1c0] sm:$0xff] %vm510, 0.0
        %761 = vst.msk [vmem:[#allocation5 + $0x1c8] sm:$0xff] %vm510, 0.0
        %762 = vst.msk [vmem:[#allocation5 + $0x1d0] sm:$0xff] %vm510, 0.0
        %763 = vst.msk [vmem:[#allocation5 + $0x1d8] sm:$0xff] %vm510, 0.0
        %764 = vst.msk [vmem:[#allocation5 + $0x1e0] sm:$0xff] %vm510, 0.0
        %765 = vst.msk [vmem:[#allocation5 + $0x1e8] sm:$0xff] %vm510, 0.0
        %766 = vst.msk [vmem:[#allocation5 + $0x1f0] sm:$0xff] %vm510, 0.0
        %767 = vst.msk [vmem:[#allocation5 + $0x1f8] sm:$0xff] %vm510, 0.0
      $region36: #{tpu_custom_call.1} parent=31 // pred_fallthru
        _
      %p768 = scmp.lt.s32.totalorder %s377, %s376
      // Predicated region
      $region37: #{tpu_custom_call.1} parent=31 // pred_check
        %p769 = pneg %p768
      $region38: #{tpu_custom_call.1} parent=31 // pred_check_branch
        %771 = sbr.rel (%p769) target = $region40
      $region39: #{tpu_custom_call.1} parent=31 // pred_region
        %v772 = vld [vmem:[#allocation2] sm:$0xff]
        %v773 = vld [vmem:[#allocation2 + $0x8] sm:$0xff]
        %v774 = vld [vmem:[#allocation2 + $0x10] sm:$0xff]
        %v775 = vld [vmem:[#allocation2 + $0x18] sm:$0xff]
        %v776 = vld [vmem:[#allocation2 + $0x20] sm:$0xff]
        %v777 = vld [vmem:[#allocation2 + $0x28] sm:$0xff]
        %v778 = vld [vmem:[#allocation2 + $0x30] sm:$0xff]
        %v779 = vld [vmem:[#allocation2 + $0x38] sm:$0xff]
        %v780 = vld [vmem:[#allocation2 + $0x40] sm:$0xff]
        %v781 = vld [vmem:[#allocation2 + $0x48] sm:$0xff]
        %v782 = vld [vmem:[#allocation2 + $0x50] sm:$0xff]
        %v783 = vld [vmem:[#allocation2 + $0x58] sm:$0xff]
        %v784 = vld [vmem:[#allocation2 + $0x60] sm:$0xff]
        %v785 = vld [vmem:[#allocation2 + $0x68] sm:$0xff]
        %v786 = vld [vmem:[#allocation2 + $0x70] sm:$0xff]
        %v787 = vld [vmem:[#allocation2 + $0x78] sm:$0xff]
        %v788 = vld [vmem:[#allocation2 + $0x80] sm:$0xff]
        %v789 = vld [vmem:[#allocation2 + $0x88] sm:$0xff]
        %v790 = vld [vmem:[#allocation2 + $0x90] sm:$0xff]
        %v791 = vld [vmem:[#allocation2 + $0x98] sm:$0xff]
        %v792 = vld [vmem:[#allocation2 + $0xa0] sm:$0xff]
        %v793 = vld [vmem:[#allocation2 + $0xa8] sm:$0xff]
        %v794 = vld [vmem:[#allocation2 + $0xb0] sm:$0xff]
        %v795 = vld [vmem:[#allocation2 + $0xb8] sm:$0xff]
        %v796 = vld [vmem:[#allocation2 + $0xc0] sm:$0xff]
        %v797 = vld [vmem:[#allocation2 + $0xc8] sm:$0xff]
        %v798 = vld [vmem:[#allocation2 + $0xd0] sm:$0xff]
        %v799 = vld [vmem:[#allocation2 + $0xd8] sm:$0xff]
        %v800 = vld [vmem:[#allocation2 + $0xe0] sm:$0xff]
        %v801 = vld [vmem:[#allocation2 + $0xe8] sm:$0xff]
        %v802 = vld [vmem:[#allocation2 + $0xf0] sm:$0xff]
        %v803 = vld [vmem:[#allocation2 + $0xf8] sm:$0xff]
        %v804 = vld [vmem:[#allocation2 + $0x100] sm:$0xff]
        %v805 = vld [vmem:[#allocation2 + $0x108] sm:$0xff]
        %v806 = vld [vmem:[#allocation2 + $0x110] sm:$0xff]
        %v807 = vld [vmem:[#allocation2 + $0x118] sm:$0xff]
        %v808 = vld [vmem:[#allocation2 + $0x120] sm:$0xff]
        %v809 = vld [vmem:[#allocation2 + $0x128] sm:$0xff]
        %v810 = vld [vmem:[#allocation2 + $0x130] sm:$0xff]
        %v811 = vld [vmem:[#allocation2 + $0x138] sm:$0xff]
        %v812 = vld [vmem:[#allocation2 + $0x140] sm:$0xff]
        %v813 = vld [vmem:[#allocation2 + $0x148] sm:$0xff]
        %v814 = vld [vmem:[#allocation2 + $0x150] sm:$0xff]
        %v815 = vld [vmem:[#allocation2 + $0x158] sm:$0xff]
        %v816 = vld [vmem:[#allocation2 + $0x160] sm:$0xff]
        %v817 = vld [vmem:[#allocation2 + $0x168] sm:$0xff]
        %v818 = vld [vmem:[#allocation2 + $0x170] sm:$0xff]
        %v819 = vld [vmem:[#allocation2 + $0x178] sm:$0xff]
        %v820 = vld [vmem:[#allocation2 + $0x180] sm:$0xff]
        %v821 = vld [vmem:[#allocation2 + $0x188] sm:$0xff]
        %v822 = vld [vmem:[#allocation2 + $0x190] sm:$0xff]
        %v823 = vld [vmem:[#allocation2 + $0x198] sm:$0xff]
        %v824 = vld [vmem:[#allocation2 + $0x1a0] sm:$0xff]
        %v825 = vld [vmem:[#allocation2 + $0x1a8] sm:$0xff]
        %v826 = vld [vmem:[#allocation2 + $0x1b0] sm:$0xff]
        %v827 = vld [vmem:[#allocation2 + $0x1b8] sm:$0xff]
        %v828 = vld [vmem:[#allocation2 + $0x1c0] sm:$0xff]
        %v829 = vld [vmem:[#allocation2 + $0x1c8] sm:$0xff]
        %v830 = vld [vmem:[#allocation2 + $0x1d0] sm:$0xff]
        %v831 = vld [vmem:[#allocation2 + $0x1d8] sm:$0xff]
        %v832 = vld [vmem:[#allocation2 + $0x1e0] sm:$0xff]
        %v833 = vld [vmem:[#allocation2 + $0x1e8] sm:$0xff]
        %v834 = vld [vmem:[#allocation2 + $0x1f0] sm:$0xff]
        %v835 = vld [vmem:[#allocation2 + $0x1f8] sm:$0xff]
        %v836 = vld [vmem:[%s341] sm:$0xff]
        %v837 = vld [vmem:[%s341 + $0x8] sm:$0xff]
        %v838 = vld [vmem:[%s341 + $0x10] sm:$0xff]
        %v839 = vld [vmem:[%s341 + $0x18] sm:$0xff]
        %v840 = vld [vmem:[%s341 + $0x20] sm:$0xff]
        %v841 = vld [vmem:[%s341 + $0x28] sm:$0xff]
        %v842 = vld [vmem:[%s341 + $0x30] sm:$0xff]
        %v843 = vld [vmem:[%s341 + $0x38] sm:$0xff]
        %v844 = vld [vmem:[%s341 + $0x40] sm:$0xff]
        %v845 = vld [vmem:[%s341 + $0x48] sm:$0xff]
        %v846 = vld [vmem:[%s341 + $0x50] sm:$0xff]
        %v847 = vld [vmem:[%s341 + $0x58] sm:$0xff]
        %v848 = vld [vmem:[%s341 + $0x60] sm:$0xff]
        %v849 = vld [vmem:[%s341 + $0x68] sm:$0xff]
        %v850 = vld [vmem:[%s341 + $0x70] sm:$0xff]
        %v851 = vld [vmem:[%s341 + $0x78] sm:$0xff]
        %v852 = vld [vmem:[%s341 + $0x80] sm:$0xff]
        %v853 = vld [vmem:[%s341 + $0x88] sm:$0xff]
        %v854 = vld [vmem:[%s341 + $0x90] sm:$0xff]
        %v855 = vld [vmem:[%s341 + $0x98] sm:$0xff]
        %v856 = vld [vmem:[%s341 + $0xa0] sm:$0xff]
        %v857 = vld [vmem:[%s341 + $0xa8] sm:$0xff]
        %v858 = vld [vmem:[%s341 + $0xb0] sm:$0xff]
        %v859 = vld [vmem:[%s341 + $0xb8] sm:$0xff]
        %v860 = vld [vmem:[%s341 + $0xc0] sm:$0xff]
        %v861 = vld [vmem:[%s341 + $0xc8] sm:$0xff]
        %v862 = vld [vmem:[%s341 + $0xd0] sm:$0xff]
        %v863 = vld [vmem:[%s341 + $0xd8] sm:$0xff]
        %v864 = vld [vmem:[%s341 + $0xe0] sm:$0xff]
        %v865 = vld [vmem:[%s341 + $0xe8] sm:$0xff]
        %v866 = vld [vmem:[%s341 + $0xf0] sm:$0xff]
        %v867 = vld [vmem:[%s341 + $0xf8] sm:$0xff]
        %v868 = vld [vmem:[%s357] sm:$0xff]
        %v869 = vld [vmem:[%s357 + $0x8] sm:$0xff]
        %v870 = vld [vmem:[%s357 + $0x10] sm:$0xff]
        %v871 = vld [vmem:[%s357 + $0x18] sm:$0xff]
        %v872 = vld [vmem:[%s357 + $0x20] sm:$0xff]
        %v873 = vld [vmem:[%s357 + $0x28] sm:$0xff]
        %v874 = vld [vmem:[%s357 + $0x30] sm:$0xff]
        %v875 = vld [vmem:[%s357 + $0x38] sm:$0xff]
        %v876 = vld [vmem:[%s357 + $0x40] sm:$0xff]
        %v877 = vld [vmem:[%s357 + $0x48] sm:$0xff]
        %v878 = vld [vmem:[%s357 + $0x50] sm:$0xff]
        %v879 = vld [vmem:[%s357 + $0x58] sm:$0xff]
        %v880 = vld [vmem:[%s357 + $0x60] sm:$0xff]
        %v881 = vld [vmem:[%s357 + $0x68] sm:$0xff]
        %v882 = vld [vmem:[%s357 + $0x70] sm:$0xff]
        %v883 = vld [vmem:[%s357 + $0x78] sm:$0xff]
        %v884 = vld [vmem:[%s357 + $0x80] sm:$0xff]
        %v885 = vld [vmem:[%s357 + $0x88] sm:$0xff]
        %v886 = vld [vmem:[%s357 + $0x90] sm:$0xff]
        %v887 = vld [vmem:[%s357 + $0x98] sm:$0xff]
        %v888 = vld [vmem:[%s357 + $0xa0] sm:$0xff]
        %v889 = vld [vmem:[%s357 + $0xa8] sm:$0xff]
        %v890 = vld [vmem:[%s357 + $0xb0] sm:$0xff]
        %v891 = vld [vmem:[%s357 + $0xb8] sm:$0xff]
        %v892 = vld [vmem:[%s357 + $0xc0] sm:$0xff]
        %v893 = vld [vmem:[%s357 + $0xc8] sm:$0xff]
        %v894 = vld [vmem:[%s357 + $0xd0] sm:$0xff]
        %v895 = vld [vmem:[%s357 + $0xd8] sm:$0xff]
        %v896 = vld [vmem:[%s357 + $0xe0] sm:$0xff]
        %v897 = vld [vmem:[%s357 + $0xe8] sm:$0xff]
        %v898 = vld [vmem:[%s357 + $0xf0] sm:$0xff]
        %v899 = vld [vmem:[%s357 + $0xf8] sm:$0xff]
        %vm900 = vcmask 261120
        %v902 = vsel %vm900, %v772, 0
        %v905 = vsel %vm900, %v773, 0
        %v908 = vsel %vm900, %v774, 0
        %v911 = vsel %vm900, %v775, 0
        %v914 = vsel %vm900, %v776, 0
        %v917 = vsel %vm900, %v777, 0
        %v920 = vsel %vm900, %v778, 0
        %v923 = vsel %vm900, %v779, 0
        %v926 = vsel %vm900, %v780, 0
        %v929 = vsel %vm900, %v781, 0
        %v932 = vsel %vm900, %v782, 0
        %v935 = vsel %vm900, %v783, 0
        %v938 = vsel %vm900, %v784, 0
        %v941 = vsel %vm900, %v785, 0
        %v944 = vsel %vm900, %v786, 0
        %v947 = vsel %vm900, %v787, 0
        %v950 = vsel %vm900, %v788, 0
        %v953 = vsel %vm900, %v789, 0
        %v956 = vsel %vm900, %v790, 0
        %v959 = vsel %vm900, %v791, 0
        %v962 = vsel %vm900, %v792, 0
        %v965 = vsel %vm900, %v793, 0
        %v968 = vsel %vm900, %v794, 0
        %v971 = vsel %vm900, %v795, 0
        %v974 = vsel %vm900, %v796, 0
        %v977 = vsel %vm900, %v797, 0
        %v980 = vsel %vm900, %v798, 0
        %v983 = vsel %vm900, %v799, 0
        %v986 = vsel %vm900, %v800, 0
        %v989 = vsel %vm900, %v801, 0
        %v992 = vsel %vm900, %v802, 0
        %v995 = vsel %vm900, %v803, 0
        %v998 = vsel %vm900, %v804, 0
        %v1001 = vsel %vm900, %v805, 0
        %v1004 = vsel %vm900, %v806, 0
        %v1007 = vsel %vm900, %v807, 0
        %v1010 = vsel %vm900, %v808, 0
        %v1013 = vsel %vm900, %v809, 0
        %v1016 = vsel %vm900, %v810, 0
        %v1019 = vsel %vm900, %v811, 0
        %v1022 = vsel %vm900, %v812, 0
        %v1025 = vsel %vm900, %v813, 0
        %v1028 = vsel %vm900, %v814, 0
        %v1031 = vsel %vm900, %v815, 0
        %v1034 = vsel %vm900, %v816, 0
        %v1037 = vsel %vm900, %v817, 0
        %v1040 = vsel %vm900, %v818, 0
        %v1043 = vsel %vm900, %v819, 0
        %v1046 = vsel %vm900, %v820, 0
        %v1049 = vsel %vm900, %v821, 0
        %v1052 = vsel %vm900, %v822, 0
        %v1055 = vsel %vm900, %v823, 0
        %v1058 = vsel %vm900, %v824, 0
        %v1061 = vsel %vm900, %v825, 0
        %v1064 = vsel %vm900, %v826, 0
        %v1067 = vsel %vm900, %v827, 0
        %v1070 = vsel %vm900, %v828, 0
        %v1073 = vsel %vm900, %v829, 0
        %v1076 = vsel %vm900, %v830, 0
        %v1079 = vsel %vm900, %v831, 0
        %v1082 = vsel %vm900, %v832, 0
        %v1085 = vsel %vm900, %v833, 0
        %v1088 = vsel %vm900, %v834, 0
        %v1091 = vsel %vm900, %v835, 0
        %v1094 = vsel %vm900, %v836, 0
        %v1097 = vsel %vm900, %v837, 0
        %v1100 = vsel %vm900, %v838, 0
        %v1103 = vsel %vm900, %v839, 0
        %v1106 = vsel %vm900, %v840, 0
        %v1109 = vsel %vm900, %v841, 0
        %v1112 = vsel %vm900, %v842, 0
        %v1115 = vsel %vm900, %v843, 0
        %v1118 = vsel %vm900, %v844, 0
        %v1121 = vsel %vm900, %v845, 0
        %v1124 = vsel %vm900, %v846, 0
        %v1127 = vsel %vm900, %v847, 0
        %v1130 = vsel %vm900, %v848, 0
        %v1133 = vsel %vm900, %v849, 0
        %v1136 = vsel %vm900, %v850, 0
        %v1139 = vsel %vm900, %v851, 0
        %v1142 = vsel %vm900, %v852, 0
        %v1145 = vsel %vm900, %v853, 0
        %v1148 = vsel %vm900, %v854, 0
        %v1151 = vsel %vm900, %v855, 0
        %v1154 = vsel %vm900, %v856, 0
        %v1157 = vsel %vm900, %v857, 0
        %v1160 = vsel %vm900, %v858, 0
        %v1163 = vsel %vm900, %v859, 0
        %v1166 = vsel %vm900, %v860, 0
        %v1169 = vsel %vm900, %v861, 0
        %v1172 = vsel %vm900, %v862, 0
        %v1175 = vsel %vm900, %v863, 0
        %v1178 = vsel %vm900, %v864, 0
        %v1181 = vsel %vm900, %v865, 0
        %v1184 = vsel %vm900, %v866, 0
        %v1187 = vsel %vm900, %v867, 0
        %1189 = vmatprep.subr.mxu0 0.0
        %1190 = vmatpush1.xpose.msra.mxu0 %v1094
        %1191 = vmatprep.subr.mxu0 0.0
        %1192 = vmatpush1.xpose.msra.mxu0 %v1097
        %1193 = vmatprep.subr.mxu0 0.0
        %1194 = vmatpush1.xpose.msra.mxu0 %v1100
        %1195 = vmatprep.subr.mxu0 0.0
        %1196 = vmatpush1.xpose.msra.mxu0 %v1103
        %1197 = vmatprep.subr.mxu0 0.0
        %1198 = vmatpush1.xpose.msra.mxu0 %v1106
        %1199 = vmatprep.subr.mxu0 0.0
        %1200 = vmatpush1.xpose.msra.mxu0 %v1109
        %1201 = vmatprep.subr.mxu0 0.0
        %1202 = vmatpush1.xpose.msra.mxu0 %v1112
        %1203 = vmatprep.subr.mxu0 0.0
        %1204 = vmatpush1.xpose.msra.mxu0 %v1115
        %1205 = vmatprep.subr.mxu0 0.0
        %1206 = vmatpush1.xpose.msra.mxu0 %v1118
        %1207 = vmatprep.subr.mxu0 0.0
        %1208 = vmatpush1.xpose.msra.mxu0 %v1121
        %1209 = vmatprep.subr.mxu0 0.0
        %1210 = vmatpush1.xpose.msra.mxu0 %v1124
        %1211 = vmatprep.subr.mxu0 0.0
        %1212 = vmatpush1.xpose.msra.mxu0 %v1127
        %1213 = vmatprep.subr.mxu0 0.0
        %1214 = vmatpush1.xpose.msra.mxu0 %v1130
        %1215 = vmatprep.subr.mxu0 0.0
        %1216 = vmatpush1.xpose.msra.mxu0 %v1133
        %1217 = vmatprep.subr.mxu0 0.0
        %1218 = vmatpush1.xpose.msra.mxu0 %v1136
        %1219 = vmatprep.subr.mxu0 0.0
        %1220 = vmatpush1.xpose.msra.mxu0 %v1139
        %1221 = vmatprep.subr.mxu0 0.0
        %1222 = vmatpush1.xpose.msra.mxu0 %v1142
        %1223 = vmatprep.subr.mxu0 0.0
        %1224 = vmatpush1.xpose.msra.mxu0 %v1145
        %1225 = vmatprep.subr.mxu0 0.0
        %1226 = vmatpush1.xpose.msra.mxu0 %v1148
        %1227 = vmatprep.subr.mxu0 0.0
        %1228 = vmatpush1.xpose.msra.mxu0 %v1151
        %1229 = vmatprep.subr.mxu0 0.0
        %1230 = vmatpush1.xpose.msra.mxu0 %v1154
        %1231 = vmatprep.subr.mxu0 0.0
        %1232 = vmatpush1.xpose.msra.mxu0 %v1157
        %1233 = vmatprep.subr.mxu0 0.0
        %1234 = vmatpush1.xpose.msra.mxu0 %v1160
        %1235 = vmatprep.subr.mxu0 0.0
        %1236 = vmatpush1.xpose.msra.mxu0 %v1163
        %1237 = vmatprep.subr.mxu0 0.0
        %1238 = vmatpush1.xpose.msra.mxu0 %v1166
        %1239 = vmatprep.subr.mxu0 0.0
        %1240 = vmatpush1.xpose.msra.mxu0 %v1169
        %1241 = vmatprep.subr.mxu0 0.0
        %1242 = vmatpush1.xpose.msra.mxu0 %v1172
        %1243 = vmatprep.subr.mxu0 0.0
        %1244 = vmatpush1.xpose.msra.mxu0 %v1175
        %1245 = vmatprep.subr.mxu0 0.0
        %1246 = vmatpush1.xpose.msra.mxu0 %v1178
        %1247 = vmatprep.subr.mxu0 0.0
        %1248 = vmatpush1.xpose.msra.mxu0 %v1181
        %1249 = vmatprep.subr.mxu0 0.0
        %1250 = vmatpush1.xpose.msra.mxu0 %v1184
        %1251 = vmatprep.subr.mxu0 0.0
        %1252 = vmatpush1.xpose.msra.mxu0 %v1187
        %1253 = vmatprep.mubr.f32.mxu0 0.0
        %1254 = vmatmul.mubr.f32.gmra.mrb[0].mxu0 %v902
        %v1255 = vpop.f32.mrb[0].mxu0
        %v1256 = vadd.f32 0.0, %v1255
        %v1257 = vpop.f32.mrb[0].mxu0
        %v1258 = vadd.f32 0.0, %v1257
        %1259 = vmatprep.mubr.f32.mxu0 0.0
        %1260 = vmatmul.mubr.f32.gmra.mrb[0].mxu0 %v905
        %v1261 = vpop.f32.mrb[0].mxu0
        %v1262 = vadd.f32 0.0, %v1261
        %v1263 = vpop.f32.mrb[0].mxu0
        %v1264 = vadd.f32 0.0, %v1263
        %1265 = vmatprep.mubr.f32.mxu0 0.0
        %1266 = vmatmul.mubr.f32.gmra.mrb[0].mxu0 %v908
        %v1267 = vpop.f32.mrb[0].mxu0
        %v1268 = vadd.f32 0.0, %v1267
        %v1269 = vpop.f32.mrb[0].mxu0
        %v1270 = vadd.f32 0.0, %v1269
        %1271 = vmatprep.mubr.f32.mxu0 0.0
        %1272 = vmatmul.mubr.f32.gmra.mrb[0].mxu0 %v911
        %v1273 = vpop.f32.mrb[0].mxu0
        %v1274 = vadd.f32 0.0, %v1273
        %v1275 = vpop.f32.mrb[0].mxu0
        %v1276 = vadd.f32 0.0, %v1275
        %1277 = vmatprep.mubr.f32.mxu0 0.0
        %1278 = vmatmul.mubr.f32.gmra.mrb[0].mxu0 %v914
        %v1279 = vpop.f32.mrb[0].mxu0
        %v1280 = vadd.f32 0.0, %v1279
        %v1281 = vpop.f32.mrb[0].mxu0
        %v1282 = vadd.f32 0.0, %v1281
        %1283 = vmatprep.mubr.f32.mxu0 0.0
        %1284 = vmatmul.mubr.f32.gmra.mrb[0].mxu0 %v917
        %v1285 = vpop.f32.mrb[0].mxu0
        %v1286 = vadd.f32 0.0, %v1285
        %v1287 = vpop.f32.mrb[0].mxu0
        %v1288 = vadd.f32 0.0, %v1287
        %1289 = vmatprep.mubr.f32.mxu0 0.0
        %1290 = vmatmul.mubr.f32.gmra.mrb[0].mxu0 %v920
        %v1291 = vpop.f32.mrb[0].mxu0
        %v1292 = vadd.f32 0.0, %v1291
        %v1293 = vpop.f32.mrb[0].mxu0
        %v1294 = vadd.f32 0.0, %v1293
        %1295 = vmatprep.mubr.f32.mxu0 0.0
        %1296 = vmatmul.mubr.f32.gmra.mrb[0].mxu0 %v923
        %v1297 = vpop.f32.mrb[0].mxu0
        %v1298 = vadd.f32 0.0, %v1297
        %v1299 = vpop.f32.mrb[0].mxu0
        %v1300 = vadd.f32 0.0, %v1299
        %1301 = vmatprep.mubr.f32.mxu0 0.0
        %1302 = vmatmul.mubr.f32.gmra.mrb[0].mxu0 %v926
        %v1303 = vpop.f32.mrb[0].mxu0
        %v1304 = vadd.f32 0.0, %v1303
        %v1305 = vpop.f32.mrb[0].mxu0
        %v1306 = vadd.f32 0.0, %v1305
        %1307 = vmatprep.mubr.f32.mxu0 0.0
        %1308 = vmatmul.mubr.f32.gmra.mrb[0].mxu0 %v929
        %v1309 = vpop.f32.mrb[0].mxu0
        %v1310 = vadd.f32 0.0, %v1309
        %v1311 = vpop.f32.mrb[0].mxu0
        %v1312 = vadd.f32 0.0, %v1311
        %1313 = vmatprep.mubr.f32.mxu0 0.0
        %1314 = vmatmul.mubr.f32.gmra.mrb[0].mxu0 %v932
        %v1315 = vpop.f32.mrb[0].mxu0
        %v1316 = vadd.f32 0.0, %v1315
        %v1317 = vpop.f32.mrb[0].mxu0
        %v1318 = vadd.f32 0.0, %v1317
        %1319 = vmatprep.mubr.f32.mxu0 0.0
        %1320 = vmatmul.mubr.f32.gmra.mrb[0].mxu0 %v935
        %v1321 = vpop.f32.mrb[0].mxu0
        %v1322 = vadd.f32 0.0, %v1321
        %v1323 = vpop.f32.mrb[0].mxu0
        %v1324 = vadd.f32 0.0, %v1323
        %1325 = vmatprep.mubr.f32.mxu0 0.0
        %1326 = vmatmul.mubr.f32.gmra.mrb[0].mxu0 %v938
        %v1327 = vpop.f32.mrb[0].mxu0
        %v1328 = vadd.f32 0.0, %v1327
        %v1329 = vpop.f32.mrb[0].mxu0
        %v1330 = vadd.f32 0.0, %v1329
        %1331 = vmatprep.mubr.f32.mxu0 0.0
        %1332 = vmatmul.mubr.f32.gmra.mrb[0].mxu0 %v941
        %v1333 = vpop.f32.mrb[0].mxu0
        %v1334 = vadd.f32 0.0, %v1333
        %v1335 = vpop.f32.mrb[0].mxu0
        %v1336 = vadd.f32 0.0, %v1335
        %1337 = vmatprep.mubr.f32.mxu0 0.0
        %1338 = vmatmul.mubr.f32.gmra.mrb[0].mxu0 %v944
        %v1339 = vpop.f32.mrb[0].mxu0
        %v1340 = vadd.f32 0.0, %v1339
        %v1341 = vpop.f32.mrb[0].mxu0
        %v1342 = vadd.f32 0.0, %v1341
        %1343 = vmatprep.mubr.f32.mxu0 0.0
        %1344 = vmatmul.mubr.f32.gmra.mrb[0].mxu0 %v947
        %v1345 = vpop.f32.mrb[0].mxu0
        %v1346 = vadd.f32 0.0, %v1345
        %v1347 = vpop.f32.mrb[0].mxu0
        %v1348 = vadd.f32 0.0, %v1347
        %1349 = vmatprep.mubr.f32.mxu0 0.0
        %1350 = vmatmul.mubr.f32.gmra.mrb[0].mxu0 %v950
        %v1351 = vpop.f32.mrb[0].mxu0
        %v1352 = vadd.f32 0.0, %v1351
        %v1353 = vpop.f32.mrb[0].mxu0
        %v1354 = vadd.f32 0.0, %v1353
        %1355 = vmatprep.mubr.f32.mxu0 0.0
        %1356 = vmatmul.mubr.f32.gmra.mrb[0].mxu0 %v953
        %v1357 = vpop.f32.mrb[0].mxu0
        %v1358 = vadd.f32 0.0, %v1357
        %v1359 = vpop.f32.mrb[0].mxu0
        %v1360 = vadd.f32 0.0, %v1359
        %1361 = vmatprep.mubr.f32.mxu0 0.0
        %1362 = vmatmul.mubr.f32.gmra.mrb[0].mxu0 %v956
        %v1363 = vpop.f32.mrb[0].mxu0
        %v1364 = vadd.f32 0.0, %v1363
        %v1365 = vpop.f32.mrb[0].mxu0
        %v1366 = vadd.f32 0.0, %v1365
        %1367 = vmatprep.mubr.f32.mxu0 0.0
        %1368 = vmatmul.mubr.f32.gmra.mrb[0].mxu0 %v959
        %v1369 = vpop.f32.mrb[0].mxu0
        %v1370 = vadd.f32 0.0, %v1369
        %v1371 = vpop.f32.mrb[0].mxu0
        %v1372 = vadd.f32 0.0, %v1371
        %1373 = vmatprep.mubr.f32.mxu0 0.0
        %1374 = vmatmul.mubr.f32.gmra.mrb[0].mxu0 %v962
        %v1375 = vpop.f32.mrb[0].mxu0
        %v1376 = vadd.f32 0.0, %v1375
        %v1377 = vpop.f32.mrb[0].mxu0
        %v1378 = vadd.f32 0.0, %v1377
        %1379 = vmatprep.mubr.f32.mxu0 0.0
        %1380 = vmatmul.mubr.f32.gmra.mrb[0].mxu0 %v965
        %v1381 = vpop.f32.mrb[0].mxu0
        %v1382 = vadd.f32 0.0, %v1381
        %v1383 = vpop.f32.mrb[0].mxu0
        %v1384 = vadd.f32 0.0, %v1383
        %1385 = vmatprep.mubr.f32.mxu0 0.0
        %1386 = vmatmul.mubr.f32.gmra.mrb[0].mxu0 %v968
        %v1387 = vpop.f32.mrb[0].mxu0
        %v1388 = vadd.f32 0.0, %v1387
        %v1389 = vpop.f32.mrb[0].mxu0
        %v1390 = vadd.f32 0.0, %v1389
        %1391 = vmatprep.mubr.f32.mxu0 0.0
        %1392 = vmatmul.mubr.f32.gmra.mrb[0].mxu0 %v971
        %v1393 = vpop.f32.mrb[0].mxu0
        %v1394 = vadd.f32 0.0, %v1393
        %v1395 = vpop.f32.mrb[0].mxu0
        %v1396 = vadd.f32 0.0, %v1395
        %1397 = vmatprep.mubr.f32.mxu0 0.0
        %1398 = vmatmul.mubr.f32.gmra.mrb[0].mxu0 %v974
        %v1399 = vpop.f32.mrb[0].mxu0
        %v1400 = vadd.f32 0.0, %v1399
        %v1401 = vpop.f32.mrb[0].mxu0
        %v1402 = vadd.f32 0.0, %v1401
        %1403 = vmatprep.mubr.f32.mxu0 0.0
        %1404 = vmatmul.mubr.f32.gmra.mrb[0].mxu0 %v977
        %v1405 = vpop.f32.mrb[0].mxu0
        %v1406 = vadd.f32 0.0, %v1405
        %v1407 = vpop.f32.mrb[0].mxu0
        %v1408 = vadd.f32 0.0, %v1407
        %1409 = vmatprep.mubr.f32.mxu0 0.0
        %1410 = vmatmul.mubr.f32.gmra.mrb[0].mxu0 %v980
        %v1411 = vpop.f32.mrb[0].mxu0
        %v1412 = vadd.f32 0.0, %v1411
        %v1413 = vpop.f32.mrb[0].mxu0
        %v1414 = vadd.f32 0.0, %v1413
        %1415 = vmatprep.mubr.f32.mxu0 0.0
        %1416 = vmatmul.mubr.f32.gmra.mrb[0].mxu0 %v983
        %v1417 = vpop.f32.mrb[0].mxu0
        %v1418 = vadd.f32 0.0, %v1417
        %v1419 = vpop.f32.mrb[0].mxu0
        %v1420 = vadd.f32 0.0, %v1419
        %1421 = vmatprep.mubr.f32.mxu0 0.0
        %1422 = vmatmul.mubr.f32.gmra.mrb[0].mxu0 %v986
        %v1423 = vpop.f32.mrb[0].mxu0
        %v1424 = vadd.f32 0.0, %v1423
        %v1425 = vpop.f32.mrb[0].mxu0
        %v1426 = vadd.f32 0.0, %v1425
        %1427 = vmatprep.mubr.f32.mxu0 0.0
        %1428 = vmatmul.mubr.f32.gmra.mrb[0].mxu0 %v989
        %v1429 = vpop.f32.mrb[0].mxu0
        %v1430 = vadd.f32 0.0, %v1429
        %v1431 = vpop.f32.mrb[0].mxu0
        %v1432 = vadd.f32 0.0, %v1431
        %1433 = vmatprep.mubr.f32.mxu0 0.0
        %1434 = vmatmul.mubr.f32.gmra.mrb[0].mxu0 %v992
        %v1435 = vpop.f32.mrb[0].mxu0
        %v1436 = vadd.f32 0.0, %v1435
        %v1437 = vpop.f32.mrb[0].mxu0
        %v1438 = vadd.f32 0.0, %v1437
        %1439 = vmatprep.mubr.f32.mxu0 0.0
        %1440 = vmatmul.mubr.f32.gmra.mrb[0].mxu0 %v995
        %v1441 = vpop.f32.mrb[0].mxu0
        %v1442 = vadd.f32 0.0, %v1441
        %v1443 = vpop.f32.mrb[0].mxu0
        %v1444 = vadd.f32 0.0, %v1443
        %1445 = vmatprep.mubr.f32.mxu0 0.0
        %1446 = vmatmul.mubr.f32.gmra.mrb[0].mxu0 %v998
        %v1447 = vpop.f32.mrb[0].mxu0
        %v1448 = vadd.f32 0.0, %v1447
        %v1449 = vpop.f32.mrb[0].mxu0
        %v1450 = vadd.f32 0.0, %v1449
        %1451 = vmatprep.mubr.f32.mxu0 0.0
        %1452 = vmatmul.mubr.f32.gmra.mrb[0].mxu0 %v1001
        %v1453 = vpop.f32.mrb[0].mxu0
        %v1454 = vadd.f32 0.0, %v1453
        %v1455 = vpop.f32.mrb[0].mxu0
        %v1456 = vadd.f32 0.0, %v1455
        %1457 = vmatprep.mubr.f32.mxu0 0.0
        %1458 = vmatmul.mubr.f32.gmra.mrb[0].mxu0 %v1004
        %v1459 = vpop.f32.mrb[0].mxu0
        %v1460 = vadd.f32 0.0, %v1459
        %v1461 = vpop.f32.mrb[0].mxu0
        %v1462 = vadd.f32 0.0, %v1461
        %1463 = vmatprep.mubr.f32.mxu0 0.0
        %1464 = vmatmul.mubr.f32.gmra.mrb[0].mxu0 %v1007
        %v1465 = vpop.f32.mrb[0].mxu0
        %v1466 = vadd.f32 0.0, %v1465
        %v1467 = vpop.f32.mrb[0].mxu0
        %v1468 = vadd.f32 0.0, %v1467
        %1469 = vmatprep.mubr.f32.mxu0 0.0
        %1470 = vmatmul.mubr.f32.gmra.mrb[0].mxu0 %v1010
        %v1471 = vpop.f32.mrb[0].mxu0
        %v1472 = vadd.f32 0.0, %v1471
        %v1473 = vpop.f32.mrb[0].mxu0
        %v1474 = vadd.f32 0.0, %v1473
        %1475 = vmatprep.mubr.f32.mxu0 0.0
        %1476 = vmatmul.mubr.f32.gmra.mrb[0].mxu0 %v1013
        %v1477 = vpop.f32.mrb[0].mxu0
        %v1478 = vadd.f32 0.0, %v1477
        %v1479 = vpop.f32.mrb[0].mxu0
        %v1480 = vadd.f32 0.0, %v1479
        %1481 = vmatprep.mubr.f32.mxu0 0.0
        %1482 = vmatmul.mubr.f32.gmra.mrb[0].mxu0 %v1016
        %v1483 = vpop.f32.mrb[0].mxu0
        %v1484 = vadd.f32 0.0, %v1483
        %v1485 = vpop.f32.mrb[0].mxu0
        %v1486 = vadd.f32 0.0, %v1485
        %1487 = vmatprep.mubr.f32.mxu0 0.0
        %1488 = vmatmul.mubr.f32.gmra.mrb[0].mxu0 %v1019
        %v1489 = vpop.f32.mrb[0].mxu0
        %v1490 = vadd.f32 0.0, %v1489
        %v1491 = vpop.f32.mrb[0].mxu0
        %v1492 = vadd.f32 0.0, %v1491
        %1493 = vmatprep.mubr.f32.mxu0 0.0
        %1494 = vmatmul.mubr.f32.gmra.mrb[0].mxu0 %v1022
        %v1495 = vpop.f32.mrb[0].mxu0
        %v1496 = vadd.f32 0.0, %v1495
        %v1497 = vpop.f32.mrb[0].mxu0
        %v1498 = vadd.f32 0.0, %v1497
        %1499 = vmatprep.mubr.f32.mxu0 0.0
        %1500 = vmatmul.mubr.f32.gmra.mrb[0].mxu0 %v1025
        %v1501 = vpop.f32.mrb[0].mxu0
        %v1502 = vadd.f32 0.0, %v1501
        %v1503 = vpop.f32.mrb[0].mxu0
        %v1504 = vadd.f32 0.0, %v1503
        %1505 = vmatprep.mubr.f32.mxu0 0.0
        %1506 = vmatmul.mubr.f32.gmra.mrb[0].mxu0 %v1028
        %v1507 = vpop.f32.mrb[0].mxu0
        %v1508 = vadd.f32 0.0, %v1507
        %v1509 = vpop.f32.mrb[0].mxu0
        %v1510 = vadd.f32 0.0, %v1509
        %1511 = vmatprep.mubr.f32.mxu0 0.0
        %1512 = vmatmul.mubr.f32.gmra.mrb[0].mxu0 %v1031
        %v1513 = vpop.f32.mrb[0].mxu0
        %v1514 = vadd.f32 0.0, %v1513
        %v1515 = vpop.f32.mrb[0].mxu0
        %v1516 = vadd.f32 0.0, %v1515
        %1517 = vmatprep.mubr.f32.mxu0 0.0
        %1518 = vmatmul.mubr.f32.gmra.mrb[0].mxu0 %v1034
        %v1519 = vpop.f32.mrb[0].mxu0
        %v1520 = vadd.f32 0.0, %v1519
        %v1521 = vpop.f32.mrb[0].mxu0
        %v1522 = vadd.f32 0.0, %v1521
        %1523 = vmatprep.mubr.f32.mxu0 0.0
        %1524 = vmatmul.mubr.f32.gmra.mrb[0].mxu0 %v1037
        %v1525 = vpop.f32.mrb[0].mxu0
        %v1526 = vadd.f32 0.0, %v1525
        %v1527 = vpop.f32.mrb[0].mxu0
        %v1528 = vadd.f32 0.0, %v1527
        %1529 = vmatprep.mubr.f32.mxu0 0.0
        %1530 = vmatmul.mubr.f32.gmra.mrb[0].mxu0 %v1040
        %v1531 = vpop.f32.mrb[0].mxu0
        %v1532 = vadd.f32 0.0, %v1531
        %v1533 = vpop.f32.mrb[0].mxu0
        %v1534 = vadd.f32 0.0, %v1533
        %1535 = vmatprep.mubr.f32.mxu0 0.0
        %1536 = vmatmul.mubr.f32.gmra.mrb[0].mxu0 %v1043
        %v1537 = vpop.f32.mrb[0].mxu0
        %v1538 = vadd.f32 0.0, %v1537
        %v1539 = vpop.f32.mrb[0].mxu0
        %v1540 = vadd.f32 0.0, %v1539
        %1541 = vmatprep.mubr.f32.mxu0 0.0
        %1542 = vmatmul.mubr.f32.gmra.mrb[0].mxu0 %v1046
        %v1543 = vpop.f32.mrb[0].mxu0
        %v1544 = vadd.f32 0.0, %v1543
        %v1545 = vpop.f32.mrb[0].mxu0
        %v1546 = vadd.f32 0.0, %v1545
        %1547 = vmatprep.mubr.f32.mxu0 0.0
        %1548 = vmatmul.mubr.f32.gmra.mrb[0].mxu0 %v1049
        %v1549 = vpop.f32.mrb[0].mxu0
        %v1550 = vadd.f32 0.0, %v1549
        %v1551 = vpop.f32.mrb[0].mxu0
        %v1552 = vadd.f32 0.0, %v1551
        %1553 = vmatprep.mubr.f32.mxu0 0.0
        %1554 = vmatmul.mubr.f32.gmra.mrb[0].mxu0 %v1052
        %v1555 = vpop.f32.mrb[0].mxu0
        %v1556 = vadd.f32 0.0, %v1555
        %v1557 = vpop.f32.mrb[0].mxu0
        %v1558 = vadd.f32 0.0, %v1557
        %1559 = vmatprep.mubr.f32.mxu0 0.0
        %1560 = vmatmul.mubr.f32.gmra.mrb[0].mxu0 %v1055
        %v1561 = vpop.f32.mrb[0].mxu0
        %v1562 = vadd.f32 0.0, %v1561
        %v1563 = vpop.f32.mrb[0].mxu0
        %v1564 = vadd.f32 0.0, %v1563
        %1565 = vmatprep.mubr.f32.mxu0 0.0
        %1566 = vmatmul.mubr.f32.gmra.mrb[0].mxu0 %v1058
        %v1567 = vpop.f32.mrb[0].mxu0
        %v1568 = vadd.f32 0.0, %v1567
        %v1569 = vpop.f32.mrb[0].mxu0
        %v1570 = vadd.f32 0.0, %v1569
        %1571 = vmatprep.mubr.f32.mxu0 0.0
        %1572 = vmatmul.mubr.f32.gmra.mrb[0].mxu0 %v1061
        %v1573 = vpop.f32.mrb[0].mxu0
        %v1574 = vadd.f32 0.0, %v1573
        %v1575 = vpop.f32.mrb[0].mxu0
        %v1576 = vadd.f32 0.0, %v1575
        %1577 = vmatprep.mubr.f32.mxu0 0.0
        %1578 = vmatmul.mubr.f32.gmra.mrb[0].mxu0 %v1064
        %v1579 = vpop.f32.mrb[0].mxu0
        %v1580 = vadd.f32 0.0, %v1579
        %v1581 = vpop.f32.mrb[0].mxu0
        %v1582 = vadd.f32 0.0, %v1581
        %1583 = vmatprep.mubr.f32.mxu0 0.0
        %1584 = vmatmul.mubr.f32.gmra.mrb[0].mxu0 %v1067
        %v1585 = vpop.f32.mrb[0].mxu0
        %v1586 = vadd.f32 0.0, %v1585
        %v1587 = vpop.f32.mrb[0].mxu0
        %v1588 = vadd.f32 0.0, %v1587
        %1589 = vmatprep.mubr.f32.mxu0 0.0
        %1590 = vmatmul.mubr.f32.gmra.mrb[0].mxu0 %v1070
        %v1591 = vpop.f32.mrb[0].mxu0
        %v1592 = vadd.f32 0.0, %v1591
        %v1593 = vpop.f32.mrb[0].mxu0
        %v1594 = vadd.f32 0.0, %v1593
        %1595 = vmatprep.mubr.f32.mxu0 0.0
        %1596 = vmatmul.mubr.f32.gmra.mrb[0].mxu0 %v1073
        %v1597 = vpop.f32.mrb[0].mxu0
        %v1598 = vadd.f32 0.0, %v1597
        %v1599 = vpop.f32.mrb[0].mxu0
        %v1600 = vadd.f32 0.0, %v1599
        %1601 = vmatprep.mubr.f32.mxu0 0.0
        %1602 = vmatmul.mubr.f32.gmra.mrb[0].mxu0 %v1076
        %v1603 = vpop.f32.mrb[0].mxu0
        %v1604 = vadd.f32 0.0, %v1603
        %v1605 = vpop.f32.mrb[0].mxu0
        %v1606 = vadd.f32 0.0, %v1605
        %1607 = vmatprep.mubr.f32.mxu0 0.0
        %1608 = vmatmul.mubr.f32.gmra.mrb[0].mxu0 %v1079
        %v1609 = vpop.f32.mrb[0].mxu0
        %v1610 = vadd.f32 0.0, %v1609
        %v1611 = vpop.f32.mrb[0].mxu0
        %v1612 = vadd.f32 0.0, %v1611
        %1613 = vmatprep.mubr.f32.mxu0 0.0
        %1614 = vmatmul.mubr.f32.gmra.mrb[0].mxu0 %v1082
        %v1615 = vpop.f32.mrb[0].mxu0
        %v1616 = vadd.f32 0.0, %v1615
        %v1617 = vpop.f32.mrb[0].mxu0
        %v1618 = vadd.f32 0.0, %v1617
        %1619 = vmatprep.mubr.f32.mxu0 0.0
        %1620 = vmatmul.mubr.f32.gmra.mrb[0].mxu0 %v1085
        %v1621 = vpop.f32.mrb[0].mxu0
        %v1622 = vadd.f32 0.0, %v1621
        %v1623 = vpop.f32.mrb[0].mxu0
        %v1624 = vadd.f32 0.0, %v1623
        %1625 = vmatprep.mubr.f32.mxu0 0.0
        %1626 = vmatmul.mubr.f32.gmra.mrb[0].mxu0 %v1088
        %v1627 = vpop.f32.mrb[0].mxu0
        %v1628 = vadd.f32 0.0, %v1627
        %v1629 = vpop.f32.mrb[0].mxu0
        %v1630 = vadd.f32 0.0, %v1629
        %1631 = vmatprep.mubr.f32.mxu0 0.0
        %1632 = vmatmul.mubr.f32.gmra.mrb[0].mxu0 %v1091
        %v1633 = vpop.f32.mrb[0].mxu0
        %v1634 = vadd.f32 0.0, %v1633
        %v1635 = vpop.f32.mrb[0].mxu0
        %v1636 = vadd.f32 0.0, %v1635
        %1637 = vdwg.mxu0
        %v1638 = vld [vmem:[#allocation3] sm:$0xff]
        %v1639 = vld [vmem:[#allocation3 + $0x8] sm:$0xff]
        %v1640 = vld [vmem:[#allocation3 + $0x10] sm:$0xff]
        %v1641 = vld [vmem:[#allocation3 + $0x18] sm:$0xff]
        %v1642 = vld [vmem:[#allocation3 + $0x20] sm:$0xff]
        %v1643 = vld [vmem:[#allocation3 + $0x28] sm:$0xff]
        %v1644 = vld [vmem:[#allocation3 + $0x30] sm:$0xff]
        %v1645 = vld [vmem:[#allocation3 + $0x38] sm:$0xff]
        %v1646 = vld [vmem:[#allocation3 + $0x40] sm:$0xff]
        %v1647 = vld [vmem:[#allocation3 + $0x48] sm:$0xff]
        %v1648 = vld [vmem:[#allocation3 + $0x50] sm:$0xff]
        %v1649 = vld [vmem:[#allocation3 + $0x58] sm:$0xff]
        %v1650 = vld [vmem:[#allocation3 + $0x60] sm:$0xff]
        %v1651 = vld [vmem:[#allocation3 + $0x68] sm:$0xff]
        %v1652 = vld [vmem:[#allocation3 + $0x70] sm:$0xff]
        %v1653 = vld [vmem:[#allocation3 + $0x78] sm:$0xff]
        %v1654 = vld [vmem:[#allocation3 + $0x80] sm:$0xff]
        %v1655 = vld [vmem:[#allocation3 + $0x88] sm:$0xff]
        %v1656 = vld [vmem:[#allocation3 + $0x90] sm:$0xff]
        %v1657 = vld [vmem:[#allocation3 + $0x98] sm:$0xff]
        %v1658 = vld [vmem:[#allocation3 + $0xa0] sm:$0xff]
        %v1659 = vld [vmem:[#allocation3 + $0xa8] sm:$0xff]
        %v1660 = vld [vmem:[#allocation3 + $0xb0] sm:$0xff]
        %v1661 = vld [vmem:[#allocation3 + $0xb8] sm:$0xff]
        %v1662 = vld [vmem:[#allocation3 + $0xc0] sm:$0xff]
        %v1663 = vld [vmem:[#allocation3 + $0xc8] sm:$0xff]
        %v1664 = vld [vmem:[#allocation3 + $0xd0] sm:$0xff]
        %v1665 = vld [vmem:[#allocation3 + $0xd8] sm:$0xff]
        %v1666 = vld [vmem:[#allocation3 + $0xe0] sm:$0xff]
        %v1667 = vld [vmem:[#allocation3 + $0xe8] sm:$0xff]
        %v1668 = vld [vmem:[#allocation3 + $0xf0] sm:$0xff]
        %v1669 = vld [vmem:[#allocation3 + $0xf8] sm:$0xff]
        %v1670 = vld [vmem:[#allocation3 + $0x100] sm:$0xff]
        %v1671 = vld [vmem:[#allocation3 + $0x108] sm:$0xff]
        %v1672 = vld [vmem:[#allocation3 + $0x110] sm:$0xff]
        %v1673 = vld [vmem:[#allocation3 + $0x118] sm:$0xff]
        %v1674 = vld [vmem:[#allocation3 + $0x120] sm:$0xff]
        %v1675 = vld [vmem:[#allocation3 + $0x128] sm:$0xff]
        %v1676 = vld [vmem:[#allocation3 + $0x130] sm:$0xff]
        %v1677 = vld [vmem:[#allocation3 + $0x138] sm:$0xff]
        %v1678 = vld [vmem:[#allocation3 + $0x140] sm:$0xff]
        %v1679 = vld [vmem:[#allocation3 + $0x148] sm:$0xff]
        %v1680 = vld [vmem:[#allocation3 + $0x150] sm:$0xff]
        %v1681 = vld [vmem:[#allocation3 + $0x158] sm:$0xff]
        %v1682 = vld [vmem:[#allocation3 + $0x160] sm:$0xff]
        %v1683 = vld [vmem:[#allocation3 + $0x168] sm:$0xff]
        %v1684 = vld [vmem:[#allocation3 + $0x170] sm:$0xff]
        %v1685 = vld [vmem:[#allocation3 + $0x178] sm:$0xff]
        %v1686 = vld [vmem:[#allocation3 + $0x180] sm:$0xff]
        %v1687 = vld [vmem:[#allocation3 + $0x188] sm:$0xff]
        %v1688 = vld [vmem:[#allocation3 + $0x190] sm:$0xff]
        %v1689 = vld [vmem:[#allocation3 + $0x198] sm:$0xff]
        %v1690 = vld [vmem:[#allocation3 + $0x1a0] sm:$0xff]
        %v1691 = vld [vmem:[#allocation3 + $0x1a8] sm:$0xff]
        %v1692 = vld [vmem:[#allocation3 + $0x1b0] sm:$0xff]
        %v1693 = vld [vmem:[#allocation3 + $0x1b8] sm:$0xff]
        %v1694 = vld [vmem:[#allocation3 + $0x1c0] sm:$0xff]
        %v1695 = vld [vmem:[#allocation3 + $0x1c8] sm:$0xff]
        %v1696 = vld [vmem:[#allocation3 + $0x1d0] sm:$0xff]
        %v1697 = vld [vmem:[#allocation3 + $0x1d8] sm:$0xff]
        %v1698 = vld [vmem:[#allocation3 + $0x1e0] sm:$0xff]
        %v1699 = vld [vmem:[#allocation3 + $0x1e8] sm:$0xff]
        %v1700 = vld [vmem:[#allocation3 + $0x1f0] sm:$0xff]
        %v1701 = vld [vmem:[#allocation3 + $0x1f8] sm:$0xff]
        %v1702 = vmax.f32 %v1256, %v1258
        %1703 = vmax.xlane.f32.xlu0 %v1702
        %v1704 = vpop.xlane.xlu0 %1703
        %v1705 = vmax.f32 %v1262, %v1264
        %1706 = vmax.xlane.f32.xlu0 %v1705
        %v1707 = vpop.xlane.xlu0 %1706
        %v1708 = vmax.f32 %v1268, %v1270
        %1709 = vmax.xlane.f32.xlu0 %v1708
        %v1710 = vpop.xlane.xlu0 %1709
        %v1711 = vmax.f32 %v1274, %v1276
        %1712 = vmax.xlane.f32.xlu0 %v1711
        %v1713 = vpop.xlane.xlu0 %1712
        %v1714 = vmax.f32 %v1280, %v1282
        %1715 = vmax.xlane.f32.xlu0 %v1714
        %v1716 = vpop.xlane.xlu0 %1715
        %v1717 = vmax.f32 %v1286, %v1288
        %1718 = vmax.xlane.f32.xlu0 %v1717
        %v1719 = vpop.xlane.xlu0 %1718
        %v1720 = vmax.f32 %v1292, %v1294
        %1721 = vmax.xlane.f32.xlu0 %v1720
        %v1722 = vpop.xlane.xlu0 %1721
        %v1723 = vmax.f32 %v1298, %v1300
        %1724 = vmax.xlane.f32.xlu0 %v1723
        %v1725 = vpop.xlane.xlu0 %1724
        %v1726 = vmax.f32 %v1304, %v1306
        %1727 = vmax.xlane.f32.xlu0 %v1726
        %v1728 = vpop.xlane.xlu0 %1727
        %v1729 = vmax.f32 %v1310, %v1312
        %1730 = vmax.xlane.f32.xlu0 %v1729
        %v1731 = vpop.xlane.xlu0 %1730
        %v1732 = vmax.f32 %v1316, %v1318
        %1733 = vmax.xlane.f32.xlu0 %v1732
        %v1734 = vpop.xlane.xlu0 %1733
        %v1735 = vmax.f32 %v1322, %v1324
        %1736 = vmax.xlane.f32.xlu0 %v1735
        %v1737 = vpop.xlane.xlu0 %1736
        %v1738 = vmax.f32 %v1328, %v1330
        %1739 = vmax.xlane.f32.xlu0 %v1738
        %v1740 = vpop.xlane.xlu0 %1739
        %v1741 = vmax.f32 %v1334, %v1336
        %1742 = vmax.xlane.f32.xlu0 %v1741
        %v1743 = vpop.xlane.xlu0 %1742
        %v1744 = vmax.f32 %v1340, %v1342
        %1745 = vmax.xlane.f32.xlu0 %v1744
        %v1746 = vpop.xlane.xlu0 %1745
        %v1747 = vmax.f32 %v1346, %v1348
        %1748 = vmax.xlane.f32.xlu0 %v1747
        %v1749 = vpop.xlane.xlu0 %1748
        %v1750 = vmax.f32 %v1352, %v1354
        %1751 = vmax.xlane.f32.xlu0 %v1750
        %v1752 = vpop.xlane.xlu0 %1751
        %v1753 = vmax.f32 %v1358, %v1360
        %1754 = vmax.xlane.f32.xlu0 %v1753
        %v1755 = vpop.xlane.xlu0 %1754
        %v1756 = vmax.f32 %v1364, %v1366
        %1757 = vmax.xlane.f32.xlu0 %v1756
        %v1758 = vpop.xlane.xlu0 %1757
        %v1759 = vmax.f32 %v1370, %v1372
        %1760 = vmax.xlane.f32.xlu0 %v1759
        %v1761 = vpop.xlane.xlu0 %1760
        %v1762 = vmax.f32 %v1376, %v1378
        %1763 = vmax.xlane.f32.xlu0 %v1762
        %v1764 = vpop.xlane.xlu0 %1763
        %v1765 = vmax.f32 %v1382, %v1384
        %1766 = vmax.xlane.f32.xlu0 %v1765
        %v1767 = vpop.xlane.xlu0 %1766
        %v1768 = vmax.f32 %v1388, %v1390
        %1769 = vmax.xlane.f32.xlu0 %v1768
        %v1770 = vpop.xlane.xlu0 %1769
        %v1771 = vmax.f32 %v1394, %v1396
        %1772 = vmax.xlane.f32.xlu0 %v1771
        %v1773 = vpop.xlane.xlu0 %1772
        %v1774 = vmax.f32 %v1400, %v1402
        %1775 = vmax.xlane.f32.xlu0 %v1774
        %v1776 = vpop.xlane.xlu0 %1775
        %v1777 = vmax.f32 %v1406, %v1408
        %1778 = vmax.xlane.f32.xlu0 %v1777
        %v1779 = vpop.xlane.xlu0 %1778
        %v1780 = vmax.f32 %v1412, %v1414
        %1781 = vmax.xlane.f32.xlu0 %v1780
        %v1782 = vpop.xlane.xlu0 %1781
        %v1783 = vmax.f32 %v1418, %v1420
        %1784 = vmax.xlane.f32.xlu0 %v1783
        %v1785 = vpop.xlane.xlu0 %1784
        %v1786 = vmax.f32 %v1424, %v1426
        %1787 = vmax.xlane.f32.xlu0 %v1786
        %v1788 = vpop.xlane.xlu0 %1787
        %v1789 = vmax.f32 %v1430, %v1432
        %1790 = vmax.xlane.f32.xlu0 %v1789
        %v1791 = vpop.xlane.xlu0 %1790
        %v1792 = vmax.f32 %v1436, %v1438
        %1793 = vmax.xlane.f32.xlu0 %v1792
        %v1794 = vpop.xlane.xlu0 %1793
        %v1795 = vmax.f32 %v1442, %v1444
        %1796 = vmax.xlane.f32.xlu0 %v1795
        %v1797 = vpop.xlane.xlu0 %1796
        %v1798 = vmax.f32 %v1448, %v1450
        %1799 = vmax.xlane.f32.xlu0 %v1798
        %v1800 = vpop.xlane.xlu0 %1799
        %v1801 = vmax.f32 %v1454, %v1456
        %1802 = vmax.xlane.f32.xlu0 %v1801
        %v1803 = vpop.xlane.xlu0 %1802
        %v1804 = vmax.f32 %v1460, %v1462
        %1805 = vmax.xlane.f32.xlu0 %v1804
        %v1806 = vpop.xlane.xlu0 %1805
        %v1807 = vmax.f32 %v1466, %v1468
        %1808 = vmax.xlane.f32.xlu0 %v1807
        %v1809 = vpop.xlane.xlu0 %1808
        %v1810 = vmax.f32 %v1472, %v1474
        %1811 = vmax.xlane.f32.xlu0 %v1810
        %v1812 = vpop.xlane.xlu0 %1811
        %v1813 = vmax.f32 %v1478, %v1480
        %1814 = vmax.xlane.f32.xlu0 %v1813
        %v1815 = vpop.xlane.xlu0 %1814
        %v1816 = vmax.f32 %v1484, %v1486
        %1817 = vmax.xlane.f32.xlu0 %v1816
        %v1818 = vpop.xlane.xlu0 %1817
        %v1819 = vmax.f32 %v1490, %v1492
        %1820 = vmax.xlane.f32.xlu0 %v1819
        %v1821 = vpop.xlane.xlu0 %1820
        %v1822 = vmax.f32 %v1496, %v1498
        %1823 = vmax.xlane.f32.xlu0 %v1822
        %v1824 = vpop.xlane.xlu0 %1823
        %v1825 = vmax.f32 %v1502, %v1504
        %1826 = vmax.xlane.f32.xlu0 %v1825
        %v1827 = vpop.xlane.xlu0 %1826
        %v1828 = vmax.f32 %v1508, %v1510
        %1829 = vmax.xlane.f32.xlu0 %v1828
        %v1830 = vpop.xlane.xlu0 %1829
        %v1831 = vmax.f32 %v1514, %v1516
        %1832 = vmax.xlane.f32.xlu0 %v1831
        %v1833 = vpop.xlane.xlu0 %1832
        %v1834 = vmax.f32 %v1520, %v1522
        %1835 = vmax.xlane.f32.xlu0 %v1834
        %v1836 = vpop.xlane.xlu0 %1835
        %v1837 = vmax.f32 %v1526, %v1528
        %1838 = vmax.xlane.f32.xlu0 %v1837
        %v1839 = vpop.xlane.xlu0 %1838
        %v1840 = vmax.f32 %v1532, %v1534
        %1841 = vmax.xlane.f32.xlu0 %v1840
        %v1842 = vpop.xlane.xlu0 %1841
        %v1843 = vmax.f32 %v1538, %v1540
        %1844 = vmax.xlane.f32.xlu0 %v1843
        %v1845 = vpop.xlane.xlu0 %1844
        %v1846 = vmax.f32 %v1544, %v1546
        %1847 = vmax.xlane.f32.xlu0 %v1846
        %v1848 = vpop.xlane.xlu0 %1847
        %v1849 = vmax.f32 %v1550, %v1552
        %1850 = vmax.xlane.f32.xlu0 %v1849
        %v1851 = vpop.xlane.xlu0 %1850
        %v1852 = vmax.f32 %v1556, %v1558
        %1853 = vmax.xlane.f32.xlu0 %v1852
        %v1854 = vpop.xlane.xlu0 %1853
        %v1855 = vmax.f32 %v1562, %v1564
        %1856 = vmax.xlane.f32.xlu0 %v1855
        %v1857 = vpop.xlane.xlu0 %1856
        %v1858 = vmax.f32 %v1568, %v1570
        %1859 = vmax.xlane.f32.xlu0 %v1858
        %v1860 = vpop.xlane.xlu0 %1859
        %v1861 = vmax.f32 %v1574, %v1576
        %1862 = vmax.xlane.f32.xlu0 %v1861
        %v1863 = vpop.xlane.xlu0 %1862
        %v1864 = vmax.f32 %v1580, %v1582
        %1865 = vmax.xlane.f32.xlu0 %v1864
        %v1866 = vpop.xlane.xlu0 %1865
        %v1867 = vmax.f32 %v1586, %v1588
        %1868 = vmax.xlane.f32.xlu0 %v1867
        %v1869 = vpop.xlane.xlu0 %1868
        %v1870 = vmax.f32 %v1592, %v1594
        %1871 = vmax.xlane.f32.xlu0 %v1870
        %v1872 = vpop.xlane.xlu0 %1871
        %v1873 = vmax.f32 %v1598, %v1600
        %1874 = vmax.xlane.f32.xlu0 %v1873
        %v1875 = vpop.xlane.xlu0 %1874
        %v1876 = vmax.f32 %v1604, %v1606
        %1877 = vmax.xlane.f32.xlu0 %v1876
        %v1878 = vpop.xlane.xlu0 %1877
        %v1879 = vmax.f32 %v1610, %v1612
        %1880 = vmax.xlane.f32.xlu0 %v1879
        %v1881 = vpop.xlane.xlu0 %1880
        %v1882 = vmax.f32 %v1616, %v1618
        %1883 = vmax.xlane.f32.xlu0 %v1882
        %v1884 = vpop.xlane.xlu0 %1883
        %v1885 = vmax.f32 %v1622, %v1624
        %1886 = vmax.xlane.f32.xlu0 %v1885
        %v1887 = vpop.xlane.xlu0 %1886
        %v1888 = vmax.f32 %v1628, %v1630
        %1889 = vmax.xlane.f32.xlu0 %v1888
        %v1890 = vpop.xlane.xlu0 %1889
        %v1891 = vmax.f32 %v1634, %v1636
        %1892 = vmax.xlane.f32.xlu0 %v1891
        %v1893 = vpop.xlane.xlu0 %1892
        %v1894 = vmax.f32 %v1638, %v1704
        %v1895 = vmax.f32 %v1639, %v1707
        %v1896 = vmax.f32 %v1640, %v1710
        %v1897 = vmax.f32 %v1641, %v1713
        %v1898 = vmax.f32 %v1642, %v1716
        %v1899 = vmax.f32 %v1643, %v1719
        %v1900 = vmax.f32 %v1644, %v1722
        %v1901 = vmax.f32 %v1645, %v1725
        %v1902 = vmax.f32 %v1646, %v1728
        %v1903 = vmax.f32 %v1647, %v1731
        %v1904 = vmax.f32 %v1648, %v1734
        %v1905 = vmax.f32 %v1649, %v1737
        %v1906 = vmax.f32 %v1650, %v1740
        %v1907 = vmax.f32 %v1651, %v1743
        %v1908 = vmax.f32 %v1652, %v1746
        %v1909 = vmax.f32 %v1653, %v1749
        %v1910 = vmax.f32 %v1654, %v1752
        %v1911 = vmax.f32 %v1655, %v1755
        %v1912 = vmax.f32 %v1656, %v1758
        %v1913 = vmax.f32 %v1657, %v1761
        %v1914 = vmax.f32 %v1658, %v1764
        %v1915 = vmax.f32 %v1659, %v1767
        %v1916 = vmax.f32 %v1660, %v1770
        %v1917 = vmax.f32 %v1661, %v1773
        %v1918 = vmax.f32 %v1662, %v1776
        %v1919 = vmax.f32 %v1663, %v1779
        %v1920 = vmax.f32 %v1664, %v1782
        %v1921 = vmax.f32 %v1665, %v1785
        %v1922 = vmax.f32 %v1666, %v1788
        %v1923 = vmax.f32 %v1667, %v1791
        %v1924 = vmax.f32 %v1668, %v1794
        %v1925 = vmax.f32 %v1669, %v1797
        %v1926 = vmax.f32 %v1670, %v1800
        %v1927 = vmax.f32 %v1671, %v1803
        %v1928 = vmax.f32 %v1672, %v1806
        %v1929 = vmax.f32 %v1673, %v1809
        %v1930 = vmax.f32 %v1674, %v1812
        %v1931 = vmax.f32 %v1675, %v1815
        %v1932 = vmax.f32 %v1676, %v1818
        %v1933 = vmax.f32 %v1677, %v1821
        %v1934 = vmax.f32 %v1678, %v1824
        %v1935 = vmax.f32 %v1679, %v1827
        %v1936 = vmax.f32 %v1680, %v1830
        %v1937 = vmax.f32 %v1681, %v1833
        %v1938 = vmax.f32 %v1682, %v1836
        %v1939 = vmax.f32 %v1683, %v1839
        %v1940 = vmax.f32 %v1684, %v1842
        %v1941 = vmax.f32 %v1685, %v1845
        %v1942 = vmax.f32 %v1686, %v1848
        %v1943 = vmax.f32 %v1687, %v1851
        %v1944 = vmax.f32 %v1688, %v1854
        %v1945 = vmax.f32 %v1689, %v1857
        %v1946 = vmax.f32 %v1690, %v1860
        %v1947 = vmax.f32 %v1691, %v1863
        %v1948 = vmax.f32 %v1692, %v1866
        %v1949 = vmax.f32 %v1693, %v1869
        %v1950 = vmax.f32 %v1694, %v1872
        %v1951 = vmax.f32 %v1695, %v1875
        %v1952 = vmax.f32 %v1696, %v1878
        %v1953 = vmax.f32 %v1697, %v1881
        %v1954 = vmax.f32 %v1698, %v1884
        %v1955 = vmax.f32 %v1699, %v1887
        %v1956 = vmax.f32 %v1700, %v1890
        %v1957 = vmax.f32 %v1701, %v1893
        %v1958 = vsub.f32 %v1638, %v1894
        %v1959 = vsub.f32 %v1639, %v1895
        %v1960 = vsub.f32 %v1640, %v1896
        %v1961 = vsub.f32 %v1641, %v1897
        %v1962 = vsub.f32 %v1642, %v1898
        %v1963 = vsub.f32 %v1643, %v1899
        %v1964 = vsub.f32 %v1644, %v1900
        %v1965 = vsub.f32 %v1645, %v1901
        %v1966 = vsub.f32 %v1646, %v1902
        %v1967 = vsub.f32 %v1647, %v1903
        %v1968 = vsub.f32 %v1648, %v1904
        %v1969 = vsub.f32 %v1649, %v1905
        %v1970 = vsub.f32 %v1650, %v1906
        %v1971 = vsub.f32 %v1651, %v1907
        %v1972 = vsub.f32 %v1652, %v1908
        %v1973 = vsub.f32 %v1653, %v1909
        %v1974 = vsub.f32 %v1654, %v1910
        %v1975 = vsub.f32 %v1655, %v1911
        %v1976 = vsub.f32 %v1656, %v1912
        %v1977 = vsub.f32 %v1657, %v1913
        %v1978 = vsub.f32 %v1658, %v1914
        %v1979 = vsub.f32 %v1659, %v1915
        %v1980 = vsub.f32 %v1660, %v1916
        %v1981 = vsub.f32 %v1661, %v1917
        %v1982 = vsub.f32 %v1662, %v1918
        %v1983 = vsub.f32 %v1663, %v1919
        %v1984 = vsub.f32 %v1664, %v1920
        %v1985 = vsub.f32 %v1665, %v1921
        %v1986 = vsub.f32 %v1666, %v1922
        %v1987 = vsub.f32 %v1667, %v1923
        %v1988 = vsub.f32 %v1668, %v1924
        %v1989 = vsub.f32 %v1669, %v1925
        %v1990 = vsub.f32 %v1670, %v1926
        %v1991 = vsub.f32 %v1671, %v1927
        %v1992 = vsub.f32 %v1672, %v1928
        %v1993 = vsub.f32 %v1673, %v1929
        %v1994 = vsub.f32 %v1674, %v1930
        %v1995 = vsub.f32 %v1675, %v1931
        %v1996 = vsub.f32 %v1676, %v1932
        %v1997 = vsub.f32 %v1677, %v1933
        %v1998 = vsub.f32 %v1678, %v1934
        %v1999 = vsub.f32 %v1679, %v1935
        %v2000 = vsub.f32 %v1680, %v1936
        %v2001 = vsub.f32 %v1681, %v1937
        %v2002 = vsub.f32 %v1682, %v1938
        %v2003 = vsub.f32 %v1683, %v1939
        %v2004 = vsub.f32 %v1684, %v1940
        %v2005 = vsub.f32 %v1685, %v1941
        %v2006 = vsub.f32 %v1686, %v1942
        %v2007 = vsub.f32 %v1687, %v1943
        %v2008 = vsub.f32 %v1688, %v1944
        %v2009 = vsub.f32 %v1689, %v1945
        %v2010 = vsub.f32 %v1690, %v1946
        %v2011 = vsub.f32 %v1691, %v1947
        %v2012 = vsub.f32 %v1692, %v1948
        %v2013 = vsub.f32 %v1693, %v1949
        %v2014 = vsub.f32 %v1694, %v1950
        %v2015 = vsub.f32 %v1695, %v1951
        %v2016 = vsub.f32 %v1696, %v1952
        %v2017 = vsub.f32 %v1697, %v1953
        %v2018 = vsub.f32 %v1698, %v1954
        %v2019 = vsub.f32 %v1699, %v1955
        %v2020 = vsub.f32 %v1700, %v1956
        %v2021 = vsub.f32 %v1701, %v1957
        %v2022 = vmul.f32 %v1958, 1.442695
        %v2023 = vpow.pop %v2022
        %v2024 = vmul.f32 %v1959, 1.442695
        %v2025 = vpow.pop %v2024
        %v2026 = vmul.f32 %v1960, 1.442695
        %v2027 = vpow.pop %v2026
        %v2028 = vmul.f32 %v1961, 1.442695
        %v2029 = vpow.pop %v2028
        %v2030 = vmul.f32 %v1962, 1.442695
        %v2031 = vpow.pop %v2030
        %v2032 = vmul.f32 %v1963, 1.442695
        %v2033 = vpow.pop %v2032
        %v2034 = vmul.f32 %v1964, 1.442695
        %v2035 = vpow.pop %v2034
        %v2036 = vmul.f32 %v1965, 1.442695
        %v2037 = vpow.pop %v2036
        %v2038 = vmul.f32 %v1966, 1.442695
        %v2039 = vpow.pop %v2038
        %v2040 = vmul.f32 %v1967, 1.442695
        %v2041 = vpow.pop %v2040
        %v2042 = vmul.f32 %v1968, 1.442695
        %v2043 = vpow.pop %v2042
        %v2044 = vmul.f32 %v1969, 1.442695
        %v2045 = vpow.pop %v2044
        %v2046 = vmul.f32 %v1970, 1.442695
        %v2047 = vpow.pop %v2046
        %v2048 = vmul.f32 %v1971, 1.442695
        %v2049 = vpow.pop %v2048
        %v2050 = vmul.f32 %v1972, 1.442695
        %v2051 = vpow.pop %v2050
        %v2052 = vmul.f32 %v1973, 1.442695
        %v2053 = vpow.pop %v2052
        %v2054 = vmul.f32 %v1974, 1.442695
        %v2055 = vpow.pop %v2054
        %v2056 = vmul.f32 %v1975, 1.442695
        %v2057 = vpow.pop %v2056
        %v2058 = vmul.f32 %v1976, 1.442695
        %v2059 = vpow.pop %v2058
        %v2060 = vmul.f32 %v1977, 1.442695
        %v2061 = vpow.pop %v2060
        %v2062 = vmul.f32 %v1978, 1.442695
        %v2063 = vpow.pop %v2062
        %v2064 = vmul.f32 %v1979, 1.442695
        %v2065 = vpow.pop %v2064
        %v2066 = vmul.f32 %v1980, 1.442695
        %v2067 = vpow.pop %v2066
        %v2068 = vmul.f32 %v1981, 1.442695
        %v2069 = vpow.pop %v2068
        %v2070 = vmul.f32 %v1982, 1.442695
        %v2071 = vpow.pop %v2070
        %v2072 = vmul.f32 %v1983, 1.442695
        %v2073 = vpow.pop %v2072
        %v2074 = vmul.f32 %v1984, 1.442695
        %v2075 = vpow.pop %v2074
        %v2076 = vmul.f32 %v1985, 1.442695
        %v2077 = vpow.pop %v2076
        %v2078 = vmul.f32 %v1986, 1.442695
        %v2079 = vpow.pop %v2078
        %v2080 = vmul.f32 %v1987, 1.442695
        %v2081 = vpow.pop %v2080
        %v2082 = vmul.f32 %v1988, 1.442695
        %v2083 = vpow.pop %v2082
        %v2084 = vmul.f32 %v1989, 1.442695
        %v2085 = vpow.pop %v2084
        %v2086 = vmul.f32 %v1990, 1.442695
        %v2087 = vpow.pop %v2086
        %v2088 = vmul.f32 %v1991, 1.442695
        %v2089 = vpow.pop %v2088
        %v2090 = vmul.f32 %v1992, 1.442695
        %v2091 = vpow.pop %v2090
        %v2092 = vmul.f32 %v1993, 1.442695
        %v2093 = vpow.pop %v2092
        %v2094 = vmul.f32 %v1994, 1.442695
        %v2095 = vpow.pop %v2094
        %v2096 = vmul.f32 %v1995, 1.442695
        %v2097 = vpow.pop %v2096
        %v2098 = vmul.f32 %v1996, 1.442695
        %v2099 = vpow.pop %v2098
        %v2100 = vmul.f32 %v1997, 1.442695
        %v2101 = vpow.pop %v2100
        %v2102 = vmul.f32 %v1998, 1.442695
        %v2103 = vpow.pop %v2102
        %v2104 = vmul.f32 %v1999, 1.442695
        %v2105 = vpow.pop %v2104
        %v2106 = vmul.f32 %v2000, 1.442695
        %v2107 = vpow.pop %v2106
        %v2108 = vmul.f32 %v2001, 1.442695
        %v2109 = vpow.pop %v2108
        %v2110 = vmul.f32 %v2002, 1.442695
        %v2111 = vpow.pop %v2110
        %v2112 = vmul.f32 %v2003, 1.442695
        %v2113 = vpow.pop %v2112
        %v2114 = vmul.f32 %v2004, 1.442695
        %v2115 = vpow.pop %v2114
        %v2116 = vmul.f32 %v2005, 1.442695
        %v2117 = vpow.pop %v2116
        %v2118 = vmul.f32 %v2006, 1.442695
        %v2119 = vpow.pop %v2118
        %v2120 = vmul.f32 %v2007, 1.442695
        %v2121 = vpow.pop %v2120
        %v2122 = vmul.f32 %v2008, 1.442695
        %v2123 = vpow.pop %v2122
        %v2124 = vmul.f32 %v2009, 1.442695
        %v2125 = vpow.pop %v2124
        %v2126 = vmul.f32 %v2010, 1.442695
        %v2127 = vpow.pop %v2126
        %v2128 = vmul.f32 %v2011, 1.442695
        %v2129 = vpow.pop %v2128
        %v2130 = vmul.f32 %v2012, 1.442695
        %v2131 = vpow.pop %v2130
        %v2132 = vmul.f32 %v2013, 1.442695
        %v2133 = vpow.pop %v2132
        %v2134 = vmul.f32 %v2014, 1.442695
        %v2135 = vpow.pop %v2134
        %v2136 = vmul.f32 %v2015, 1.442695
        %v2137 = vpow.pop %v2136
        %v2138 = vmul.f32 %v2016, 1.442695
        %v2139 = vpow.pop %v2138
        %v2140 = vmul.f32 %v2017, 1.442695
        %v2141 = vpow.pop %v2140
        %v2142 = vmul.f32 %v2018, 1.442695
        %v2143 = vpow.pop %v2142
        %v2144 = vmul.f32 %v2019, 1.442695
        %v2145 = vpow.pop %v2144
        %v2146 = vmul.f32 %v2020, 1.442695
        %v2147 = vpow.pop %v2146
        %v2148 = vmul.f32 %v2021, 1.442695
        %v2149 = vpow.pop %v2148
        %2151 = vset.pattern.permute.xlu0 0
        %2152 = vperm.xlu0 %2151, %v1894
        %v2153 = vpop.permute.xlu0 %2152
        %2156 = vset.pattern.permute.xlu0 0
        %2157 = vperm.xlu0 %2156, %v1895
        %v2158 = vpop.permute.xlu0 %2157
        %2161 = vset.pattern.permute.xlu0 0
        %2162 = vperm.xlu0 %2161, %v1896
        %v2163 = vpop.permute.xlu0 %2162
        %2166 = vset.pattern.permute.xlu0 0
        %2167 = vperm.xlu0 %2166, %v1897
        %v2168 = vpop.permute.xlu0 %2167
        %2171 = vset.pattern.permute.xlu0 0
        %2172 = vperm.xlu0 %2171, %v1898
        %v2173 = vpop.permute.xlu0 %2172
        %2176 = vset.pattern.permute.xlu0 0
        %2177 = vperm.xlu0 %2176, %v1899
        %v2178 = vpop.permute.xlu0 %2177
        %2181 = vset.pattern.permute.xlu0 0
        %2182 = vperm.xlu0 %2181, %v1900
        %v2183 = vpop.permute.xlu0 %2182
        %2186 = vset.pattern.permute.xlu0 0
        %2187 = vperm.xlu0 %2186, %v1901
        %v2188 = vpop.permute.xlu0 %2187
        %2191 = vset.pattern.permute.xlu0 0
        %2192 = vperm.xlu0 %2191, %v1902
        %v2193 = vpop.permute.xlu0 %2192
        %2196 = vset.pattern.permute.xlu0 0
        %2197 = vperm.xlu0 %2196, %v1903
        %v2198 = vpop.permute.xlu0 %2197
        %2201 = vset.pattern.permute.xlu0 0
        %2202 = vperm.xlu0 %2201, %v1904
        %v2203 = vpop.permute.xlu0 %2202
        %2206 = vset.pattern.permute.xlu0 0
        %2207 = vperm.xlu0 %2206, %v1905
        %v2208 = vpop.permute.xlu0 %2207
        %2211 = vset.pattern.permute.xlu0 0
        %2212 = vperm.xlu0 %2211, %v1906
        %v2213 = vpop.permute.xlu0 %2212
        %2216 = vset.pattern.permute.xlu0 0
        %2217 = vperm.xlu0 %2216, %v1907
        %v2218 = vpop.permute.xlu0 %2217
        %2221 = vset.pattern.permute.xlu0 0
        %2222 = vperm.xlu0 %2221, %v1908
        %v2223 = vpop.permute.xlu0 %2222
        %2226 = vset.pattern.permute.xlu0 0
        %2227 = vperm.xlu0 %2226, %v1909
        %v2228 = vpop.permute.xlu0 %2227
        %2231 = vset.pattern.permute.xlu0 0
        %2232 = vperm.xlu0 %2231, %v1910
        %v2233 = vpop.permute.xlu0 %2232
        %2236 = vset.pattern.permute.xlu0 0
        %2237 = vperm.xlu0 %2236, %v1911
        %v2238 = vpop.permute.xlu0 %2237
        %2241 = vset.pattern.permute.xlu0 0
        %2242 = vperm.xlu0 %2241, %v1912
        %v2243 = vpop.permute.xlu0 %2242
        %2246 = vset.pattern.permute.xlu0 0
        %2247 = vperm.xlu0 %2246, %v1913
        %v2248 = vpop.permute.xlu0 %2247
        %2251 = vset.pattern.permute.xlu0 0
        %2252 = vperm.xlu0 %2251, %v1914
        %v2253 = vpop.permute.xlu0 %2252
        %2256 = vset.pattern.permute.xlu0 0
        %2257 = vperm.xlu0 %2256, %v1915
        %v2258 = vpop.permute.xlu0 %2257
        %2261 = vset.pattern.permute.xlu0 0
        %2262 = vperm.xlu0 %2261, %v1916
        %v2263 = vpop.permute.xlu0 %2262
        %2266 = vset.pattern.permute.xlu0 0
        %2267 = vperm.xlu0 %2266, %v1917
        %v2268 = vpop.permute.xlu0 %2267
        %2271 = vset.pattern.permute.xlu0 0
        %2272 = vperm.xlu0 %2271, %v1918
        %v2273 = vpop.permute.xlu0 %2272
        %2276 = vset.pattern.permute.xlu0 0
        %2277 = vperm.xlu0 %2276, %v1919
        %v2278 = vpop.permute.xlu0 %2277
        %2281 = vset.pattern.permute.xlu0 0
        %2282 = vperm.xlu0 %2281, %v1920
        %v2283 = vpop.permute.xlu0 %2282
        %2286 = vset.pattern.permute.xlu0 0
        %2287 = vperm.xlu0 %2286, %v1921
        %v2288 = vpop.permute.xlu0 %2287
        %2291 = vset.pattern.permute.xlu0 0
        %2292 = vperm.xlu0 %2291, %v1922
        %v2293 = vpop.permute.xlu0 %2292
        %2296 = vset.pattern.permute.xlu0 0
        %2297 = vperm.xlu0 %2296, %v1923
        %v2298 = vpop.permute.xlu0 %2297
        %2301 = vset.pattern.permute.xlu0 0
        %2302 = vperm.xlu0 %2301, %v1924
        %v2303 = vpop.permute.xlu0 %2302
        %2306 = vset.pattern.permute.xlu0 0
        %2307 = vperm.xlu0 %2306, %v1925
        %v2308 = vpop.permute.xlu0 %2307
        %2311 = vset.pattern.permute.xlu0 0
        %2312 = vperm.xlu0 %2311, %v1926
        %v2313 = vpop.permute.xlu0 %2312
        %2316 = vset.pattern.permute.xlu0 0
        %2317 = vperm.xlu0 %2316, %v1927
        %v2318 = vpop.permute.xlu0 %2317
        %2321 = vset.pattern.permute.xlu0 0
        %2322 = vperm.xlu0 %2321, %v1928
        %v2323 = vpop.permute.xlu0 %2322
        %2326 = vset.pattern.permute.xlu0 0
        %2327 = vperm.xlu0 %2326, %v1929
        %v2328 = vpop.permute.xlu0 %2327
        %2331 = vset.pattern.permute.xlu0 0
        %2332 = vperm.xlu0 %2331, %v1930
        %v2333 = vpop.permute.xlu0 %2332
        %2336 = vset.pattern.permute.xlu0 0
        %2337 = vperm.xlu0 %2336, %v1931
        %v2338 = vpop.permute.xlu0 %2337
        %2341 = vset.pattern.permute.xlu0 0
        %2342 = vperm.xlu0 %2341, %v1932
        %v2343 = vpop.permute.xlu0 %2342
        %2346 = vset.pattern.permute.xlu0 0
        %2347 = vperm.xlu0 %2346, %v1933
        %v2348 = vpop.permute.xlu0 %2347
        %2351 = vset.pattern.permute.xlu0 0
        %2352 = vperm.xlu0 %2351, %v1934
        %v2353 = vpop.permute.xlu0 %2352
        %2356 = vset.pattern.permute.xlu0 0
        %2357 = vperm.xlu0 %2356, %v1935
        %v2358 = vpop.permute.xlu0 %2357
        %2361 = vset.pattern.permute.xlu0 0
        %2362 = vperm.xlu0 %2361, %v1936
        %v2363 = vpop.permute.xlu0 %2362
        %2366 = vset.pattern.permute.xlu0 0
        %2367 = vperm.xlu0 %2366, %v1937
        %v2368 = vpop.permute.xlu0 %2367
        %2371 = vset.pattern.permute.xlu0 0
        %2372 = vperm.xlu0 %2371, %v1938
        %v2373 = vpop.permute.xlu0 %2372
        %2376 = vset.pattern.permute.xlu0 0
        %2377 = vperm.xlu0 %2376, %v1939
        %v2378 = vpop.permute.xlu0 %2377
        %2381 = vset.pattern.permute.xlu0 0
        %2382 = vperm.xlu0 %2381, %v1940
        %v2383 = vpop.permute.xlu0 %2382
        %2386 = vset.pattern.permute.xlu0 0
        %2387 = vperm.xlu0 %2386, %v1941
        %v2388 = vpop.permute.xlu0 %2387
        %2391 = vset.pattern.permute.xlu0 0
        %2392 = vperm.xlu0 %2391, %v1942
        %v2393 = vpop.permute.xlu0 %2392
        %2396 = vset.pattern.permute.xlu0 0
        %2397 = vperm.xlu0 %2396, %v1943
        %v2398 = vpop.permute.xlu0 %2397
        %2401 = vset.pattern.permute.xlu0 0
        %2402 = vperm.xlu0 %2401, %v1944
        %v2403 = vpop.permute.xlu0 %2402
        %2406 = vset.pattern.permute.xlu0 0
        %2407 = vperm.xlu0 %2406, %v1945
        %v2408 = vpop.permute.xlu0 %2407
        %2411 = vset.pattern.permute.xlu0 0
        %2412 = vperm.xlu0 %2411, %v1946
        %v2413 = vpop.permute.xlu0 %2412
        %2416 = vset.pattern.permute.xlu0 0
        %2417 = vperm.xlu0 %2416, %v1947
        %v2418 = vpop.permute.xlu0 %2417
        %2421 = vset.pattern.permute.xlu0 0
        %2422 = vperm.xlu0 %2421, %v1948
        %v2423 = vpop.permute.xlu0 %2422
        %2426 = vset.pattern.permute.xlu0 0
        %2427 = vperm.xlu0 %2426, %v1949
        %v2428 = vpop.permute.xlu0 %2427
        %2431 = vset.pattern.permute.xlu0 0
        %2432 = vperm.xlu0 %2431, %v1950
        %v2433 = vpop.permute.xlu0 %2432
        %2436 = vset.pattern.permute.xlu0 0
        %2437 = vperm.xlu0 %2436, %v1951
        %v2438 = vpop.permute.xlu0 %2437
        %2441 = vset.pattern.permute.xlu0 0
        %2442 = vperm.xlu0 %2441, %v1952
        %v2443 = vpop.permute.xlu0 %2442
        %2446 = vset.pattern.permute.xlu0 0
        %2447 = vperm.xlu0 %2446, %v1953
        %v2448 = vpop.permute.xlu0 %2447
        %2451 = vset.pattern.permute.xlu0 0
        %2452 = vperm.xlu0 %2451, %v1954
        %v2453 = vpop.permute.xlu0 %2452
        %2456 = vset.pattern.permute.xlu0 0
        %2457 = vperm.xlu0 %2456, %v1955
        %v2458 = vpop.permute.xlu0 %2457
        %2461 = vset.pattern.permute.xlu0 0
        %2462 = vperm.xlu0 %2461, %v1956
        %v2463 = vpop.permute.xlu0 %2462
        %2466 = vset.pattern.permute.xlu0 0
        %2467 = vperm.xlu0 %2466, %v1957
        %v2468 = vpop.permute.xlu0 %2467
        %v2470 = vsub.f32 %v1256, %v2153
        %v2471 = vsub.f32 %v1258, %v2153
        %v2472 = vsub.f32 %v1262, %v2158
        %v2473 = vsub.f32 %v1264, %v2158
        %v2474 = vsub.f32 %v1268, %v2163
        %v2475 = vsub.f32 %v1270, %v2163
        %v2476 = vsub.f32 %v1274, %v2168
        %v2477 = vsub.f32 %v1276, %v2168
        %v2478 = vsub.f32 %v1280, %v2173
        %v2479 = vsub.f32 %v1282, %v2173
        %v2480 = vsub.f32 %v1286, %v2178
        %v2481 = vsub.f32 %v1288, %v2178
        %v2482 = vsub.f32 %v1292, %v2183
        %v2483 = vsub.f32 %v1294, %v2183
        %v2484 = vsub.f32 %v1298, %v2188
        %v2485 = vsub.f32 %v1300, %v2188
        %v2486 = vsub.f32 %v1304, %v2193
        %v2487 = vsub.f32 %v1306, %v2193
        %v2488 = vsub.f32 %v1310, %v2198
        %v2489 = vsub.f32 %v1312, %v2198
        %v2490 = vsub.f32 %v1316, %v2203
        %v2491 = vsub.f32 %v1318, %v2203
        %v2492 = vsub.f32 %v1322, %v2208
        %v2493 = vsub.f32 %v1324, %v2208
        %v2494 = vsub.f32 %v1328, %v2213
        %v2495 = vsub.f32 %v1330, %v2213
        %v2496 = vsub.f32 %v1334, %v2218
        %v2497 = vsub.f32 %v1336, %v2218
        %v2498 = vsub.f32 %v1340, %v2223
        %v2499 = vsub.f32 %v1342, %v2223
        %v2500 = vsub.f32 %v1346, %v2228
        %v2501 = vsub.f32 %v1348, %v2228
        %v2502 = vsub.f32 %v1352, %v2233
        %v2503 = vsub.f32 %v1354, %v2233
        %v2504 = vsub.f32 %v1358, %v2238
        %v2505 = vsub.f32 %v1360, %v2238
        %v2506 = vsub.f32 %v1364, %v2243
        %v2507 = vsub.f32 %v1366, %v2243
        %v2508 = vsub.f32 %v1370, %v2248
        %v2509 = vsub.f32 %v1372, %v2248
        %v2510 = vsub.f32 %v1376, %v2253
        %v2511 = vsub.f32 %v1378, %v2253
        %v2512 = vsub.f32 %v1382, %v2258
        %v2513 = vsub.f32 %v1384, %v2258
        %v2514 = vsub.f32 %v1388, %v2263
        %v2515 = vsub.f32 %v1390, %v2263
        %v2516 = vsub.f32 %v1394, %v2268
        %v2517 = vsub.f32 %v1396, %v2268
        %v2518 = vsub.f32 %v1400, %v2273
        %v2519 = vsub.f32 %v1402, %v2273
        %v2520 = vsub.f32 %v1406, %v2278
        %v2521 = vsub.f32 %v1408, %v2278
        %v2522 = vsub.f32 %v1412, %v2283
        %v2523 = vsub.f32 %v1414, %v2283
        %v2524 = vsub.f32 %v1418, %v2288
        %v2525 = vsub.f32 %v1420, %v2288
        %v2526 = vsub.f32 %v1424, %v2293
        %v2527 = vsub.f32 %v1426, %v2293
        %v2528 = vsub.f32 %v1430, %v2298
        %v2529 = vsub.f32 %v1432, %v2298
        %v2530 = vsub.f32 %v1436, %v2303
        %v2531 = vsub.f32 %v1438, %v2303
        %v2532 = vsub.f32 %v1442, %v2308
        %v2533 = vsub.f32 %v1444, %v2308
        %v2534 = vsub.f32 %v1448, %v2313
        %v2535 = vsub.f32 %v1450, %v2313
        %v2536 = vsub.f32 %v1454, %v2318
        %v2537 = vsub.f32 %v1456, %v2318
        %v2538 = vsub.f32 %v1460, %v2323
        %v2539 = vsub.f32 %v1462, %v2323
        %v2540 = vsub.f32 %v1466, %v2328
        %v2541 = vsub.f32 %v1468, %v2328
        %v2542 = vsub.f32 %v1472, %v2333
        %v2543 = vsub.f32 %v1474, %v2333
        %v2544 = vsub.f32 %v1478, %v2338
        %v2545 = vsub.f32 %v1480, %v2338
        %v2546 = vsub.f32 %v1484, %v2343
        %v2547 = vsub.f32 %v1486, %v2343
        %v2548 = vsub.f32 %v1490, %v2348
        %v2549 = vsub.f32 %v1492, %v2348
        %v2550 = vsub.f32 %v1496, %v2353
        %v2551 = vsub.f32 %v1498, %v2353
        %v2552 = vsub.f32 %v1502, %v2358
        %v2553 = vsub.f32 %v1504, %v2358
        %v2554 = vsub.f32 %v1508, %v2363
        %v2555 = vsub.f32 %v1510, %v2363
        %v2556 = vsub.f32 %v1514, %v2368
        %v2557 = vsub.f32 %v1516, %v2368
        %v2558 = vsub.f32 %v1520, %v2373
        %v2559 = vsub.f32 %v1522, %v2373
        %v2560 = vsub.f32 %v1526, %v2378
        %v2561 = vsub.f32 %v1528, %v2378
        %v2562 = vsub.f32 %v1532, %v2383
        %v2563 = vsub.f32 %v1534, %v2383
        %v2564 = vsub.f32 %v1538, %v2388
        %v2565 = vsub.f32 %v1540, %v2388
        %v2566 = vsub.f32 %v1544, %v2393
        %v2567 = vsub.f32 %v1546, %v2393
        %v2568 = vsub.f32 %v1550, %v2398
        %v2569 = vsub.f32 %v1552, %v2398
        %v2570 = vsub.f32 %v1556, %v2403
        %v2571 = vsub.f32 %v1558, %v2403
        %v2572 = vsub.f32 %v1562, %v2408
        %v2573 = vsub.f32 %v1564, %v2408
        %v2574 = vsub.f32 %v1568, %v2413
        %v2575 = vsub.f32 %v1570, %v2413
        %v2576 = vsub.f32 %v1574, %v2418
        %v2577 = vsub.f32 %v1576, %v2418
        %v2578 = vsub.f32 %v1580, %v2423
        %v2579 = vsub.f32 %v1582, %v2423
        %v2580 = vsub.f32 %v1586, %v2428
        %v2581 = vsub.f32 %v1588, %v2428
        %v2582 = vsub.f32 %v1592, %v2433
        %v2583 = vsub.f32 %v1594, %v2433
        %v2584 = vsub.f32 %v1598, %v2438
        %v2585 = vsub.f32 %v1600, %v2438
        %v2586 = vsub.f32 %v1604, %v2443
        %v2587 = vsub.f32 %v1606, %v2443
        %v2588 = vsub.f32 %v1610, %v2448
        %v2589 = vsub.f32 %v1612, %v2448
        %v2590 = vsub.f32 %v1616, %v2453
        %v2591 = vsub.f32 %v1618, %v2453
        %v2592 = vsub.f32 %v1622, %v2458
        %v2593 = vsub.f32 %v1624, %v2458
        %v2594 = vsub.f32 %v1628, %v2463
        %v2595 = vsub.f32 %v1630, %v2463
        %v2596 = vsub.f32 %v1634, %v2468
        %v2597 = vsub.f32 %v1636, %v2468
        %v2598 = vmul.f32 %v2470, 1.442695
        %v2599 = vpow.pop %v2598
        %v2600 = vmul.f32 %v2471, 1.442695
        %v2601 = vpow.pop %v2600
        %v2602 = vmul.f32 %v2472, 1.442695
        %v2603 = vpow.pop %v2602
        %v2604 = vmul.f32 %v2473, 1.442695
        %v2605 = vpow.pop %v2604
        %v2606 = vmul.f32 %v2474, 1.442695
        %v2607 = vpow.pop %v2606
        %v2608 = vmul.f32 %v2475, 1.442695
        %v2609 = vpow.pop %v2608
        %v2610 = vmul.f32 %v2476, 1.442695
        %v2611 = vpow.pop %v2610
        %v2612 = vmul.f32 %v2477, 1.442695
        %v2613 = vpow.pop %v2612
        %v2614 = vmul.f32 %v2478, 1.442695
        %v2615 = vpow.pop %v2614
        %v2616 = vmul.f32 %v2479, 1.442695
        %v2617 = vpow.pop %v2616
        %v2618 = vmul.f32 %v2480, 1.442695
        %v2619 = vpow.pop %v2618
        %v2620 = vmul.f32 %v2481, 1.442695
        %v2621 = vpow.pop %v2620
        %v2622 = vmul.f32 %v2482, 1.442695
        %v2623 = vpow.pop %v2622
        %v2624 = vmul.f32 %v2483, 1.442695
        %v2625 = vpow.pop %v2624
        %v2626 = vmul.f32 %v2484, 1.442695
        %v2627 = vpow.pop %v2626
        %v2628 = vmul.f32 %v2485, 1.442695
        %v2629 = vpow.pop %v2628
        %v2630 = vmul.f32 %v2486, 1.442695
        %v2631 = vpow.pop %v2630
        %v2632 = vmul.f32 %v2487, 1.442695
        %v2633 = vpow.pop %v2632
        %v2634 = vmul.f32 %v2488, 1.442695
        %v2635 = vpow.pop %v2634
        %v2636 = vmul.f32 %v2489, 1.442695
        %v2637 = vpow.pop %v2636
        %v2638 = vmul.f32 %v2490, 1.442695
        %v2639 = vpow.pop %v2638
        %v2640 = vmul.f32 %v2491, 1.442695
        %v2641 = vpow.pop %v2640
        %v2642 = vmul.f32 %v2492, 1.442695
        %v2643 = vpow.pop %v2642
        %v2644 = vmul.f32 %v2493, 1.442695
        %v2645 = vpow.pop %v2644
        %v2646 = vmul.f32 %v2494, 1.442695
        %v2647 = vpow.pop %v2646
        %v2648 = vmul.f32 %v2495, 1.442695
        %v2649 = vpow.pop %v2648
        %v2650 = vmul.f32 %v2496, 1.442695
        %v2651 = vpow.pop %v2650
        %v2652 = vmul.f32 %v2497, 1.442695
        %v2653 = vpow.pop %v2652
        %v2654 = vmul.f32 %v2498, 1.442695
        %v2655 = vpow.pop %v2654
        %v2656 = vmul.f32 %v2499, 1.442695
        %v2657 = vpow.pop %v2656
        %v2658 = vmul.f32 %v2500, 1.442695
        %v2659 = vpow.pop %v2658
        %v2660 = vmul.f32 %v2501, 1.442695
        %v2661 = vpow.pop %v2660
        %v2662 = vmul.f32 %v2502, 1.442695
        %v2663 = vpow.pop %v2662
        %v2664 = vmul.f32 %v2503, 1.442695
        %v2665 = vpow.pop %v2664
        %v2666 = vmul.f32 %v2504, 1.442695
        %v2667 = vpow.pop %v2666
        %v2668 = vmul.f32 %v2505, 1.442695
        %v2669 = vpow.pop %v2668
        %v2670 = vmul.f32 %v2506, 1.442695
        %v2671 = vpow.pop %v2670
        %v2672 = vmul.f32 %v2507, 1.442695
        %v2673 = vpow.pop %v2672
        %v2674 = vmul.f32 %v2508, 1.442695
        %v2675 = vpow.pop %v2674
        %v2676 = vmul.f32 %v2509, 1.442695
        %v2677 = vpow.pop %v2676
        %v2678 = vmul.f32 %v2510, 1.442695
        %v2679 = vpow.pop %v2678
        %v2680 = vmul.f32 %v2511, 1.442695
        %v2681 = vpow.pop %v2680
        %v2682 = vmul.f32 %v2512, 1.442695
        %v2683 = vpow.pop %v2682
        %v2684 = vmul.f32 %v2513, 1.442695
        %v2685 = vpow.pop %v2684
        %v2686 = vmul.f32 %v2514, 1.442695
        %v2687 = vpow.pop %v2686
        %v2688 = vmul.f32 %v2515, 1.442695
        %v2689 = vpow.pop %v2688
        %v2690 = vmul.f32 %v2516, 1.442695
        %v2691 = vpow.pop %v2690
        %v2692 = vmul.f32 %v2517, 1.442695
        %v2693 = vpow.pop %v2692
        %v2694 = vmul.f32 %v2518, 1.442695
        %v2695 = vpow.pop %v2694
        %v2696 = vmul.f32 %v2519, 1.442695
        %v2697 = vpow.pop %v2696
        %v2698 = vmul.f32 %v2520, 1.442695
        %v2699 = vpow.pop %v2698
        %v2700 = vmul.f32 %v2521, 1.442695
        %v2701 = vpow.pop %v2700
        %v2702 = vmul.f32 %v2522, 1.442695
        %v2703 = vpow.pop %v2702
        %v2704 = vmul.f32 %v2523, 1.442695
        %v2705 = vpow.pop %v2704
        %v2706 = vmul.f32 %v2524, 1.442695
        %v2707 = vpow.pop %v2706
        %v2708 = vmul.f32 %v2525, 1.442695
        %v2709 = vpow.pop %v2708
        %v2710 = vmul.f32 %v2526, 1.442695
        %v2711 = vpow.pop %v2710
        %v2712 = vmul.f32 %v2527, 1.442695
        %v2713 = vpow.pop %v2712
        %v2714 = vmul.f32 %v2528, 1.442695
        %v2715 = vpow.pop %v2714
        %v2716 = vmul.f32 %v2529, 1.442695
        %v2717 = vpow.pop %v2716
        %v2718 = vmul.f32 %v2530, 1.442695
        %v2719 = vpow.pop %v2718
        %v2720 = vmul.f32 %v2531, 1.442695
        %v2721 = vpow.pop %v2720
        %v2722 = vmul.f32 %v2532, 1.442695
        %v2723 = vpow.pop %v2722
        %v2724 = vmul.f32 %v2533, 1.442695
        %v2725 = vpow.pop %v2724
        %v2726 = vmul.f32 %v2534, 1.442695
        %v2727 = vpow.pop %v2726
        %v2728 = vmul.f32 %v2535, 1.442695
        %v2729 = vpow.pop %v2728
        %v2730 = vmul.f32 %v2536, 1.442695
        %v2731 = vpow.pop %v2730
        %v2732 = vmul.f32 %v2537, 1.442695
        %v2733 = vpow.pop %v2732
        %v2734 = vmul.f32 %v2538, 1.442695
        %v2735 = vpow.pop %v2734
        %v2736 = vmul.f32 %v2539, 1.442695
        %v2737 = vpow.pop %v2736
        %v2738 = vmul.f32 %v2540, 1.442695
        %v2739 = vpow.pop %v2738
        %v2740 = vmul.f32 %v2541, 1.442695
        %v2741 = vpow.pop %v2740
        %v2742 = vmul.f32 %v2542, 1.442695
        %v2743 = vpow.pop %v2742
        %v2744 = vmul.f32 %v2543, 1.442695
        %v2745 = vpow.pop %v2744
        %v2746 = vmul.f32 %v2544, 1.442695
        %v2747 = vpow.pop %v2746
        %v2748 = vmul.f32 %v2545, 1.442695
        %v2749 = vpow.pop %v2748
        %v2750 = vmul.f32 %v2546, 1.442695
        %v2751 = vpow.pop %v2750
        %v2752 = vmul.f32 %v2547, 1.442695
        %v2753 = vpow.pop %v2752
        %v2754 = vmul.f32 %v2548, 1.442695
        %v2755 = vpow.pop %v2754
        %v2756 = vmul.f32 %v2549, 1.442695
        %v2757 = vpow.pop %v2756
        %v2758 = vmul.f32 %v2550, 1.442695
        %v2759 = vpow.pop %v2758
        %v2760 = vmul.f32 %v2551, 1.442695
        %v2761 = vpow.pop %v2760
        %v2762 = vmul.f32 %v2552, 1.442695
        %v2763 = vpow.pop %v2762
        %v2764 = vmul.f32 %v2553, 1.442695
        %v2765 = vpow.pop %v2764
        %v2766 = vmul.f32 %v2554, 1.442695
        %v2767 = vpow.pop %v2766
        %v2768 = vmul.f32 %v2555, 1.442695
        %v2769 = vpow.pop %v2768
        %v2770 = vmul.f32 %v2556, 1.442695
        %v2771 = vpow.pop %v2770
        %v2772 = vmul.f32 %v2557, 1.442695
        %v2773 = vpow.pop %v2772
        %v2774 = vmul.f32 %v2558, 1.442695
        %v2775 = vpow.pop %v2774
        %v2776 = vmul.f32 %v2559, 1.442695
        %v2777 = vpow.pop %v2776
        %v2778 = vmul.f32 %v2560, 1.442695
        %v2779 = vpow.pop %v2778
        %v2780 = vmul.f32 %v2561, 1.442695
        %v2781 = vpow.pop %v2780
        %v2782 = vmul.f32 %v2562, 1.442695
        %v2783 = vpow.pop %v2782
        %v2784 = vmul.f32 %v2563, 1.442695
        %v2785 = vpow.pop %v2784
        %v2786 = vmul.f32 %v2564, 1.442695
        %v2787 = vpow.pop %v2786
        %v2788 = vmul.f32 %v2565, 1.442695
        %v2789 = vpow.pop %v2788
        %v2790 = vmul.f32 %v2566, 1.442695
        %v2791 = vpow.pop %v2790
        %v2792 = vmul.f32 %v2567, 1.442695
        %v2793 = vpow.pop %v2792
        %v2794 = vmul.f32 %v2568, 1.442695
        %v2795 = vpow.pop %v2794
        %v2796 = vmul.f32 %v2569, 1.442695
        %v2797 = vpow.pop %v2796
        %v2798 = vmul.f32 %v2570, 1.442695
        %v2799 = vpow.pop %v2798
        %v2800 = vmul.f32 %v2571, 1.442695
        %v2801 = vpow.pop %v2800
        %v2802 = vmul.f32 %v2572, 1.442695
        %v2803 = vpow.pop %v2802
        %v2804 = vmul.f32 %v2573, 1.442695
        %v2805 = vpow.pop %v2804
        %v2806 = vmul.f32 %v2574, 1.442695
        %v2807 = vpow.pop %v2806
        %v2808 = vmul.f32 %v2575, 1.442695
        %v2809 = vpow.pop %v2808
        %v2810 = vmul.f32 %v2576, 1.442695
        %v2811 = vpow.pop %v2810
        %v2812 = vmul.f32 %v2577, 1.442695
        %v2813 = vpow.pop %v2812
        %v2814 = vmul.f32 %v2578, 1.442695
        %v2815 = vpow.pop %v2814
        %v2816 = vmul.f32 %v2579, 1.442695
        %v2817 = vpow.pop %v2816
        %v2818 = vmul.f32 %v2580, 1.442695
        %v2819 = vpow.pop %v2818
        %v2820 = vmul.f32 %v2581, 1.442695
        %v2821 = vpow.pop %v2820
        %v2822 = vmul.f32 %v2582, 1.442695
        %v2823 = vpow.pop %v2822
        %v2824 = vmul.f32 %v2583, 1.442695
        %v2825 = vpow.pop %v2824
        %v2826 = vmul.f32 %v2584, 1.442695
        %v2827 = vpow.pop %v2826
        %v2828 = vmul.f32 %v2585, 1.442695
        %v2829 = vpow.pop %v2828
        %v2830 = vmul.f32 %v2586, 1.442695
        %v2831 = vpow.pop %v2830
        %v2832 = vmul.f32 %v2587, 1.442695
        %v2833 = vpow.pop %v2832
        %v2834 = vmul.f32 %v2588, 1.442695
        %v2835 = vpow.pop %v2834
        %v2836 = vmul.f32 %v2589, 1.442695
        %v2837 = vpow.pop %v2836
        %v2838 = vmul.f32 %v2590, 1.442695
        %v2839 = vpow.pop %v2838
        %v2840 = vmul.f32 %v2591, 1.442695
        %v2841 = vpow.pop %v2840
        %v2842 = vmul.f32 %v2592, 1.442695
        %v2843 = vpow.pop %v2842
        %v2844 = vmul.f32 %v2593, 1.442695
        %v2845 = vpow.pop %v2844
        %v2846 = vmul.f32 %v2594, 1.442695
        %v2847 = vpow.pop %v2846
        %v2848 = vmul.f32 %v2595, 1.442695
        %v2849 = vpow.pop %v2848
        %v2850 = vmul.f32 %v2596, 1.442695
        %v2851 = vpow.pop %v2850
        %v2852 = vmul.f32 %v2597, 1.442695
        %v2853 = vpow.pop %v2852
        %v2854 = vld [vmem:[#allocation4] sm:$0xff]
        %v2855 = vld [vmem:[#allocation4 + $0x8] sm:$0xff]
        %v2856 = vld [vmem:[#allocation4 + $0x10] sm:$0xff]
        %v2857 = vld [vmem:[#allocation4 + $0x18] sm:$0xff]
        %v2858 = vld [vmem:[#allocation4 + $0x20] sm:$0xff]
        %v2859 = vld [vmem:[#allocation4 + $0x28] sm:$0xff]
        %v2860 = vld [vmem:[#allocation4 + $0x30] sm:$0xff]
        %v2861 = vld [vmem:[#allocation4 + $0x38] sm:$0xff]
        %v2862 = vld [vmem:[#allocation4 + $0x40] sm:$0xff]
        %v2863 = vld [vmem:[#allocation4 + $0x48] sm:$0xff]
        %v2864 = vld [vmem:[#allocation4 + $0x50] sm:$0xff]
        %v2865 = vld [vmem:[#allocation4 + $0x58] sm:$0xff]
        %v2866 = vld [vmem:[#allocation4 + $0x60] sm:$0xff]
        %v2867 = vld [vmem:[#allocation4 + $0x68] sm:$0xff]
        %v2868 = vld [vmem:[#allocation4 + $0x70] sm:$0xff]
        %v2869 = vld [vmem:[#allocation4 + $0x78] sm:$0xff]
        %v2870 = vld [vmem:[#allocation4 + $0x80] sm:$0xff]
        %v2871 = vld [vmem:[#allocation4 + $0x88] sm:$0xff]
        %v2872 = vld [vmem:[#allocation4 + $0x90] sm:$0xff]
        %v2873 = vld [vmem:[#allocation4 + $0x98] sm:$0xff]
        %v2874 = vld [vmem:[#allocation4 + $0xa0] sm:$0xff]
        %v2875 = vld [vmem:[#allocation4 + $0xa8] sm:$0xff]
        %v2876 = vld [vmem:[#allocation4 + $0xb0] sm:$0xff]
        %v2877 = vld [vmem:[#allocation4 + $0xb8] sm:$0xff]
        %v2878 = vld [vmem:[#allocation4 + $0xc0] sm:$0xff]
        %v2879 = vld [vmem:[#allocation4 + $0xc8] sm:$0xff]
        %v2880 = vld [vmem:[#allocation4 + $0xd0] sm:$0xff]
        %v2881 = vld [vmem:[#allocation4 + $0xd8] sm:$0xff]
        %v2882 = vld [vmem:[#allocation4 + $0xe0] sm:$0xff]
        %v2883 = vld [vmem:[#allocation4 + $0xe8] sm:$0xff]
        %v2884 = vld [vmem:[#allocation4 + $0xf0] sm:$0xff]
        %v2885 = vld [vmem:[#allocation4 + $0xf8] sm:$0xff]
        %v2886 = vld [vmem:[#allocation4 + $0x100] sm:$0xff]
        %v2887 = vld [vmem:[#allocation4 + $0x108] sm:$0xff]
        %v2888 = vld [vmem:[#allocation4 + $0x110] sm:$0xff]
        %v2889 = vld [vmem:[#allocation4 + $0x118] sm:$0xff]
        %v2890 = vld [vmem:[#allocation4 + $0x120] sm:$0xff]
        %v2891 = vld [vmem:[#allocation4 + $0x128] sm:$0xff]
        %v2892 = vld [vmem:[#allocation4 + $0x130] sm:$0xff]
        %v2893 = vld [vmem:[#allocation4 + $0x138] sm:$0xff]
        %v2894 = vld [vmem:[#allocation4 + $0x140] sm:$0xff]
        %v2895 = vld [vmem:[#allocation4 + $0x148] sm:$0xff]
        %v2896 = vld [vmem:[#allocation4 + $0x150] sm:$0xff]
        %v2897 = vld [vmem:[#allocation4 + $0x158] sm:$0xff]
        %v2898 = vld [vmem:[#allocation4 + $0x160] sm:$0xff]
        %v2899 = vld [vmem:[#allocation4 + $0x168] sm:$0xff]
        %v2900 = vld [vmem:[#allocation4 + $0x170] sm:$0xff]
        %v2901 = vld [vmem:[#allocation4 + $0x178] sm:$0xff]
        %v2902 = vld [vmem:[#allocation4 + $0x180] sm:$0xff]
        %v2903 = vld [vmem:[#allocation4 + $0x188] sm:$0xff]
        %v2904 = vld [vmem:[#allocation4 + $0x190] sm:$0xff]
        %v2905 = vld [vmem:[#allocation4 + $0x198] sm:$0xff]
        %v2906 = vld [vmem:[#allocation4 + $0x1a0] sm:$0xff]
        %v2907 = vld [vmem:[#allocation4 + $0x1a8] sm:$0xff]
        %v2908 = vld [vmem:[#allocation4 + $0x1b0] sm:$0xff]
        %v2909 = vld [vmem:[#allocation4 + $0x1b8] sm:$0xff]
        %v2910 = vld [vmem:[#allocation4 + $0x1c0] sm:$0xff]
        %v2911 = vld [vmem:[#allocation4 + $0x1c8] sm:$0xff]
        %v2912 = vld [vmem:[#allocation4 + $0x1d0] sm:$0xff]
        %v2913 = vld [vmem:[#allocation4 + $0x1d8] sm:$0xff]
        %v2914 = vld [vmem:[#allocation4 + $0x1e0] sm:$0xff]
        %v2915 = vld [vmem:[#allocation4 + $0x1e8] sm:$0xff]
        %v2916 = vld [vmem:[#allocation4 + $0x1f0] sm:$0xff]
        %v2917 = vld [vmem:[#allocation4 + $0x1f8] sm:$0xff]
        %v2918 = vmul.f32 %v2023, %v2854
        %v2919 = vmul.f32 %v2025, %v2855
        %v2920 = vmul.f32 %v2027, %v2856
        %v2921 = vmul.f32 %v2029, %v2857
        %v2922 = vmul.f32 %v2031, %v2858
        %v2923 = vmul.f32 %v2033, %v2859
        %v2924 = vmul.f32 %v2035, %v2860
        %v2925 = vmul.f32 %v2037, %v2861
        %v2926 = vmul.f32 %v2039, %v2862
        %v2927 = vmul.f32 %v2041, %v2863
        %v2928 = vmul.f32 %v2043, %v2864
        %v2929 = vmul.f32 %v2045, %v2865
        %v2930 = vmul.f32 %v2047, %v2866
        %v2931 = vmul.f32 %v2049, %v2867
        %v2932 = vmul.f32 %v2051, %v2868
        %v2933 = vmul.f32 %v2053, %v2869
        %v2934 = vmul.f32 %v2055, %v2870
        %v2935 = vmul.f32 %v2057, %v2871
        %v2936 = vmul.f32 %v2059, %v2872
        %v2937 = vmul.f32 %v2061, %v2873
        %v2938 = vmul.f32 %v2063, %v2874
        %v2939 = vmul.f32 %v2065, %v2875
        %v2940 = vmul.f32 %v2067, %v2876
        %v2941 = vmul.f32 %v2069, %v2877
        %v2942 = vmul.f32 %v2071, %v2878
        %v2943 = vmul.f32 %v2073, %v2879
        %v2944 = vmul.f32 %v2075, %v2880
        %v2945 = vmul.f32 %v2077, %v2881
        %v2946 = vmul.f32 %v2079, %v2882
        %v2947 = vmul.f32 %v2081, %v2883
        %v2948 = vmul.f32 %v2083, %v2884
        %v2949 = vmul.f32 %v2085, %v2885
        %v2950 = vmul.f32 %v2087, %v2886
        %v2951 = vmul.f32 %v2089, %v2887
        %v2952 = vmul.f32 %v2091, %v2888
        %v2953 = vmul.f32 %v2093, %v2889
        %v2954 = vmul.f32 %v2095, %v2890
        %v2955 = vmul.f32 %v2097, %v2891
        %v2956 = vmul.f32 %v2099, %v2892
        %v2957 = vmul.f32 %v2101, %v2893
        %v2958 = vmul.f32 %v2103, %v2894
        %v2959 = vmul.f32 %v2105, %v2895
        %v2960 = vmul.f32 %v2107, %v2896
        %v2961 = vmul.f32 %v2109, %v2897
        %v2962 = vmul.f32 %v2111, %v2898
        %v2963 = vmul.f32 %v2113, %v2899
        %v2964 = vmul.f32 %v2115, %v2900
        %v2965 = vmul.f32 %v2117, %v2901
        %v2966 = vmul.f32 %v2119, %v2902
        %v2967 = vmul.f32 %v2121, %v2903
        %v2968 = vmul.f32 %v2123, %v2904
        %v2969 = vmul.f32 %v2125, %v2905
        %v2970 = vmul.f32 %v2127, %v2906
        %v2971 = vmul.f32 %v2129, %v2907
        %v2972 = vmul.f32 %v2131, %v2908
        %v2973 = vmul.f32 %v2133, %v2909
        %v2974 = vmul.f32 %v2135, %v2910
        %v2975 = vmul.f32 %v2137, %v2911
        %v2976 = vmul.f32 %v2139, %v2912
        %v2977 = vmul.f32 %v2141, %v2913
        %v2978 = vmul.f32 %v2143, %v2914
        %v2979 = vmul.f32 %v2145, %v2915
        %v2980 = vmul.f32 %v2147, %v2916
        %v2981 = vmul.f32 %v2149, %v2917
        %v2982 = vadd.f32 %v2599, %v2601
        %2983 = vadd.xlane.f32.xlu0 %v2982
        %v2984 = vpop.xlane.xlu0 %2983
        %v2985 = vadd.f32 %v2603, %v2605
        %2986 = vadd.xlane.f32.xlu0 %v2985
        %v2987 = vpop.xlane.xlu0 %2986
        %v2988 = vadd.f32 %v2607, %v2609
        %2989 = vadd.xlane.f32.xlu0 %v2988
        %v2990 = vpop.xlane.xlu0 %2989
        %v2991 = vadd.f32 %v2611, %v2613
        %2992 = vadd.xlane.f32.xlu0 %v2991
        %v2993 = vpop.xlane.xlu0 %2992
        %v2994 = vadd.f32 %v2615, %v2617
        %2995 = vadd.xlane.f32.xlu0 %v2994
        %v2996 = vpop.xlane.xlu0 %2995
        %v2997 = vadd.f32 %v2619, %v2621
        %2998 = vadd.xlane.f32.xlu0 %v2997
        %v2999 = vpop.xlane.xlu0 %2998
        %v3000 = vadd.f32 %v2623, %v2625
        %3001 = vadd.xlane.f32.xlu0 %v3000
        %v3002 = vpop.xlane.xlu0 %3001
        %v3003 = vadd.f32 %v2627, %v2629
        %3004 = vadd.xlane.f32.xlu0 %v3003
        %v3005 = vpop.xlane.xlu0 %3004
        %v3006 = vadd.f32 %v2631, %v2633
        %3007 = vadd.xlane.f32.xlu0 %v3006
        %v3008 = vpop.xlane.xlu0 %3007
        %v3009 = vadd.f32 %v2635, %v2637
        %3010 = vadd.xlane.f32.xlu0 %v3009
        %v3011 = vpop.xlane.xlu0 %3010
        %v3012 = vadd.f32 %v2639, %v2641
        %3013 = vadd.xlane.f32.xlu0 %v3012
        %v3014 = vpop.xlane.xlu0 %3013
        %v3015 = vadd.f32 %v2643, %v2645
        %3016 = vadd.xlane.f32.xlu0 %v3015
        %v3017 = vpop.xlane.xlu0 %3016
        %v3018 = vadd.f32 %v2647, %v2649
        %3019 = vadd.xlane.f32.xlu0 %v3018
        %v3020 = vpop.xlane.xlu0 %3019
        %v3021 = vadd.f32 %v2651, %v2653
        %3022 = vadd.xlane.f32.xlu0 %v3021
        %v3023 = vpop.xlane.xlu0 %3022
        %v3024 = vadd.f32 %v2655, %v2657
        %3025 = vadd.xlane.f32.xlu0 %v3024
        %v3026 = vpop.xlane.xlu0 %3025
        %v3027 = vadd.f32 %v2659, %v2661
        %3028 = vadd.xlane.f32.xlu0 %v3027
        %v3029 = vpop.xlane.xlu0 %3028
        %v3030 = vadd.f32 %v2663, %v2665
        %3031 = vadd.xlane.f32.xlu0 %v3030
        %v3032 = vpop.xlane.xlu0 %3031
        %v3033 = vadd.f32 %v2667, %v2669
        %3034 = vadd.xlane.f32.xlu0 %v3033
        %v3035 = vpop.xlane.xlu0 %3034
        %v3036 = vadd.f32 %v2671, %v2673
        %3037 = vadd.xlane.f32.xlu0 %v3036
        %v3038 = vpop.xlane.xlu0 %3037
        %v3039 = vadd.f32 %v2675, %v2677
        %3040 = vadd.xlane.f32.xlu0 %v3039
        %v3041 = vpop.xlane.xlu0 %3040
        %v3042 = vadd.f32 %v2679, %v2681
        %3043 = vadd.xlane.f32.xlu0 %v3042
        %v3044 = vpop.xlane.xlu0 %3043
        %v3045 = vadd.f32 %v2683, %v2685
        %3046 = vadd.xlane.f32.xlu0 %v3045
        %v3047 = vpop.xlane.xlu0 %3046
        %v3048 = vadd.f32 %v2687, %v2689
        %3049 = vadd.xlane.f32.xlu0 %v3048
        %v3050 = vpop.xlane.xlu0 %3049
        %v3051 = vadd.f32 %v2691, %v2693
        %3052 = vadd.xlane.f32.xlu0 %v3051
        %v3053 = vpop.xlane.xlu0 %3052
        %v3054 = vadd.f32 %v2695, %v2697
        %3055 = vadd.xlane.f32.xlu0 %v3054
        %v3056 = vpop.xlane.xlu0 %3055
        %v3057 = vadd.f32 %v2699, %v2701
        %3058 = vadd.xlane.f32.xlu0 %v3057
        %v3059 = vpop.xlane.xlu0 %3058
        %v3060 = vadd.f32 %v2703, %v2705
        %3061 = vadd.xlane.f32.xlu0 %v3060
        %v3062 = vpop.xlane.xlu0 %3061
        %v3063 = vadd.f32 %v2707, %v2709
        %3064 = vadd.xlane.f32.xlu0 %v3063
        %v3065 = vpop.xlane.xlu0 %3064
        %v3066 = vadd.f32 %v2711, %v2713
        %3067 = vadd.xlane.f32.xlu0 %v3066
        %v3068 = vpop.xlane.xlu0 %3067
        %v3069 = vadd.f32 %v2715, %v2717
        %3070 = vadd.xlane.f32.xlu0 %v3069
        %v3071 = vpop.xlane.xlu0 %3070
        %v3072 = vadd.f32 %v2719, %v2721
        %3073 = vadd.xlane.f32.xlu0 %v3072
        %v3074 = vpop.xlane.xlu0 %3073
        %v3075 = vadd.f32 %v2723, %v2725
        %3076 = vadd.xlane.f32.xlu0 %v3075
        %v3077 = vpop.xlane.xlu0 %3076
        %v3078 = vadd.f32 %v2727, %v2729
        %3079 = vadd.xlane.f32.xlu0 %v3078
        %v3080 = vpop.xlane.xlu0 %3079
        %v3081 = vadd.f32 %v2731, %v2733
        %3082 = vadd.xlane.f32.xlu0 %v3081
        %v3083 = vpop.xlane.xlu0 %3082
        %v3084 = vadd.f32 %v2735, %v2737
        %3085 = vadd.xlane.f32.xlu0 %v3084
        %v3086 = vpop.xlane.xlu0 %3085
        %v3087 = vadd.f32 %v2739, %v2741
        %3088 = vadd.xlane.f32.xlu0 %v3087
        %v3089 = vpop.xlane.xlu0 %3088
        %v3090 = vadd.f32 %v2743, %v2745
        %3091 = vadd.xlane.f32.xlu0 %v3090
        %v3092 = vpop.xlane.xlu0 %3091
        %v3093 = vadd.f32 %v2747, %v2749
        %3094 = vadd.xlane.f32.xlu0 %v3093
        %v3095 = vpop.xlane.xlu0 %3094
        %v3096 = vadd.f32 %v2751, %v2753
        %3097 = vadd.xlane.f32.xlu0 %v3096
        %v3098 = vpop.xlane.xlu0 %3097
        %v3099 = vadd.f32 %v2755, %v2757
        %3100 = vadd.xlane.f32.xlu0 %v3099
        %v3101 = vpop.xlane.xlu0 %3100
        %v3102 = vadd.f32 %v2759, %v2761
        %3103 = vadd.xlane.f32.xlu0 %v3102
        %v3104 = vpop.xlane.xlu0 %3103
        %v3105 = vadd.f32 %v2763, %v2765
        %3106 = vadd.xlane.f32.xlu0 %v3105
        %v3107 = vpop.xlane.xlu0 %3106
        %v3108 = vadd.f32 %v2767, %v2769
        %3109 = vadd.xlane.f32.xlu0 %v3108
        %v3110 = vpop.xlane.xlu0 %3109
        %v3111 = vadd.f32 %v2771, %v2773
        %3112 = vadd.xlane.f32.xlu0 %v3111
        %v3113 = vpop.xlane.xlu0 %3112
        %v3114 = vadd.f32 %v2775, %v2777
        %3115 = vadd.xlane.f32.xlu0 %v3114
        %v3116 = vpop.xlane.xlu0 %3115
        %v3117 = vadd.f32 %v2779, %v2781
        %3118 = vadd.xlane.f32.xlu0 %v3117
        %v3119 = vpop.xlane.xlu0 %3118
        %v3120 = vadd.f32 %v2783, %v2785
        %3121 = vadd.xlane.f32.xlu0 %v3120
        %v3122 = vpop.xlane.xlu0 %3121
        %v3123 = vadd.f32 %v2787, %v2789
        %3124 = vadd.xlane.f32.xlu0 %v3123
        %v3125 = vpop.xlane.xlu0 %3124
        %v3126 = vadd.f32 %v2791, %v2793
        %3127 = vadd.xlane.f32.xlu0 %v3126
        %v3128 = vpop.xlane.xlu0 %3127
        %v3129 = vadd.f32 %v2795, %v2797
        %3130 = vadd.xlane.f32.xlu0 %v3129
        %v3131 = vpop.xlane.xlu0 %3130
        %v3132 = vadd.f32 %v2799, %v2801
        %3133 = vadd.xlane.f32.xlu0 %v3132
        %v3134 = vpop.xlane.xlu0 %3133
        %v3135 = vadd.f32 %v2803, %v2805
        %3136 = vadd.xlane.f32.xlu0 %v3135
        %v3137 = vpop.xlane.xlu0 %3136
        %v3138 = vadd.f32 %v2807, %v2809
        %3139 = vadd.xlane.f32.xlu0 %v3138
        %v3140 = vpop.xlane.xlu0 %3139
        %v3141 = vadd.f32 %v2811, %v2813
        %3142 = vadd.xlane.f32.xlu0 %v3141
        %v3143 = vpop.xlane.xlu0 %3142
        %v3144 = vadd.f32 %v2815, %v2817
        %3145 = vadd.xlane.f32.xlu0 %v3144
        %v3146 = vpop.xlane.xlu0 %3145
        %v3147 = vadd.f32 %v2819, %v2821
        %3148 = vadd.xlane.f32.xlu0 %v3147
        %v3149 = vpop.xlane.xlu0 %3148
        %v3150 = vadd.f32 %v2823, %v2825
        %3151 = vadd.xlane.f32.xlu0 %v3150
        %v3152 = vpop.xlane.xlu0 %3151
        %v3153 = vadd.f32 %v2827, %v2829
        %3154 = vadd.xlane.f32.xlu0 %v3153
        %v3155 = vpop.xlane.xlu0 %3154
        %v3156 = vadd.f32 %v2831, %v2833
        %3157 = vadd.xlane.f32.xlu0 %v3156
        %v3158 = vpop.xlane.xlu0 %3157
        %v3159 = vadd.f32 %v2835, %v2837
        %3160 = vadd.xlane.f32.xlu0 %v3159
        %v3161 = vpop.xlane.xlu0 %3160
        %v3162 = vadd.f32 %v2839, %v2841
        %3163 = vadd.xlane.f32.xlu0 %v3162
        %v3164 = vpop.xlane.xlu0 %3163
        %v3165 = vadd.f32 %v2843, %v2845
        %3166 = vadd.xlane.f32.xlu0 %v3165
        %v3167 = vpop.xlane.xlu0 %3166
        %v3168 = vadd.f32 %v2847, %v2849
        %3169 = vadd.xlane.f32.xlu0 %v3168
        %v3170 = vpop.xlane.xlu0 %3169
        %v3171 = vadd.f32 %v2851, %v2853
        %3172 = vadd.xlane.f32.xlu0 %v3171
        %v3173 = vpop.xlane.xlu0 %3172
        %v3174 = vadd.f32 %v2918, %v2984
        %v3175 = vadd.f32 %v2919, %v2987
        %v3176 = vadd.f32 %v2920, %v2990
        %v3177 = vadd.f32 %v2921, %v2993
        %v3178 = vadd.f32 %v2922, %v2996
        %v3179 = vadd.f32 %v2923, %v2999
        %v3180 = vadd.f32 %v2924, %v3002
        %v3181 = vadd.f32 %v2925, %v3005
        %v3182 = vadd.f32 %v2926, %v3008
        %v3183 = vadd.f32 %v2927, %v3011
        %v3184 = vadd.f32 %v2928, %v3014
        %v3185 = vadd.f32 %v2929, %v3017
        %v3186 = vadd.f32 %v2930, %v3020
        %v3187 = vadd.f32 %v2931, %v3023
        %v3188 = vadd.f32 %v2932, %v3026
        %v3189 = vadd.f32 %v2933, %v3029
        %v3190 = vadd.f32 %v2934, %v3032
        %v3191 = vadd.f32 %v2935, %v3035
        %v3192 = vadd.f32 %v2936, %v3038
        %v3193 = vadd.f32 %v2937, %v3041
        %v3194 = vadd.f32 %v2938, %v3044
        %v3195 = vadd.f32 %v2939, %v3047
        %v3196 = vadd.f32 %v2940, %v3050
        %v3197 = vadd.f32 %v2941, %v3053
        %v3198 = vadd.f32 %v2942, %v3056
        %v3199 = vadd.f32 %v2943, %v3059
        %v3200 = vadd.f32 %v2944, %v3062
        %v3201 = vadd.f32 %v2945, %v3065
        %v3202 = vadd.f32 %v2946, %v3068
        %v3203 = vadd.f32 %v2947, %v3071
        %v3204 = vadd.f32 %v2948, %v3074
        %v3205 = vadd.f32 %v2949, %v3077
        %v3206 = vadd.f32 %v2950, %v3080
        %v3207 = vadd.f32 %v2951, %v3083
        %v3208 = vadd.f32 %v2952, %v3086
        %v3209 = vadd.f32 %v2953, %v3089
        %v3210 = vadd.f32 %v2954, %v3092
        %v3211 = vadd.f32 %v2955, %v3095
        %v3212 = vadd.f32 %v2956, %v3098
        %v3213 = vadd.f32 %v2957, %v3101
        %v3214 = vadd.f32 %v2958, %v3104
        %v3215 = vadd.f32 %v2959, %v3107
        %v3216 = vadd.f32 %v2960, %v3110
        %v3217 = vadd.f32 %v2961, %v3113
        %v3218 = vadd.f32 %v2962, %v3116
        %v3219 = vadd.f32 %v2963, %v3119
        %v3220 = vadd.f32 %v2964, %v3122
        %v3221 = vadd.f32 %v2965, %v3125
        %v3222 = vadd.f32 %v2966, %v3128
        %v3223 = vadd.f32 %v2967, %v3131
        %v3224 = vadd.f32 %v2968, %v3134
        %v3225 = vadd.f32 %v2969, %v3137
        %v3226 = vadd.f32 %v2970, %v3140
        %v3227 = vadd.f32 %v2971, %v3143
        %v3228 = vadd.f32 %v2972, %v3146
        %v3229 = vadd.f32 %v2973, %v3149
        %v3230 = vadd.f32 %v2974, %v3152
        %v3231 = vadd.f32 %v2975, %v3155
        %v3232 = vadd.f32 %v2976, %v3158
        %v3233 = vadd.f32 %v2977, %v3161
        %v3234 = vadd.f32 %v2978, %v3164
        %v3235 = vadd.f32 %v2979, %v3167
        %v3236 = vadd.f32 %v2980, %v3170
        %v3237 = vadd.f32 %v2981, %v3173
        %vm3238 = vcmask 7168
        %3239 = vst.msk [vmem:[#allocation4] sm:$0xff] %vm3238, %v3174
        %3240 = vst.msk [vmem:[#allocation4 + $0x8] sm:$0xff] %vm3238, %v3175
        %3241 = vst.msk [vmem:[#allocation4 + $0x10] sm:$0xff] %vm3238, %v3176
        %3242 = vst.msk [vmem:[#allocation4 + $0x18] sm:$0xff] %vm3238, %v3177
        %3243 = vst.msk [vmem:[#allocation4 + $0x20] sm:$0xff] %vm3238, %v3178
        %3244 = vst.msk [vmem:[#allocation4 + $0x28] sm:$0xff] %vm3238, %v3179
        %3245 = vst.msk [vmem:[#allocation4 + $0x30] sm:$0xff] %vm3238, %v3180
        %3246 = vst.msk [vmem:[#allocation4 + $0x38] sm:$0xff] %vm3238, %v3181
        %3247 = vst.msk [vmem:[#allocation4 + $0x40] sm:$0xff] %vm3238, %v3182
        %3248 = vst.msk [vmem:[#allocation4 + $0x48] sm:$0xff] %vm3238, %v3183
        %3249 = vst.msk [vmem:[#allocation4 + $0x50] sm:$0xff] %vm3238, %v3184
        %3250 = vst.msk [vmem:[#allocation4 + $0x58] sm:$0xff] %vm3238, %v3185
        %3251 = vst.msk [vmem:[#allocation4 + $0x60] sm:$0xff] %vm3238, %v3186
        %3252 = vst.msk [vmem:[#allocation4 + $0x68] sm:$0xff] %vm3238, %v3187
        %3253 = vst.msk [vmem:[#allocation4 + $0x70] sm:$0xff] %vm3238, %v3188
        %3254 = vst.msk [vmem:[#allocation4 + $0x78] sm:$0xff] %vm3238, %v3189
        %3255 = vst.msk [vmem:[#allocation4 + $0x80] sm:$0xff] %vm3238, %v3190
        %3256 = vst.msk [vmem:[#allocation4 + $0x88] sm:$0xff] %vm3238, %v3191
        %3257 = vst.msk [vmem:[#allocation4 + $0x90] sm:$0xff] %vm3238, %v3192
        %3258 = vst.msk [vmem:[#allocation4 + $0x98] sm:$0xff] %vm3238, %v3193
        %3259 = vst.msk [vmem:[#allocation4 + $0xa0] sm:$0xff] %vm3238, %v3194
        %3260 = vst.msk [vmem:[#allocation4 + $0xa8] sm:$0xff] %vm3238, %v3195
        %3261 = vst.msk [vmem:[#allocation4 + $0xb0] sm:$0xff] %vm3238, %v3196
        %3262 = vst.msk [vmem:[#allocation4 + $0xb8] sm:$0xff] %vm3238, %v3197
        %3263 = vst.msk [vmem:[#allocation4 + $0xc0] sm:$0xff] %vm3238, %v3198
        %3264 = vst.msk [vmem:[#allocation4 + $0xc8] sm:$0xff] %vm3238, %v3199
        %3265 = vst.msk [vmem:[#allocation4 + $0xd0] sm:$0xff] %vm3238, %v3200
        %3266 = vst.msk [vmem:[#allocation4 + $0xd8] sm:$0xff] %vm3238, %v3201
        %3267 = vst.msk [vmem:[#allocation4 + $0xe0] sm:$0xff] %vm3238, %v3202
        %3268 = vst.msk [vmem:[#allocation4 + $0xe8] sm:$0xff] %vm3238, %v3203
        %3269 = vst.msk [vmem:[#allocation4 + $0xf0] sm:$0xff] %vm3238, %v3204
        %3270 = vst.msk [vmem:[#allocation4 + $0xf8] sm:$0xff] %vm3238, %v3205
        %3271 = vst.msk [vmem:[#allocation4 + $0x100] sm:$0xff] %vm3238, %v3206
        %3272 = vst.msk [vmem:[#allocation4 + $0x108] sm:$0xff] %vm3238, %v3207
        %3273 = vst.msk [vmem:[#allocation4 + $0x110] sm:$0xff] %vm3238, %v3208
        %3274 = vst.msk [vmem:[#allocation4 + $0x118] sm:$0xff] %vm3238, %v3209
        %3275 = vst.msk [vmem:[#allocation4 + $0x120] sm:$0xff] %vm3238, %v3210
        %3276 = vst.msk [vmem:[#allocation4 + $0x128] sm:$0xff] %vm3238, %v3211
        %3277 = vst.msk [vmem:[#allocation4 + $0x130] sm:$0xff] %vm3238, %v3212
        %3278 = vst.msk [vmem:[#allocation4 + $0x138] sm:$0xff] %vm3238, %v3213
        %3279 = vst.msk [vmem:[#allocation4 + $0x140] sm:$0xff] %vm3238, %v3214
        %3280 = vst.msk [vmem:[#allocation4 + $0x148] sm:$0xff] %vm3238, %v3215
        %3281 = vst.msk [vmem:[#allocation4 + $0x150] sm:$0xff] %vm3238, %v3216
        %3282 = vst.msk [vmem:[#allocation4 + $0x158] sm:$0xff] %vm3238, %v3217
        %3283 = vst.msk [vmem:[#allocation4 + $0x160] sm:$0xff] %vm3238, %v3218
        %3284 = vst.msk [vmem:[#allocation4 + $0x168] sm:$0xff] %vm3238, %v3219
        %3285 = vst.msk [vmem:[#allocation4 + $0x170] sm:$0xff] %vm3238, %v3220
        %3286 = vst.msk [vmem:[#allocation4 + $0x178] sm:$0xff] %vm3238, %v3221
        %3287 = vst.msk [vmem:[#allocation4 + $0x180] sm:$0xff] %vm3238, %v3222
        %3288 = vst.msk [vmem:[#allocation4 + $0x188] sm:$0xff] %vm3238, %v3223
        %3289 = vst.msk [vmem:[#allocation4 + $0x190] sm:$0xff] %vm3238, %v3224
        %3290 = vst.msk [vmem:[#allocation4 + $0x198] sm:$0xff] %vm3238, %v3225
        %3291 = vst.msk [vmem:[#allocation4 + $0x1a0] sm:$0xff] %vm3238, %v3226
        %3292 = vst.msk [vmem:[#allocation4 + $0x1a8] sm:$0xff] %vm3238, %v3227
        %3293 = vst.msk [vmem:[#allocation4 + $0x1b0] sm:$0xff] %vm3238, %v3228
        %3294 = vst.msk [vmem:[#allocation4 + $0x1b8] sm:$0xff] %vm3238, %v3229
        %3295 = vst.msk [vmem:[#allocation4 + $0x1c0] sm:$0xff] %vm3238, %v3230
        %3296 = vst.msk [vmem:[#allocation4 + $0x1c8] sm:$0xff] %vm3238, %v3231
        %3297 = vst.msk [vmem:[#allocation4 + $0x1d0] sm:$0xff] %vm3238, %v3232
        %3298 = vst.msk [vmem:[#allocation4 + $0x1d8] sm:$0xff] %vm3238, %v3233
        %3299 = vst.msk [vmem:[#allocation4 + $0x1e0] sm:$0xff] %vm3238, %v3234
        %3300 = vst.msk [vmem:[#allocation4 + $0x1e8] sm:$0xff] %vm3238, %v3235
        %3301 = vst.msk [vmem:[#allocation4 + $0x1f0] sm:$0xff] %vm3238, %v3236
        %3302 = vst.msk [vmem:[#allocation4 + $0x1f8] sm:$0xff] %vm3238, %v3237
        %v3303 = vld [vmem:[#allocation5] sm:$0xff]
        %v3304 = vld [vmem:[#allocation5 + $0x8] sm:$0xff]
        %v3305 = vld [vmem:[#allocation5 + $0x10] sm:$0xff]
        %v3306 = vld [vmem:[#allocation5 + $0x18] sm:$0xff]
        %v3307 = vld [vmem:[#allocation5 + $0x20] sm:$0xff]
        %v3308 = vld [vmem:[#allocation5 + $0x28] sm:$0xff]
        %v3309 = vld [vmem:[#allocation5 + $0x30] sm:$0xff]
        %v3310 = vld [vmem:[#allocation5 + $0x38] sm:$0xff]
        %v3311 = vld [vmem:[#allocation5 + $0x40] sm:$0xff]
        %v3312 = vld [vmem:[#allocation5 + $0x48] sm:$0xff]
        %v3313 = vld [vmem:[#allocation5 + $0x50] sm:$0xff]
        %v3314 = vld [vmem:[#allocation5 + $0x58] sm:$0xff]
        %v3315 = vld [vmem:[#allocation5 + $0x60] sm:$0xff]
        %v3316 = vld [vmem:[#allocation5 + $0x68] sm:$0xff]
        %v3317 = vld [vmem:[#allocation5 + $0x70] sm:$0xff]
        %v3318 = vld [vmem:[#allocation5 + $0x78] sm:$0xff]
        %v3319 = vld [vmem:[#allocation5 + $0x80] sm:$0xff]
        %v3320 = vld [vmem:[#allocation5 + $0x88] sm:$0xff]
        %v3321 = vld [vmem:[#allocation5 + $0x90] sm:$0xff]
        %v3322 = vld [vmem:[#allocation5 + $0x98] sm:$0xff]
        %v3323 = vld [vmem:[#allocation5 + $0xa0] sm:$0xff]
        %v3324 = vld [vmem:[#allocation5 + $0xa8] sm:$0xff]
        %v3325 = vld [vmem:[#allocation5 + $0xb0] sm:$0xff]
        %v3326 = vld [vmem:[#allocation5 + $0xb8] sm:$0xff]
        %v3327 = vld [vmem:[#allocation5 + $0xc0] sm:$0xff]
        %v3328 = vld [vmem:[#allocation5 + $0xc8] sm:$0xff]
        %v3329 = vld [vmem:[#allocation5 + $0xd0] sm:$0xff]
        %v3330 = vld [vmem:[#allocation5 + $0xd8] sm:$0xff]
        %v3331 = vld [vmem:[#allocation5 + $0xe0] sm:$0xff]
        %v3332 = vld [vmem:[#allocation5 + $0xe8] sm:$0xff]
        %v3333 = vld [vmem:[#allocation5 + $0xf0] sm:$0xff]
        %v3334 = vld [vmem:[#allocation5 + $0xf8] sm:$0xff]
        %v3335 = vld [vmem:[#allocation5 + $0x100] sm:$0xff]
        %v3336 = vld [vmem:[#allocation5 + $0x108] sm:$0xff]
        %v3337 = vld [vmem:[#allocation5 + $0x110] sm:$0xff]
        %v3338 = vld [vmem:[#allocation5 + $0x118] sm:$0xff]
        %v3339 = vld [vmem:[#allocation5 + $0x120] sm:$0xff]
        %v3340 = vld [vmem:[#allocation5 + $0x128] sm:$0xff]
        %v3341 = vld [vmem:[#allocation5 + $0x130] sm:$0xff]
        %v3342 = vld [vmem:[#allocation5 + $0x138] sm:$0xff]
        %v3343 = vld [vmem:[#allocation5 + $0x140] sm:$0xff]
        %v3344 = vld [vmem:[#allocation5 + $0x148] sm:$0xff]
        %v3345 = vld [vmem:[#allocation5 + $0x150] sm:$0xff]
        %v3346 = vld [vmem:[#allocation5 + $0x158] sm:$0xff]
        %v3347 = vld [vmem:[#allocation5 + $0x160] sm:$0xff]
        %v3348 = vld [vmem:[#allocation5 + $0x168] sm:$0xff]
        %v3349 = vld [vmem:[#allocation5 + $0x170] sm:$0xff]
        %v3350 = vld [vmem:[#allocation5 + $0x178] sm:$0xff]
        %v3351 = vld [vmem:[#allocation5 + $0x180] sm:$0xff]
        %v3352 = vld [vmem:[#allocation5 + $0x188] sm:$0xff]
        %v3353 = vld [vmem:[#allocation5 + $0x190] sm:$0xff]
        %v3354 = vld [vmem:[#allocation5 + $0x198] sm:$0xff]
        %v3355 = vld [vmem:[#allocation5 + $0x1a0] sm:$0xff]
        %v3356 = vld [vmem:[#allocation5 + $0x1a8] sm:$0xff]
        %v3357 = vld [vmem:[#allocation5 + $0x1b0] sm:$0xff]
        %v3358 = vld [vmem:[#allocation5 + $0x1b8] sm:$0xff]
        %v3359 = vld [vmem:[#allocation5 + $0x1c0] sm:$0xff]
        %v3360 = vld [vmem:[#allocation5 + $0x1c8] sm:$0xff]
        %v3361 = vld [vmem:[#allocation5 + $0x1d0] sm:$0xff]
        %v3362 = vld [vmem:[#allocation5 + $0x1d8] sm:$0xff]
        %v3363 = vld [vmem:[#allocation5 + $0x1e0] sm:$0xff]
        %v3364 = vld [vmem:[#allocation5 + $0x1e8] sm:$0xff]
        %v3365 = vld [vmem:[#allocation5 + $0x1f0] sm:$0xff]
        %v3366 = vld [vmem:[#allocation5 + $0x1f8] sm:$0xff]
        %3368 = vset.pattern.permute.xlu0 0
        %3369 = vperm.xlu0 %3368, %v2023
        %v3370 = vpop.permute.xlu0 %3369
        %3373 = vset.pattern.permute.xlu0 0
        %3374 = vperm.xlu0 %3373, %v2025
        %v3375 = vpop.permute.xlu0 %3374
        %3378 = vset.pattern.permute.xlu0 0
        %3379 = vperm.xlu0 %3378, %v2027
        %v3380 = vpop.permute.xlu0 %3379
        %3383 = vset.pattern.permute.xlu0 0
        %3384 = vperm.xlu0 %3383, %v2029
        %v3385 = vpop.permute.xlu0 %3384
        %3388 = vset.pattern.permute.xlu0 0
        %3389 = vperm.xlu0 %3388, %v2031
        %v3390 = vpop.permute.xlu0 %3389
        %3393 = vset.pattern.permute.xlu0 0
        %3394 = vperm.xlu0 %3393, %v2033
        %v3395 = vpop.permute.xlu0 %3394
        %3398 = vset.pattern.permute.xlu0 0
        %3399 = vperm.xlu0 %3398, %v2035
        %v3400 = vpop.permute.xlu0 %3399
        %3403 = vset.pattern.permute.xlu0 0
        %3404 = vperm.xlu0 %3403, %v2037
        %v3405 = vpop.permute.xlu0 %3404
        %3408 = vset.pattern.permute.xlu0 0
        %3409 = vperm.xlu0 %3408, %v2039
        %v3410 = vpop.permute.xlu0 %3409
        %3413 = vset.pattern.permute.xlu0 0
        %3414 = vperm.xlu0 %3413, %v2041
        %v3415 = vpop.permute.xlu0 %3414
        %3418 = vset.pattern.permute.xlu0 0
        %3419 = vperm.xlu0 %3418, %v2043
        %v3420 = vpop.permute.xlu0 %3419
        %3423 = vset.pattern.permute.xlu0 0
        %3424 = vperm.xlu0 %3423, %v2045
        %v3425 = vpop.permute.xlu0 %3424
        %3428 = vset.pattern.permute.xlu0 0
        %3429 = vperm.xlu0 %3428, %v2047
        %v3430 = vpop.permute.xlu0 %3429
        %3433 = vset.pattern.permute.xlu0 0
        %3434 = vperm.xlu0 %3433, %v2049
        %v3435 = vpop.permute.xlu0 %3434
        %3438 = vset.pattern.permute.xlu0 0
        %3439 = vperm.xlu0 %3438, %v2051
        %v3440 = vpop.permute.xlu0 %3439
        %3443 = vset.pattern.permute.xlu0 0
        %3444 = vperm.xlu0 %3443, %v2053
        %v3445 = vpop.permute.xlu0 %3444
        %3448 = vset.pattern.permute.xlu0 0
        %3449 = vperm.xlu0 %3448, %v2055
        %v3450 = vpop.permute.xlu0 %3449
        %3453 = vset.pattern.permute.xlu0 0
        %3454 = vperm.xlu0 %3453, %v2057
        %v3455 = vpop.permute.xlu0 %3454
        %3458 = vset.pattern.permute.xlu0 0
        %3459 = vperm.xlu0 %3458, %v2059
        %v3460 = vpop.permute.xlu0 %3459
        %3463 = vset.pattern.permute.xlu0 0
        %3464 = vperm.xlu0 %3463, %v2061
        %v3465 = vpop.permute.xlu0 %3464
        %3468 = vset.pattern.permute.xlu0 0
        %3469 = vperm.xlu0 %3468, %v2063
        %v3470 = vpop.permute.xlu0 %3469
        %3473 = vset.pattern.permute.xlu0 0
        %3474 = vperm.xlu0 %3473, %v2065
        %v3475 = vpop.permute.xlu0 %3474
        %3478 = vset.pattern.permute.xlu0 0
        %3479 = vperm.xlu0 %3478, %v2067
        %v3480 = vpop.permute.xlu0 %3479
        %3483 = vset.pattern.permute.xlu0 0
        %3484 = vperm.xlu0 %3483, %v2069
        %v3485 = vpop.permute.xlu0 %3484
        %3488 = vset.pattern.permute.xlu0 0
        %3489 = vperm.xlu0 %3488, %v2071
        %v3490 = vpop.permute.xlu0 %3489
        %3493 = vset.pattern.permute.xlu0 0
        %3494 = vperm.xlu0 %3493, %v2073
        %v3495 = vpop.permute.xlu0 %3494
        %3498 = vset.pattern.permute.xlu0 0
        %3499 = vperm.xlu0 %3498, %v2075
        %v3500 = vpop.permute.xlu0 %3499
        %3503 = vset.pattern.permute.xlu0 0
        %3504 = vperm.xlu0 %3503, %v2077
        %v3505 = vpop.permute.xlu0 %3504
        %3508 = vset.pattern.permute.xlu0 0
        %3509 = vperm.xlu0 %3508, %v2079
        %v3510 = vpop.permute.xlu0 %3509
        %3513 = vset.pattern.permute.xlu0 0
        %3514 = vperm.xlu0 %3513, %v2081
        %v3515 = vpop.permute.xlu0 %3514
        %3518 = vset.pattern.permute.xlu0 0
        %3519 = vperm.xlu0 %3518, %v2083
        %v3520 = vpop.permute.xlu0 %3519
        %3523 = vset.pattern.permute.xlu0 0
        %3524 = vperm.xlu0 %3523, %v2085
        %v3525 = vpop.permute.xlu0 %3524
        %3528 = vset.pattern.permute.xlu0 0
        %3529 = vperm.xlu0 %3528, %v2087
        %v3530 = vpop.permute.xlu0 %3529
        %3533 = vset.pattern.permute.xlu0 0
        %3534 = vperm.xlu0 %3533, %v2089
        %v3535 = vpop.permute.xlu0 %3534
        %3538 = vset.pattern.permute.xlu0 0
        %3539 = vperm.xlu0 %3538, %v2091
        %v3540 = vpop.permute.xlu0 %3539
        %3543 = vset.pattern.permute.xlu0 0
        %3544 = vperm.xlu0 %3543, %v2093
        %v3545 = vpop.permute.xlu0 %3544
        %3548 = vset.pattern.permute.xlu0 0
        %3549 = vperm.xlu0 %3548, %v2095
        %v3550 = vpop.permute.xlu0 %3549
        %3553 = vset.pattern.permute.xlu0 0
        %3554 = vperm.xlu0 %3553, %v2097
        %v3555 = vpop.permute.xlu0 %3554
        %3558 = vset.pattern.permute.xlu0 0
        %3559 = vperm.xlu0 %3558, %v2099
        %v3560 = vpop.permute.xlu0 %3559
        %3563 = vset.pattern.permute.xlu0 0
        %3564 = vperm.xlu0 %3563, %v2101
        %v3565 = vpop.permute.xlu0 %3564
        %3568 = vset.pattern.permute.xlu0 0
        %3569 = vperm.xlu0 %3568, %v2103
        %v3570 = vpop.permute.xlu0 %3569
        %3573 = vset.pattern.permute.xlu0 0
        %3574 = vperm.xlu0 %3573, %v2105
        %v3575 = vpop.permute.xlu0 %3574
        %3578 = vset.pattern.permute.xlu0 0
        %3579 = vperm.xlu0 %3578, %v2107
        %v3580 = vpop.permute.xlu0 %3579
        %3583 = vset.pattern.permute.xlu0 0
        %3584 = vperm.xlu0 %3583, %v2109
        %v3585 = vpop.permute.xlu0 %3584
        %3588 = vset.pattern.permute.xlu0 0
        %3589 = vperm.xlu0 %3588, %v2111
        %v3590 = vpop.permute.xlu0 %3589
        %3593 = vset.pattern.permute.xlu0 0
        %3594 = vperm.xlu0 %3593, %v2113
        %v3595 = vpop.permute.xlu0 %3594
        %3598 = vset.pattern.permute.xlu0 0
        %3599 = vperm.xlu0 %3598, %v2115
        %v3600 = vpop.permute.xlu0 %3599
        %3603 = vset.pattern.permute.xlu0 0
        %3604 = vperm.xlu0 %3603, %v2117
        %v3605 = vpop.permute.xlu0 %3604
        %3608 = vset.pattern.permute.xlu0 0
        %3609 = vperm.xlu0 %3608, %v2119
        %v3610 = vpop.permute.xlu0 %3609
        %3613 = vset.pattern.permute.xlu0 0
        %3614 = vperm.xlu0 %3613, %v2121
        %v3615 = vpop.permute.xlu0 %3614
        %3618 = vset.pattern.permute.xlu0 0
        %3619 = vperm.xlu0 %3618, %v2123
        %v3620 = vpop.permute.xlu0 %3619
        %3623 = vset.pattern.permute.xlu0 0
        %3624 = vperm.xlu0 %3623, %v2125
        %v3625 = vpop.permute.xlu0 %3624
        %3628 = vset.pattern.permute.xlu0 0
        %3629 = vperm.xlu0 %3628, %v2127
        %v3630 = vpop.permute.xlu0 %3629
        %3633 = vset.pattern.permute.xlu0 0
        %3634 = vperm.xlu0 %3633, %v2129
        %v3635 = vpop.permute.xlu0 %3634
        %3638 = vset.pattern.permute.xlu0 0
        %3639 = vperm.xlu0 %3638, %v2131
        %v3640 = vpop.permute.xlu0 %3639
        %3643 = vset.pattern.permute.xlu0 0
        %3644 = vperm.xlu0 %3643, %v2133
        %v3645 = vpop.permute.xlu0 %3644
        %3648 = vset.pattern.permute.xlu0 0
        %3649 = vperm.xlu0 %3648, %v2135
        %v3650 = vpop.permute.xlu0 %3649
        %3653 = vset.pattern.permute.xlu0 0
        %3654 = vperm.xlu0 %3653, %v2137
        %v3655 = vpop.permute.xlu0 %3654
        %3658 = vset.pattern.permute.xlu0 0
        %3659 = vperm.xlu0 %3658, %v2139
        %v3660 = vpop.permute.xlu0 %3659
        %3663 = vset.pattern.permute.xlu0 0
        %3664 = vperm.xlu0 %3663, %v2141
        %v3665 = vpop.permute.xlu0 %3664
        %3668 = vset.pattern.permute.xlu0 0
        %3669 = vperm.xlu0 %3668, %v2143
        %v3670 = vpop.permute.xlu0 %3669
        %3673 = vset.pattern.permute.xlu0 0
        %3674 = vperm.xlu0 %3673, %v2145
        %v3675 = vpop.permute.xlu0 %3674
        %3678 = vset.pattern.permute.xlu0 0
        %3679 = vperm.xlu0 %3678, %v2147
        %v3680 = vpop.permute.xlu0 %3679
        %3683 = vset.pattern.permute.xlu0 0
        %3684 = vperm.xlu0 %3683, %v2149
        %v3685 = vpop.permute.xlu0 %3684
        %v3687 = vmul.f32 %v3370, %v3303
        %v3688 = vmul.f32 %v3375, %v3304
        %v3689 = vmul.f32 %v3380, %v3305
        %v3690 = vmul.f32 %v3385, %v3306
        %v3691 = vmul.f32 %v3390, %v3307
        %v3692 = vmul.f32 %v3395, %v3308
        %v3693 = vmul.f32 %v3400, %v3309
        %v3694 = vmul.f32 %v3405, %v3310
        %v3695 = vmul.f32 %v3410, %v3311
        %v3696 = vmul.f32 %v3415, %v3312
        %v3697 = vmul.f32 %v3420, %v3313
        %v3698 = vmul.f32 %v3425, %v3314
        %v3699 = vmul.f32 %v3430, %v3315
        %v3700 = vmul.f32 %v3435, %v3316
        %v3701 = vmul.f32 %v3440, %v3317
        %v3702 = vmul.f32 %v3445, %v3318
        %v3703 = vmul.f32 %v3450, %v3319
        %v3704 = vmul.f32 %v3455, %v3320
        %v3705 = vmul.f32 %v3460, %v3321
        %v3706 = vmul.f32 %v3465, %v3322
        %v3707 = vmul.f32 %v3470, %v3323
        %v3708 = vmul.f32 %v3475, %v3324
        %v3709 = vmul.f32 %v3480, %v3325
        %v3710 = vmul.f32 %v3485, %v3326
        %v3711 = vmul.f32 %v3490, %v3327
        %v3712 = vmul.f32 %v3495, %v3328
        %v3713 = vmul.f32 %v3500, %v3329
        %v3714 = vmul.f32 %v3505, %v3330
        %v3715 = vmul.f32 %v3510, %v3331
        %v3716 = vmul.f32 %v3515, %v3332
        %v3717 = vmul.f32 %v3520, %v3333
        %v3718 = vmul.f32 %v3525, %v3334
        %v3719 = vmul.f32 %v3530, %v3335
        %v3720 = vmul.f32 %v3535, %v3336
        %v3721 = vmul.f32 %v3540, %v3337
        %v3722 = vmul.f32 %v3545, %v3338
        %v3723 = vmul.f32 %v3550, %v3339
        %v3724 = vmul.f32 %v3555, %v3340
        %v3725 = vmul.f32 %v3560, %v3341
        %v3726 = vmul.f32 %v3565, %v3342
        %v3727 = vmul.f32 %v3570, %v3343
        %v3728 = vmul.f32 %v3575, %v3344
        %v3729 = vmul.f32 %v3580, %v3345
        %v3730 = vmul.f32 %v3585, %v3346
        %v3731 = vmul.f32 %v3590, %v3347
        %v3732 = vmul.f32 %v3595, %v3348
        %v3733 = vmul.f32 %v3600, %v3349
        %v3734 = vmul.f32 %v3605, %v3350
        %v3735 = vmul.f32 %v3610, %v3351
        %v3736 = vmul.f32 %v3615, %v3352
        %v3737 = vmul.f32 %v3620, %v3353
        %v3738 = vmul.f32 %v3625, %v3354
        %v3739 = vmul.f32 %v3630, %v3355
        %v3740 = vmul.f32 %v3635, %v3356
        %v3741 = vmul.f32 %v3640, %v3357
        %v3742 = vmul.f32 %v3645, %v3358
        %v3743 = vmul.f32 %v3650, %v3359
        %v3744 = vmul.f32 %v3655, %v3360
        %v3745 = vmul.f32 %v3660, %v3361
        %v3746 = vmul.f32 %v3665, %v3362
        %v3747 = vmul.f32 %v3670, %v3363
        %v3748 = vmul.f32 %v3675, %v3364
        %v3749 = vmul.f32 %v3680, %v3365
        %v3750 = vmul.f32 %v3685, %v3366
        %3751 = vmatprep.subr.mxu0 0.0
        %3752 = vmatpush1.msra.mxu0 %v868
        %3753 = vmatprep.subr.mxu0 0.0
        %3754 = vmatpush1.msra.mxu0 %v869
        %3755 = vmatprep.subr.mxu0 0.0
        %3756 = vmatpush1.msra.mxu0 %v870
        %3757 = vmatprep.subr.mxu0 0.0
        %3758 = vmatpush1.msra.mxu0 %v871
        %3759 = vmatprep.subr.mxu0 0.0
        %3760 = vmatpush1.msra.mxu0 %v872
        %3761 = vmatprep.subr.mxu0 0.0
        %3762 = vmatpush1.msra.mxu0 %v873
        %3763 = vmatprep.subr.mxu0 0.0
        %3764 = vmatpush1.msra.mxu0 %v874
        %3765 = vmatprep.subr.mxu0 0.0
        %3766 = vmatpush1.msra.mxu0 %v875
        %3767 = vmatprep.subr.mxu0 0.0
        %3768 = vmatpush1.msra.mxu0 %v876
        %3769 = vmatprep.subr.mxu0 0.0
        %3770 = vmatpush1.msra.mxu0 %v877
        %3771 = vmatprep.subr.mxu0 0.0
        %3772 = vmatpush1.msra.mxu0 %v878
        %3773 = vmatprep.subr.mxu0 0.0
        %3774 = vmatpush1.msra.mxu0 %v879
        %3775 = vmatprep.subr.mxu0 0.0
        %3776 = vmatpush1.msra.mxu0 %v880
        %3777 = vmatprep.subr.mxu0 0.0
        %3778 = vmatpush1.msra.mxu0 %v881
        %3779 = vmatprep.subr.mxu0 0.0
        %3780 = vmatpush1.msra.mxu0 %v882
        %3781 = vmatprep.subr.mxu0 0.0
        %3782 = vmatpush1.msra.mxu0 %v883
        %3783 = vmatprep.subr.mxu0 0.0
        %3784 = vmatpush1.msra.mxu0 %v884
        %3785 = vmatprep.subr.mxu0 0.0
        %3786 = vmatpush1.msra.mxu0 %v885
        %3787 = vmatprep.subr.mxu0 0.0
        %3788 = vmatpush1.msra.mxu0 %v886
        %3789 = vmatprep.subr.mxu0 0.0
        %3790 = vmatpush1.msra.mxu0 %v887
        %3791 = vmatprep.subr.mxu0 0.0
        %3792 = vmatpush1.msra.mxu0 %v888
        %3793 = vmatprep.subr.mxu0 0.0
        %3794 = vmatpush1.msra.mxu0 %v889
        %3795 = vmatprep.subr.mxu0 0.0
        %3796 = vmatpush1.msra.mxu0 %v890
        %3797 = vmatprep.subr.mxu0 0.0
        %3798 = vmatpush1.msra.mxu0 %v891
        %3799 = vmatprep.subr.mxu0 0.0
        %3800 = vmatpush1.msra.mxu0 %v892
        %3801 = vmatprep.subr.mxu0 0.0
        %3802 = vmatpush1.msra.mxu0 %v893
        %3803 = vmatprep.subr.mxu0 0.0
        %3804 = vmatpush1.msra.mxu0 %v894
        %3805 = vmatprep.subr.mxu0 0.0
        %3806 = vmatpush1.msra.mxu0 %v895
        %3807 = vmatprep.subr.mxu0 0.0
        %3808 = vmatpush1.msra.mxu0 %v896
        %3809 = vmatprep.subr.mxu0 0.0
        %3810 = vmatpush1.msra.mxu0 %v897
        %3811 = vmatprep.subr.mxu0 0.0
        %3812 = vmatpush1.msra.mxu0 %v898
        %3813 = vmatprep.subr.mxu0 0.0
        %3814 = vmatpush1.msra.mxu0 %v899
        %3815 = vmatprep.mubr.f32.mxu0 %v2601
        %3816 = vmatmul.mubr.f32.gmra.mrb[0].mxu0 %v2599
        %v3817 = vpop.f32.mrb[0].mxu0
        %v3818 = vadd.f32 0.0, %v3817
        %v3819 = vpop.f32.mrb[0].mxu0
        %3820 = vmatprep.mubr.f32.mxu0 %v2605
        %3821 = vmatmul.mubr.f32.gmra.mrb[0].mxu0 %v2603
        %v3822 = vpop.f32.mrb[0].mxu0
        %v3823 = vadd.f32 0.0, %v3822
        %v3824 = vpop.f32.mrb[0].mxu0
        %3825 = vmatprep.mubr.f32.mxu0 %v2609
        %3826 = vmatmul.mubr.f32.gmra.mrb[0].mxu0 %v2607
        %v3827 = vpop.f32.mrb[0].mxu0
        %v3828 = vadd.f32 0.0, %v3827
        %v3829 = vpop.f32.mrb[0].mxu0
        %3830 = vmatprep.mubr.f32.mxu0 %v2613
        %3831 = vmatmul.mubr.f32.gmra.mrb[0].mxu0 %v2611
        %v3832 = vpop.f32.mrb[0].mxu0
        %v3833 = vadd.f32 0.0, %v3832
        %v3834 = vpop.f32.mrb[0].mxu0
        %3835 = vmatprep.mubr.f32.mxu0 %v2617
        %3836 = vmatmul.mubr.f32.gmra.mrb[0].mxu0 %v2615
        %v3837 = vpop.f32.mrb[0].mxu0
        %v3838 = vadd.f32 0.0, %v3837
        %v3839 = vpop.f32.mrb[0].mxu0
        %3840 = vmatprep.mubr.f32.mxu0 %v2621
        %3841 = vmatmul.mubr.f32.gmra.mrb[0].mxu0 %v2619
        %v3842 = vpop.f32.mrb[0].mxu0
        %v3843 = vadd.f32 0.0, %v3842
        %v3844 = vpop.f32.mrb[0].mxu0
        %3845 = vmatprep.mubr.f32.mxu0 %v2625
        %3846 = vmatmul.mubr.f32.gmra.mrb[0].mxu0 %v2623
        %v3847 = vpop.f32.mrb[0].mxu0
        %v3848 = vadd.f32 0.0, %v3847
        %v3849 = vpop.f32.mrb[0].mxu0
        %3850 = vmatprep.mubr.f32.mxu0 %v2629
        %3851 = vmatmul.mubr.f32.gmra.mrb[0].mxu0 %v2627
        %v3852 = vpop.f32.mrb[0].mxu0
        %v3853 = vadd.f32 0.0, %v3852
        %v3854 = vpop.f32.mrb[0].mxu0
        %3855 = vmatprep.mubr.f32.mxu0 %v2633
        %3856 = vmatmul.mubr.f32.gmra.mrb[0].mxu0 %v2631
        %v3857 = vpop.f32.mrb[0].mxu0
        %v3858 = vadd.f32 0.0, %v3857
        %v3859 = vpop.f32.mrb[0].mxu0
        %3860 = vmatprep.mubr.f32.mxu0 %v2637
        %3861 = vmatmul.mubr.f32.gmra.mrb[0].mxu0 %v2635
        %v3862 = vpop.f32.mrb[0].mxu0
        %v3863 = vadd.f32 0.0, %v3862
        %v3864 = vpop.f32.mrb[0].mxu0
        %3865 = vmatprep.mubr.f32.mxu0 %v2641
        %3866 = vmatmul.mubr.f32.gmra.mrb[0].mxu0 %v2639
        %v3867 = vpop.f32.mrb[0].mxu0
        %v3868 = vadd.f32 0.0, %v3867
        %v3869 = vpop.f32.mrb[0].mxu0
        %3870 = vmatprep.mubr.f32.mxu0 %v2645
        %3871 = vmatmul.mubr.f32.gmra.mrb[0].mxu0 %v2643
        %v3872 = vpop.f32.mrb[0].mxu0
        %v3873 = vadd.f32 0.0, %v3872
        %v3874 = vpop.f32.mrb[0].mxu0
        %3875 = vmatprep.mubr.f32.mxu0 %v2649
        %3876 = vmatmul.mubr.f32.gmra.mrb[0].mxu0 %v2647
        %v3877 = vpop.f32.mrb[0].mxu0
        %v3878 = vadd.f32 0.0, %v3877
        %v3879 = vpop.f32.mrb[0].mxu0
        %3880 = vmatprep.mubr.f32.mxu0 %v2653
        %3881 = vmatmul.mubr.f32.gmra.mrb[0].mxu0 %v2651
        %v3882 = vpop.f32.mrb[0].mxu0
        %v3883 = vadd.f32 0.0, %v3882
        %v3884 = vpop.f32.mrb[0].mxu0
        %3885 = vmatprep.mubr.f32.mxu0 %v2657
        %3886 = vmatmul.mubr.f32.gmra.mrb[0].mxu0 %v2655
        %v3887 = vpop.f32.mrb[0].mxu0
        %v3888 = vadd.f32 0.0, %v3887
        %v3889 = vpop.f32.mrb[0].mxu0
        %3890 = vmatprep.mubr.f32.mxu0 %v2661
        %3891 = vmatmul.mubr.f32.gmra.mrb[0].mxu0 %v2659
        %v3892 = vpop.f32.mrb[0].mxu0
        %v3893 = vadd.f32 0.0, %v3892
        %v3894 = vpop.f32.mrb[0].mxu0
        %3895 = vmatprep.mubr.f32.mxu0 %v2665
        %3896 = vmatmul.mubr.f32.gmra.mrb[0].mxu0 %v2663
        %v3897 = vpop.f32.mrb[0].mxu0
        %v3898 = vadd.f32 0.0, %v3897
        %v3899 = vpop.f32.mrb[0].mxu0
        %3900 = vmatprep.mubr.f32.mxu0 %v2669
        %3901 = vmatmul.mubr.f32.gmra.mrb[0].mxu0 %v2667
        %v3902 = vpop.f32.mrb[0].mxu0
        %v3903 = vadd.f32 0.0, %v3902
        %v3904 = vpop.f32.mrb[0].mxu0
        %3905 = vmatprep.mubr.f32.mxu0 %v2673
        %3906 = vmatmul.mubr.f32.gmra.mrb[0].mxu0 %v2671
        %v3907 = vpop.f32.mrb[0].mxu0
        %v3908 = vadd.f32 0.0, %v3907
        %v3909 = vpop.f32.mrb[0].mxu0
        %3910 = vmatprep.mubr.f32.mxu0 %v2677
        %3911 = vmatmul.mubr.f32.gmra.mrb[0].mxu0 %v2675
        %v3912 = vpop.f32.mrb[0].mxu0
        %v3913 = vadd.f32 0.0, %v3912
        %v3914 = vpop.f32.mrb[0].mxu0
        %3915 = vmatprep.mubr.f32.mxu0 %v2681
        %3916 = vmatmul.mubr.f32.gmra.mrb[0].mxu0 %v2679
        %v3917 = vpop.f32.mrb[0].mxu0
        %v3918 = vadd.f32 0.0, %v3917
        %v3919 = vpop.f32.mrb[0].mxu0
        %3920 = vmatprep.mubr.f32.mxu0 %v2685
        %3921 = vmatmul.mubr.f32.gmra.mrb[0].mxu0 %v2683
        %v3922 = vpop.f32.mrb[0].mxu0
        %v3923 = vadd.f32 0.0, %v3922
        %v3924 = vpop.f32.mrb[0].mxu0
        %3925 = vmatprep.mubr.f32.mxu0 %v2689
        %3926 = vmatmul.mubr.f32.gmra.mrb[0].mxu0 %v2687
        %v3927 = vpop.f32.mrb[0].mxu0
        %v3928 = vadd.f32 0.0, %v3927
        %v3929 = vpop.f32.mrb[0].mxu0
        %3930 = vmatprep.mubr.f32.mxu0 %v2693
        %3931 = vmatmul.mubr.f32.gmra.mrb[0].mxu0 %v2691
        %v3932 = vpop.f32.mrb[0].mxu0
        %v3933 = vadd.f32 0.0, %v3932
        %v3934 = vpop.f32.mrb[0].mxu0
        %3935 = vmatprep.mubr.f32.mxu0 %v2697
        %3936 = vmatmul.mubr.f32.gmra.mrb[0].mxu0 %v2695
        %v3937 = vpop.f32.mrb[0].mxu0
        %v3938 = vadd.f32 0.0, %v3937
        %v3939 = vpop.f32.mrb[0].mxu0
        %3940 = vmatprep.mubr.f32.mxu0 %v2701
        %3941 = vmatmul.mubr.f32.gmra.mrb[0].mxu0 %v2699
        %v3942 = vpop.f32.mrb[0].mxu0
        %v3943 = vadd.f32 0.0, %v3942
        %v3944 = vpop.f32.mrb[0].mxu0
        %3945 = vmatprep.mubr.f32.mxu0 %v2705
        %3946 = vmatmul.mubr.f32.gmra.mrb[0].mxu0 %v2703
        %v3947 = vpop.f32.mrb[0].mxu0
        %v3948 = vadd.f32 0.0, %v3947
        %v3949 = vpop.f32.mrb[0].mxu0
        %3950 = vmatprep.mubr.f32.mxu0 %v2709
        %3951 = vmatmul.mubr.f32.gmra.mrb[0].mxu0 %v2707
        %v3952 = vpop.f32.mrb[0].mxu0
        %v3953 = vadd.f32 0.0, %v3952
        %v3954 = vpop.f32.mrb[0].mxu0
        %3955 = vmatprep.mubr.f32.mxu0 %v2713
        %3956 = vmatmul.mubr.f32.gmra.mrb[0].mxu0 %v2711
        %v3957 = vpop.f32.mrb[0].mxu0
        %v3958 = vadd.f32 0.0, %v3957
        %v3959 = vpop.f32.mrb[0].mxu0
        %3960 = vmatprep.mubr.f32.mxu0 %v2717
        %3961 = vmatmul.mubr.f32.gmra.mrb[0].mxu0 %v2715
        %v3962 = vpop.f32.mrb[0].mxu0
        %v3963 = vadd.f32 0.0, %v3962
        %v3964 = vpop.f32.mrb[0].mxu0
        %3965 = vmatprep.mubr.f32.mxu0 %v2721
        %3966 = vmatmul.mubr.f32.gmra.mrb[0].mxu0 %v2719
        %v3967 = vpop.f32.mrb[0].mxu0
        %v3968 = vadd.f32 0.0, %v3967
        %v3969 = vpop.f32.mrb[0].mxu0
        %3970 = vmatprep.mubr.f32.mxu0 %v2725
        %3971 = vmatmul.mubr.f32.gmra.mrb[0].mxu0 %v2723
        %v3972 = vpop.f32.mrb[0].mxu0
        %v3973 = vadd.f32 0.0, %v3972
        %v3974 = vpop.f32.mrb[0].mxu0
        %3975 = vmatprep.mubr.f32.mxu0 %v2729
        %3976 = vmatmul.mubr.f32.gmra.mrb[0].mxu0 %v2727
        %v3977 = vpop.f32.mrb[0].mxu0
        %v3978 = vadd.f32 0.0, %v3977
        %v3979 = vpop.f32.mrb[0].mxu0
        %3980 = vmatprep.mubr.f32.mxu0 %v2733
        %3981 = vmatmul.mubr.f32.gmra.mrb[0].mxu0 %v2731
        %v3982 = vpop.f32.mrb[0].mxu0
        %v3983 = vadd.f32 0.0, %v3982
        %v3984 = vpop.f32.mrb[0].mxu0
        %3985 = vmatprep.mubr.f32.mxu0 %v2737
        %3986 = vmatmul.mubr.f32.gmra.mrb[0].mxu0 %v2735
        %v3987 = vpop.f32.mrb[0].mxu0
        %v3988 = vadd.f32 0.0, %v3987
        %v3989 = vpop.f32.mrb[0].mxu0
        %3990 = vmatprep.mubr.f32.mxu0 %v2741
        %3991 = vmatmul.mubr.f32.gmra.mrb[0].mxu0 %v2739
        %v3992 = vpop.f32.mrb[0].mxu0
        %v3993 = vadd.f32 0.0, %v3992
        %v3994 = vpop.f32.mrb[0].mxu0
        %3995 = vmatprep.mubr.f32.mxu0 %v2745
        %3996 = vmatmul.mubr.f32.gmra.mrb[0].mxu0 %v2743
        %v3997 = vpop.f32.mrb[0].mxu0
        %v3998 = vadd.f32 0.0, %v3997
        %v3999 = vpop.f32.mrb[0].mxu0
        %4000 = vmatprep.mubr.f32.mxu0 %v2749
        %4001 = vmatmul.mubr.f32.gmra.mrb[0].mxu0 %v2747
        %v4002 = vpop.f32.mrb[0].mxu0
        %v4003 = vadd.f32 0.0, %v4002
        %v4004 = vpop.f32.mrb[0].mxu0
        %4005 = vmatprep.mubr.f32.mxu0 %v2753
        %4006 = vmatmul.mubr.f32.gmra.mrb[0].mxu0 %v2751
        %v4007 = vpop.f32.mrb[0].mxu0
        %v4008 = vadd.f32 0.0, %v4007
        %v4009 = vpop.f32.mrb[0].mxu0
        %4010 = vmatprep.mubr.f32.mxu0 %v2757
        %4011 = vmatmul.mubr.f32.gmra.mrb[0].mxu0 %v2755
        %v4012 = vpop.f32.mrb[0].mxu0
        %v4013 = vadd.f32 0.0, %v4012
        %v4014 = vpop.f32.mrb[0].mxu0
        %4015 = vmatprep.mubr.f32.mxu0 %v2761
        %4016 = vmatmul.mubr.f32.gmra.mrb[0].mxu0 %v2759
        %v4017 = vpop.f32.mrb[0].mxu0
        %v4018 = vadd.f32 0.0, %v4017
        %v4019 = vpop.f32.mrb[0].mxu0
        %4020 = vmatprep.mubr.f32.mxu0 %v2765
        %4021 = vmatmul.mubr.f32.gmra.mrb[0].mxu0 %v2763
        %v4022 = vpop.f32.mrb[0].mxu0
        %v4023 = vadd.f32 0.0, %v4022
        %v4024 = vpop.f32.mrb[0].mxu0
        %4025 = vmatprep.mubr.f32.mxu0 %v2769
        %4026 = vmatmul.mubr.f32.gmra.mrb[0].mxu0 %v2767
        %v4027 = vpop.f32.mrb[0].mxu0
        %v4028 = vadd.f32 0.0, %v4027
        %v4029 = vpop.f32.mrb[0].mxu0
        %4030 = vmatprep.mubr.f32.mxu0 %v2773
        %4031 = vmatmul.mubr.f32.gmra.mrb[0].mxu0 %v2771
        %v4032 = vpop.f32.mrb[0].mxu0
        %v4033 = vadd.f32 0.0, %v4032
        %v4034 = vpop.f32.mrb[0].mxu0
        %4035 = vmatprep.mubr.f32.mxu0 %v2777
        %4036 = vmatmul.mubr.f32.gmra.mrb[0].mxu0 %v2775
        %v4037 = vpop.f32.mrb[0].mxu0
        %v4038 = vadd.f32 0.0, %v4037
        %v4039 = vpop.f32.mrb[0].mxu0
        %4040 = vmatprep.mubr.f32.mxu0 %v2781
        %4041 = vmatmul.mubr.f32.gmra.mrb[0].mxu0 %v2779
        %v4042 = vpop.f32.mrb[0].mxu0
        %v4043 = vadd.f32 0.0, %v4042
        %v4044 = vpop.f32.mrb[0].mxu0
        %4045 = vmatprep.mubr.f32.mxu0 %v2785
        %4046 = vmatmul.mubr.f32.gmra.mrb[0].mxu0 %v2783
        %v4047 = vpop.f32.mrb[0].mxu0
        %v4048 = vadd.f32 0.0, %v4047
        %v4049 = vpop.f32.mrb[0].mxu0
        %4050 = vmatprep.mubr.f32.mxu0 %v2789
        %4051 = vmatmul.mubr.f32.gmra.mrb[0].mxu0 %v2787
        %v4052 = vpop.f32.mrb[0].mxu0
        %v4053 = vadd.f32 0.0, %v4052
        %v4054 = vpop.f32.mrb[0].mxu0
        %4055 = vmatprep.mubr.f32.mxu0 %v2793
        %4056 = vmatmul.mubr.f32.gmra.mrb[0].mxu0 %v2791
        %v4057 = vpop.f32.mrb[0].mxu0
        %v4058 = vadd.f32 0.0, %v4057
        %v4059 = vpop.f32.mrb[0].mxu0
        %4060 = vmatprep.mubr.f32.mxu0 %v2797
        %4061 = vmatmul.mubr.f32.gmra.mrb[0].mxu0 %v2795
        %v4062 = vpop.f32.mrb[0].mxu0
        %v4063 = vadd.f32 0.0, %v4062
        %v4064 = vpop.f32.mrb[0].mxu0
        %4065 = vmatprep.mubr.f32.mxu0 %v2801
        %4066 = vmatmul.mubr.f32.gmra.mrb[0].mxu0 %v2799
        %v4067 = vpop.f32.mrb[0].mxu0
        %v4068 = vadd.f32 0.0, %v4067
        %v4069 = vpop.f32.mrb[0].mxu0
        %4070 = vmatprep.mubr.f32.mxu0 %v2805
        %4071 = vmatmul.mubr.f32.gmra.mrb[0].mxu0 %v2803
        %v4072 = vpop.f32.mrb[0].mxu0
        %v4073 = vadd.f32 0.0, %v4072
        %v4074 = vpop.f32.mrb[0].mxu0
        %4075 = vmatprep.mubr.f32.mxu0 %v2809
        %4076 = vmatmul.mubr.f32.gmra.mrb[0].mxu0 %v2807
        %v4077 = vpop.f32.mrb[0].mxu0
        %v4078 = vadd.f32 0.0, %v4077
        %v4079 = vpop.f32.mrb[0].mxu0
        %4080 = vmatprep.mubr.f32.mxu0 %v2813
        %4081 = vmatmul.mubr.f32.gmra.mrb[0].mxu0 %v2811
        %v4082 = vpop.f32.mrb[0].mxu0
        %v4083 = vadd.f32 0.0, %v4082
        %v4084 = vpop.f32.mrb[0].mxu0
        %4085 = vmatprep.mubr.f32.mxu0 %v2817
        %4086 = vmatmul.mubr.f32.gmra.mrb[0].mxu0 %v2815
        %v4087 = vpop.f32.mrb[0].mxu0
        %v4088 = vadd.f32 0.0, %v4087
        %v4089 = vpop.f32.mrb[0].mxu0
        %4090 = vmatprep.mubr.f32.mxu0 %v2821
        %4091 = vmatmul.mubr.f32.gmra.mrb[0].mxu0 %v2819
        %v4092 = vpop.f32.mrb[0].mxu0
        %v4093 = vadd.f32 0.0, %v4092
        %v4094 = vpop.f32.mrb[0].mxu0
        %4095 = vmatprep.mubr.f32.mxu0 %v2825
        %4096 = vmatmul.mubr.f32.gmra.mrb[0].mxu0 %v2823
        %v4097 = vpop.f32.mrb[0].mxu0
        %v4098 = vadd.f32 0.0, %v4097
        %v4099 = vpop.f32.mrb[0].mxu0
        %4100 = vmatprep.mubr.f32.mxu0 %v2829
        %4101 = vmatmul.mubr.f32.gmra.mrb[0].mxu0 %v2827
        %v4102 = vpop.f32.mrb[0].mxu0
        %v4103 = vadd.f32 0.0, %v4102
        %v4104 = vpop.f32.mrb[0].mxu0
        %4105 = vmatprep.mubr.f32.mxu0 %v2833
        %4106 = vmatmul.mubr.f32.gmra.mrb[0].mxu0 %v2831
        %v4107 = vpop.f32.mrb[0].mxu0
        %v4108 = vadd.f32 0.0, %v4107
        %v4109 = vpop.f32.mrb[0].mxu0
        %4110 = vmatprep.mubr.f32.mxu0 %v2837
        %4111 = vmatmul.mubr.f32.gmra.mrb[0].mxu0 %v2835
        %v4112 = vpop.f32.mrb[0].mxu0
        %v4113 = vadd.f32 0.0, %v4112
        %v4114 = vpop.f32.mrb[0].mxu0
        %4115 = vmatprep.mubr.f32.mxu0 %v2841
        %4116 = vmatmul.mubr.f32.gmra.mrb[0].mxu0 %v2839
        %v4117 = vpop.f32.mrb[0].mxu0
        %v4118 = vadd.f32 0.0, %v4117
        %v4119 = vpop.f32.mrb[0].mxu0
        %4120 = vmatprep.mubr.f32.mxu0 %v2845
        %4121 = vmatmul.mubr.f32.gmra.mrb[0].mxu0 %v2843
        %v4122 = vpop.f32.mrb[0].mxu0
        %v4123 = vadd.f32 0.0, %v4122
        %v4124 = vpop.f32.mrb[0].mxu0
        %4125 = vmatprep.mubr.f32.mxu0 %v2849
        %4126 = vmatmul.mubr.f32.gmra.mrb[0].mxu0 %v2847
        %v4127 = vpop.f32.mrb[0].mxu0
        %v4128 = vadd.f32 0.0, %v4127
        %v4129 = vpop.f32.mrb[0].mxu0
        %4130 = vmatprep.mubr.f32.mxu0 %v2853
        %4131 = vmatmul.mubr.f32.gmra.mrb[0].mxu0 %v2851
        %v4132 = vpop.f32.mrb[0].mxu0
        %v4133 = vadd.f32 0.0, %v4132
        %v4134 = vpop.f32.mrb[0].mxu0
        %4135 = vdwg.mxu0
        %v4136 = vadd.f32 %v3687, %v3818
        %v4137 = vadd.f32 %v3688, %v3823
        %v4138 = vadd.f32 %v3689, %v3828
        %v4139 = vadd.f32 %v3690, %v3833
        %v4140 = vadd.f32 %v3691, %v3838
        %v4141 = vadd.f32 %v3692, %v3843
        %v4142 = vadd.f32 %v3693, %v3848
        %v4143 = vadd.f32 %v3694, %v3853
        %v4144 = vadd.f32 %v3695, %v3858
        %v4145 = vadd.f32 %v3696, %v3863
        %v4146 = vadd.f32 %v3697, %v3868
        %v4147 = vadd.f32 %v3698, %v3873
        %v4148 = vadd.f32 %v3699, %v3878
        %v4149 = vadd.f32 %v3700, %v3883
        %v4150 = vadd.f32 %v3701, %v3888
        %v4151 = vadd.f32 %v3702, %v3893
        %v4152 = vadd.f32 %v3703, %v3898
        %v4153 = vadd.f32 %v3704, %v3903
        %v4154 = vadd.f32 %v3705, %v3908
        %v4155 = vadd.f32 %v3706, %v3913
        %v4156 = vadd.f32 %v3707, %v3918
        %v4157 = vadd.f32 %v3708, %v3923
        %v4158 = vadd.f32 %v3709, %v3928
        %v4159 = vadd.f32 %v3710, %v3933
        %v4160 = vadd.f32 %v3711, %v3938
        %v4161 = vadd.f32 %v3712, %v3943
        %v4162 = vadd.f32 %v3713, %v3948
        %v4163 = vadd.f32 %v3714, %v3953
        %v4164 = vadd.f32 %v3715, %v3958
        %v4165 = vadd.f32 %v3716, %v3963
        %v4166 = vadd.f32 %v3717, %v3968
        %v4167 = vadd.f32 %v3718, %v3973
        %v4168 = vadd.f32 %v3719, %v3978
        %v4169 = vadd.f32 %v3720, %v3983
        %v4170 = vadd.f32 %v3721, %v3988
        %v4171 = vadd.f32 %v3722, %v3993
        %v4172 = vadd.f32 %v3723, %v3998
        %v4173 = vadd.f32 %v3724, %v4003
        %v4174 = vadd.f32 %v3725, %v4008
        %v4175 = vadd.f32 %v3726, %v4013
        %v4176 = vadd.f32 %v3727, %v4018
        %v4177 = vadd.f32 %v3728, %v4023
        %v4178 = vadd.f32 %v3729, %v4028
        %v4179 = vadd.f32 %v3730, %v4033
        %v4180 = vadd.f32 %v3731, %v4038
        %v4181 = vadd.f32 %v3732, %v4043
        %v4182 = vadd.f32 %v3733, %v4048
        %v4183 = vadd.f32 %v3734, %v4053
        %v4184 = vadd.f32 %v3735, %v4058
        %v4185 = vadd.f32 %v3736, %v4063
        %v4186 = vadd.f32 %v3737, %v4068
        %v4187 = vadd.f32 %v3738, %v4073
        %v4188 = vadd.f32 %v3739, %v4078
        %v4189 = vadd.f32 %v3740, %v4083
        %v4190 = vadd.f32 %v3741, %v4088
        %v4191 = vadd.f32 %v3742, %v4093
        %v4192 = vadd.f32 %v3743, %v4098
        %v4193 = vadd.f32 %v3744, %v4103
        %v4194 = vadd.f32 %v3745, %v4108
        %v4195 = vadd.f32 %v3746, %v4113
        %v4196 = vadd.f32 %v3747, %v4118
        %v4197 = vadd.f32 %v3748, %v4123
        %v4198 = vadd.f32 %v3749, %v4128
        %v4199 = vadd.f32 %v3750, %v4133
        %4200 = vst.msk [vmem:[#allocation5] sm:$0xff] %vm900, %v4136
        %4201 = vst.msk [vmem:[#allocation5 + $0x8] sm:$0xff] %vm900, %v4137
        %4202 = vst.msk [vmem:[#allocation5 + $0x10] sm:$0xff] %vm900, %v4138
        %4203 = vst.msk [vmem:[#allocation5 + $0x18] sm:$0xff] %vm900, %v4139
        %4204 = vst.msk [vmem:[#allocation5 + $0x20] sm:$0xff] %vm900, %v4140
        %4205 = vst.msk [vmem:[#allocation5 + $0x28] sm:$0xff] %vm900, %v4141
        %4206 = vst.msk [vmem:[#allocation5 + $0x30] sm:$0xff] %vm900, %v4142
        %4207 = vst.msk [vmem:[#allocation5 + $0x38] sm:$0xff] %vm900, %v4143
        %4208 = vst.msk [vmem:[#allocation5 + $0x40] sm:$0xff] %vm900, %v4144
        %4209 = vst.msk [vmem:[#allocation5 + $0x48] sm:$0xff] %vm900, %v4145
        %4210 = vst.msk [vmem:[#allocation5 + $0x50] sm:$0xff] %vm900, %v4146
        %4211 = vst.msk [vmem:[#allocation5 + $0x58] sm:$0xff] %vm900, %v4147
        %4212 = vst.msk [vmem:[#allocation5 + $0x60] sm:$0xff] %vm900, %v4148
        %4213 = vst.msk [vmem:[#allocation5 + $0x68] sm:$0xff] %vm900, %v4149
        %4214 = vst.msk [vmem:[#allocation5 + $0x70] sm:$0xff] %vm900, %v4150
        %4215 = vst.msk [vmem:[#allocation5 + $0x78] sm:$0xff] %vm900, %v4151
        %4216 = vst.msk [vmem:[#allocation5 + $0x80] sm:$0xff] %vm900, %v4152
        %4217 = vst.msk [vmem:[#allocation5 + $0x88] sm:$0xff] %vm900, %v4153
        %4218 = vst.msk [vmem:[#allocation5 + $0x90] sm:$0xff] %vm900, %v4154
        %4219 = vst.msk [vmem:[#allocation5 + $0x98] sm:$0xff] %vm900, %v4155
        %4220 = vst.msk [vmem:[#allocation5 + $0xa0] sm:$0xff] %vm900, %v4156
        %4221 = vst.msk [vmem:[#allocation5 + $0xa8] sm:$0xff] %vm900, %v4157
        %4222 = vst.msk [vmem:[#allocation5 + $0xb0] sm:$0xff] %vm900, %v4158
        %4223 = vst.msk [vmem:[#allocation5 + $0xb8] sm:$0xff] %vm900, %v4159
        %4224 = vst.msk [vmem:[#allocation5 + $0xc0] sm:$0xff] %vm900, %v4160
        %4225 = vst.msk [vmem:[#allocation5 + $0xc8] sm:$0xff] %vm900, %v4161
        %4226 = vst.msk [vmem:[#allocation5 + $0xd0] sm:$0xff] %vm900, %v4162
        %4227 = vst.msk [vmem:[#allocation5 + $0xd8] sm:$0xff] %vm900, %v4163
        %4228 = vst.msk [vmem:[#allocation5 + $0xe0] sm:$0xff] %vm900, %v4164
        %4229 = vst.msk [vmem:[#allocation5 + $0xe8] sm:$0xff] %vm900, %v4165
        %4230 = vst.msk [vmem:[#allocation5 + $0xf0] sm:$0xff] %vm900, %v4166
        %4231 = vst.msk [vmem:[#allocation5 + $0xf8] sm:$0xff] %vm900, %v4167
        %4232 = vst.msk [vmem:[#allocation5 + $0x100] sm:$0xff] %vm900, %v4168
        %4233 = vst.msk [vmem:[#allocation5 + $0x108] sm:$0xff] %vm900, %v4169
        %4234 = vst.msk [vmem:[#allocation5 + $0x110] sm:$0xff] %vm900, %v4170
        %4235 = vst.msk [vmem:[#allocation5 + $0x118] sm:$0xff] %vm900, %v4171
        %4236 = vst.msk [vmem:[#allocation5 + $0x120] sm:$0xff] %vm900, %v4172
        %4237 = vst.msk [vmem:[#allocation5 + $0x128] sm:$0xff] %vm900, %v4173
        %4238 = vst.msk [vmem:[#allocation5 + $0x130] sm:$0xff] %vm900, %v4174
        %4239 = vst.msk [vmem:[#allocation5 + $0x138] sm:$0xff] %vm900, %v4175
        %4240 = vst.msk [vmem:[#allocation5 + $0x140] sm:$0xff] %vm900, %v4176
        %4241 = vst.msk [vmem:[#allocation5 + $0x148] sm:$0xff] %vm900, %v4177
        %4242 = vst.msk [vmem:[#allocation5 + $0x150] sm:$0xff] %vm900, %v4178
        %4243 = vst.msk [vmem:[#allocation5 + $0x158] sm:$0xff] %vm900, %v4179
        %4244 = vst.msk [vmem:[#allocation5 + $0x160] sm:$0xff] %vm900, %v4180
        %4245 = vst.msk [vmem:[#allocation5 + $0x168] sm:$0xff] %vm900, %v4181
        %4246 = vst.msk [vmem:[#allocation5 + $0x170] sm:$0xff] %vm900, %v4182
        %4247 = vst.msk [vmem:[#allocation5 + $0x178] sm:$0xff] %vm900, %v4183
        %4248 = vst.msk [vmem:[#allocation5 + $0x180] sm:$0xff] %vm900, %v4184
        %4249 = vst.msk [vmem:[#allocation5 + $0x188] sm:$0xff] %vm900, %v4185
        %4250 = vst.msk [vmem:[#allocation5 + $0x190] sm:$0xff] %vm900, %v4186
        %4251 = vst.msk [vmem:[#allocation5 + $0x198] sm:$0xff] %vm900, %v4187
        %4252 = vst.msk [vmem:[#allocation5 + $0x1a0] sm:$0xff] %vm900, %v4188
        %4253 = vst.msk [vmem:[#allocation5 + $0x1a8] sm:$0xff] %vm900, %v4189
        %4254 = vst.msk [vmem:[#allocation5 + $0x1b0] sm:$0xff] %vm900, %v4190
        %4255 = vst.msk [vmem:[#allocation5 + $0x1b8] sm:$0xff] %vm900, %v4191
        %4256 = vst.msk [vmem:[#allocation5 + $0x1c0] sm:$0xff] %vm900, %v4192
        %4257 = vst.msk [vmem:[#allocation5 + $0x1c8] sm:$0xff] %vm900, %v4193
        %4258 = vst.msk [vmem:[#allocation5 + $0x1d0] sm:$0xff] %vm900, %v4194
        %4259 = vst.msk [vmem:[#allocation5 + $0x1d8] sm:$0xff] %vm900, %v4195
        %4260 = vst.msk [vmem:[#allocation5 + $0x1e0] sm:$0xff] %vm900, %v4196
        %4261 = vst.msk [vmem:[#allocation5 + $0x1e8] sm:$0xff] %vm900, %v4197
        %4262 = vst.msk [vmem:[#allocation5 + $0x1f0] sm:$0xff] %vm900, %v4198
        %4263 = vst.msk [vmem:[#allocation5 + $0x1f8] sm:$0xff] %vm900, %v4199
        %4264 = vst.msk [vmem:[#allocation3] sm:$0xff] %vm3238, %v1894
        %4265 = vst.msk [vmem:[#allocation3 + $0x8] sm:$0xff] %vm3238, %v1895
        %4266 = vst.msk [vmem:[#allocation3 + $0x10] sm:$0xff] %vm3238, %v1896
        %4267 = vst.msk [vmem:[#allocation3 + $0x18] sm:$0xff] %vm3238, %v1897
        %4268 = vst.msk [vmem:[#allocation3 + $0x20] sm:$0xff] %vm3238, %v1898
        %4269 = vst.msk [vmem:[#allocation3 + $0x28] sm:$0xff] %vm3238, %v1899
        %4270 = vst.msk [vmem:[#allocation3 + $0x30] sm:$0xff] %vm3238, %v1900
        %4271 = vst.msk [vmem:[#allocation3 + $0x38] sm:$0xff] %vm3238, %v1901
        %4272 = vst.msk [vmem:[#allocation3 + $0x40] sm:$0xff] %vm3238, %v1902
        %4273 = vst.msk [vmem:[#allocation3 + $0x48] sm:$0xff] %vm3238, %v1903
        %4274 = vst.msk [vmem:[#allocation3 + $0x50] sm:$0xff] %vm3238, %v1904
        %4275 = vst.msk [vmem:[#allocation3 + $0x58] sm:$0xff] %vm3238, %v1905
        %4276 = vst.msk [vmem:[#allocation3 + $0x60] sm:$0xff] %vm3238, %v1906
        %4277 = vst.msk [vmem:[#allocation3 + $0x68] sm:$0xff] %vm3238, %v1907
        %4278 = vst.msk [vmem:[#allocation3 + $0x70] sm:$0xff] %vm3238, %v1908
        %4279 = vst.msk [vmem:[#allocation3 + $0x78] sm:$0xff] %vm3238, %v1909
        %4280 = vst.msk [vmem:[#allocation3 + $0x80] sm:$0xff] %vm3238, %v1910
        %4281 = vst.msk [vmem:[#allocation3 + $0x88] sm:$0xff] %vm3238, %v1911
        %4282 = vst.msk [vmem:[#allocation3 + $0x90] sm:$0xff] %vm3238, %v1912
        %4283 = vst.msk [vmem:[#allocation3 + $0x98] sm:$0xff] %vm3238, %v1913
        %4284 = vst.msk [vmem:[#allocation3 + $0xa0] sm:$0xff] %vm3238, %v1914
        %4285 = vst.msk [vmem:[#allocation3 + $0xa8] sm:$0xff] %vm3238, %v1915
        %4286 = vst.msk [vmem:[#allocation3 + $0xb0] sm:$0xff] %vm3238, %v1916
        %4287 = vst.msk [vmem:[#allocation3 + $0xb8] sm:$0xff] %vm3238, %v1917
        %4288 = vst.msk [vmem:[#allocation3 + $0xc0] sm:$0xff] %vm3238, %v1918
        %4289 = vst.msk [vmem:[#allocation3 + $0xc8] sm:$0xff] %vm3238, %v1919
        %4290 = vst.msk [vmem:[#allocation3 + $0xd0] sm:$0xff] %vm3238, %v1920
        %4291 = vst.msk [vmem:[#allocation3 + $0xd8] sm:$0xff] %vm3238, %v1921
        %4292 = vst.msk [vmem:[#allocation3 + $0xe0] sm:$0xff] %vm3238, %v1922
        %4293 = vst.msk [vmem:[#allocation3 + $0xe8] sm:$0xff] %vm3238, %v1923
        %4294 = vst.msk [vmem:[#allocation3 + $0xf0] sm:$0xff] %vm3238, %v1924
        %4295 = vst.msk [vmem:[#allocation3 + $0xf8] sm:$0xff] %vm3238, %v1925
        %4296 = vst.msk [vmem:[#allocation3 + $0x100] sm:$0xff] %vm3238, %v1926
        %4297 = vst.msk [vmem:[#allocation3 + $0x108] sm:$0xff] %vm3238, %v1927
        %4298 = vst.msk [vmem:[#allocation3 + $0x110] sm:$0xff] %vm3238, %v1928
        %4299 = vst.msk [vmem:[#allocation3 + $0x118] sm:$0xff] %vm3238, %v1929
        %4300 = vst.msk [vmem:[#allocation3 + $0x120] sm:$0xff] %vm3238, %v1930
        %4301 = vst.msk [vmem:[#allocation3 + $0x128] sm:$0xff] %vm3238, %v1931
        %4302 = vst.msk [vmem:[#allocation3 + $0x130] sm:$0xff] %vm3238, %v1932
        %4303 = vst.msk [vmem:[#allocation3 + $0x138] sm:$0xff] %vm3238, %v1933
        %4304 = vst.msk [vmem:[#allocation3 + $0x140] sm:$0xff] %vm3238, %v1934
        %4305 = vst.msk [vmem:[#allocation3 + $0x148] sm:$0xff] %vm3238, %v1935
        %4306 = vst.msk [vmem:[#allocation3 + $0x150] sm:$0xff] %vm3238, %v1936
        %4307 = vst.msk [vmem:[#allocation3 + $0x158] sm:$0xff] %vm3238, %v1937
        %4308 = vst.msk [vmem:[#allocation3 + $0x160] sm:$0xff] %vm3238, %v1938
        %4309 = vst.msk [vmem:[#allocation3 + $0x168] sm:$0xff] %vm3238, %v1939
        %4310 = vst.msk [vmem:[#allocation3 + $0x170] sm:$0xff] %vm3238, %v1940
        %4311 = vst.msk [vmem:[#allocation3 + $0x178] sm:$0xff] %vm3238, %v1941
        %4312 = vst.msk [vmem:[#allocation3 + $0x180] sm:$0xff] %vm3238, %v1942
        %4313 = vst.msk [vmem:[#allocation3 + $0x188] sm:$0xff] %vm3238, %v1943
        %4314 = vst.msk [vmem:[#allocation3 + $0x190] sm:$0xff] %vm3238, %v1944
        %4315 = vst.msk [vmem:[#allocation3 + $0x198] sm:$0xff] %vm3238, %v1945
        %4316 = vst.msk [vmem:[#allocation3 + $0x1a0] sm:$0xff] %vm3238, %v1946
        %4317 = vst.msk [vmem:[#allocation3 + $0x1a8] sm:$0xff] %vm3238, %v1947
        %4318 = vst.msk [vmem:[#allocation3 + $0x1b0] sm:$0xff] %vm3238, %v1948
        %4319 = vst.msk [vmem:[#allocation3 + $0x1b8] sm:$0xff] %vm3238, %v1949
        %4320 = vst.msk [vmem:[#allocation3 + $0x1c0] sm:$0xff] %vm3238, %v1950
        %4321 = vst.msk [vmem:[#allocation3 + $0x1c8] sm:$0xff] %vm3238, %v1951
        %4322 = vst.msk [vmem:[#allocation3 + $0x1d0] sm:$0xff] %vm3238, %v1952
        %4323 = vst.msk [vmem:[#allocation3 + $0x1d8] sm:$0xff] %vm3238, %v1953
        %4324 = vst.msk [vmem:[#allocation3 + $0x1e0] sm:$0xff] %vm3238, %v1954
        %4325 = vst.msk [vmem:[#allocation3 + $0x1e8] sm:$0xff] %vm3238, %v1955
        %4326 = vst.msk [vmem:[#allocation3 + $0x1f0] sm:$0xff] %vm3238, %v1956
        %4327 = vst.msk [vmem:[#allocation3 + $0x1f8] sm:$0xff] %vm3238, %v1957
      $region40: #{tpu_custom_call.1} parent=31 // pred_fallthru
        _
      %p4328 = scmp.eq.s32.totalorder %s377, %s376
      // Predicated region
      $region41: #{tpu_custom_call.1} parent=31 // pred_check
        %p4329 = pneg %p4328
      $region42: #{tpu_custom_call.1} parent=31 // pred_check_branch
        %4331 = sbr.rel (%p4329) target = $region44
      $region43: #{tpu_custom_call.1} parent=31 // pred_region
        %v4332 = vld [vmem:[#allocation2] sm:$0xff]
        %v4333 = vld [vmem:[#allocation2 + $0x8] sm:$0xff]
        %v4334 = vld [vmem:[#allocation2 + $0x10] sm:$0xff]
        %v4335 = vld [vmem:[#allocation2 + $0x18] sm:$0xff]
        %v4336 = vld [vmem:[#allocation2 + $0x20] sm:$0xff]
        %v4337 = vld [vmem:[#allocation2 + $0x28] sm:$0xff]
        %v4338 = vld [vmem:[#allocation2 + $0x30] sm:$0xff]
        %v4339 = vld [vmem:[#allocation2 + $0x38] sm:$0xff]
        %v4340 = vld [vmem:[#allocation2 + $0x40] sm:$0xff]
        %v4341 = vld [vmem:[#allocation2 + $0x48] sm:$0xff]
        %v4342 = vld [vmem:[#allocation2 + $0x50] sm:$0xff]
        %v4343 = vld [vmem:[#allocation2 + $0x58] sm:$0xff]
        %v4344 = vld [vmem:[#allocation2 + $0x60] sm:$0xff]
        %v4345 = vld [vmem:[#allocation2 + $0x68] sm:$0xff]
        %v4346 = vld [vmem:[#allocation2 + $0x70] sm:$0xff]
        %v4347 = vld [vmem:[#allocation2 + $0x78] sm:$0xff]
        %v4348 = vld [vmem:[#allocation2 + $0x80] sm:$0xff]
        %v4349 = vld [vmem:[#allocation2 + $0x88] sm:$0xff]
        %v4350 = vld [vmem:[#allocation2 + $0x90] sm:$0xff]
        %v4351 = vld [vmem:[#allocation2 + $0x98] sm:$0xff]
        %v4352 = vld [vmem:[#allocation2 + $0xa0] sm:$0xff]
        %v4353 = vld [vmem:[#allocation2 + $0xa8] sm:$0xff]
        %v4354 = vld [vmem:[#allocation2 + $0xb0] sm:$0xff]
        %v4355 = vld [vmem:[#allocation2 + $0xb8] sm:$0xff]
        %v4356 = vld [vmem:[#allocation2 + $0xc0] sm:$0xff]
        %v4357 = vld [vmem:[#allocation2 + $0xc8] sm:$0xff]
        %v4358 = vld [vmem:[#allocation2 + $0xd0] sm:$0xff]
        %v4359 = vld [vmem:[#allocation2 + $0xd8] sm:$0xff]
        %v4360 = vld [vmem:[#allocation2 + $0xe0] sm:$0xff]
        %v4361 = vld [vmem:[#allocation2 + $0xe8] sm:$0xff]
        %v4362 = vld [vmem:[#allocation2 + $0xf0] sm:$0xff]
        %v4363 = vld [vmem:[#allocation2 + $0xf8] sm:$0xff]
        %v4364 = vld [vmem:[#allocation2 + $0x100] sm:$0xff]
        %v4365 = vld [vmem:[#allocation2 + $0x108] sm:$0xff]
        %v4366 = vld [vmem:[#allocation2 + $0x110] sm:$0xff]
        %v4367 = vld [vmem:[#allocation2 + $0x118] sm:$0xff]
        %v4368 = vld [vmem:[#allocation2 + $0x120] sm:$0xff]
        %v4369 = vld [vmem:[#allocation2 + $0x128] sm:$0xff]
        %v4370 = vld [vmem:[#allocation2 + $0x130] sm:$0xff]
        %v4371 = vld [vmem:[#allocation2 + $0x138] sm:$0xff]
        %v4372 = vld [vmem:[#allocation2 + $0x140] sm:$0xff]
        %v4373 = vld [vmem:[#allocation2 + $0x148] sm:$0xff]
        %v4374 = vld [vmem:[#allocation2 + $0x150] sm:$0xff]
        %v4375 = vld [vmem:[#allocation2 + $0x158] sm:$0xff]
        %v4376 = vld [vmem:[#allocation2 + $0x160] sm:$0xff]
        %v4377 = vld [vmem:[#allocation2 + $0x168] sm:$0xff]
        %v4378 = vld [vmem:[#allocation2 + $0x170] sm:$0xff]
        %v4379 = vld [vmem:[#allocation2 + $0x178] sm:$0xff]
        %v4380 = vld [vmem:[#allocation2 + $0x180] sm:$0xff]
        %v4381 = vld [vmem:[#allocation2 + $0x188] sm:$0xff]
        %v4382 = vld [vmem:[#allocation2 + $0x190] sm:$0xff]
        %v4383 = vld [vmem:[#allocation2 + $0x198] sm:$0xff]
        %v4384 = vld [vmem:[#allocation2 + $0x1a0] sm:$0xff]
        %v4385 = vld [vmem:[#allocation2 + $0x1a8] sm:$0xff]
        %v4386 = vld [vmem:[#allocation2 + $0x1b0] sm:$0xff]
        %v4387 = vld [vmem:[#allocation2 + $0x1b8] sm:$0xff]
        %v4388 = vld [vmem:[#allocation2 + $0x1c0] sm:$0xff]
        %v4389 = vld [vmem:[#allocation2 + $0x1c8] sm:$0xff]
        %v4390 = vld [vmem:[#allocation2 + $0x1d0] sm:$0xff]
        %v4391 = vld [vmem:[#allocation2 + $0x1d8] sm:$0xff]
        %v4392 = vld [vmem:[#allocation2 + $0x1e0] sm:$0xff]
        %v4393 = vld [vmem:[#allocation2 + $0x1e8] sm:$0xff]
        %v4394 = vld [vmem:[#allocation2 + $0x1f0] sm:$0xff]
        %v4395 = vld [vmem:[#allocation2 + $0x1f8] sm:$0xff]
        %v4396 = vld [vmem:[%s341] sm:$0xff]
        %v4397 = vld [vmem:[%s341 + $0x8] sm:$0xff]
        %v4398 = vld [vmem:[%s341 + $0x10] sm:$0xff]
        %v4399 = vld [vmem:[%s341 + $0x18] sm:$0xff]
        %v4400 = vld [vmem:[%s341 + $0x20] sm:$0xff]
        %v4401 = vld [vmem:[%s341 + $0x28] sm:$0xff]
        %v4402 = vld [vmem:[%s341 + $0x30] sm:$0xff]
        %v4403 = vld [vmem:[%s341 + $0x38] sm:$0xff]
        %v4404 = vld [vmem:[%s341 + $0x40] sm:$0xff]
        %v4405 = vld [vmem:[%s341 + $0x48] sm:$0xff]
        %v4406 = vld [vmem:[%s341 + $0x50] sm:$0xff]
        %v4407 = vld [vmem:[%s341 + $0x58] sm:$0xff]
        %v4408 = vld [vmem:[%s341 + $0x60] sm:$0xff]
        %v4409 = vld [vmem:[%s341 + $0x68] sm:$0xff]
        %v4410 = vld [vmem:[%s341 + $0x70] sm:$0xff]
        %v4411 = vld [vmem:[%s341 + $0x78] sm:$0xff]
        %v4412 = vld [vmem:[%s341 + $0x80] sm:$0xff]
        %v4413 = vld [vmem:[%s341 + $0x88] sm:$0xff]
        %v4414 = vld [vmem:[%s341 + $0x90] sm:$0xff]
        %v4415 = vld [vmem:[%s341 + $0x98] sm:$0xff]
        %v4416 = vld [vmem:[%s341 + $0xa0] sm:$0xff]
        %v4417 = vld [vmem:[%s341 + $0xa8] sm:$0xff]
        %v4418 = vld [vmem:[%s341 + $0xb0] sm:$0xff]
        %v4419 = vld [vmem:[%s341 + $0xb8] sm:$0xff]
        %v4420 = vld [vmem:[%s341 + $0xc0] sm:$0xff]
        %v4421 = vld [vmem:[%s341 + $0xc8] sm:$0xff]
        %v4422 = vld [vmem:[%s341 + $0xd0] sm:$0xff]
        %v4423 = vld [vmem:[%s341 + $0xd8] sm:$0xff]
        %v4424 = vld [vmem:[%s341 + $0xe0] sm:$0xff]
        %v4425 = vld [vmem:[%s341 + $0xe8] sm:$0xff]
        %v4426 = vld [vmem:[%s341 + $0xf0] sm:$0xff]
        %v4427 = vld [vmem:[%s341 + $0xf8] sm:$0xff]
        %v4428 = vld [vmem:[%s357] sm:$0xff]
        %v4429 = vld [vmem:[%s357 + $0x8] sm:$0xff]
        %v4430 = vld [vmem:[%s357 + $0x10] sm:$0xff]
        %v4431 = vld [vmem:[%s357 + $0x18] sm:$0xff]
        %v4432 = vld [vmem:[%s357 + $0x20] sm:$0xff]
        %v4433 = vld [vmem:[%s357 + $0x28] sm:$0xff]
        %v4434 = vld [vmem:[%s357 + $0x30] sm:$0xff]
        %v4435 = vld [vmem:[%s357 + $0x38] sm:$0xff]
        %v4436 = vld [vmem:[%s357 + $0x40] sm:$0xff]
        %v4437 = vld [vmem:[%s357 + $0x48] sm:$0xff]
        %v4438 = vld [vmem:[%s357 + $0x50] sm:$0xff]
        %v4439 = vld [vmem:[%s357 + $0x58] sm:$0xff]
        %v4440 = vld [vmem:[%s357 + $0x60] sm:$0xff]
        %v4441 = vld [vmem:[%s357 + $0x68] sm:$0xff]
        %v4442 = vld [vmem:[%s357 + $0x70] sm:$0xff]
        %v4443 = vld [vmem:[%s357 + $0x78] sm:$0xff]
        %v4444 = vld [vmem:[%s357 + $0x80] sm:$0xff]
        %v4445 = vld [vmem:[%s357 + $0x88] sm:$0xff]
        %v4446 = vld [vmem:[%s357 + $0x90] sm:$0xff]
        %v4447 = vld [vmem:[%s357 + $0x98] sm:$0xff]
        %v4448 = vld [vmem:[%s357 + $0xa0] sm:$0xff]
        %v4449 = vld [vmem:[%s357 + $0xa8] sm:$0xff]
        %v4450 = vld [vmem:[%s357 + $0xb0] sm:$0xff]
        %v4451 = vld [vmem:[%s357 + $0xb8] sm:$0xff]
        %v4452 = vld [vmem:[%s357 + $0xc0] sm:$0xff]
        %v4453 = vld [vmem:[%s357 + $0xc8] sm:$0xff]
        %v4454 = vld [vmem:[%s357 + $0xd0] sm:$0xff]
        %v4455 = vld [vmem:[%s357 + $0xd8] sm:$0xff]
        %v4456 = vld [vmem:[%s357 + $0xe0] sm:$0xff]
        %v4457 = vld [vmem:[%s357 + $0xe8] sm:$0xff]
        %v4458 = vld [vmem:[%s357 + $0xf0] sm:$0xff]
        %v4459 = vld [vmem:[%s357 + $0xf8] sm:$0xff]
        %vm4460 = vcmask 261120
        %v4462 = vsel %vm4460, %v4332, 0
        %v4465 = vsel %vm4460, %v4333, 0
        %v4468 = vsel %vm4460, %v4334, 0
        %v4471 = vsel %vm4460, %v4335, 0
        %v4474 = vsel %vm4460, %v4336, 0
        %v4477 = vsel %vm4460, %v4337, 0
        %v4480 = vsel %vm4460, %v4338, 0
        %v4483 = vsel %vm4460, %v4339, 0
        %v4486 = vsel %vm4460, %v4340, 0
        %v4489 = vsel %vm4460, %v4341, 0
        %v4492 = vsel %vm4460, %v4342, 0
        %v4495 = vsel %vm4460, %v4343, 0
        %v4498 = vsel %vm4460, %v4344, 0
        %v4501 = vsel %vm4460, %v4345, 0
        %v4504 = vsel %vm4460, %v4346, 0
        %v4507 = vsel %vm4460, %v4347, 0
        %v4510 = vsel %vm4460, %v4348, 0
        %v4513 = vsel %vm4460, %v4349, 0
        %v4516 = vsel %vm4460, %v4350, 0
        %v4519 = vsel %vm4460, %v4351, 0
        %v4522 = vsel %vm4460, %v4352, 0
        %v4525 = vsel %vm4460, %v4353, 0
        %v4528 = vsel %vm4460, %v4354, 0
        %v4531 = vsel %vm4460, %v4355, 0
        %v4534 = vsel %vm4460, %v4356, 0
        %v4537 = vsel %vm4460, %v4357, 0
        %v4540 = vsel %vm4460, %v4358, 0
        %v4543 = vsel %vm4460, %v4359, 0
        %v4546 = vsel %vm4460, %v4360, 0
        %v4549 = vsel %vm4460, %v4361, 0
        %v4552 = vsel %vm4460, %v4362, 0
        %v4555 = vsel %vm4460, %v4363, 0
        %v4558 = vsel %vm4460, %v4364, 0
        %v4561 = vsel %vm4460, %v4365, 0
        %v4564 = vsel %vm4460, %v4366, 0
        %v4567 = vsel %vm4460, %v4367, 0
        %v4570 = vsel %vm4460, %v4368, 0
        %v4573 = vsel %vm4460, %v4369, 0
        %v4576 = vsel %vm4460, %v4370, 0
        %v4579 = vsel %vm4460, %v4371, 0
        %v4582 = vsel %vm4460, %v4372, 0
        %v4585 = vsel %vm4460, %v4373, 0
        %v4588 = vsel %vm4460, %v4374, 0
        %v4591 = vsel %vm4460, %v4375, 0
        %v4594 = vsel %vm4460, %v4376, 0
        %v4597 = vsel %vm4460, %v4377, 0
        %v4600 = vsel %vm4460, %v4378, 0
        %v4603 = vsel %vm4460, %v4379, 0
        %v4606 = vsel %vm4460, %v4380, 0
        %v4609 = vsel %vm4460, %v4381, 0
        %v4612 = vsel %vm4460, %v4382, 0
        %v4615 = vsel %vm4460, %v4383, 0
        %v4618 = vsel %vm4460, %v4384, 0
        %v4621 = vsel %vm4460, %v4385, 0
        %v4624 = vsel %vm4460, %v4386, 0
        %v4627 = vsel %vm4460, %v4387, 0
        %v4630 = vsel %vm4460, %v4388, 0
        %v4633 = vsel %vm4460, %v4389, 0
        %v4636 = vsel %vm4460, %v4390, 0
        %v4639 = vsel %vm4460, %v4391, 0
        %v4642 = vsel %vm4460, %v4392, 0
        %v4645 = vsel %vm4460, %v4393, 0
        %v4648 = vsel %vm4460, %v4394, 0
        %v4651 = vsel %vm4460, %v4395, 0
        %v4654 = vsel %vm4460, %v4396, 0
        %v4657 = vsel %vm4460, %v4397, 0
        %v4660 = vsel %vm4460, %v4398, 0
        %v4663 = vsel %vm4460, %v4399, 0
        %v4666 = vsel %vm4460, %v4400, 0
        %v4669 = vsel %vm4460, %v4401, 0
        %v4672 = vsel %vm4460, %v4402, 0
        %v4675 = vsel %vm4460, %v4403, 0
        %v4678 = vsel %vm4460, %v4404, 0
        %v4681 = vsel %vm4460, %v4405, 0
        %v4684 = vsel %vm4460, %v4406, 0
        %v4687 = vsel %vm4460, %v4407, 0
        %v4690 = vsel %vm4460, %v4408, 0
        %v4693 = vsel %vm4460, %v4409, 0
        %v4696 = vsel %vm4460, %v4410, 0
        %v4699 = vsel %vm4460, %v4411, 0
        %v4702 = vsel %vm4460, %v4412, 0
        %v4705 = vsel %vm4460, %v4413, 0
        %v4708 = vsel %vm4460, %v4414, 0
        %v4711 = vsel %vm4460, %v4415, 0
        %v4714 = vsel %vm4460, %v4416, 0
        %v4717 = vsel %vm4460, %v4417, 0
        %v4720 = vsel %vm4460, %v4418, 0
        %v4723 = vsel %vm4460, %v4419, 0
        %v4726 = vsel %vm4460, %v4420, 0
        %v4729 = vsel %vm4460, %v4421, 0
        %v4732 = vsel %vm4460, %v4422, 0
        %v4735 = vsel %vm4460, %v4423, 0
        %v4738 = vsel %vm4460, %v4424, 0
        %v4741 = vsel %vm4460, %v4425, 0
        %v4744 = vsel %vm4460, %v4426, 0
        %v4747 = vsel %vm4460, %v4427, 0
        %4749 = vmatprep.subr.mxu0 0.0
        %4750 = vmatpush1.xpose.msra.mxu0 %v4654
        %4751 = vmatprep.subr.mxu0 0.0
        %4752 = vmatpush1.xpose.msra.mxu0 %v4657
        %4753 = vmatprep.subr.mxu0 0.0
        %4754 = vmatpush1.xpose.msra.mxu0 %v4660
        %4755 = vmatprep.subr.mxu0 0.0
        %4756 = vmatpush1.xpose.msra.mxu0 %v4663
        %4757 = vmatprep.subr.mxu0 0.0
        %4758 = vmatpush1.xpose.msra.mxu0 %v4666
        %4759 = vmatprep.subr.mxu0 0.0
        %4760 = vmatpush1.xpose.msra.mxu0 %v4669
        %4761 = vmatprep.subr.mxu0 0.0
        %4762 = vmatpush1.xpose.msra.mxu0 %v4672
        %4763 = vmatprep.subr.mxu0 0.0
        %4764 = vmatpush1.xpose.msra.mxu0 %v4675
        %4765 = vmatprep.subr.mxu0 0.0
        %4766 = vmatpush1.xpose.msra.mxu0 %v4678
        %4767 = vmatprep.subr.mxu0 0.0
        %4768 = vmatpush1.xpose.msra.mxu0 %v4681
        %4769 = vmatprep.subr.mxu0 0.0
        %4770 = vmatpush1.xpose.msra.mxu0 %v4684
        %4771 = vmatprep.subr.mxu0 0.0
        %4772 = vmatpush1.xpose.msra.mxu0 %v4687
        %4773 = vmatprep.subr.mxu0 0.0
        %4774 = vmatpush1.xpose.msra.mxu0 %v4690
        %4775 = vmatprep.subr.mxu0 0.0
        %4776 = vmatpush1.xpose.msra.mxu0 %v4693
        %4777 = vmatprep.subr.mxu0 0.0
        %4778 = vmatpush1.xpose.msra.mxu0 %v4696
        %4779 = vmatprep.subr.mxu0 0.0
        %4780 = vmatpush1.xpose.msra.mxu0 %v4699
        %4781 = vmatprep.subr.mxu0 0.0
        %4782 = vmatpush1.xpose.msra.mxu0 %v4702
        %4783 = vmatprep.subr.mxu0 0.0
        %4784 = vmatpush1.xpose.msra.mxu0 %v4705
        %4785 = vmatprep.subr.mxu0 0.0
        %4786 = vmatpush1.xpose.msra.mxu0 %v4708
        %4787 = vmatprep.subr.mxu0 0.0
        %4788 = vmatpush1.xpose.msra.mxu0 %v4711
        %4789 = vmatprep.subr.mxu0 0.0
        %4790 = vmatpush1.xpose.msra.mxu0 %v4714
        %4791 = vmatprep.subr.mxu0 0.0
        %4792 = vmatpush1.xpose.msra.mxu0 %v4717
        %4793 = vmatprep.subr.mxu0 0.0
        %4794 = vmatpush1.xpose.msra.mxu0 %v4720
        %4795 = vmatprep.subr.mxu0 0.0
        %4796 = vmatpush1.xpose.msra.mxu0 %v4723
        %4797 = vmatprep.subr.mxu0 0.0
        %4798 = vmatpush1.xpose.msra.mxu0 %v4726
        %4799 = vmatprep.subr.mxu0 0.0
        %4800 = vmatpush1.xpose.msra.mxu0 %v4729
        %4801 = vmatprep.subr.mxu0 0.0
        %4802 = vmatpush1.xpose.msra.mxu0 %v4732
        %4803 = vmatprep.subr.mxu0 0.0
        %4804 = vmatpush1.xpose.msra.mxu0 %v4735
        %4805 = vmatprep.subr.mxu0 0.0
        %4806 = vmatpush1.xpose.msra.mxu0 %v4738
        %4807 = vmatprep.subr.mxu0 0.0
        %4808 = vmatpush1.xpose.msra.mxu0 %v4741
        %4809 = vmatprep.subr.mxu0 0.0
        %4810 = vmatpush1.xpose.msra.mxu0 %v4744
        %4811 = vmatprep.subr.mxu0 0.0
        %4812 = vmatpush1.xpose.msra.mxu0 %v4747
        %4813 = vmatprep.mubr.f32.mxu0 0.0
        %4814 = vmatmul.mubr.f32.gmra.mrb[0].mxu0 %v4462
        %v4815 = vpop.f32.mrb[0].mxu0
        %v4816 = vadd.f32 0.0, %v4815
        %v4817 = vpop.f32.mrb[0].mxu0
        %v4818 = vadd.f32 0.0, %v4817
        %4819 = vmatprep.mubr.f32.mxu0 0.0
        %4820 = vmatmul.mubr.f32.gmra.mrb[0].mxu0 %v4465
        %v4821 = vpop.f32.mrb[0].mxu0
        %v4822 = vadd.f32 0.0, %v4821
        %v4823 = vpop.f32.mrb[0].mxu0
        %v4824 = vadd.f32 0.0, %v4823
        %4825 = vmatprep.mubr.f32.mxu0 0.0
        %4826 = vmatmul.mubr.f32.gmra.mrb[0].mxu0 %v4468
        %v4827 = vpop.f32.mrb[0].mxu0
        %v4828 = vadd.f32 0.0, %v4827
        %v4829 = vpop.f32.mrb[0].mxu0
        %v4830 = vadd.f32 0.0, %v4829
        %4831 = vmatprep.mubr.f32.mxu0 0.0
        %4832 = vmatmul.mubr.f32.gmra.mrb[0].mxu0 %v4471
        %v4833 = vpop.f32.mrb[0].mxu0
        %v4834 = vadd.f32 0.0, %v4833
        %v4835 = vpop.f32.mrb[0].mxu0
        %v4836 = vadd.f32 0.0, %v4835
        %4837 = vmatprep.mubr.f32.mxu0 0.0
        %4838 = vmatmul.mubr.f32.gmra.mrb[0].mxu0 %v4474
        %v4839 = vpop.f32.mrb[0].mxu0
        %v4840 = vadd.f32 0.0, %v4839
        %v4841 = vpop.f32.mrb[0].mxu0
        %v4842 = vadd.f32 0.0, %v4841
        %4843 = vmatprep.mubr.f32.mxu0 0.0
        %4844 = vmatmul.mubr.f32.gmra.mrb[0].mxu0 %v4477
        %v4845 = vpop.f32.mrb[0].mxu0
        %v4846 = vadd.f32 0.0, %v4845
        %v4847 = vpop.f32.mrb[0].mxu0
        %v4848 = vadd.f32 0.0, %v4847
        %4849 = vmatprep.mubr.f32.mxu0 0.0
        %4850 = vmatmul.mubr.f32.gmra.mrb[0].mxu0 %v4480
        %v4851 = vpop.f32.mrb[0].mxu0
        %v4852 = vadd.f32 0.0, %v4851
        %v4853 = vpop.f32.mrb[0].mxu0
        %v4854 = vadd.f32 0.0, %v4853
        %4855 = vmatprep.mubr.f32.mxu0 0.0
        %4856 = vmatmul.mubr.f32.gmra.mrb[0].mxu0 %v4483
        %v4857 = vpop.f32.mrb[0].mxu0
        %v4858 = vadd.f32 0.0, %v4857
        %v4859 = vpop.f32.mrb[0].mxu0
        %v4860 = vadd.f32 0.0, %v4859
        %4861 = vmatprep.mubr.f32.mxu0 0.0
        %4862 = vmatmul.mubr.f32.gmra.mrb[0].mxu0 %v4486
        %v4863 = vpop.f32.mrb[0].mxu0
        %v4864 = vadd.f32 0.0, %v4863
        %v4865 = vpop.f32.mrb[0].mxu0
        %v4866 = vadd.f32 0.0, %v4865
        %4867 = vmatprep.mubr.f32.mxu0 0.0
        %4868 = vmatmul.mubr.f32.gmra.mrb[0].mxu0 %v4489
        %v4869 = vpop.f32.mrb[0].mxu0
        %v4870 = vadd.f32 0.0, %v4869
        %v4871 = vpop.f32.mrb[0].mxu0
        %v4872 = vadd.f32 0.0, %v4871
        %4873 = vmatprep.mubr.f32.mxu0 0.0
        %4874 = vmatmul.mubr.f32.gmra.mrb[0].mxu0 %v4492
        %v4875 = vpop.f32.mrb[0].mxu0
        %v4876 = vadd.f32 0.0, %v4875
        %v4877 = vpop.f32.mrb[0].mxu0
        %v4878 = vadd.f32 0.0, %v4877
        %4879 = vmatprep.mubr.f32.mxu0 0.0
        %4880 = vmatmul.mubr.f32.gmra.mrb[0].mxu0 %v4495
        %v4881 = vpop.f32.mrb[0].mxu0
        %v4882 = vadd.f32 0.0, %v4881
        %v4883 = vpop.f32.mrb[0].mxu0
        %v4884 = vadd.f32 0.0, %v4883
        %4885 = vmatprep.mubr.f32.mxu0 0.0
        %4886 = vmatmul.mubr.f32.gmra.mrb[0].mxu0 %v4498
        %v4887 = vpop.f32.mrb[0].mxu0
        %v4888 = vadd.f32 0.0, %v4887
        %v4889 = vpop.f32.mrb[0].mxu0
        %v4890 = vadd.f32 0.0, %v4889
        %4891 = vmatprep.mubr.f32.mxu0 0.0
        %4892 = vmatmul.mubr.f32.gmra.mrb[0].mxu0 %v4501
        %v4893 = vpop.f32.mrb[0].mxu0
        %v4894 = vadd.f32 0.0, %v4893
        %v4895 = vpop.f32.mrb[0].mxu0
        %v4896 = vadd.f32 0.0, %v4895
        %4897 = vmatprep.mubr.f32.mxu0 0.0
        %4898 = vmatmul.mubr.f32.gmra.mrb[0].mxu0 %v4504
        %v4899 = vpop.f32.mrb[0].mxu0
        %v4900 = vadd.f32 0.0, %v4899
        %v4901 = vpop.f32.mrb[0].mxu0
        %v4902 = vadd.f32 0.0, %v4901
        %4903 = vmatprep.mubr.f32.mxu0 0.0
        %4904 = vmatmul.mubr.f32.gmra.mrb[0].mxu0 %v4507
        %v4905 = vpop.f32.mrb[0].mxu0
        %v4906 = vadd.f32 0.0, %v4905
        %v4907 = vpop.f32.mrb[0].mxu0
        %v4908 = vadd.f32 0.0, %v4907
        %4909 = vmatprep.mubr.f32.mxu0 0.0
        %4910 = vmatmul.mubr.f32.gmra.mrb[0].mxu0 %v4510
        %v4911 = vpop.f32.mrb[0].mxu0
        %v4912 = vadd.f32 0.0, %v4911
        %v4913 = vpop.f32.mrb[0].mxu0
        %v4914 = vadd.f32 0.0, %v4913
        %4915 = vmatprep.mubr.f32.mxu0 0.0
        %4916 = vmatmul.mubr.f32.gmra.mrb[0].mxu0 %v4513
        %v4917 = vpop.f32.mrb[0].mxu0
        %v4918 = vadd.f32 0.0, %v4917
        %v4919 = vpop.f32.mrb[0].mxu0
        %v4920 = vadd.f32 0.0, %v4919
        %4921 = vmatprep.mubr.f32.mxu0 0.0
        %4922 = vmatmul.mubr.f32.gmra.mrb[0].mxu0 %v4516
        %v4923 = vpop.f32.mrb[0].mxu0
        %v4924 = vadd.f32 0.0, %v4923
        %v4925 = vpop.f32.mrb[0].mxu0
        %v4926 = vadd.f32 0.0, %v4925
        %4927 = vmatprep.mubr.f32.mxu0 0.0
        %4928 = vmatmul.mubr.f32.gmra.mrb[0].mxu0 %v4519
        %v4929 = vpop.f32.mrb[0].mxu0
        %v4930 = vadd.f32 0.0, %v4929
        %v4931 = vpop.f32.mrb[0].mxu0
        %v4932 = vadd.f32 0.0, %v4931
        %4933 = vmatprep.mubr.f32.mxu0 0.0
        %4934 = vmatmul.mubr.f32.gmra.mrb[0].mxu0 %v4522
        %v4935 = vpop.f32.mrb[0].mxu0
        %v4936 = vadd.f32 0.0, %v4935
        %v4937 = vpop.f32.mrb[0].mxu0
        %v4938 = vadd.f32 0.0, %v4937
        %4939 = vmatprep.mubr.f32.mxu0 0.0
        %4940 = vmatmul.mubr.f32.gmra.mrb[0].mxu0 %v4525
        %v4941 = vpop.f32.mrb[0].mxu0
        %v4942 = vadd.f32 0.0, %v4941
        %v4943 = vpop.f32.mrb[0].mxu0
        %v4944 = vadd.f32 0.0, %v4943
        %4945 = vmatprep.mubr.f32.mxu0 0.0
        %4946 = vmatmul.mubr.f32.gmra.mrb[0].mxu0 %v4528
        %v4947 = vpop.f32.mrb[0].mxu0
        %v4948 = vadd.f32 0.0, %v4947
        %v4949 = vpop.f32.mrb[0].mxu0
        %v4950 = vadd.f32 0.0, %v4949
        %4951 = vmatprep.mubr.f32.mxu0 0.0
        %4952 = vmatmul.mubr.f32.gmra.mrb[0].mxu0 %v4531
        %v4953 = vpop.f32.mrb[0].mxu0
        %v4954 = vadd.f32 0.0, %v4953
        %v4955 = vpop.f32.mrb[0].mxu0
        %v4956 = vadd.f32 0.0, %v4955
        %4957 = vmatprep.mubr.f32.mxu0 0.0
        %4958 = vmatmul.mubr.f32.gmra.mrb[0].mxu0 %v4534
        %v4959 = vpop.f32.mrb[0].mxu0
        %v4960 = vadd.f32 0.0, %v4959
        %v4961 = vpop.f32.mrb[0].mxu0
        %v4962 = vadd.f32 0.0, %v4961
        %4963 = vmatprep.mubr.f32.mxu0 0.0
        %4964 = vmatmul.mubr.f32.gmra.mrb[0].mxu0 %v4537
        %v4965 = vpop.f32.mrb[0].mxu0
        %v4966 = vadd.f32 0.0, %v4965
        %v4967 = vpop.f32.mrb[0].mxu0
        %v4968 = vadd.f32 0.0, %v4967
        %4969 = vmatprep.mubr.f32.mxu0 0.0
        %4970 = vmatmul.mubr.f32.gmra.mrb[0].mxu0 %v4540
        %v4971 = vpop.f32.mrb[0].mxu0
        %v4972 = vadd.f32 0.0, %v4971
        %v4973 = vpop.f32.mrb[0].mxu0
        %v4974 = vadd.f32 0.0, %v4973
        %4975 = vmatprep.mubr.f32.mxu0 0.0
        %4976 = vmatmul.mubr.f32.gmra.mrb[0].mxu0 %v4543
        %v4977 = vpop.f32.mrb[0].mxu0
        %v4978 = vadd.f32 0.0, %v4977
        %v4979 = vpop.f32.mrb[0].mxu0
        %v4980 = vadd.f32 0.0, %v4979
        %4981 = vmatprep.mubr.f32.mxu0 0.0
        %4982 = vmatmul.mubr.f32.gmra.mrb[0].mxu0 %v4546
        %v4983 = vpop.f32.mrb[0].mxu0
        %v4984 = vadd.f32 0.0, %v4983
        %v4985 = vpop.f32.mrb[0].mxu0
        %v4986 = vadd.f32 0.0, %v4985
        %4987 = vmatprep.mubr.f32.mxu0 0.0
        %4988 = vmatmul.mubr.f32.gmra.mrb[0].mxu0 %v4549
        %v4989 = vpop.f32.mrb[0].mxu0
        %v4990 = vadd.f32 0.0, %v4989
        %v4991 = vpop.f32.mrb[0].mxu0
        %v4992 = vadd.f32 0.0, %v4991
        %4993 = vmatprep.mubr.f32.mxu0 0.0
        %4994 = vmatmul.mubr.f32.gmra.mrb[0].mxu0 %v4552
        %v4995 = vpop.f32.mrb[0].mxu0
        %v4996 = vadd.f32 0.0, %v4995
        %v4997 = vpop.f32.mrb[0].mxu0
        %v4998 = vadd.f32 0.0, %v4997
        %4999 = vmatprep.mubr.f32.mxu0 0.0
        %5000 = vmatmul.mubr.f32.gmra.mrb[0].mxu0 %v4555
        %v5001 = vpop.f32.mrb[0].mxu0
        %v5002 = vadd.f32 0.0, %v5001
        %v5003 = vpop.f32.mrb[0].mxu0
        %v5004 = vadd.f32 0.0, %v5003
        %5005 = vmatprep.mubr.f32.mxu0 0.0
        %5006 = vmatmul.mubr.f32.gmra.mrb[0].mxu0 %v4558
        %v5007 = vpop.f32.mrb[0].mxu0
        %v5008 = vadd.f32 0.0, %v5007
        %v5009 = vpop.f32.mrb[0].mxu0
        %v5010 = vadd.f32 0.0, %v5009
        %5011 = vmatprep.mubr.f32.mxu0 0.0
        %5012 = vmatmul.mubr.f32.gmra.mrb[0].mxu0 %v4561
        %v5013 = vpop.f32.mrb[0].mxu0
        %v5014 = vadd.f32 0.0, %v5013
        %v5015 = vpop.f32.mrb[0].mxu0
        %v5016 = vadd.f32 0.0, %v5015
        %5017 = vmatprep.mubr.f32.mxu0 0.0
        %5018 = vmatmul.mubr.f32.gmra.mrb[0].mxu0 %v4564
        %v5019 = vpop.f32.mrb[0].mxu0
        %v5020 = vadd.f32 0.0, %v5019
        %v5021 = vpop.f32.mrb[0].mxu0
        %v5022 = vadd.f32 0.0, %v5021
        %5023 = vmatprep.mubr.f32.mxu0 0.0
        %5024 = vmatmul.mubr.f32.gmra.mrb[0].mxu0 %v4567
        %v5025 = vpop.f32.mrb[0].mxu0
        %v5026 = vadd.f32 0.0, %v5025
        %v5027 = vpop.f32.mrb[0].mxu0
        %v5028 = vadd.f32 0.0, %v5027
        %5029 = vmatprep.mubr.f32.mxu0 0.0
        %5030 = vmatmul.mubr.f32.gmra.mrb[0].mxu0 %v4570
        %v5031 = vpop.f32.mrb[0].mxu0
        %v5032 = vadd.f32 0.0, %v5031
        %v5033 = vpop.f32.mrb[0].mxu0
        %v5034 = vadd.f32 0.0, %v5033
        %5035 = vmatprep.mubr.f32.mxu0 0.0
        %5036 = vmatmul.mubr.f32.gmra.mrb[0].mxu0 %v4573
        %v5037 = vpop.f32.mrb[0].mxu0
        %v5038 = vadd.f32 0.0, %v5037
        %v5039 = vpop.f32.mrb[0].mxu0
        %v5040 = vadd.f32 0.0, %v5039
        %5041 = vmatprep.mubr.f32.mxu0 0.0
        %5042 = vmatmul.mubr.f32.gmra.mrb[0].mxu0 %v4576
        %v5043 = vpop.f32.mrb[0].mxu0
        %v5044 = vadd.f32 0.0, %v5043
        %v5045 = vpop.f32.mrb[0].mxu0
        %v5046 = vadd.f32 0.0, %v5045
        %5047 = vmatprep.mubr.f32.mxu0 0.0
        %5048 = vmatmul.mubr.f32.gmra.mrb[0].mxu0 %v4579
        %v5049 = vpop.f32.mrb[0].mxu0
        %v5050 = vadd.f32 0.0, %v5049
        %v5051 = vpop.f32.mrb[0].mxu0
        %v5052 = vadd.f32 0.0, %v5051
        %5053 = vmatprep.mubr.f32.mxu0 0.0
        %5054 = vmatmul.mubr.f32.gmra.mrb[0].mxu0 %v4582
        %v5055 = vpop.f32.mrb[0].mxu0
        %v5056 = vadd.f32 0.0, %v5055
        %v5057 = vpop.f32.mrb[0].mxu0
        %v5058 = vadd.f32 0.0, %v5057
        %5059 = vmatprep.mubr.f32.mxu0 0.0
        %5060 = vmatmul.mubr.f32.gmra.mrb[0].mxu0 %v4585
        %v5061 = vpop.f32.mrb[0].mxu0
        %v5062 = vadd.f32 0.0, %v5061
        %v5063 = vpop.f32.mrb[0].mxu0
        %v5064 = vadd.f32 0.0, %v5063
        %5065 = vmatprep.mubr.f32.mxu0 0.0
        %5066 = vmatmul.mubr.f32.gmra.mrb[0].mxu0 %v4588
        %v5067 = vpop.f32.mrb[0].mxu0
        %v5068 = vadd.f32 0.0, %v5067
        %v5069 = vpop.f32.mrb[0].mxu0
        %v5070 = vadd.f32 0.0, %v5069
        %5071 = vmatprep.mubr.f32.mxu0 0.0
        %5072 = vmatmul.mubr.f32.gmra.mrb[0].mxu0 %v4591
        %v5073 = vpop.f32.mrb[0].mxu0
        %v5074 = vadd.f32 0.0, %v5073
        %v5075 = vpop.f32.mrb[0].mxu0
        %v5076 = vadd.f32 0.0, %v5075
        %5077 = vmatprep.mubr.f32.mxu0 0.0
        %5078 = vmatmul.mubr.f32.gmra.mrb[0].mxu0 %v4594
        %v5079 = vpop.f32.mrb[0].mxu0
        %v5080 = vadd.f32 0.0, %v5079
        %v5081 = vpop.f32.mrb[0].mxu0
        %v5082 = vadd.f32 0.0, %v5081
        %5083 = vmatprep.mubr.f32.mxu0 0.0
        %5084 = vmatmul.mubr.f32.gmra.mrb[0].mxu0 %v4597
        %v5085 = vpop.f32.mrb[0].mxu0
        %v5086 = vadd.f32 0.0, %v5085
        %v5087 = vpop.f32.mrb[0].mxu0
        %v5088 = vadd.f32 0.0, %v5087
        %5089 = vmatprep.mubr.f32.mxu0 0.0
        %5090 = vmatmul.mubr.f32.gmra.mrb[0].mxu0 %v4600
        %v5091 = vpop.f32.mrb[0].mxu0
        %v5092 = vadd.f32 0.0, %v5091
        %v5093 = vpop.f32.mrb[0].mxu0
        %v5094 = vadd.f32 0.0, %v5093
        %5095 = vmatprep.mubr.f32.mxu0 0.0
        %5096 = vmatmul.mubr.f32.gmra.mrb[0].mxu0 %v4603
        %v5097 = vpop.f32.mrb[0].mxu0
        %v5098 = vadd.f32 0.0, %v5097
        %v5099 = vpop.f32.mrb[0].mxu0
        %v5100 = vadd.f32 0.0, %v5099
        %5101 = vmatprep.mubr.f32.mxu0 0.0
        %5102 = vmatmul.mubr.f32.gmra.mrb[0].mxu0 %v4606
        %v5103 = vpop.f32.mrb[0].mxu0
        %v5104 = vadd.f32 0.0, %v5103
        %v5105 = vpop.f32.mrb[0].mxu0
        %v5106 = vadd.f32 0.0, %v5105
        %5107 = vmatprep.mubr.f32.mxu0 0.0
        %5108 = vmatmul.mubr.f32.gmra.mrb[0].mxu0 %v4609
        %v5109 = vpop.f32.mrb[0].mxu0
        %v5110 = vadd.f32 0.0, %v5109
        %v5111 = vpop.f32.mrb[0].mxu0
        %v5112 = vadd.f32 0.0, %v5111
        %5113 = vmatprep.mubr.f32.mxu0 0.0
        %5114 = vmatmul.mubr.f32.gmra.mrb[0].mxu0 %v4612
        %v5115 = vpop.f32.mrb[0].mxu0
        %v5116 = vadd.f32 0.0, %v5115
        %v5117 = vpop.f32.mrb[0].mxu0
        %v5118 = vadd.f32 0.0, %v5117
        %5119 = vmatprep.mubr.f32.mxu0 0.0
        %5120 = vmatmul.mubr.f32.gmra.mrb[0].mxu0 %v4615
        %v5121 = vpop.f32.mrb[0].mxu0
        %v5122 = vadd.f32 0.0, %v5121
        %v5123 = vpop.f32.mrb[0].mxu0
        %v5124 = vadd.f32 0.0, %v5123
        %5125 = vmatprep.mubr.f32.mxu0 0.0
        %5126 = vmatmul.mubr.f32.gmra.mrb[0].mxu0 %v4618
        %v5127 = vpop.f32.mrb[0].mxu0
        %v5128 = vadd.f32 0.0, %v5127
        %v5129 = vpop.f32.mrb[0].mxu0
        %v5130 = vadd.f32 0.0, %v5129
        %5131 = vmatprep.mubr.f32.mxu0 0.0
        %5132 = vmatmul.mubr.f32.gmra.mrb[0].mxu0 %v4621
        %v5133 = vpop.f32.mrb[0].mxu0
        %v5134 = vadd.f32 0.0, %v5133
        %v5135 = vpop.f32.mrb[0].mxu0
        %v5136 = vadd.f32 0.0, %v5135
        %5137 = vmatprep.mubr.f32.mxu0 0.0
        %5138 = vmatmul.mubr.f32.gmra.mrb[0].mxu0 %v4624
        %v5139 = vpop.f32.mrb[0].mxu0
        %v5140 = vadd.f32 0.0, %v5139
        %v5141 = vpop.f32.mrb[0].mxu0
        %v5142 = vadd.f32 0.0, %v5141
        %5143 = vmatprep.mubr.f32.mxu0 0.0
        %5144 = vmatmul.mubr.f32.gmra.mrb[0].mxu0 %v4627
        %v5145 = vpop.f32.mrb[0].mxu0
        %v5146 = vadd.f32 0.0, %v5145
        %v5147 = vpop.f32.mrb[0].mxu0
        %v5148 = vadd.f32 0.0, %v5147
        %5149 = vmatprep.mubr.f32.mxu0 0.0
        %5150 = vmatmul.mubr.f32.gmra.mrb[0].mxu0 %v4630
        %v5151 = vpop.f32.mrb[0].mxu0
        %v5152 = vadd.f32 0.0, %v5151
        %v5153 = vpop.f32.mrb[0].mxu0
        %v5154 = vadd.f32 0.0, %v5153
        %5155 = vmatprep.mubr.f32.mxu0 0.0
        %5156 = vmatmul.mubr.f32.gmra.mrb[0].mxu0 %v4633
        %v5157 = vpop.f32.mrb[0].mxu0
        %v5158 = vadd.f32 0.0, %v5157
        %v5159 = vpop.f32.mrb[0].mxu0
        %v5160 = vadd.f32 0.0, %v5159
        %5161 = vmatprep.mubr.f32.mxu0 0.0
        %5162 = vmatmul.mubr.f32.gmra.mrb[0].mxu0 %v4636
        %v5163 = vpop.f32.mrb[0].mxu0
        %v5164 = vadd.f32 0.0, %v5163
        %v5165 = vpop.f32.mrb[0].mxu0
        %v5166 = vadd.f32 0.0, %v5165
        %5167 = vmatprep.mubr.f32.mxu0 0.0
        %5168 = vmatmul.mubr.f32.gmra.mrb[0].mxu0 %v4639
        %v5169 = vpop.f32.mrb[0].mxu0
        %v5170 = vadd.f32 0.0, %v5169
        %v5171 = vpop.f32.mrb[0].mxu0
        %v5172 = vadd.f32 0.0, %v5171
        %5173 = vmatprep.mubr.f32.mxu0 0.0
        %5174 = vmatmul.mubr.f32.gmra.mrb[0].mxu0 %v4642
        %v5175 = vpop.f32.mrb[0].mxu0
        %v5176 = vadd.f32 0.0, %v5175
        %v5177 = vpop.f32.mrb[0].mxu0
        %v5178 = vadd.f32 0.0, %v5177
        %5179 = vmatprep.mubr.f32.mxu0 0.0
        %5180 = vmatmul.mubr.f32.gmra.mrb[0].mxu0 %v4645
        %v5181 = vpop.f32.mrb[0].mxu0
        %v5182 = vadd.f32 0.0, %v5181
        %v5183 = vpop.f32.mrb[0].mxu0
        %v5184 = vadd.f32 0.0, %v5183
        %5185 = vmatprep.mubr.f32.mxu0 0.0
        %5186 = vmatmul.mubr.f32.gmra.mrb[0].mxu0 %v4648
        %v5187 = vpop.f32.mrb[0].mxu0
        %v5188 = vadd.f32 0.0, %v5187
        %v5189 = vpop.f32.mrb[0].mxu0
        %v5190 = vadd.f32 0.0, %v5189
        %5191 = vmatprep.mubr.f32.mxu0 0.0
        %5192 = vmatmul.mubr.f32.gmra.mrb[0].mxu0 %v4651
        %v5193 = vpop.f32.mrb[0].mxu0
        %v5194 = vadd.f32 0.0, %v5193
        %v5195 = vpop.f32.mrb[0].mxu0
        %v5196 = vadd.f32 0.0, %v5195
        %5197 = vdwg.mxu0
        %v5198 = vlaneseq
        %v5199 = vshrl.u32 %v5198, 7
        %v5200 = vadd.s32 %v5199, 8
        %v5201 = vadd.s32 %v5199, 16
        %v5202 = vadd.s32 %v5199, 24
        %v5203 = vadd.s32 %v5199, 32
        %v5204 = vadd.s32 %v5199, 40
        %v5205 = vadd.s32 %v5199, 48
        %v5206 = vadd.s32 %v5199, 56
        %v5207 = vadd.s32 %v5199, 64
        %v5208 = vadd.s32 %v5199, 72
        %v5209 = vadd.s32 %v5199, 80
        %v5210 = vadd.s32 %v5199, 88
        %v5211 = vadd.s32 %v5199, 96
        %v5212 = vadd.s32 %v5199, 104
        %v5213 = vadd.s32 %v5199, 112
        %v5214 = vadd.s32 %v5199, 120
        %v5215 = vadd.s32 %v5199, 128
        %v5216 = vadd.s32 %v5199, 136
        %v5217 = vadd.s32 %v5199, 144
        %v5218 = vadd.s32 %v5199, 152
        %v5219 = vadd.s32 %v5199, 160
        %v5220 = vadd.s32 %v5199, 168
        %v5221 = vadd.s32 %v5199, 176
        %v5222 = vadd.s32 %v5199, 184
        %v5223 = vadd.s32 %v5199, 192
        %v5224 = vadd.s32 %v5199, 200
        %v5225 = vadd.s32 %v5199, 208
        %v5226 = vadd.s32 %v5199, 216
        %v5227 = vadd.s32 %v5199, 224
        %v5228 = vadd.s32 %v5199, 232
        %v5229 = vadd.s32 %v5199, 240
        %v5230 = vadd.s32 %v5199, 248
        %v5231 = vlaneseq
        %v5232 = vand.u32 %v5231, 127
        %v5233 = vadd.s32 %v5232, 128
        %vm5234 = vcmp.le.s32.totalorder %v5232, %v5199
        %vm5235 = vcmp.le.s32.totalorder %v5233, %v5199
        %vm5236 = vcmp.le.s32.totalorder %v5232, %v5200
        %vm5237 = vcmp.le.s32.totalorder %v5233, %v5200
        %vm5238 = vcmp.le.s32.totalorder %v5232, %v5201
        %vm5239 = vcmp.le.s32.totalorder %v5233, %v5201
        %vm5240 = vcmp.le.s32.totalorder %v5232, %v5202
        %vm5241 = vcmp.le.s32.totalorder %v5233, %v5202
        %vm5242 = vcmp.le.s32.totalorder %v5232, %v5203
        %vm5243 = vcmp.le.s32.totalorder %v5233, %v5203
        %vm5244 = vcmp.le.s32.totalorder %v5232, %v5204
        %vm5245 = vcmp.le.s32.totalorder %v5233, %v5204
        %vm5246 = vcmp.le.s32.totalorder %v5232, %v5205
        %vm5247 = vcmp.le.s32.totalorder %v5233, %v5205
        %vm5248 = vcmp.le.s32.totalorder %v5232, %v5206
        %vm5249 = vcmp.le.s32.totalorder %v5233, %v5206
        %vm5250 = vcmp.le.s32.totalorder %v5232, %v5207
        %vm5251 = vcmp.le.s32.totalorder %v5233, %v5207
        %vm5252 = vcmp.le.s32.totalorder %v5232, %v5208
        %vm5253 = vcmp.le.s32.totalorder %v5233, %v5208
        %vm5254 = vcmp.le.s32.totalorder %v5232, %v5209
        %vm5255 = vcmp.le.s32.totalorder %v5233, %v5209
        %vm5256 = vcmp.le.s32.totalorder %v5232, %v5210
        %vm5257 = vcmp.le.s32.totalorder %v5233, %v5210
        %vm5258 = vcmp.le.s32.totalorder %v5232, %v5211
        %vm5259 = vcmp.le.s32.totalorder %v5233, %v5211
        %vm5260 = vcmp.le.s32.totalorder %v5232, %v5212
        %vm5261 = vcmp.le.s32.totalorder %v5233, %v5212
        %vm5262 = vcmp.le.s32.totalorder %v5232, %v5213
        %vm5263 = vcmp.le.s32.totalorder %v5233, %v5213
        %vm5264 = vcmp.le.s32.totalorder %v5232, %v5214
        %vm5265 = vcmp.le.s32.totalorder %v5233, %v5214
        %vm5266 = vcmp.le.s32.totalorder %v5232, %v5215
        %vm5267 = vcmp.le.s32.totalorder %v5233, %v5215
        %vm5268 = vcmp.le.s32.totalorder %v5232, %v5216
        %vm5269 = vcmp.le.s32.totalorder %v5233, %v5216
        %vm5270 = vcmp.le.s32.totalorder %v5232, %v5217
        %vm5271 = vcmp.le.s32.totalorder %v5233, %v5217
        %vm5272 = vcmp.le.s32.totalorder %v5232, %v5218
        %vm5273 = vcmp.le.s32.totalorder %v5233, %v5218
        %vm5274 = vcmp.le.s32.totalorder %v5232, %v5219
        %vm5275 = vcmp.le.s32.totalorder %v5233, %v5219
        %vm5276 = vcmp.le.s32.totalorder %v5232, %v5220
        %vm5277 = vcmp.le.s32.totalorder %v5233, %v5220
        %vm5278 = vcmp.le.s32.totalorder %v5232, %v5221
        %vm5279 = vcmp.le.s32.totalorder %v5233, %v5221
        %vm5280 = vcmp.le.s32.totalorder %v5232, %v5222
        %vm5281 = vcmp.le.s32.totalorder %v5233, %v5222
        %vm5282 = vcmp.le.s32.totalorder %v5232, %v5223
        %vm5283 = vcmp.le.s32.totalorder %v5233, %v5223
        %vm5284 = vcmp.le.s32.totalorder %v5232, %v5224
        %vm5285 = vcmp.le.s32.totalorder %v5233, %v5224
        %vm5286 = vcmp.le.s32.totalorder %v5232, %v5225
        %vm5287 = vcmp.le.s32.totalorder %v5233, %v5225
        %vm5288 = vcmp.le.s32.totalorder %v5232, %v5226
        %vm5289 = vcmp.le.s32.totalorder %v5233, %v5226
        %vm5290 = vcmp.le.s32.totalorder %v5232, %v5227
        %vm5291 = vcmp.le.s32.totalorder %v5233, %v5227
        %vm5292 = vcmp.le.s32.totalorder %v5232, %v5228
        %vm5293 = vcmp.le.s32.totalorder %v5233, %v5228
        %vm5294 = vcmp.le.s32.totalorder %v5232, %v5229
        %vm5295 = vcmp.le.s32.totalorder %v5233, %v5229
        %vm5296 = vcmp.le.s32.totalorder %v5232, %v5230
        %vm5297 = vcmp.le.s32.totalorder %v5233, %v5230
        %v5298 = vsel %vm5234, 1, 0
        %v5299 = vsel %vm5235, 1, 0
        %v5300 = vsel %vm5236, 1, 0
        %v5301 = vsel %vm5237, 1, 0
        %v5302 = vsel %vm5238, 1, 0
        %v5303 = vsel %vm5239, 1, 0
        %v5304 = vsel %vm5240, 1, 0
        %v5305 = vsel %vm5241, 1, 0
        %v5306 = vsel %vm5242, 1, 0
        %v5307 = vsel %vm5243, 1, 0
        %v5308 = vsel %vm5244, 1, 0
        %v5309 = vsel %vm5245, 1, 0
        %v5310 = vsel %vm5246, 1, 0
        %v5311 = vsel %vm5247, 1, 0
        %v5312 = vsel %vm5248, 1, 0
        %v5313 = vsel %vm5249, 1, 0
        %v5314 = vsel %vm5250, 1, 0
        %v5315 = vsel %vm5251, 1, 0
        %v5316 = vsel %vm5252, 1, 0
        %v5317 = vsel %vm5253, 1, 0
        %v5318 = vsel %vm5254, 1, 0
        %v5319 = vsel %vm5255, 1, 0
        %v5320 = vsel %vm5256, 1, 0
        %v5321 = vsel %vm5257, 1, 0
        %v5322 = vsel %vm5258, 1, 0
        %v5323 = vsel %vm5259, 1, 0
        %v5324 = vsel %vm5260, 1, 0
        %v5325 = vsel %vm5261, 1, 0
        %v5326 = vsel %vm5262, 1, 0
        %v5327 = vsel %vm5263, 1, 0
        %v5328 = vsel %vm5264, 1, 0
        %v5329 = vsel %vm5265, 1, 0
        %v5330 = vsel %vm5266, 1, 0
        %v5331 = vsel %vm5267, 1, 0
        %v5332 = vsel %vm5268, 1, 0
        %v5333 = vsel %vm5269, 1, 0
        %v5334 = vsel %vm5270, 1, 0
        %v5335 = vsel %vm5271, 1, 0
        %v5336 = vsel %vm5272, 1, 0
        %v5337 = vsel %vm5273, 1, 0
        %v5338 = vsel %vm5274, 1, 0
        %v5339 = vsel %vm5275, 1, 0
        %v5340 = vsel %vm5276, 1, 0
        %v5341 = vsel %vm5277, 1, 0
        %v5342 = vsel %vm5278, 1, 0
        %v5343 = vsel %vm5279, 1, 0
        %v5344 = vsel %vm5280, 1, 0
        %v5345 = vsel %vm5281, 1, 0
        %v5346 = vsel %vm5282, 1, 0
        %v5347 = vsel %vm5283, 1, 0
        %v5348 = vsel %vm5284, 1, 0
        %v5349 = vsel %vm5285, 1, 0
        %v5350 = vsel %vm5286, 1, 0
        %v5351 = vsel %vm5287, 1, 0
        %v5352 = vsel %vm5288, 1, 0
        %v5353 = vsel %vm5289, 1, 0
        %v5354 = vsel %vm5290, 1, 0
        %v5355 = vsel %vm5291, 1, 0
        %v5356 = vsel %vm5292, 1, 0
        %v5357 = vsel %vm5293, 1, 0
        %v5358 = vsel %vm5294, 1, 0
        %v5359 = vsel %vm5295, 1, 0
        %v5360 = vsel %vm5296, 1, 0
        %v5361 = vsel %vm5297, 1, 0
        %vm5362 = vcmp.eq.s32.totalorder %v5298, 1
        %vm5363 = vcmp.eq.s32.totalorder %v5299, 1
        %vm5364 = vcmp.eq.s32.totalorder %v5300, 1
        %vm5365 = vcmp.eq.s32.totalorder %v5301, 1
        %vm5366 = vcmp.eq.s32.totalorder %v5302, 1
        %vm5367 = vcmp.eq.s32.totalorder %v5303, 1
        %vm5368 = vcmp.eq.s32.totalorder %v5304, 1
        %vm5369 = vcmp.eq.s32.totalorder %v5305, 1
        %vm5370 = vcmp.eq.s32.totalorder %v5306, 1
        %vm5371 = vcmp.eq.s32.totalorder %v5307, 1
        %vm5372 = vcmp.eq.s32.totalorder %v5308, 1
        %vm5373 = vcmp.eq.s32.totalorder %v5309, 1
        %vm5374 = vcmp.eq.s32.totalorder %v5310, 1
        %vm5375 = vcmp.eq.s32.totalorder %v5311, 1
        %vm5376 = vcmp.eq.s32.totalorder %v5312, 1
        %vm5377 = vcmp.eq.s32.totalorder %v5313, 1
        %vm5378 = vcmp.eq.s32.totalorder %v5314, 1
        %vm5379 = vcmp.eq.s32.totalorder %v5315, 1
        %vm5380 = vcmp.eq.s32.totalorder %v5316, 1
        %vm5381 = vcmp.eq.s32.totalorder %v5317, 1
        %vm5382 = vcmp.eq.s32.totalorder %v5318, 1
        %vm5383 = vcmp.eq.s32.totalorder %v5319, 1
        %vm5384 = vcmp.eq.s32.totalorder %v5320, 1
        %vm5385 = vcmp.eq.s32.totalorder %v5321, 1
        %vm5386 = vcmp.eq.s32.totalorder %v5322, 1
        %vm5387 = vcmp.eq.s32.totalorder %v5323, 1
        %vm5388 = vcmp.eq.s32.totalorder %v5324, 1
        %vm5389 = vcmp.eq.s32.totalorder %v5325, 1
        %vm5390 = vcmp.eq.s32.totalorder %v5326, 1
        %vm5391 = vcmp.eq.s32.totalorder %v5327, 1
        %vm5392 = vcmp.eq.s32.totalorder %v5328, 1
        %vm5393 = vcmp.eq.s32.totalorder %v5329, 1
        %vm5394 = vcmp.eq.s32.totalorder %v5330, 1
        %vm5395 = vcmp.eq.s32.totalorder %v5331, 1
        %vm5396 = vcmp.eq.s32.totalorder %v5332, 1
        %vm5397 = vcmp.eq.s32.totalorder %v5333, 1
        %vm5398 = vcmp.eq.s32.totalorder %v5334, 1
        %vm5399 = vcmp.eq.s32.totalorder %v5335, 1
        %vm5400 = vcmp.eq.s32.totalorder %v5336, 1
        %vm5401 = vcmp.eq.s32.totalorder %v5337, 1
        %vm5402 = vcmp.eq.s32.totalorder %v5338, 1
        %vm5403 = vcmp.eq.s32.totalorder %v5339, 1
        %vm5404 = vcmp.eq.s32.totalorder %v5340, 1
        %vm5405 = vcmp.eq.s32.totalorder %v5341, 1
        %vm5406 = vcmp.eq.s32.totalorder %v5342, 1
        %vm5407 = vcmp.eq.s32.totalorder %v5343, 1
        %vm5408 = vcmp.eq.s32.totalorder %v5344, 1
        %vm5409 = vcmp.eq.s32.totalorder %v5345, 1
        %vm5410 = vcmp.eq.s32.totalorder %v5346, 1
        %vm5411 = vcmp.eq.s32.totalorder %v5347, 1
        %vm5412 = vcmp.eq.s32.totalorder %v5348, 1
        %vm5413 = vcmp.eq.s32.totalorder %v5349, 1
        %vm5414 = vcmp.eq.s32.totalorder %v5350, 1
        %vm5415 = vcmp.eq.s32.totalorder %v5351, 1
        %vm5416 = vcmp.eq.s32.totalorder %v5352, 1
        %vm5417 = vcmp.eq.s32.totalorder %v5353, 1
        %vm5418 = vcmp.eq.s32.totalorder %v5354, 1
        %vm5419 = vcmp.eq.s32.totalorder %v5355, 1
        %vm5420 = vcmp.eq.s32.totalorder %v5356, 1
        %vm5421 = vcmp.eq.s32.totalorder %v5357, 1
        %vm5422 = vcmp.eq.s32.totalorder %v5358, 1
        %vm5423 = vcmp.eq.s32.totalorder %v5359, 1
        %vm5424 = vcmp.eq.s32.totalorder %v5360, 1
        %vm5425 = vcmp.eq.s32.totalorder %v5361, 1
        %v5426 = vsel %vm5362, %v4816, -inf
        %v5427 = vsel %vm5363, %v4818, -inf
        %v5428 = vsel %vm5364, %v4822, -inf
        %v5429 = vsel %vm5365, %v4824, -inf
        %v5430 = vsel %vm5366, %v4828, -inf
        %v5431 = vsel %vm5367, %v4830, -inf
        %v5432 = vsel %vm5368, %v4834, -inf
        %v5433 = vsel %vm5369, %v4836, -inf
        %v5434 = vsel %vm5370, %v4840, -inf
        %v5435 = vsel %vm5371, %v4842, -inf
        %v5436 = vsel %vm5372, %v4846, -inf
        %v5437 = vsel %vm5373, %v4848, -inf
        %v5438 = vsel %vm5374, %v4852, -inf
        %v5439 = vsel %vm5375, %v4854, -inf
        %v5440 = vsel %vm5376, %v4858, -inf
        %v5441 = vsel %vm5377, %v4860, -inf
        %v5442 = vsel %vm5378, %v4864, -inf
        %v5443 = vsel %vm5379, %v4866, -inf
        %v5444 = vsel %vm5380, %v4870, -inf
        %v5445 = vsel %vm5381, %v4872, -inf
        %v5446 = vsel %vm5382, %v4876, -inf
        %v5447 = vsel %vm5383, %v4878, -inf
        %v5448 = vsel %vm5384, %v4882, -inf
        %v5449 = vsel %vm5385, %v4884, -inf
        %v5450 = vsel %vm5386, %v4888, -inf
        %v5451 = vsel %vm5387, %v4890, -inf
        %v5452 = vsel %vm5388, %v4894, -inf
        %v5453 = vsel %vm5389, %v4896, -inf
        %v5454 = vsel %vm5390, %v4900, -inf
        %v5455 = vsel %vm5391, %v4902, -inf
        %v5456 = vsel %vm5392, %v4906, -inf
        %v5457 = vsel %vm5393, %v4908, -inf
        %v5458 = vsel %vm5394, %v4912, -inf
        %v5459 = vsel %vm5395, %v4914, -inf
        %v5460 = vsel %vm5396, %v4918, -inf
        %v5461 = vsel %vm5397, %v4920, -inf
        %v5462 = vsel %vm5398, %v4924, -inf
        %v5463 = vsel %vm5399, %v4926, -inf
        %v5464 = vsel %vm5400, %v4930, -inf
        %v5465 = vsel %vm5401, %v4932, -inf
        %v5466 = vsel %vm5402, %v4936, -inf
        %v5467 = vsel %vm5403, %v4938, -inf
        %v5468 = vsel %vm5404, %v4942, -inf
        %v5469 = vsel %vm5405, %v4944, -inf
        %v5470 = vsel %vm5406, %v4948, -inf
        %v5471 = vsel %vm5407, %v4950, -inf
        %v5472 = vsel %vm5408, %v4954, -inf
        %v5473 = vsel %vm5409, %v4956, -inf
        %v5474 = vsel %vm5410, %v4960, -inf
        %v5475 = vsel %vm5411, %v4962, -inf
        %v5476 = vsel %vm5412, %v4966, -inf
        %v5477 = vsel %vm5413, %v4968, -inf
        %v5478 = vsel %vm5414, %v4972, -inf
        %v5479 = vsel %vm5415, %v4974, -inf
        %v5480 = vsel %vm5416, %v4978, -inf
        %v5481 = vsel %vm5417, %v4980, -inf
        %v5482 = vsel %vm5418, %v4984, -inf
        %v5483 = vsel %vm5419, %v4986, -inf
        %v5484 = vsel %vm5420, %v4990, -inf
        %v5485 = vsel %vm5421, %v4992, -inf
        %v5486 = vsel %vm5422, %v4996, -inf
        %v5487 = vsel %vm5423, %v4998, -inf
        %v5488 = vsel %vm5424, %v5002, -inf
        %v5489 = vsel %vm5425, %v5004, -inf
        %v5490 = vsel %vm5362, %v5008, -inf
        %v5491 = vsel %vm5363, %v5010, -inf
        %v5492 = vsel %vm5364, %v5014, -inf
        %v5493 = vsel %vm5365, %v5016, -inf
        %v5494 = vsel %vm5366, %v5020, -inf
        %v5495 = vsel %vm5367, %v5022, -inf
        %v5496 = vsel %vm5368, %v5026, -inf
        %v5497 = vsel %vm5369, %v5028, -inf
        %v5498 = vsel %vm5370, %v5032, -inf
        %v5499 = vsel %vm5371, %v5034, -inf
        %v5500 = vsel %vm5372, %v5038, -inf
        %v5501 = vsel %vm5373, %v5040, -inf
        %v5502 = vsel %vm5374, %v5044, -inf
        %v5503 = vsel %vm5375, %v5046, -inf
        %v5504 = vsel %vm5376, %v5050, -inf
        %v5505 = vsel %vm5377, %v5052, -inf
        %v5506 = vsel %vm5378, %v5056, -inf
        %v5507 = vsel %vm5379, %v5058, -inf
        %v5508 = vsel %vm5380, %v5062, -inf
        %v5509 = vsel %vm5381, %v5064, -inf
        %v5510 = vsel %vm5382, %v5068, -inf
        %v5511 = vsel %vm5383, %v5070, -inf
        %v5512 = vsel %vm5384, %v5074, -inf
        %v5513 = vsel %vm5385, %v5076, -inf
        %v5514 = vsel %vm5386, %v5080, -inf
        %v5515 = vsel %vm5387, %v5082, -inf
        %v5516 = vsel %vm5388, %v5086, -inf
        %v5517 = vsel %vm5389, %v5088, -inf
        %v5518 = vsel %vm5390, %v5092, -inf
        %v5519 = vsel %vm5391, %v5094, -inf
        %v5520 = vsel %vm5392, %v5098, -inf
        %v5521 = vsel %vm5393, %v5100, -inf
        %v5522 = vsel %vm5394, %v5104, -inf
        %v5523 = vsel %vm5395, %v5106, -inf
        %v5524 = vsel %vm5396, %v5110, -inf
        %v5525 = vsel %vm5397, %v5112, -inf
        %v5526 = vsel %vm5398, %v5116, -inf
        %v5527 = vsel %vm5399, %v5118, -inf
        %v5528 = vsel %vm5400, %v5122, -inf
        %v5529 = vsel %vm5401, %v5124, -inf
        %v5530 = vsel %vm5402, %v5128, -inf
        %v5531 = vsel %vm5403, %v5130, -inf
        %v5532 = vsel %vm5404, %v5134, -inf
        %v5533 = vsel %vm5405, %v5136, -inf
        %v5534 = vsel %vm5406, %v5140, -inf
        %v5535 = vsel %vm5407, %v5142, -inf
        %v5536 = vsel %vm5408, %v5146, -inf
        %v5537 = vsel %vm5409, %v5148, -inf
        %v5538 = vsel %vm5410, %v5152, -inf
        %v5539 = vsel %vm5411, %v5154, -inf
        %v5540 = vsel %vm5412, %v5158, -inf
        %v5541 = vsel %vm5413, %v5160, -inf
        %v5542 = vsel %vm5414, %v5164, -inf
        %v5543 = vsel %vm5415, %v5166, -inf
        %v5544 = vsel %vm5416, %v5170, -inf
        %v5545 = vsel %vm5417, %v5172, -inf
        %v5546 = vsel %vm5418, %v5176, -inf
        %v5547 = vsel %vm5419, %v5178, -inf
        %v5548 = vsel %vm5420, %v5182, -inf
        %v5549 = vsel %vm5421, %v5184, -inf
        %v5550 = vsel %vm5422, %v5188, -inf
        %v5551 = vsel %vm5423, %v5190, -inf
        %v5552 = vsel %vm5424, %v5194, -inf
        %v5553 = vsel %vm5425, %v5196, -inf
        %v5554 = vld [vmem:[#allocation3] sm:$0xff]
        %v5555 = vld [vmem:[#allocation3 + $0x8] sm:$0xff]
        %v5556 = vld [vmem:[#allocation3 + $0x10] sm:$0xff]
        %v5557 = vld [vmem:[#allocation3 + $0x18] sm:$0xff]
        %v5558 = vld [vmem:[#allocation3 + $0x20] sm:$0xff]
        %v5559 = vld [vmem:[#allocation3 + $0x28] sm:$0xff]
        %v5560 = vld [vmem:[#allocation3 + $0x30] sm:$0xff]
        %v5561 = vld [vmem:[#allocation3 + $0x38] sm:$0xff]
        %v5562 = vld [vmem:[#allocation3 + $0x40] sm:$0xff]
        %v5563 = vld [vmem:[#allocation3 + $0x48] sm:$0xff]
        %v5564 = vld [vmem:[#allocation3 + $0x50] sm:$0xff]
        %v5565 = vld [vmem:[#allocation3 + $0x58] sm:$0xff]
        %v5566 = vld [vmem:[#allocation3 + $0x60] sm:$0xff]
        %v5567 = vld [vmem:[#allocation3 + $0x68] sm:$0xff]
        %v5568 = vld [vmem:[#allocation3 + $0x70] sm:$0xff]
        %v5569 = vld [vmem:[#allocation3 + $0x78] sm:$0xff]
        %v5570 = vld [vmem:[#allocation3 + $0x80] sm:$0xff]
        %v5571 = vld [vmem:[#allocation3 + $0x88] sm:$0xff]
        %v5572 = vld [vmem:[#allocation3 + $0x90] sm:$0xff]
        %v5573 = vld [vmem:[#allocation3 + $0x98] sm:$0xff]
        %v5574 = vld [vmem:[#allocation3 + $0xa0] sm:$0xff]
        %v5575 = vld [vmem:[#allocation3 + $0xa8] sm:$0xff]
        %v5576 = vld [vmem:[#allocation3 + $0xb0] sm:$0xff]
        %v5577 = vld [vmem:[#allocation3 + $0xb8] sm:$0xff]
        %v5578 = vld [vmem:[#allocation3 + $0xc0] sm:$0xff]
        %v5579 = vld [vmem:[#allocation3 + $0xc8] sm:$0xff]
        %v5580 = vld [vmem:[#allocation3 + $0xd0] sm:$0xff]
        %v5581 = vld [vmem:[#allocation3 + $0xd8] sm:$0xff]
        %v5582 = vld [vmem:[#allocation3 + $0xe0] sm:$0xff]
        %v5583 = vld [vmem:[#allocation3 + $0xe8] sm:$0xff]
        %v5584 = vld [vmem:[#allocation3 + $0xf0] sm:$0xff]
        %v5585 = vld [vmem:[#allocation3 + $0xf8] sm:$0xff]
        %v5586 = vld [vmem:[#allocation3 + $0x100] sm:$0xff]
        %v5587 = vld [vmem:[#allocation3 + $0x108] sm:$0xff]
        %v5588 = vld [vmem:[#allocation3 + $0x110] sm:$0xff]
        %v5589 = vld [vmem:[#allocation3 + $0x118] sm:$0xff]
        %v5590 = vld [vmem:[#allocation3 + $0x120] sm:$0xff]
        %v5591 = vld [vmem:[#allocation3 + $0x128] sm:$0xff]
        %v5592 = vld [vmem:[#allocation3 + $0x130] sm:$0xff]
        %v5593 = vld [vmem:[#allocation3 + $0x138] sm:$0xff]
        %v5594 = vld [vmem:[#allocation3 + $0x140] sm:$0xff]
        %v5595 = vld [vmem:[#allocation3 + $0x148] sm:$0xff]
        %v5596 = vld [vmem:[#allocation3 + $0x150] sm:$0xff]
        %v5597 = vld [vmem:[#allocation3 + $0x158] sm:$0xff]
        %v5598 = vld [vmem:[#allocation3 + $0x160] sm:$0xff]
        %v5599 = vld [vmem:[#allocation3 + $0x168] sm:$0xff]
        %v5600 = vld [vmem:[#allocation3 + $0x170] sm:$0xff]
        %v5601 = vld [vmem:[#allocation3 + $0x178] sm:$0xff]
        %v5602 = vld [vmem:[#allocation3 + $0x180] sm:$0xff]
        %v5603 = vld [vmem:[#allocation3 + $0x188] sm:$0xff]
        %v5604 = vld [vmem:[#allocation3 + $0x190] sm:$0xff]
        %v5605 = vld [vmem:[#allocation3 + $0x198] sm:$0xff]
        %v5606 = vld [vmem:[#allocation3 + $0x1a0] sm:$0xff]
        %v5607 = vld [vmem:[#allocation3 + $0x1a8] sm:$0xff]
        %v5608 = vld [vmem:[#allocation3 + $0x1b0] sm:$0xff]
        %v5609 = vld [vmem:[#allocation3 + $0x1b8] sm:$0xff]
        %v5610 = vld [vmem:[#allocation3 + $0x1c0] sm:$0xff]
        %v5611 = vld [vmem:[#allocation3 + $0x1c8] sm:$0xff]
        %v5612 = vld [vmem:[#allocation3 + $0x1d0] sm:$0xff]
        %v5613 = vld [vmem:[#allocation3 + $0x1d8] sm:$0xff]
        %v5614 = vld [vmem:[#allocation3 + $0x1e0] sm:$0xff]
        %v5615 = vld [vmem:[#allocation3 + $0x1e8] sm:$0xff]
        %v5616 = vld [vmem:[#allocation3 + $0x1f0] sm:$0xff]
        %v5617 = vld [vmem:[#allocation3 + $0x1f8] sm:$0xff]
        %v5618 = vmax.f32 %v5426, %v5427
        %5619 = vmax.xlane.f32.xlu0 %v5618
        %v5620 = vpop.xlane.xlu0 %5619
        %v5621 = vmax.f32 %v5428, %v5429
        %5622 = vmax.xlane.f32.xlu0 %v5621
        %v5623 = vpop.xlane.xlu0 %5622
        %v5624 = vmax.f32 %v5430, %v5431
        %5625 = vmax.xlane.f32.xlu0 %v5624
        %v5626 = vpop.xlane.xlu0 %5625
        %v5627 = vmax.f32 %v5432, %v5433
        %5628 = vmax.xlane.f32.xlu0 %v5627
        %v5629 = vpop.xlane.xlu0 %5628
        %v5630 = vmax.f32 %v5434, %v5435
        %5631 = vmax.xlane.f32.xlu0 %v5630
        %v5632 = vpop.xlane.xlu0 %5631
        %v5633 = vmax.f32 %v5436, %v5437
        %5634 = vmax.xlane.f32.xlu0 %v5633
        %v5635 = vpop.xlane.xlu0 %5634
        %v5636 = vmax.f32 %v5438, %v5439
        %5637 = vmax.xlane.f32.xlu0 %v5636
        %v5638 = vpop.xlane.xlu0 %5637
        %v5639 = vmax.f32 %v5440, %v5441
        %5640 = vmax.xlane.f32.xlu0 %v5639
        %v5641 = vpop.xlane.xlu0 %5640
        %v5642 = vmax.f32 %v5442, %v5443
        %5643 = vmax.xlane.f32.xlu0 %v5642
        %v5644 = vpop.xlane.xlu0 %5643
        %v5645 = vmax.f32 %v5444, %v5445
        %5646 = vmax.xlane.f32.xlu0 %v5645
        %v5647 = vpop.xlane.xlu0 %5646
        %v5648 = vmax.f32 %v5446, %v5447
        %5649 = vmax.xlane.f32.xlu0 %v5648
        %v5650 = vpop.xlane.xlu0 %5649
        %v5651 = vmax.f32 %v5448, %v5449
        %5652 = vmax.xlane.f32.xlu0 %v5651
        %v5653 = vpop.xlane.xlu0 %5652
        %v5654 = vmax.f32 %v5450, %v5451
        %5655 = vmax.xlane.f32.xlu0 %v5654
        %v5656 = vpop.xlane.xlu0 %5655
        %v5657 = vmax.f32 %v5452, %v5453
        %5658 = vmax.xlane.f32.xlu0 %v5657
        %v5659 = vpop.xlane.xlu0 %5658
        %v5660 = vmax.f32 %v5454, %v5455
        %5661 = vmax.xlane.f32.xlu0 %v5660
        %v5662 = vpop.xlane.xlu0 %5661
        %v5663 = vmax.f32 %v5456, %v5457
        %5664 = vmax.xlane.f32.xlu0 %v5663
        %v5665 = vpop.xlane.xlu0 %5664
        %v5666 = vmax.f32 %v5458, %v5459
        %5667 = vmax.xlane.f32.xlu0 %v5666
        %v5668 = vpop.xlane.xlu0 %5667
        %v5669 = vmax.f32 %v5460, %v5461
        %5670 = vmax.xlane.f32.xlu0 %v5669
        %v5671 = vpop.xlane.xlu0 %5670
        %v5672 = vmax.f32 %v5462, %v5463
        %5673 = vmax.xlane.f32.xlu0 %v5672
        %v5674 = vpop.xlane.xlu0 %5673
        %v5675 = vmax.f32 %v5464, %v5465
        %5676 = vmax.xlane.f32.xlu0 %v5675
        %v5677 = vpop.xlane.xlu0 %5676
        %v5678 = vmax.f32 %v5466, %v5467
        %5679 = vmax.xlane.f32.xlu0 %v5678
        %v5680 = vpop.xlane.xlu0 %5679
        %v5681 = vmax.f32 %v5468, %v5469
        %5682 = vmax.xlane.f32.xlu0 %v5681
        %v5683 = vpop.xlane.xlu0 %5682
        %v5684 = vmax.f32 %v5470, %v5471
        %5685 = vmax.xlane.f32.xlu0 %v5684
        %v5686 = vpop.xlane.xlu0 %5685
        %v5687 = vmax.f32 %v5472, %v5473
        %5688 = vmax.xlane.f32.xlu0 %v5687
        %v5689 = vpop.xlane.xlu0 %5688
        %v5690 = vmax.f32 %v5474, %v5475
        %5691 = vmax.xlane.f32.xlu0 %v5690
        %v5692 = vpop.xlane.xlu0 %5691
        %v5693 = vmax.f32 %v5476, %v5477
        %5694 = vmax.xlane.f32.xlu0 %v5693
        %v5695 = vpop.xlane.xlu0 %5694
        %v5696 = vmax.f32 %v5478, %v5479
        %5697 = vmax.xlane.f32.xlu0 %v5696
        %v5698 = vpop.xlane.xlu0 %5697
        %v5699 = vmax.f32 %v5480, %v5481
        %5700 = vmax.xlane.f32.xlu0 %v5699
        %v5701 = vpop.xlane.xlu0 %5700
        %v5702 = vmax.f32 %v5482, %v5483
        %5703 = vmax.xlane.f32.xlu0 %v5702
        %v5704 = vpop.xlane.xlu0 %5703
        %v5705 = vmax.f32 %v5484, %v5485
        %5706 = vmax.xlane.f32.xlu0 %v5705
        %v5707 = vpop.xlane.xlu0 %5706
        %v5708 = vmax.f32 %v5486, %v5487
        %5709 = vmax.xlane.f32.xlu0 %v5708
        %v5710 = vpop.xlane.xlu0 %5709
        %v5711 = vmax.f32 %v5488, %v5489
        %5712 = vmax.xlane.f32.xlu0 %v5711
        %v5713 = vpop.xlane.xlu0 %5712
        %v5714 = vmax.f32 %v5490, %v5491
        %5715 = vmax.xlane.f32.xlu0 %v5714
        %v5716 = vpop.xlane.xlu0 %5715
        %v5717 = vmax.f32 %v5492, %v5493
        %5718 = vmax.xlane.f32.xlu0 %v5717
        %v5719 = vpop.xlane.xlu0 %5718
        %v5720 = vmax.f32 %v5494, %v5495
        %5721 = vmax.xlane.f32.xlu0 %v5720
        %v5722 = vpop.xlane.xlu0 %5721
        %v5723 = vmax.f32 %v5496, %v5497
        %5724 = vmax.xlane.f32.xlu0 %v5723
        %v5725 = vpop.xlane.xlu0 %5724
        %v5726 = vmax.f32 %v5498, %v5499
        %5727 = vmax.xlane.f32.xlu0 %v5726
        %v5728 = vpop.xlane.xlu0 %5727
        %v5729 = vmax.f32 %v5500, %v5501
        %5730 = vmax.xlane.f32.xlu0 %v5729
        %v5731 = vpop.xlane.xlu0 %5730
        %v5732 = vmax.f32 %v5502, %v5503
        %5733 = vmax.xlane.f32.xlu0 %v5732
        %v5734 = vpop.xlane.xlu0 %5733
        %v5735 = vmax.f32 %v5504, %v5505
        %5736 = vmax.xlane.f32.xlu0 %v5735
        %v5737 = vpop.xlane.xlu0 %5736
        %v5738 = vmax.f32 %v5506, %v5507
        %5739 = vmax.xlane.f32.xlu0 %v5738
        %v5740 = vpop.xlane.xlu0 %5739
        %v5741 = vmax.f32 %v5508, %v5509
        %5742 = vmax.xlane.f32.xlu0 %v5741
        %v5743 = vpop.xlane.xlu0 %5742
        %v5744 = vmax.f32 %v5510, %v5511
        %5745 = vmax.xlane.f32.xlu0 %v5744
        %v5746 = vpop.xlane.xlu0 %5745
        %v5747 = vmax.f32 %v5512, %v5513
        %5748 = vmax.xlane.f32.xlu0 %v5747
        %v5749 = vpop.xlane.xlu0 %5748
        %v5750 = vmax.f32 %v5514, %v5515
        %5751 = vmax.xlane.f32.xlu0 %v5750
        %v5752 = vpop.xlane.xlu0 %5751
        %v5753 = vmax.f32 %v5516, %v5517
        %5754 = vmax.xlane.f32.xlu0 %v5753
        %v5755 = vpop.xlane.xlu0 %5754
        %v5756 = vmax.f32 %v5518, %v5519
        %5757 = vmax.xlane.f32.xlu0 %v5756
        %v5758 = vpop.xlane.xlu0 %5757
        %v5759 = vmax.f32 %v5520, %v5521
        %5760 = vmax.xlane.f32.xlu0 %v5759
        %v5761 = vpop.xlane.xlu0 %5760
        %v5762 = vmax.f32 %v5522, %v5523
        %5763 = vmax.xlane.f32.xlu0 %v5762
        %v5764 = vpop.xlane.xlu0 %5763
        %v5765 = vmax.f32 %v5524, %v5525
        %5766 = vmax.xlane.f32.xlu0 %v5765
        %v5767 = vpop.xlane.xlu0 %5766
        %v5768 = vmax.f32 %v5526, %v5527
        %5769 = vmax.xlane.f32.xlu0 %v5768
        %v5770 = vpop.xlane.xlu0 %5769
        %v5771 = vmax.f32 %v5528, %v5529
        %5772 = vmax.xlane.f32.xlu0 %v5771
        %v5773 = vpop.xlane.xlu0 %5772
        %v5774 = vmax.f32 %v5530, %v5531
        %5775 = vmax.xlane.f32.xlu0 %v5774
        %v5776 = vpop.xlane.xlu0 %5775
        %v5777 = vmax.f32 %v5532, %v5533
        %5778 = vmax.xlane.f32.xlu0 %v5777
        %v5779 = vpop.xlane.xlu0 %5778
        %v5780 = vmax.f32 %v5534, %v5535
        %5781 = vmax.xlane.f32.xlu0 %v5780
        %v5782 = vpop.xlane.xlu0 %5781
        %v5783 = vmax.f32 %v5536, %v5537
        %5784 = vmax.xlane.f32.xlu0 %v5783
        %v5785 = vpop.xlane.xlu0 %5784
        %v5786 = vmax.f32 %v5538, %v5539
        %5787 = vmax.xlane.f32.xlu0 %v5786
        %v5788 = vpop.xlane.xlu0 %5787
        %v5789 = vmax.f32 %v5540, %v5541
        %5790 = vmax.xlane.f32.xlu0 %v5789
        %v5791 = vpop.xlane.xlu0 %5790
        %v5792 = vmax.f32 %v5542, %v5543
        %5793 = vmax.xlane.f32.xlu0 %v5792
        %v5794 = vpop.xlane.xlu0 %5793
        %v5795 = vmax.f32 %v5544, %v5545
        %5796 = vmax.xlane.f32.xlu0 %v5795
        %v5797 = vpop.xlane.xlu0 %5796
        %v5798 = vmax.f32 %v5546, %v5547
        %5799 = vmax.xlane.f32.xlu0 %v5798
        %v5800 = vpop.xlane.xlu0 %5799
        %v5801 = vmax.f32 %v5548, %v5549
        %5802 = vmax.xlane.f32.xlu0 %v5801
        %v5803 = vpop.xlane.xlu0 %5802
        %v5804 = vmax.f32 %v5550, %v5551
        %5805 = vmax.xlane.f32.xlu0 %v5804
        %v5806 = vpop.xlane.xlu0 %5805
        %v5807 = vmax.f32 %v5552, %v5553
        %5808 = vmax.xlane.f32.xlu0 %v5807
        %v5809 = vpop.xlane.xlu0 %5808
        %v5810 = vmax.f32 %v5554, %v5620
        %v5811 = vmax.f32 %v5555, %v5623
        %v5812 = vmax.f32 %v5556, %v5626
        %v5813 = vmax.f32 %v5557, %v5629
        %v5814 = vmax.f32 %v5558, %v5632
        %v5815 = vmax.f32 %v5559, %v5635
        %v5816 = vmax.f32 %v5560, %v5638
        %v5817 = vmax.f32 %v5561, %v5641
        %v5818 = vmax.f32 %v5562, %v5644
        %v5819 = vmax.f32 %v5563, %v5647
        %v5820 = vmax.f32 %v5564, %v5650
        %v5821 = vmax.f32 %v5565, %v5653
        %v5822 = vmax.f32 %v5566, %v5656
        %v5823 = vmax.f32 %v5567, %v5659
        %v5824 = vmax.f32 %v5568, %v5662
        %v5825 = vmax.f32 %v5569, %v5665
        %v5826 = vmax.f32 %v5570, %v5668
        %v5827 = vmax.f32 %v5571, %v5671
        %v5828 = vmax.f32 %v5572, %v5674
        %v5829 = vmax.f32 %v5573, %v5677
        %v5830 = vmax.f32 %v5574, %v5680
        %v5831 = vmax.f32 %v5575, %v5683
        %v5832 = vmax.f32 %v5576, %v5686
        %v5833 = vmax.f32 %v5577, %v5689
        %v5834 = vmax.f32 %v5578, %v5692
        %v5835 = vmax.f32 %v5579, %v5695
        %v5836 = vmax.f32 %v5580, %v5698
        %v5837 = vmax.f32 %v5581, %v5701
        %v5838 = vmax.f32 %v5582, %v5704
        %v5839 = vmax.f32 %v5583, %v5707
        %v5840 = vmax.f32 %v5584, %v5710
        %v5841 = vmax.f32 %v5585, %v5713
        %v5842 = vmax.f32 %v5586, %v5716
        %v5843 = vmax.f32 %v5587, %v5719
        %v5844 = vmax.f32 %v5588, %v5722
        %v5845 = vmax.f32 %v5589, %v5725
        %v5846 = vmax.f32 %v5590, %v5728
        %v5847 = vmax.f32 %v5591, %v5731
        %v5848 = vmax.f32 %v5592, %v5734
        %v5849 = vmax.f32 %v5593, %v5737
        %v5850 = vmax.f32 %v5594, %v5740
        %v5851 = vmax.f32 %v5595, %v5743
        %v5852 = vmax.f32 %v5596, %v5746
        %v5853 = vmax.f32 %v5597, %v5749
        %v5854 = vmax.f32 %v5598, %v5752
        %v5855 = vmax.f32 %v5599, %v5755
        %v5856 = vmax.f32 %v5600, %v5758
        %v5857 = vmax.f32 %v5601, %v5761
        %v5858 = vmax.f32 %v5602, %v5764
        %v5859 = vmax.f32 %v5603, %v5767
        %v5860 = vmax.f32 %v5604, %v5770
        %v5861 = vmax.f32 %v5605, %v5773
        %v5862 = vmax.f32 %v5606, %v5776
        %v5863 = vmax.f32 %v5607, %v5779
        %v5864 = vmax.f32 %v5608, %v5782
        %v5865 = vmax.f32 %v5609, %v5785
        %v5866 = vmax.f32 %v5610, %v5788
        %v5867 = vmax.f32 %v5611, %v5791
        %v5868 = vmax.f32 %v5612, %v5794
        %v5869 = vmax.f32 %v5613, %v5797
        %v5870 = vmax.f32 %v5614, %v5800
        %v5871 = vmax.f32 %v5615, %v5803
        %v5872 = vmax.f32 %v5616, %v5806
        %v5873 = vmax.f32 %v5617, %v5809
        %v5874 = vsub.f32 %v5554, %v5810
        %v5875 = vsub.f32 %v5555, %v5811
        %v5876 = vsub.f32 %v5556, %v5812
        %v5877 = vsub.f32 %v5557, %v5813
        %v5878 = vsub.f32 %v5558, %v5814
        %v5879 = vsub.f32 %v5559, %v5815
        %v5880 = vsub.f32 %v5560, %v5816
        %v5881 = vsub.f32 %v5561, %v5817
        %v5882 = vsub.f32 %v5562, %v5818
        %v5883 = vsub.f32 %v5563, %v5819
        %v5884 = vsub.f32 %v5564, %v5820
        %v5885 = vsub.f32 %v5565, %v5821
        %v5886 = vsub.f32 %v5566, %v5822
        %v5887 = vsub.f32 %v5567, %v5823
        %v5888 = vsub.f32 %v5568, %v5824
        %v5889 = vsub.f32 %v5569, %v5825
        %v5890 = vsub.f32 %v5570, %v5826
        %v5891 = vsub.f32 %v5571, %v5827
        %v5892 = vsub.f32 %v5572, %v5828
        %v5893 = vsub.f32 %v5573, %v5829
        %v5894 = vsub.f32 %v5574, %v5830
        %v5895 = vsub.f32 %v5575, %v5831
        %v5896 = vsub.f32 %v5576, %v5832
        %v5897 = vsub.f32 %v5577, %v5833
        %v5898 = vsub.f32 %v5578, %v5834
        %v5899 = vsub.f32 %v5579, %v5835
        %v5900 = vsub.f32 %v5580, %v5836
        %v5901 = vsub.f32 %v5581, %v5837
        %v5902 = vsub.f32 %v5582, %v5838
        %v5903 = vsub.f32 %v5583, %v5839
        %v5904 = vsub.f32 %v5584, %v5840
        %v5905 = vsub.f32 %v5585, %v5841
        %v5906 = vsub.f32 %v5586, %v5842
        %v5907 = vsub.f32 %v5587, %v5843
        %v5908 = vsub.f32 %v5588, %v5844
        %v5909 = vsub.f32 %v5589, %v5845
        %v5910 = vsub.f32 %v5590, %v5846
        %v5911 = vsub.f32 %v5591, %v5847
        %v5912 = vsub.f32 %v5592, %v5848
        %v5913 = vsub.f32 %v5593, %v5849
        %v5914 = vsub.f32 %v5594, %v5850
        %v5915 = vsub.f32 %v5595, %v5851
        %v5916 = vsub.f32 %v5596, %v5852
        %v5917 = vsub.f32 %v5597, %v5853
        %v5918 = vsub.f32 %v5598, %v5854
        %v5919 = vsub.f32 %v5599, %v5855
        %v5920 = vsub.f32 %v5600, %v5856
        %v5921 = vsub.f32 %v5601, %v5857
        %v5922 = vsub.f32 %v5602, %v5858
        %v5923 = vsub.f32 %v5603, %v5859
        %v5924 = vsub.f32 %v5604, %v5860
        %v5925 = vsub.f32 %v5605, %v5861
        %v5926 = vsub.f32 %v5606, %v5862
        %v5927 = vsub.f32 %v5607, %v5863
        %v5928 = vsub.f32 %v5608, %v5864
        %v5929 = vsub.f32 %v5609, %v5865
        %v5930 = vsub.f32 %v5610, %v5866
        %v5931 = vsub.f32 %v5611, %v5867
        %v5932 = vsub.f32 %v5612, %v5868
        %v5933 = vsub.f32 %v5613, %v5869
        %v5934 = vsub.f32 %v5614, %v5870
        %v5935 = vsub.f32 %v5615, %v5871
        %v5936 = vsub.f32 %v5616, %v5872
        %v5937 = vsub.f32 %v5617, %v5873
        %v5938 = vmul.f32 %v5874, 1.442695
        %v5939 = vpow.pop %v5938
        %v5940 = vmul.f32 %v5875, 1.442695
        %v5941 = vpow.pop %v5940
        %v5942 = vmul.f32 %v5876, 1.442695
        %v5943 = vpow.pop %v5942
        %v5944 = vmul.f32 %v5877, 1.442695
        %v5945 = vpow.pop %v5944
        %v5946 = vmul.f32 %v5878, 1.442695
        %v5947 = vpow.pop %v5946
        %v5948 = vmul.f32 %v5879, 1.442695
        %v5949 = vpow.pop %v5948
        %v5950 = vmul.f32 %v5880, 1.442695
        %v5951 = vpow.pop %v5950
        %v5952 = vmul.f32 %v5881, 1.442695
        %v5953 = vpow.pop %v5952
        %v5954 = vmul.f32 %v5882, 1.442695
        %v5955 = vpow.pop %v5954
        %v5956 = vmul.f32 %v5883, 1.442695
        %v5957 = vpow.pop %v5956
        %v5958 = vmul.f32 %v5884, 1.442695
        %v5959 = vpow.pop %v5958
        %v5960 = vmul.f32 %v5885, 1.442695
        %v5961 = vpow.pop %v5960
        %v5962 = vmul.f32 %v5886, 1.442695
        %v5963 = vpow.pop %v5962
        %v5964 = vmul.f32 %v5887, 1.442695
        %v5965 = vpow.pop %v5964
        %v5966 = vmul.f32 %v5888, 1.442695
        %v5967 = vpow.pop %v5966
        %v5968 = vmul.f32 %v5889, 1.442695
        %v5969 = vpow.pop %v5968
        %v5970 = vmul.f32 %v5890, 1.442695
        %v5971 = vpow.pop %v5970
        %v5972 = vmul.f32 %v5891, 1.442695
        %v5973 = vpow.pop %v5972
        %v5974 = vmul.f32 %v5892, 1.442695
        %v5975 = vpow.pop %v5974
        %v5976 = vmul.f32 %v5893, 1.442695
        %v5977 = vpow.pop %v5976
        %v5978 = vmul.f32 %v5894, 1.442695
        %v5979 = vpow.pop %v5978
        %v5980 = vmul.f32 %v5895, 1.442695
        %v5981 = vpow.pop %v5980
        %v5982 = vmul.f32 %v5896, 1.442695
        %v5983 = vpow.pop %v5982
        %v5984 = vmul.f32 %v5897, 1.442695
        %v5985 = vpow.pop %v5984
        %v5986 = vmul.f32 %v5898, 1.442695
        %v5987 = vpow.pop %v5986
        %v5988 = vmul.f32 %v5899, 1.442695
        %v5989 = vpow.pop %v5988
        %v5990 = vmul.f32 %v5900, 1.442695
        %v5991 = vpow.pop %v5990
        %v5992 = vmul.f32 %v5901, 1.442695
        %v5993 = vpow.pop %v5992
        %v5994 = vmul.f32 %v5902, 1.442695
        %v5995 = vpow.pop %v5994
        %v5996 = vmul.f32 %v5903, 1.442695
        %v5997 = vpow.pop %v5996
        %v5998 = vmul.f32 %v5904, 1.442695
        %v5999 = vpow.pop %v5998
        %v6000 = vmul.f32 %v5905, 1.442695
        %v6001 = vpow.pop %v6000
        %v6002 = vmul.f32 %v5906, 1.442695
        %v6003 = vpow.pop %v6002
        %v6004 = vmul.f32 %v5907, 1.442695
        %v6005 = vpow.pop %v6004
        %v6006 = vmul.f32 %v5908, 1.442695
        %v6007 = vpow.pop %v6006
        %v6008 = vmul.f32 %v5909, 1.442695
        %v6009 = vpow.pop %v6008
        %v6010 = vmul.f32 %v5910, 1.442695
        %v6011 = vpow.pop %v6010
        %v6012 = vmul.f32 %v5911, 1.442695
        %v6013 = vpow.pop %v6012
        %v6014 = vmul.f32 %v5912, 1.442695
        %v6015 = vpow.pop %v6014
        %v6016 = vmul.f32 %v5913, 1.442695
        %v6017 = vpow.pop %v6016
        %v6018 = vmul.f32 %v5914, 1.442695
        %v6019 = vpow.pop %v6018
        %v6020 = vmul.f32 %v5915, 1.442695
        %v6021 = vpow.pop %v6020
        %v6022 = vmul.f32 %v5916, 1.442695
        %v6023 = vpow.pop %v6022
        %v6024 = vmul.f32 %v5917, 1.442695
        %v6025 = vpow.pop %v6024
        %v6026 = vmul.f32 %v5918, 1.442695
        %v6027 = vpow.pop %v6026
        %v6028 = vmul.f32 %v5919, 1.442695
        %v6029 = vpow.pop %v6028
        %v6030 = vmul.f32 %v5920, 1.442695
        %v6031 = vpow.pop %v6030
        %v6032 = vmul.f32 %v5921, 1.442695
        %v6033 = vpow.pop %v6032
        %v6034 = vmul.f32 %v5922, 1.442695
        %v6035 = vpow.pop %v6034
        %v6036 = vmul.f32 %v5923, 1.442695
        %v6037 = vpow.pop %v6036
        %v6038 = vmul.f32 %v5924, 1.442695
        %v6039 = vpow.pop %v6038
        %v6040 = vmul.f32 %v5925, 1.442695
        %v6041 = vpow.pop %v6040
        %v6042 = vmul.f32 %v5926, 1.442695
        %v6043 = vpow.pop %v6042
        %v6044 = vmul.f32 %v5927, 1.442695
        %v6045 = vpow.pop %v6044
        %v6046 = vmul.f32 %v5928, 1.442695
        %v6047 = vpow.pop %v6046
        %v6048 = vmul.f32 %v5929, 1.442695
        %v6049 = vpow.pop %v6048
        %v6050 = vmul.f32 %v5930, 1.442695
        %v6051 = vpow.pop %v6050
        %v6052 = vmul.f32 %v5931, 1.442695
        %v6053 = vpow.pop %v6052
        %v6054 = vmul.f32 %v5932, 1.442695
        %v6055 = vpow.pop %v6054
        %v6056 = vmul.f32 %v5933, 1.442695
        %v6057 = vpow.pop %v6056
        %v6058 = vmul.f32 %v5934, 1.442695
        %v6059 = vpow.pop %v6058
        %v6060 = vmul.f32 %v5935, 1.442695
        %v6061 = vpow.pop %v6060
        %v6062 = vmul.f32 %v5936, 1.442695
        %v6063 = vpow.pop %v6062
        %v6064 = vmul.f32 %v5937, 1.442695
        %v6065 = vpow.pop %v6064
        %6067 = vset.pattern.permute.xlu0 0
        %6068 = vperm.xlu0 %6067, %v5810
        %v6069 = vpop.permute.xlu0 %6068
        %6072 = vset.pattern.permute.xlu0 0
        %6073 = vperm.xlu0 %6072, %v5811
        %v6074 = vpop.permute.xlu0 %6073
        %6077 = vset.pattern.permute.xlu0 0
        %6078 = vperm.xlu0 %6077, %v5812
        %v6079 = vpop.permute.xlu0 %6078
        %6082 = vset.pattern.permute.xlu0 0
        %6083 = vperm.xlu0 %6082, %v5813
        %v6084 = vpop.permute.xlu0 %6083
        %6087 = vset.pattern.permute.xlu0 0
        %6088 = vperm.xlu0 %6087, %v5814
        %v6089 = vpop.permute.xlu0 %6088
        %6092 = vset.pattern.permute.xlu0 0
        %6093 = vperm.xlu0 %6092, %v5815
        %v6094 = vpop.permute.xlu0 %6093
        %6097 = vset.pattern.permute.xlu0 0
        %6098 = vperm.xlu0 %6097, %v5816
        %v6099 = vpop.permute.xlu0 %6098
        %6102 = vset.pattern.permute.xlu0 0
        %6103 = vperm.xlu0 %6102, %v5817
        %v6104 = vpop.permute.xlu0 %6103
        %6107 = vset.pattern.permute.xlu0 0
        %6108 = vperm.xlu0 %6107, %v5818
        %v6109 = vpop.permute.xlu0 %6108
        %6112 = vset.pattern.permute.xlu0 0
        %6113 = vperm.xlu0 %6112, %v5819
        %v6114 = vpop.permute.xlu0 %6113
        %6117 = vset.pattern.permute.xlu0 0
        %6118 = vperm.xlu0 %6117, %v5820
        %v6119 = vpop.permute.xlu0 %6118
        %6122 = vset.pattern.permute.xlu0 0
        %6123 = vperm.xlu0 %6122, %v5821
        %v6124 = vpop.permute.xlu0 %6123
        %6127 = vset.pattern.permute.xlu0 0
        %6128 = vperm.xlu0 %6127, %v5822
        %v6129 = vpop.permute.xlu0 %6128
        %6132 = vset.pattern.permute.xlu0 0
        %6133 = vperm.xlu0 %6132, %v5823
        %v6134 = vpop.permute.xlu0 %6133
        %6137 = vset.pattern.permute.xlu0 0
        %6138 = vperm.xlu0 %6137, %v5824
        %v6139 = vpop.permute.xlu0 %6138
        %6142 = vset.pattern.permute.xlu0 0
        %6143 = vperm.xlu0 %6142, %v5825
        %v6144 = vpop.permute.xlu0 %6143
        %6147 = vset.pattern.permute.xlu0 0
        %6148 = vperm.xlu0 %6147, %v5826
        %v6149 = vpop.permute.xlu0 %6148
        %6152 = vset.pattern.permute.xlu0 0
        %6153 = vperm.xlu0 %6152, %v5827
        %v6154 = vpop.permute.xlu0 %6153
        %6157 = vset.pattern.permute.xlu0 0
        %6158 = vperm.xlu0 %6157, %v5828
        %v6159 = vpop.permute.xlu0 %6158
        %6162 = vset.pattern.permute.xlu0 0
        %6163 = vperm.xlu0 %6162, %v5829
        %v6164 = vpop.permute.xlu0 %6163
        %6167 = vset.pattern.permute.xlu0 0
        %6168 = vperm.xlu0 %6167, %v5830
        %v6169 = vpop.permute.xlu0 %6168
        %6172 = vset.pattern.permute.xlu0 0
        %6173 = vperm.xlu0 %6172, %v5831
        %v6174 = vpop.permute.xlu0 %6173
        %6177 = vset.pattern.permute.xlu0 0
        %6178 = vperm.xlu0 %6177, %v5832
        %v6179 = vpop.permute.xlu0 %6178
        %6182 = vset.pattern.permute.xlu0 0
        %6183 = vperm.xlu0 %6182, %v5833
        %v6184 = vpop.permute.xlu0 %6183
        %6187 = vset.pattern.permute.xlu0 0
        %6188 = vperm.xlu0 %6187, %v5834
        %v6189 = vpop.permute.xlu0 %6188
        %6192 = vset.pattern.permute.xlu0 0
        %6193 = vperm.xlu0 %6192, %v5835
        %v6194 = vpop.permute.xlu0 %6193
        %6197 = vset.pattern.permute.xlu0 0
        %6198 = vperm.xlu0 %6197, %v5836
        %v6199 = vpop.permute.xlu0 %6198
        %6202 = vset.pattern.permute.xlu0 0
        %6203 = vperm.xlu0 %6202, %v5837
        %v6204 = vpop.permute.xlu0 %6203
        %6207 = vset.pattern.permute.xlu0 0
        %6208 = vperm.xlu0 %6207, %v5838
        %v6209 = vpop.permute.xlu0 %6208
        %6212 = vset.pattern.permute.xlu0 0
        %6213 = vperm.xlu0 %6212, %v5839
        %v6214 = vpop.permute.xlu0 %6213
        %6217 = vset.pattern.permute.xlu0 0
        %6218 = vperm.xlu0 %6217, %v5840
        %v6219 = vpop.permute.xlu0 %6218
        %6222 = vset.pattern.permute.xlu0 0
        %6223 = vperm.xlu0 %6222, %v5841
        %v6224 = vpop.permute.xlu0 %6223
        %6227 = vset.pattern.permute.xlu0 0
        %6228 = vperm.xlu0 %6227, %v5842
        %v6229 = vpop.permute.xlu0 %6228
        %6232 = vset.pattern.permute.xlu0 0
        %6233 = vperm.xlu0 %6232, %v5843
        %v6234 = vpop.permute.xlu0 %6233
        %6237 = vset.pattern.permute.xlu0 0
        %6238 = vperm.xlu0 %6237, %v5844
        %v6239 = vpop.permute.xlu0 %6238
        %6242 = vset.pattern.permute.xlu0 0
        %6243 = vperm.xlu0 %6242, %v5845
        %v6244 = vpop.permute.xlu0 %6243
        %6247 = vset.pattern.permute.xlu0 0
        %6248 = vperm.xlu0 %6247, %v5846
        %v6249 = vpop.permute.xlu0 %6248
        %6252 = vset.pattern.permute.xlu0 0
        %6253 = vperm.xlu0 %6252, %v5847
        %v6254 = vpop.permute.xlu0 %6253
        %6257 = vset.pattern.permute.xlu0 0
        %6258 = vperm.xlu0 %6257, %v5848
        %v6259 = vpop.permute.xlu0 %6258
        %6262 = vset.pattern.permute.xlu0 0
        %6263 = vperm.xlu0 %6262, %v5849
        %v6264 = vpop.permute.xlu0 %6263
        %6267 = vset.pattern.permute.xlu0 0
        %6268 = vperm.xlu0 %6267, %v5850
        %v6269 = vpop.permute.xlu0 %6268
        %6272 = vset.pattern.permute.xlu0 0
        %6273 = vperm.xlu0 %6272, %v5851
        %v6274 = vpop.permute.xlu0 %6273
        %6277 = vset.pattern.permute.xlu0 0
        %6278 = vperm.xlu0 %6277, %v5852
        %v6279 = vpop.permute.xlu0 %6278
        %6282 = vset.pattern.permute.xlu0 0
        %6283 = vperm.xlu0 %6282, %v5853
        %v6284 = vpop.permute.xlu0 %6283
        %6287 = vset.pattern.permute.xlu0 0
        %6288 = vperm.xlu0 %6287, %v5854
        %v6289 = vpop.permute.xlu0 %6288
        %6292 = vset.pattern.permute.xlu0 0
        %6293 = vperm.xlu0 %6292, %v5855
        %v6294 = vpop.permute.xlu0 %6293
        %6297 = vset.pattern.permute.xlu0 0
        %6298 = vperm.xlu0 %6297, %v5856
        %v6299 = vpop.permute.xlu0 %6298
        %6302 = vset.pattern.permute.xlu0 0
        %6303 = vperm.xlu0 %6302, %v5857
        %v6304 = vpop.permute.xlu0 %6303
        %6307 = vset.pattern.permute.xlu0 0
        %6308 = vperm.xlu0 %6307, %v5858
        %v6309 = vpop.permute.xlu0 %6308
        %6312 = vset.pattern.permute.xlu0 0
        %6313 = vperm.xlu0 %6312, %v5859
        %v6314 = vpop.permute.xlu0 %6313
        %6317 = vset.pattern.permute.xlu0 0
        %6318 = vperm.xlu0 %6317, %v5860
        %v6319 = vpop.permute.xlu0 %6318
        %6322 = vset.pattern.permute.xlu0 0
        %6323 = vperm.xlu0 %6322, %v5861
        %v6324 = vpop.permute.xlu0 %6323
        %6327 = vset.pattern.permute.xlu0 0
        %6328 = vperm.xlu0 %6327, %v5862
        %v6329 = vpop.permute.xlu0 %6328
        %6332 = vset.pattern.permute.xlu0 0
        %6333 = vperm.xlu0 %6332, %v5863
        %v6334 = vpop.permute.xlu0 %6333
        %6337 = vset.pattern.permute.xlu0 0
        %6338 = vperm.xlu0 %6337, %v5864
        %v6339 = vpop.permute.xlu0 %6338
        %6342 = vset.pattern.permute.xlu0 0
        %6343 = vperm.xlu0 %6342, %v5865
        %v6344 = vpop.permute.xlu0 %6343
        %6347 = vset.pattern.permute.xlu0 0
        %6348 = vperm.xlu0 %6347, %v5866
        %v6349 = vpop.permute.xlu0 %6348
        %6352 = vset.pattern.permute.xlu0 0
        %6353 = vperm.xlu0 %6352, %v5867
        %v6354 = vpop.permute.xlu0 %6353
        %6357 = vset.pattern.permute.xlu0 0
        %6358 = vperm.xlu0 %6357, %v5868
        %v6359 = vpop.permute.xlu0 %6358
        %6362 = vset.pattern.permute.xlu0 0
        %6363 = vperm.xlu0 %6362, %v5869
        %v6364 = vpop.permute.xlu0 %6363
        %6367 = vset.pattern.permute.xlu0 0
        %6368 = vperm.xlu0 %6367, %v5870
        %v6369 = vpop.permute.xlu0 %6368
        %6372 = vset.pattern.permute.xlu0 0
        %6373 = vperm.xlu0 %6372, %v5871
        %v6374 = vpop.permute.xlu0 %6373
        %6377 = vset.pattern.permute.xlu0 0
        %6378 = vperm.xlu0 %6377, %v5872
        %v6379 = vpop.permute.xlu0 %6378
        %6382 = vset.pattern.permute.xlu0 0
        %6383 = vperm.xlu0 %6382, %v5873
        %v6384 = vpop.permute.xlu0 %6383
        %v6386 = vsub.f32 %v5426, %v6069
        %v6387 = vsub.f32 %v5427, %v6069
        %v6388 = vsub.f32 %v5428, %v6074
        %v6389 = vsub.f32 %v5429, %v6074
        %v6390 = vsub.f32 %v5430, %v6079
        %v6391 = vsub.f32 %v5431, %v6079
        %v6392 = vsub.f32 %v5432, %v6084
        %v6393 = vsub.f32 %v5433, %v6084
        %v6394 = vsub.f32 %v5434, %v6089
        %v6395 = vsub.f32 %v5435, %v6089
        %v6396 = vsub.f32 %v5436, %v6094
        %v6397 = vsub.f32 %v5437, %v6094
        %v6398 = vsub.f32 %v5438, %v6099
        %v6399 = vsub.f32 %v5439, %v6099
        %v6400 = vsub.f32 %v5440, %v6104
        %v6401 = vsub.f32 %v5441, %v6104
        %v6402 = vsub.f32 %v5442, %v6109
        %v6403 = vsub.f32 %v5443, %v6109
        %v6404 = vsub.f32 %v5444, %v6114
        %v6405 = vsub.f32 %v5445, %v6114
        %v6406 = vsub.f32 %v5446, %v6119
        %v6407 = vsub.f32 %v5447, %v6119
        %v6408 = vsub.f32 %v5448, %v6124
        %v6409 = vsub.f32 %v5449, %v6124
        %v6410 = vsub.f32 %v5450, %v6129
        %v6411 = vsub.f32 %v5451, %v6129
        %v6412 = vsub.f32 %v5452, %v6134
        %v6413 = vsub.f32 %v5453, %v6134
        %v6414 = vsub.f32 %v5454, %v6139
        %v6415 = vsub.f32 %v5455, %v6139
        %v6416 = vsub.f32 %v5456, %v6144
        %v6417 = vsub.f32 %v5457, %v6144
        %v6418 = vsub.f32 %v5458, %v6149
        %v6419 = vsub.f32 %v5459, %v6149
        %v6420 = vsub.f32 %v5460, %v6154
        %v6421 = vsub.f32 %v5461, %v6154
        %v6422 = vsub.f32 %v5462, %v6159
        %v6423 = vsub.f32 %v5463, %v6159
        %v6424 = vsub.f32 %v5464, %v6164
        %v6425 = vsub.f32 %v5465, %v6164
        %v6426 = vsub.f32 %v5466, %v6169
        %v6427 = vsub.f32 %v5467, %v6169
        %v6428 = vsub.f32 %v5468, %v6174
        %v6429 = vsub.f32 %v5469, %v6174
        %v6430 = vsub.f32 %v5470, %v6179
        %v6431 = vsub.f32 %v5471, %v6179
        %v6432 = vsub.f32 %v5472, %v6184
        %v6433 = vsub.f32 %v5473, %v6184
        %v6434 = vsub.f32 %v5474, %v6189
        %v6435 = vsub.f32 %v5475, %v6189
        %v6436 = vsub.f32 %v5476, %v6194
        %v6437 = vsub.f32 %v5477, %v6194
        %v6438 = vsub.f32 %v5478, %v6199
        %v6439 = vsub.f32 %v5479, %v6199
        %v6440 = vsub.f32 %v5480, %v6204
        %v6441 = vsub.f32 %v5481, %v6204
        %v6442 = vsub.f32 %v5482, %v6209
        %v6443 = vsub.f32 %v5483, %v6209
        %v6444 = vsub.f32 %v5484, %v6214
        %v6445 = vsub.f32 %v5485, %v6214
        %v6446 = vsub.f32 %v5486, %v6219
        %v6447 = vsub.f32 %v5487, %v6219
        %v6448 = vsub.f32 %v5488, %v6224
        %v6449 = vsub.f32 %v5489, %v6224
        %v6450 = vsub.f32 %v5490, %v6229
        %v6451 = vsub.f32 %v5491, %v6229
        %v6452 = vsub.f32 %v5492, %v6234
        %v6453 = vsub.f32 %v5493, %v6234
        %v6454 = vsub.f32 %v5494, %v6239
        %v6455 = vsub.f32 %v5495, %v6239
        %v6456 = vsub.f32 %v5496, %v6244
        %v6457 = vsub.f32 %v5497, %v6244
        %v6458 = vsub.f32 %v5498, %v6249
        %v6459 = vsub.f32 %v5499, %v6249
        %v6460 = vsub.f32 %v5500, %v6254
        %v6461 = vsub.f32 %v5501, %v6254
        %v6462 = vsub.f32 %v5502, %v6259
        %v6463 = vsub.f32 %v5503, %v6259
        %v6464 = vsub.f32 %v5504, %v6264
        %v6465 = vsub.f32 %v5505, %v6264
        %v6466 = vsub.f32 %v5506, %v6269
        %v6467 = vsub.f32 %v5507, %v6269
        %v6468 = vsub.f32 %v5508, %v6274
        %v6469 = vsub.f32 %v5509, %v6274
        %v6470 = vsub.f32 %v5510, %v6279
        %v6471 = vsub.f32 %v5511, %v6279
        %v6472 = vsub.f32 %v5512, %v6284
        %v6473 = vsub.f32 %v5513, %v6284
        %v6474 = vsub.f32 %v5514, %v6289
        %v6475 = vsub.f32 %v5515, %v6289
        %v6476 = vsub.f32 %v5516, %v6294
        %v6477 = vsub.f32 %v5517, %v6294
        %v6478 = vsub.f32 %v5518, %v6299
        %v6479 = vsub.f32 %v5519, %v6299
        %v6480 = vsub.f32 %v5520, %v6304
        %v6481 = vsub.f32 %v5521, %v6304
        %v6482 = vsub.f32 %v5522, %v6309
        %v6483 = vsub.f32 %v5523, %v6309
        %v6484 = vsub.f32 %v5524, %v6314
        %v6485 = vsub.f32 %v5525, %v6314
        %v6486 = vsub.f32 %v5526, %v6319
        %v6487 = vsub.f32 %v5527, %v6319
        %v6488 = vsub.f32 %v5528, %v6324
        %v6489 = vsub.f32 %v5529, %v6324
        %v6490 = vsub.f32 %v5530, %v6329
        %v6491 = vsub.f32 %v5531, %v6329
        %v6492 = vsub.f32 %v5532, %v6334
        %v6493 = vsub.f32 %v5533, %v6334
        %v6494 = vsub.f32 %v5534, %v6339
        %v6495 = vsub.f32 %v5535, %v6339
        %v6496 = vsub.f32 %v5536, %v6344
        %v6497 = vsub.f32 %v5537, %v6344
        %v6498 = vsub.f32 %v5538, %v6349
        %v6499 = vsub.f32 %v5539, %v6349
        %v6500 = vsub.f32 %v5540, %v6354
        %v6501 = vsub.f32 %v5541, %v6354
        %v6502 = vsub.f32 %v5542, %v6359
        %v6503 = vsub.f32 %v5543, %v6359
        %v6504 = vsub.f32 %v5544, %v6364
        %v6505 = vsub.f32 %v5545, %v6364
        %v6506 = vsub.f32 %v5546, %v6369
        %v6507 = vsub.f32 %v5547, %v6369
        %v6508 = vsub.f32 %v5548, %v6374
        %v6509 = vsub.f32 %v5549, %v6374
        %v6510 = vsub.f32 %v5550, %v6379
        %v6511 = vsub.f32 %v5551, %v6379
        %v6512 = vsub.f32 %v5552, %v6384
        %v6513 = vsub.f32 %v5553, %v6384
        %v6514 = vmul.f32 %v6386, 1.442695
        %v6515 = vpow.pop %v6514
        %v6516 = vmul.f32 %v6387, 1.442695
        %v6517 = vpow.pop %v6516
        %v6518 = vmul.f32 %v6388, 1.442695
        %v6519 = vpow.pop %v6518
        %v6520 = vmul.f32 %v6389, 1.442695
        %v6521 = vpow.pop %v6520
        %v6522 = vmul.f32 %v6390, 1.442695
        %v6523 = vpow.pop %v6522
        %v6524 = vmul.f32 %v6391, 1.442695
        %v6525 = vpow.pop %v6524
        %v6526 = vmul.f32 %v6392, 1.442695
        %v6527 = vpow.pop %v6526
        %v6528 = vmul.f32 %v6393, 1.442695
        %v6529 = vpow.pop %v6528
        %v6530 = vmul.f32 %v6394, 1.442695
        %v6531 = vpow.pop %v6530
        %v6532 = vmul.f32 %v6395, 1.442695
        %v6533 = vpow.pop %v6532
        %v6534 = vmul.f32 %v6396, 1.442695
        %v6535 = vpow.pop %v6534
        %v6536 = vmul.f32 %v6397, 1.442695
        %v6537 = vpow.pop %v6536
        %v6538 = vmul.f32 %v6398, 1.442695
        %v6539 = vpow.pop %v6538
        %v6540 = vmul.f32 %v6399, 1.442695
        %v6541 = vpow.pop %v6540
        %v6542 = vmul.f32 %v6400, 1.442695
        %v6543 = vpow.pop %v6542
        %v6544 = vmul.f32 %v6401, 1.442695
        %v6545 = vpow.pop %v6544
        %v6546 = vmul.f32 %v6402, 1.442695
        %v6547 = vpow.pop %v6546
        %v6548 = vmul.f32 %v6403, 1.442695
        %v6549 = vpow.pop %v6548
        %v6550 = vmul.f32 %v6404, 1.442695
        %v6551 = vpow.pop %v6550
        %v6552 = vmul.f32 %v6405, 1.442695
        %v6553 = vpow.pop %v6552
        %v6554 = vmul.f32 %v6406, 1.442695
        %v6555 = vpow.pop %v6554
        %v6556 = vmul.f32 %v6407, 1.442695
        %v6557 = vpow.pop %v6556
        %v6558 = vmul.f32 %v6408, 1.442695
        %v6559 = vpow.pop %v6558
        %v6560 = vmul.f32 %v6409, 1.442695
        %v6561 = vpow.pop %v6560
        %v6562 = vmul.f32 %v6410, 1.442695
        %v6563 = vpow.pop %v6562
        %v6564 = vmul.f32 %v6411, 1.442695
        %v6565 = vpow.pop %v6564
        %v6566 = vmul.f32 %v6412, 1.442695
        %v6567 = vpow.pop %v6566
        %v6568 = vmul.f32 %v6413, 1.442695
        %v6569 = vpow.pop %v6568
        %v6570 = vmul.f32 %v6414, 1.442695
        %v6571 = vpow.pop %v6570
        %v6572 = vmul.f32 %v6415, 1.442695
        %v6573 = vpow.pop %v6572
        %v6574 = vmul.f32 %v6416, 1.442695
        %v6575 = vpow.pop %v6574
        %v6576 = vmul.f32 %v6417, 1.442695
        %v6577 = vpow.pop %v6576
        %v6578 = vmul.f32 %v6418, 1.442695
        %v6579 = vpow.pop %v6578
        %v6580 = vmul.f32 %v6419, 1.442695
        %v6581 = vpow.pop %v6580
        %v6582 = vmul.f32 %v6420, 1.442695
        %v6583 = vpow.pop %v6582
        %v6584 = vmul.f32 %v6421, 1.442695
        %v6585 = vpow.pop %v6584
        %v6586 = vmul.f32 %v6422, 1.442695
        %v6587 = vpow.pop %v6586
        %v6588 = vmul.f32 %v6423, 1.442695
        %v6589 = vpow.pop %v6588
        %v6590 = vmul.f32 %v6424, 1.442695
        %v6591 = vpow.pop %v6590
        %v6592 = vmul.f32 %v6425, 1.442695
        %v6593 = vpow.pop %v6592
        %v6594 = vmul.f32 %v6426, 1.442695
        %v6595 = vpow.pop %v6594
        %v6596 = vmul.f32 %v6427, 1.442695
        %v6597 = vpow.pop %v6596
        %v6598 = vmul.f32 %v6428, 1.442695
        %v6599 = vpow.pop %v6598
        %v6600 = vmul.f32 %v6429, 1.442695
        %v6601 = vpow.pop %v6600
        %v6602 = vmul.f32 %v6430, 1.442695
        %v6603 = vpow.pop %v6602
        %v6604 = vmul.f32 %v6431, 1.442695
        %v6605 = vpow.pop %v6604
        %v6606 = vmul.f32 %v6432, 1.442695
        %v6607 = vpow.pop %v6606
        %v6608 = vmul.f32 %v6433, 1.442695
        %v6609 = vpow.pop %v6608
        %v6610 = vmul.f32 %v6434, 1.442695
        %v6611 = vpow.pop %v6610
        %v6612 = vmul.f32 %v6435, 1.442695
        %v6613 = vpow.pop %v6612
        %v6614 = vmul.f32 %v6436, 1.442695
        %v6615 = vpow.pop %v6614
        %v6616 = vmul.f32 %v6437, 1.442695
        %v6617 = vpow.pop %v6616
        %v6618 = vmul.f32 %v6438, 1.442695
        %v6619 = vpow.pop %v6618
        %v6620 = vmul.f32 %v6439, 1.442695
        %v6621 = vpow.pop %v6620
        %v6622 = vmul.f32 %v6440, 1.442695
        %v6623 = vpow.pop %v6622
        %v6624 = vmul.f32 %v6441, 1.442695
        %v6625 = vpow.pop %v6624
        %v6626 = vmul.f32 %v6442, 1.442695
        %v6627 = vpow.pop %v6626
        %v6628 = vmul.f32 %v6443, 1.442695
        %v6629 = vpow.pop %v6628
        %v6630 = vmul.f32 %v6444, 1.442695
        %v6631 = vpow.pop %v6630
        %v6632 = vmul.f32 %v6445, 1.442695
        %v6633 = vpow.pop %v6632
        %v6634 = vmul.f32 %v6446, 1.442695
        %v6635 = vpow.pop %v6634
        %v6636 = vmul.f32 %v6447, 1.442695
        %v6637 = vpow.pop %v6636
        %v6638 = vmul.f32 %v6448, 1.442695
        %v6639 = vpow.pop %v6638
        %v6640 = vmul.f32 %v6449, 1.442695
        %v6641 = vpow.pop %v6640
        %v6642 = vmul.f32 %v6450, 1.442695
        %v6643 = vpow.pop %v6642
        %v6644 = vmul.f32 %v6451, 1.442695
        %v6645 = vpow.pop %v6644
        %v6646 = vmul.f32 %v6452, 1.442695
        %v6647 = vpow.pop %v6646
        %v6648 = vmul.f32 %v6453, 1.442695
        %v6649 = vpow.pop %v6648
        %v6650 = vmul.f32 %v6454, 1.442695
        %v6651 = vpow.pop %v6650
        %v6652 = vmul.f32 %v6455, 1.442695
        %v6653 = vpow.pop %v6652
        %v6654 = vmul.f32 %v6456, 1.442695
        %v6655 = vpow.pop %v6654
        %v6656 = vmul.f32 %v6457, 1.442695
        %v6657 = vpow.pop %v6656
        %v6658 = vmul.f32 %v6458, 1.442695
        %v6659 = vpow.pop %v6658
        %v6660 = vmul.f32 %v6459, 1.442695
        %v6661 = vpow.pop %v6660
        %v6662 = vmul.f32 %v6460, 1.442695
        %v6663 = vpow.pop %v6662
        %v6664 = vmul.f32 %v6461, 1.442695
        %v6665 = vpow.pop %v6664
        %v6666 = vmul.f32 %v6462, 1.442695
        %v6667 = vpow.pop %v6666
        %v6668 = vmul.f32 %v6463, 1.442695
        %v6669 = vpow.pop %v6668
        %v6670 = vmul.f32 %v6464, 1.442695
        %v6671 = vpow.pop %v6670
        %v6672 = vmul.f32 %v6465, 1.442695
        %v6673 = vpow.pop %v6672
        %v6674 = vmul.f32 %v6466, 1.442695
        %v6675 = vpow.pop %v6674
        %v6676 = vmul.f32 %v6467, 1.442695
        %v6677 = vpow.pop %v6676
        %v6678 = vmul.f32 %v6468, 1.442695
        %v6679 = vpow.pop %v6678
        %v6680 = vmul.f32 %v6469, 1.442695
        %v6681 = vpow.pop %v6680
        %v6682 = vmul.f32 %v6470, 1.442695
        %v6683 = vpow.pop %v6682
        %v6684 = vmul.f32 %v6471, 1.442695
        %v6685 = vpow.pop %v6684
        %v6686 = vmul.f32 %v6472, 1.442695
        %v6687 = vpow.pop %v6686
        %v6688 = vmul.f32 %v6473, 1.442695
        %v6689 = vpow.pop %v6688
        %v6690 = vmul.f32 %v6474, 1.442695
        %v6691 = vpow.pop %v6690
        %v6692 = vmul.f32 %v6475, 1.442695
        %v6693 = vpow.pop %v6692
        %v6694 = vmul.f32 %v6476, 1.442695
        %v6695 = vpow.pop %v6694
        %v6696 = vmul.f32 %v6477, 1.442695
        %v6697 = vpow.pop %v6696
        %v6698 = vmul.f32 %v6478, 1.442695
        %v6699 = vpow.pop %v6698
        %v6700 = vmul.f32 %v6479, 1.442695
        %v6701 = vpow.pop %v6700
        %v6702 = vmul.f32 %v6480, 1.442695
        %v6703 = vpow.pop %v6702
        %v6704 = vmul.f32 %v6481, 1.442695
        %v6705 = vpow.pop %v6704
        %v6706 = vmul.f32 %v6482, 1.442695
        %v6707 = vpow.pop %v6706
        %v6708 = vmul.f32 %v6483, 1.442695
        %v6709 = vpow.pop %v6708
        %v6710 = vmul.f32 %v6484, 1.442695
        %v6711 = vpow.pop %v6710
        %v6712 = vmul.f32 %v6485, 1.442695
        %v6713 = vpow.pop %v6712
        %v6714 = vmul.f32 %v6486, 1.442695
        %v6715 = vpow.pop %v6714
        %v6716 = vmul.f32 %v6487, 1.442695
        %v6717 = vpow.pop %v6716
        %v6718 = vmul.f32 %v6488, 1.442695
        %v6719 = vpow.pop %v6718
        %v6720 = vmul.f32 %v6489, 1.442695
        %v6721 = vpow.pop %v6720
        %v6722 = vmul.f32 %v6490, 1.442695
        %v6723 = vpow.pop %v6722
        %v6724 = vmul.f32 %v6491, 1.442695
        %v6725 = vpow.pop %v6724
        %v6726 = vmul.f32 %v6492, 1.442695
        %v6727 = vpow.pop %v6726
        %v6728 = vmul.f32 %v6493, 1.442695
        %v6729 = vpow.pop %v6728
        %v6730 = vmul.f32 %v6494, 1.442695
        %v6731 = vpow.pop %v6730
        %v6732 = vmul.f32 %v6495, 1.442695
        %v6733 = vpow.pop %v6732
        %v6734 = vmul.f32 %v6496, 1.442695
        %v6735 = vpow.pop %v6734
        %v6736 = vmul.f32 %v6497, 1.442695
        %v6737 = vpow.pop %v6736
        %v6738 = vmul.f32 %v6498, 1.442695
        %v6739 = vpow.pop %v6738
        %v6740 = vmul.f32 %v6499, 1.442695
        %v6741 = vpow.pop %v6740
        %v6742 = vmul.f32 %v6500, 1.442695
        %v6743 = vpow.pop %v6742
        %v6744 = vmul.f32 %v6501, 1.442695
        %v6745 = vpow.pop %v6744
        %v6746 = vmul.f32 %v6502, 1.442695
        %v6747 = vpow.pop %v6746
        %v6748 = vmul.f32 %v6503, 1.442695
        %v6749 = vpow.pop %v6748
        %v6750 = vmul.f32 %v6504, 1.442695
        %v6751 = vpow.pop %v6750
        %v6752 = vmul.f32 %v6505, 1.442695
        %v6753 = vpow.pop %v6752
        %v6754 = vmul.f32 %v6506, 1.442695
        %v6755 = vpow.pop %v6754
        %v6756 = vmul.f32 %v6507, 1.442695
        %v6757 = vpow.pop %v6756
        %v6758 = vmul.f32 %v6508, 1.442695
        %v6759 = vpow.pop %v6758
        %v6760 = vmul.f32 %v6509, 1.442695
        %v6761 = vpow.pop %v6760
        %v6762 = vmul.f32 %v6510, 1.442695
        %v6763 = vpow.pop %v6762
        %v6764 = vmul.f32 %v6511, 1.442695
        %v6765 = vpow.pop %v6764
        %v6766 = vmul.f32 %v6512, 1.442695
        %v6767 = vpow.pop %v6766
        %v6768 = vmul.f32 %v6513, 1.442695
        %v6769 = vpow.pop %v6768
        %v6770 = vld [vmem:[#allocation4] sm:$0xff]
        %v6771 = vld [vmem:[#allocation4 + $0x8] sm:$0xff]
        %v6772 = vld [vmem:[#allocation4 + $0x10] sm:$0xff]
        %v6773 = vld [vmem:[#allocation4 + $0x18] sm:$0xff]
        %v6774 = vld [vmem:[#allocation4 + $0x20] sm:$0xff]
        %v6775 = vld [vmem:[#allocation4 + $0x28] sm:$0xff]
        %v6776 = vld [vmem:[#allocation4 + $0x30] sm:$0xff]
        %v6777 = vld [vmem:[#allocation4 + $0x38] sm:$0xff]
        %v6778 = vld [vmem:[#allocation4 + $0x40] sm:$0xff]
        %v6779 = vld [vmem:[#allocation4 + $0x48] sm:$0xff]
        %v6780 = vld [vmem:[#allocation4 + $0x50] sm:$0xff]
        %v6781 = vld [vmem:[#allocation4 + $0x58] sm:$0xff]
        %v6782 = vld [vmem:[#allocation4 + $0x60] sm:$0xff]
        %v6783 = vld [vmem:[#allocation4 + $0x68] sm:$0xff]
        %v6784 = vld [vmem:[#allocation4 + $0x70] sm:$0xff]
        %v6785 = vld [vmem:[#allocation4 + $0x78] sm:$0xff]
        %v6786 = vld [vmem:[#allocation4 + $0x80] sm:$0xff]
        %v6787 = vld [vmem:[#allocation4 + $0x88] sm:$0xff]
        %v6788 = vld [vmem:[#allocation4 + $0x90] sm:$0xff]
        %v6789 = vld [vmem:[#allocation4 + $0x98] sm:$0xff]
        %v6790 = vld [vmem:[#allocation4 + $0xa0] sm:$0xff]
        %v6791 = vld [vmem:[#allocation4 + $0xa8] sm:$0xff]
        %v6792 = vld [vmem:[#allocation4 + $0xb0] sm:$0xff]
        %v6793 = vld [vmem:[#allocation4 + $0xb8] sm:$0xff]
        %v6794 = vld [vmem:[#allocation4 + $0xc0] sm:$0xff]
        %v6795 = vld [vmem:[#allocation4 + $0xc8] sm:$0xff]
        %v6796 = vld [vmem:[#allocation4 + $0xd0] sm:$0xff]
        %v6797 = vld [vmem:[#allocation4 + $0xd8] sm:$0xff]
        %v6798 = vld [vmem:[#allocation4 + $0xe0] sm:$0xff]
        %v6799 = vld [vmem:[#allocation4 + $0xe8] sm:$0xff]
        %v6800 = vld [vmem:[#allocation4 + $0xf0] sm:$0xff]
        %v6801 = vld [vmem:[#allocation4 + $0xf8] sm:$0xff]
        %v6802 = vld [vmem:[#allocation4 + $0x100] sm:$0xff]
        %v6803 = vld [vmem:[#allocation4 + $0x108] sm:$0xff]
        %v6804 = vld [vmem:[#allocation4 + $0x110] sm:$0xff]
        %v6805 = vld [vmem:[#allocation4 + $0x118] sm:$0xff]
        %v6806 = vld [vmem:[#allocation4 + $0x120] sm:$0xff]
        %v6807 = vld [vmem:[#allocation4 + $0x128] sm:$0xff]
        %v6808 = vld [vmem:[#allocation4 + $0x130] sm:$0xff]
        %v6809 = vld [vmem:[#allocation4 + $0x138] sm:$0xff]
        %v6810 = vld [vmem:[#allocation4 + $0x140] sm:$0xff]
        %v6811 = vld [vmem:[#allocation4 + $0x148] sm:$0xff]
        %v6812 = vld [vmem:[#allocation4 + $0x150] sm:$0xff]
        %v6813 = vld [vmem:[#allocation4 + $0x158] sm:$0xff]
        %v6814 = vld [vmem:[#allocation4 + $0x160] sm:$0xff]
        %v6815 = vld [vmem:[#allocation4 + $0x168] sm:$0xff]
        %v6816 = vld [vmem:[#allocation4 + $0x170] sm:$0xff]
        %v6817 = vld [vmem:[#allocation4 + $0x178] sm:$0xff]
        %v6818 = vld [vmem:[#allocation4 + $0x180] sm:$0xff]
        %v6819 = vld [vmem:[#allocation4 + $0x188] sm:$0xff]
        %v6820 = vld [vmem:[#allocation4 + $0x190] sm:$0xff]
        %v6821 = vld [vmem:[#allocation4 + $0x198] sm:$0xff]
        %v6822 = vld [vmem:[#allocation4 + $0x1a0] sm:$0xff]
        %v6823 = vld [vmem:[#allocation4 + $0x1a8] sm:$0xff]
        %v6824 = vld [vmem:[#allocation4 + $0x1b0] sm:$0xff]
        %v6825 = vld [vmem:[#allocation4 + $0x1b8] sm:$0xff]
        %v6826 = vld [vmem:[#allocation4 + $0x1c0] sm:$0xff]
        %v6827 = vld [vmem:[#allocation4 + $0x1c8] sm:$0xff]
        %v6828 = vld [vmem:[#allocation4 + $0x1d0] sm:$0xff]
        %v6829 = vld [vmem:[#allocation4 + $0x1d8] sm:$0xff]
        %v6830 = vld [vmem:[#allocation4 + $0x1e0] sm:$0xff]
        %v6831 = vld [vmem:[#allocation4 + $0x1e8] sm:$0xff]
        %v6832 = vld [vmem:[#allocation4 + $0x1f0] sm:$0xff]
        %v6833 = vld [vmem:[#allocation4 + $0x1f8] sm:$0xff]
        %v6834 = vmul.f32 %v5939, %v6770
        %v6835 = vmul.f32 %v5941, %v6771
        %v6836 = vmul.f32 %v5943, %v6772
        %v6837 = vmul.f32 %v5945, %v6773
        %v6838 = vmul.f32 %v5947, %v6774
        %v6839 = vmul.f32 %v5949, %v6775
        %v6840 = vmul.f32 %v5951, %v6776
        %v6841 = vmul.f32 %v5953, %v6777
        %v6842 = vmul.f32 %v5955, %v6778
        %v6843 = vmul.f32 %v5957, %v6779
        %v6844 = vmul.f32 %v5959, %v6780
        %v6845 = vmul.f32 %v5961, %v6781
        %v6846 = vmul.f32 %v5963, %v6782
        %v6847 = vmul.f32 %v5965, %v6783
        %v6848 = vmul.f32 %v5967, %v6784
        %v6849 = vmul.f32 %v5969, %v6785
        %v6850 = vmul.f32 %v5971, %v6786
        %v6851 = vmul.f32 %v5973, %v6787
        %v6852 = vmul.f32 %v5975, %v6788
        %v6853 = vmul.f32 %v5977, %v6789
        %v6854 = vmul.f32 %v5979, %v6790
        %v6855 = vmul.f32 %v5981, %v6791
        %v6856 = vmul.f32 %v5983, %v6792
        %v6857 = vmul.f32 %v5985, %v6793
        %v6858 = vmul.f32 %v5987, %v6794
        %v6859 = vmul.f32 %v5989, %v6795
        %v6860 = vmul.f32 %v5991, %v6796
        %v6861 = vmul.f32 %v5993, %v6797
        %v6862 = vmul.f32 %v5995, %v6798
        %v6863 = vmul.f32 %v5997, %v6799
        %v6864 = vmul.f32 %v5999, %v6800
        %v6865 = vmul.f32 %v6001, %v6801
        %v6866 = vmul.f32 %v6003, %v6802
        %v6867 = vmul.f32 %v6005, %v6803
        %v6868 = vmul.f32 %v6007, %v6804
        %v6869 = vmul.f32 %v6009, %v6805
        %v6870 = vmul.f32 %v6011, %v6806
        %v6871 = vmul.f32 %v6013, %v6807
        %v6872 = vmul.f32 %v6015, %v6808
        %v6873 = vmul.f32 %v6017, %v6809
        %v6874 = vmul.f32 %v6019, %v6810
        %v6875 = vmul.f32 %v6021, %v6811
        %v6876 = vmul.f32 %v6023, %v6812
        %v6877 = vmul.f32 %v6025, %v6813
        %v6878 = vmul.f32 %v6027, %v6814
        %v6879 = vmul.f32 %v6029, %v6815
        %v6880 = vmul.f32 %v6031, %v6816
        %v6881 = vmul.f32 %v6033, %v6817
        %v6882 = vmul.f32 %v6035, %v6818
        %v6883 = vmul.f32 %v6037, %v6819
        %v6884 = vmul.f32 %v6039, %v6820
        %v6885 = vmul.f32 %v6041, %v6821
        %v6886 = vmul.f32 %v6043, %v6822
        %v6887 = vmul.f32 %v6045, %v6823
        %v6888 = vmul.f32 %v6047, %v6824
        %v6889 = vmul.f32 %v6049, %v6825
        %v6890 = vmul.f32 %v6051, %v6826
        %v6891 = vmul.f32 %v6053, %v6827
        %v6892 = vmul.f32 %v6055, %v6828
        %v6893 = vmul.f32 %v6057, %v6829
        %v6894 = vmul.f32 %v6059, %v6830
        %v6895 = vmul.f32 %v6061, %v6831
        %v6896 = vmul.f32 %v6063, %v6832
        %v6897 = vmul.f32 %v6065, %v6833
        %v6898 = vadd.f32 %v6515, %v6517
        %6899 = vadd.xlane.f32.xlu0 %v6898
        %v6900 = vpop.xlane.xlu0 %6899
        %v6901 = vadd.f32 %v6519, %v6521
        %6902 = vadd.xlane.f32.xlu0 %v6901
        %v6903 = vpop.xlane.xlu0 %6902
        %v6904 = vadd.f32 %v6523, %v6525
        %6905 = vadd.xlane.f32.xlu0 %v6904
        %v6906 = vpop.xlane.xlu0 %6905
        %v6907 = vadd.f32 %v6527, %v6529
        %6908 = vadd.xlane.f32.xlu0 %v6907
        %v6909 = vpop.xlane.xlu0 %6908
        %v6910 = vadd.f32 %v6531, %v6533
        %6911 = vadd.xlane.f32.xlu0 %v6910
        %v6912 = vpop.xlane.xlu0 %6911
        %v6913 = vadd.f32 %v6535, %v6537
        %6914 = vadd.xlane.f32.xlu0 %v6913
        %v6915 = vpop.xlane.xlu0 %6914
        %v6916 = vadd.f32 %v6539, %v6541
        %6917 = vadd.xlane.f32.xlu0 %v6916
        %v6918 = vpop.xlane.xlu0 %6917
        %v6919 = vadd.f32 %v6543, %v6545
        %6920 = vadd.xlane.f32.xlu0 %v6919
        %v6921 = vpop.xlane.xlu0 %6920
        %v6922 = vadd.f32 %v6547, %v6549
        %6923 = vadd.xlane.f32.xlu0 %v6922
        %v6924 = vpop.xlane.xlu0 %6923
        %v6925 = vadd.f32 %v6551, %v6553
        %6926 = vadd.xlane.f32.xlu0 %v6925
        %v6927 = vpop.xlane.xlu0 %6926
        %v6928 = vadd.f32 %v6555, %v6557
        %6929 = vadd.xlane.f32.xlu0 %v6928
        %v6930 = vpop.xlane.xlu0 %6929
        %v6931 = vadd.f32 %v6559, %v6561
        %6932 = vadd.xlane.f32.xlu0 %v6931
        %v6933 = vpop.xlane.xlu0 %6932
        %v6934 = vadd.f32 %v6563, %v6565
        %6935 = vadd.xlane.f32.xlu0 %v6934
        %v6936 = vpop.xlane.xlu0 %6935
        %v6937 = vadd.f32 %v6567, %v6569
        %6938 = vadd.xlane.f32.xlu0 %v6937
        %v6939 = vpop.xlane.xlu0 %6938
        %v6940 = vadd.f32 %v6571, %v6573
        %6941 = vadd.xlane.f32.xlu0 %v6940
        %v6942 = vpop.xlane.xlu0 %6941
        %v6943 = vadd.f32 %v6575, %v6577
        %6944 = vadd.xlane.f32.xlu0 %v6943
        %v6945 = vpop.xlane.xlu0 %6944
        %v6946 = vadd.f32 %v6579, %v6581
        %6947 = vadd.xlane.f32.xlu0 %v6946
        %v6948 = vpop.xlane.xlu0 %6947
        %v6949 = vadd.f32 %v6583, %v6585
        %6950 = vadd.xlane.f32.xlu0 %v6949
        %v6951 = vpop.xlane.xlu0 %6950
        %v6952 = vadd.f32 %v6587, %v6589
        %6953 = vadd.xlane.f32.xlu0 %v6952
        %v6954 = vpop.xlane.xlu0 %6953
        %v6955 = vadd.f32 %v6591, %v6593
        %6956 = vadd.xlane.f32.xlu0 %v6955
        %v6957 = vpop.xlane.xlu0 %6956
        %v6958 = vadd.f32 %v6595, %v6597
        %6959 = vadd.xlane.f32.xlu0 %v6958
        %v6960 = vpop.xlane.xlu0 %6959
        %v6961 = vadd.f32 %v6599, %v6601
        %6962 = vadd.xlane.f32.xlu0 %v6961
        %v6963 = vpop.xlane.xlu0 %6962
        %v6964 = vadd.f32 %v6603, %v6605
        %6965 = vadd.xlane.f32.xlu0 %v6964
        %v6966 = vpop.xlane.xlu0 %6965
        %v6967 = vadd.f32 %v6607, %v6609
        %6968 = vadd.xlane.f32.xlu0 %v6967
        %v6969 = vpop.xlane.xlu0 %6968
        %v6970 = vadd.f32 %v6611, %v6613
        %6971 = vadd.xlane.f32.xlu0 %v6970
        %v6972 = vpop.xlane.xlu0 %6971
        %v6973 = vadd.f32 %v6615, %v6617
        %6974 = vadd.xlane.f32.xlu0 %v6973
        %v6975 = vpop.xlane.xlu0 %6974
        %v6976 = vadd.f32 %v6619, %v6621
        %6977 = vadd.xlane.f32.xlu0 %v6976
        %v6978 = vpop.xlane.xlu0 %6977
        %v6979 = vadd.f32 %v6623, %v6625
        %6980 = vadd.xlane.f32.xlu0 %v6979
        %v6981 = vpop.xlane.xlu0 %6980
        %v6982 = vadd.f32 %v6627, %v6629
        %6983 = vadd.xlane.f32.xlu0 %v6982
        %v6984 = vpop.xlane.xlu0 %6983
        %v6985 = vadd.f32 %v6631, %v6633
        %6986 = vadd.xlane.f32.xlu0 %v6985
        %v6987 = vpop.xlane.xlu0 %6986
        %v6988 = vadd.f32 %v6635, %v6637
        %6989 = vadd.xlane.f32.xlu0 %v6988
        %v6990 = vpop.xlane.xlu0 %6989
        %v6991 = vadd.f32 %v6639, %v6641
        %6992 = vadd.xlane.f32.xlu0 %v6991
        %v6993 = vpop.xlane.xlu0 %6992
        %v6994 = vadd.f32 %v6643, %v6645
        %6995 = vadd.xlane.f32.xlu0 %v6994
        %v6996 = vpop.xlane.xlu0 %6995
        %v6997 = vadd.f32 %v6647, %v6649
        %6998 = vadd.xlane.f32.xlu0 %v6997
        %v6999 = vpop.xlane.xlu0 %6998
        %v7000 = vadd.f32 %v6651, %v6653
        %7001 = vadd.xlane.f32.xlu0 %v7000
        %v7002 = vpop.xlane.xlu0 %7001
        %v7003 = vadd.f32 %v6655, %v6657
        %7004 = vadd.xlane.f32.xlu0 %v7003
        %v7005 = vpop.xlane.xlu0 %7004
        %v7006 = vadd.f32 %v6659, %v6661
        %7007 = vadd.xlane.f32.xlu0 %v7006
        %v7008 = vpop.xlane.xlu0 %7007
        %v7009 = vadd.f32 %v6663, %v6665
        %7010 = vadd.xlane.f32.xlu0 %v7009
        %v7011 = vpop.xlane.xlu0 %7010
        %v7012 = vadd.f32 %v6667, %v6669
        %7013 = vadd.xlane.f32.xlu0 %v7012
        %v7014 = vpop.xlane.xlu0 %7013
        %v7015 = vadd.f32 %v6671, %v6673
        %7016 = vadd.xlane.f32.xlu0 %v7015
        %v7017 = vpop.xlane.xlu0 %7016
        %v7018 = vadd.f32 %v6675, %v6677
        %7019 = vadd.xlane.f32.xlu0 %v7018
        %v7020 = vpop.xlane.xlu0 %7019
        %v7021 = vadd.f32 %v6679, %v6681
        %7022 = vadd.xlane.f32.xlu0 %v7021
        %v7023 = vpop.xlane.xlu0 %7022
        %v7024 = vadd.f32 %v6683, %v6685
        %7025 = vadd.xlane.f32.xlu0 %v7024
        %v7026 = vpop.xlane.xlu0 %7025
        %v7027 = vadd.f32 %v6687, %v6689
        %7028 = vadd.xlane.f32.xlu0 %v7027
        %v7029 = vpop.xlane.xlu0 %7028
        %v7030 = vadd.f32 %v6691, %v6693
        %7031 = vadd.xlane.f32.xlu0 %v7030
        %v7032 = vpop.xlane.xlu0 %7031
        %v7033 = vadd.f32 %v6695, %v6697
        %7034 = vadd.xlane.f32.xlu0 %v7033
        %v7035 = vpop.xlane.xlu0 %7034
        %v7036 = vadd.f32 %v6699, %v6701
        %7037 = vadd.xlane.f32.xlu0 %v7036
        %v7038 = vpop.xlane.xlu0 %7037
        %v7039 = vadd.f32 %v6703, %v6705
        %7040 = vadd.xlane.f32.xlu0 %v7039
        %v7041 = vpop.xlane.xlu0 %7040
        %v7042 = vadd.f32 %v6707, %v6709
        %7043 = vadd.xlane.f32.xlu0 %v7042
        %v7044 = vpop.xlane.xlu0 %7043
        %v7045 = vadd.f32 %v6711, %v6713
        %7046 = vadd.xlane.f32.xlu0 %v7045
        %v7047 = vpop.xlane.xlu0 %7046
        %v7048 = vadd.f32 %v6715, %v6717
        %7049 = vadd.xlane.f32.xlu0 %v7048
        %v7050 = vpop.xlane.xlu0 %7049
        %v7051 = vadd.f32 %v6719, %v6721
        %7052 = vadd.xlane.f32.xlu0 %v7051
        %v7053 = vpop.xlane.xlu0 %7052
        %v7054 = vadd.f32 %v6723, %v6725
        %7055 = vadd.xlane.f32.xlu0 %v7054
        %v7056 = vpop.xlane.xlu0 %7055
        %v7057 = vadd.f32 %v6727, %v6729
        %7058 = vadd.xlane.f32.xlu0 %v7057
        %v7059 = vpop.xlane.xlu0 %7058
        %v7060 = vadd.f32 %v6731, %v6733
        %7061 = vadd.xlane.f32.xlu0 %v7060
        %v7062 = vpop.xlane.xlu0 %7061
        %v7063 = vadd.f32 %v6735, %v6737
        %7064 = vadd.xlane.f32.xlu0 %v7063
        %v7065 = vpop.xlane.xlu0 %7064
        %v7066 = vadd.f32 %v6739, %v6741
        %7067 = vadd.xlane.f32.xlu0 %v7066
        %v7068 = vpop.xlane.xlu0 %7067
        %v7069 = vadd.f32 %v6743, %v6745
        %7070 = vadd.xlane.f32.xlu0 %v7069
        %v7071 = vpop.xlane.xlu0 %7070
        %v7072 = vadd.f32 %v6747, %v6749
        %7073 = vadd.xlane.f32.xlu0 %v7072
        %v7074 = vpop.xlane.xlu0 %7073
        %v7075 = vadd.f32 %v6751, %v6753
        %7076 = vadd.xlane.f32.xlu0 %v7075
        %v7077 = vpop.xlane.xlu0 %7076
        %v7078 = vadd.f32 %v6755, %v6757
        %7079 = vadd.xlane.f32.xlu0 %v7078
        %v7080 = vpop.xlane.xlu0 %7079
        %v7081 = vadd.f32 %v6759, %v6761
        %7082 = vadd.xlane.f32.xlu0 %v7081
        %v7083 = vpop.xlane.xlu0 %7082
        %v7084 = vadd.f32 %v6763, %v6765
        %7085 = vadd.xlane.f32.xlu0 %v7084
        %v7086 = vpop.xlane.xlu0 %7085
        %v7087 = vadd.f32 %v6767, %v6769
        %7088 = vadd.xlane.f32.xlu0 %v7087
        %v7089 = vpop.xlane.xlu0 %7088
        %v7090 = vadd.f32 %v6834, %v6900
        %v7091 = vadd.f32 %v6835, %v6903
        %v7092 = vadd.f32 %v6836, %v6906
        %v7093 = vadd.f32 %v6837, %v6909
        %v7094 = vadd.f32 %v6838, %v6912
        %v7095 = vadd.f32 %v6839, %v6915
        %v7096 = vadd.f32 %v6840, %v6918
        %v7097 = vadd.f32 %v6841, %v6921
        %v7098 = vadd.f32 %v6842, %v6924
        %v7099 = vadd.f32 %v6843, %v6927
        %v7100 = vadd.f32 %v6844, %v6930
        %v7101 = vadd.f32 %v6845, %v6933
        %v7102 = vadd.f32 %v6846, %v6936
        %v7103 = vadd.f32 %v6847, %v6939
        %v7104 = vadd.f32 %v6848, %v6942
        %v7105 = vadd.f32 %v6849, %v6945
        %v7106 = vadd.f32 %v6850, %v6948
        %v7107 = vadd.f32 %v6851, %v6951
        %v7108 = vadd.f32 %v6852, %v6954
        %v7109 = vadd.f32 %v6853, %v6957
        %v7110 = vadd.f32 %v6854, %v6960
        %v7111 = vadd.f32 %v6855, %v6963
        %v7112 = vadd.f32 %v6856, %v6966
        %v7113 = vadd.f32 %v6857, %v6969
        %v7114 = vadd.f32 %v6858, %v6972
        %v7115 = vadd.f32 %v6859, %v6975
        %v7116 = vadd.f32 %v6860, %v6978
        %v7117 = vadd.f32 %v6861, %v6981
        %v7118 = vadd.f32 %v6862, %v6984
        %v7119 = vadd.f32 %v6863, %v6987
        %v7120 = vadd.f32 %v6864, %v6990
        %v7121 = vadd.f32 %v6865, %v6993
        %v7122 = vadd.f32 %v6866, %v6996
        %v7123 = vadd.f32 %v6867, %v6999
        %v7124 = vadd.f32 %v6868, %v7002
        %v7125 = vadd.f32 %v6869, %v7005
        %v7126 = vadd.f32 %v6870, %v7008
        %v7127 = vadd.f32 %v6871, %v7011
        %v7128 = vadd.f32 %v6872, %v7014
        %v7129 = vadd.f32 %v6873, %v7017
        %v7130 = vadd.f32 %v6874, %v7020
        %v7131 = vadd.f32 %v6875, %v7023
        %v7132 = vadd.f32 %v6876, %v7026
        %v7133 = vadd.f32 %v6877, %v7029
        %v7134 = vadd.f32 %v6878, %v7032
        %v7135 = vadd.f32 %v6879, %v7035
        %v7136 = vadd.f32 %v6880, %v7038
        %v7137 = vadd.f32 %v6881, %v7041
        %v7138 = vadd.f32 %v6882, %v7044
        %v7139 = vadd.f32 %v6883, %v7047
        %v7140 = vadd.f32 %v6884, %v7050
        %v7141 = vadd.f32 %v6885, %v7053
        %v7142 = vadd.f32 %v6886, %v7056
        %v7143 = vadd.f32 %v6887, %v7059
        %v7144 = vadd.f32 %v6888, %v7062
        %v7145 = vadd.f32 %v6889, %v7065
        %v7146 = vadd.f32 %v6890, %v7068
        %v7147 = vadd.f32 %v6891, %v7071
        %v7148 = vadd.f32 %v6892, %v7074
        %v7149 = vadd.f32 %v6893, %v7077
        %v7150 = vadd.f32 %v6894, %v7080
        %v7151 = vadd.f32 %v6895, %v7083
        %v7152 = vadd.f32 %v6896, %v7086
        %v7153 = vadd.f32 %v6897, %v7089
        %vm7154 = vcmask 7168
        %7155 = vst.msk [vmem:[#allocation4] sm:$0xff] %vm7154, %v7090
        %7156 = vst.msk [vmem:[#allocation4 + $0x8] sm:$0xff] %vm7154, %v7091
        %7157 = vst.msk [vmem:[#allocation4 + $0x10] sm:$0xff] %vm7154, %v7092
        %7158 = vst.msk [vmem:[#allocation4 + $0x18] sm:$0xff] %vm7154, %v7093
        %7159 = vst.msk [vmem:[#allocation4 + $0x20] sm:$0xff] %vm7154, %v7094
        %7160 = vst.msk [vmem:[#allocation4 + $0x28] sm:$0xff] %vm7154, %v7095
        %7161 = vst.msk [vmem:[#allocation4 + $0x30] sm:$0xff] %vm7154, %v7096
        %7162 = vst.msk [vmem:[#allocation4 + $0x38] sm:$0xff] %vm7154, %v7097
        %7163 = vst.msk [vmem:[#allocation4 + $0x40] sm:$0xff] %vm7154, %v7098
        %7164 = vst.msk [vmem:[#allocation4 + $0x48] sm:$0xff] %vm7154, %v7099
        %7165 = vst.msk [vmem:[#allocation4 + $0x50] sm:$0xff] %vm7154, %v7100
        %7166 = vst.msk [vmem:[#allocation4 + $0x58] sm:$0xff] %vm7154, %v7101
        %7167 = vst.msk [vmem:[#allocation4 + $0x60] sm:$0xff] %vm7154, %v7102
        %7168 = vst.msk [vmem:[#allocation4 + $0x68] sm:$0xff] %vm7154, %v7103
        %7169 = vst.msk [vmem:[#allocation4 + $0x70] sm:$0xff] %vm7154, %v7104
        %7170 = vst.msk [vmem:[#allocation4 + $0x78] sm:$0xff] %vm7154, %v7105
        %7171 = vst.msk [vmem:[#allocation4 + $0x80] sm:$0xff] %vm7154, %v7106
        %7172 = vst.msk [vmem:[#allocation4 + $0x88] sm:$0xff] %vm7154, %v7107
        %7173 = vst.msk [vmem:[#allocation4 + $0x90] sm:$0xff] %vm7154, %v7108
        %7174 = vst.msk [vmem:[#allocation4 + $0x98] sm:$0xff] %vm7154, %v7109
        %7175 = vst.msk [vmem:[#allocation4 + $0xa0] sm:$0xff] %vm7154, %v7110
        %7176 = vst.msk [vmem:[#allocation4 + $0xa8] sm:$0xff] %vm7154, %v7111
        %7177 = vst.msk [vmem:[#allocation4 + $0xb0] sm:$0xff] %vm7154, %v7112
        %7178 = vst.msk [vmem:[#allocation4 + $0xb8] sm:$0xff] %vm7154, %v7113
        %7179 = vst.msk [vmem:[#allocation4 + $0xc0] sm:$0xff] %vm7154, %v7114
        %7180 = vst.msk [vmem:[#allocation4 + $0xc8] sm:$0xff] %vm7154, %v7115
        %7181 = vst.msk [vmem:[#allocation4 + $0xd0] sm:$0xff] %vm7154, %v7116
        %7182 = vst.msk [vmem:[#allocation4 + $0xd8] sm:$0xff] %vm7154, %v7117
        %7183 = vst.msk [vmem:[#allocation4 + $0xe0] sm:$0xff] %vm7154, %v7118
        %7184 = vst.msk [vmem:[#allocation4 + $0xe8] sm:$0xff] %vm7154, %v7119
        %7185 = vst.msk [vmem:[#allocation4 + $0xf0] sm:$0xff] %vm7154, %v7120
        %7186 = vst.msk [vmem:[#allocation4 + $0xf8] sm:$0xff] %vm7154, %v7121
        %7187 = vst.msk [vmem:[#allocation4 + $0x100] sm:$0xff] %vm7154, %v7122
        %7188 = vst.msk [vmem:[#allocation4 + $0x108] sm:$0xff] %vm7154, %v7123
        %7189 = vst.msk [vmem:[#allocation4 + $0x110] sm:$0xff] %vm7154, %v7124
        %7190 = vst.msk [vmem:[#allocation4 + $0x118] sm:$0xff] %vm7154, %v7125
        %7191 = vst.msk [vmem:[#allocation4 + $0x120] sm:$0xff] %vm7154, %v7126
        %7192 = vst.msk [vmem:[#allocation4 + $0x128] sm:$0xff] %vm7154, %v7127
        %7193 = vst.msk [vmem:[#allocation4 + $0x130] sm:$0xff] %vm7154, %v7128
        %7194 = vst.msk [vmem:[#allocation4 + $0x138] sm:$0xff] %vm7154, %v7129
        %7195 = vst.msk [vmem:[#allocation4 + $0x140] sm:$0xff] %vm7154, %v7130
        %7196 = vst.msk [vmem:[#allocation4 + $0x148] sm:$0xff] %vm7154, %v7131
        %7197 = vst.msk [vmem:[#allocation4 + $0x150] sm:$0xff] %vm7154, %v7132
        %7198 = vst.msk [vmem:[#allocation4 + $0x158] sm:$0xff] %vm7154, %v7133
        %7199 = vst.msk [vmem:[#allocation4 + $0x160] sm:$0xff] %vm7154, %v7134
        %7200 = vst.msk [vmem:[#allocation4 + $0x168] sm:$0xff] %vm7154, %v7135
        %7201 = vst.msk [vmem:[#allocation4 + $0x170] sm:$0xff] %vm7154, %v7136
        %7202 = vst.msk [vmem:[#allocation4 + $0x178] sm:$0xff] %vm7154, %v7137
        %7203 = vst.msk [vmem:[#allocation4 + $0x180] sm:$0xff] %vm7154, %v7138
        %7204 = vst.msk [vmem:[#allocation4 + $0x188] sm:$0xff] %vm7154, %v7139
        %7205 = vst.msk [vmem:[#allocation4 + $0x190] sm:$0xff] %vm7154, %v7140
        %7206 = vst.msk [vmem:[#allocation4 + $0x198] sm:$0xff] %vm7154, %v7141
        %7207 = vst.msk [vmem:[#allocation4 + $0x1a0] sm:$0xff] %vm7154, %v7142
        %7208 = vst.msk [vmem:[#allocation4 + $0x1a8] sm:$0xff] %vm7154, %v7143
        %7209 = vst.msk [vmem:[#allocation4 + $0x1b0] sm:$0xff] %vm7154, %v7144
        %7210 = vst.msk [vmem:[#allocation4 + $0x1b8] sm:$0xff] %vm7154, %v7145
        %7211 = vst.msk [vmem:[#allocation4 + $0x1c0] sm:$0xff] %vm7154, %v7146
        %7212 = vst.msk [vmem:[#allocation4 + $0x1c8] sm:$0xff] %vm7154, %v7147
        %7213 = vst.msk [vmem:[#allocation4 + $0x1d0] sm:$0xff] %vm7154, %v7148
        %7214 = vst.msk [vmem:[#allocation4 + $0x1d8] sm:$0xff] %vm7154, %v7149
        %7215 = vst.msk [vmem:[#allocation4 + $0x1e0] sm:$0xff] %vm7154, %v7150
        %7216 = vst.msk [vmem:[#allocation4 + $0x1e8] sm:$0xff] %vm7154, %v7151
        %7217 = vst.msk [vmem:[#allocation4 + $0x1f0] sm:$0xff] %vm7154, %v7152
        %7218 = vst.msk [vmem:[#allocation4 + $0x1f8] sm:$0xff] %vm7154, %v7153
        %v7219 = vld [vmem:[#allocation5] sm:$0xff]
        %v7220 = vld [vmem:[#allocation5 + $0x8] sm:$0xff]
        %v7221 = vld [vmem:[#allocation5 + $0x10] sm:$0xff]
        %v7222 = vld [vmem:[#allocation5 + $0x18] sm:$0xff]
        %v7223 = vld [vmem:[#allocation5 + $0x20] sm:$0xff]
        %v7224 = vld [vmem:[#allocation5 + $0x28] sm:$0xff]
        %v7225 = vld [vmem:[#allocation5 + $0x30] sm:$0xff]
        %v7226 = vld [vmem:[#allocation5 + $0x38] sm:$0xff]
        %v7227 = vld [vmem:[#allocation5 + $0x40] sm:$0xff]
        %v7228 = vld [vmem:[#allocation5 + $0x48] sm:$0xff]
        %v7229 = vld [vmem:[#allocation5 + $0x50] sm:$0xff]
        %v7230 = vld [vmem:[#allocation5 + $0x58] sm:$0xff]
        %v7231 = vld [vmem:[#allocation5 + $0x60] sm:$0xff]
        %v7232 = vld [vmem:[#allocation5 + $0x68] sm:$0xff]
        %v7233 = vld [vmem:[#allocation5 + $0x70] sm:$0xff]
        %v7234 = vld [vmem:[#allocation5 + $0x78] sm:$0xff]
        %v7235 = vld [vmem:[#allocation5 + $0x80] sm:$0xff]
        %v7236 = vld [vmem:[#allocation5 + $0x88] sm:$0xff]
        %v7237 = vld [vmem:[#allocation5 + $0x90] sm:$0xff]
        %v7238 = vld [vmem:[#allocation5 + $0x98] sm:$0xff]
        %v7239 = vld [vmem:[#allocation5 + $0xa0] sm:$0xff]
        %v7240 = vld [vmem:[#allocation5 + $0xa8] sm:$0xff]
        %v7241 = vld [vmem:[#allocation5 + $0xb0] sm:$0xff]
        %v7242 = vld [vmem:[#allocation5 + $0xb8] sm:$0xff]
        %v7243 = vld [vmem:[#allocation5 + $0xc0] sm:$0xff]
        %v7244 = vld [vmem:[#allocation5 + $0xc8] sm:$0xff]
        %v7245 = vld [vmem:[#allocation5 + $0xd0] sm:$0xff]
        %v7246 = vld [vmem:[#allocation5 + $0xd8] sm:$0xff]
        %v7247 = vld [vmem:[#allocation5 + $0xe0] sm:$0xff]
        %v7248 = vld [vmem:[#allocation5 + $0xe8] sm:$0xff]
        %v7249 = vld [vmem:[#allocation5 + $0xf0] sm:$0xff]
        %v7250 = vld [vmem:[#allocation5 + $0xf8] sm:$0xff]
        %v7251 = vld [vmem:[#allocation5 + $0x100] sm:$0xff]
        %v7252 = vld [vmem:[#allocation5 + $0x108] sm:$0xff]
        %v7253 = vld [vmem:[#allocation5 + $0x110] sm:$0xff]
        %v7254 = vld [vmem:[#allocation5 + $0x118] sm:$0xff]
        %v7255 = vld [vmem:[#allocation5 + $0x120] sm:$0xff]
        %v7256 = vld [vmem:[#allocation5 + $0x128] sm:$0xff]
        %v7257 = vld [vmem:[#allocation5 + $0x130] sm:$0xff]
        %v7258 = vld [vmem:[#allocation5 + $0x138] sm:$0xff]
        %v7259 = vld [vmem:[#allocation5 + $0x140] sm:$0xff]
        %v7260 = vld [vmem:[#allocation5 + $0x148] sm:$0xff]
        %v7261 = vld [vmem:[#allocation5 + $0x150] sm:$0xff]
        %v7262 = vld [vmem:[#allocation5 + $0x158] sm:$0xff]
        %v7263 = vld [vmem:[#allocation5 + $0x160] sm:$0xff]
        %v7264 = vld [vmem:[#allocation5 + $0x168] sm:$0xff]
        %v7265 = vld [vmem:[#allocation5 + $0x170] sm:$0xff]
        %v7266 = vld [vmem:[#allocation5 + $0x178] sm:$0xff]
        %v7267 = vld [vmem:[#allocation5 + $0x180] sm:$0xff]
        %v7268 = vld [vmem:[#allocation5 + $0x188] sm:$0xff]
        %v7269 = vld [vmem:[#allocation5 + $0x190] sm:$0xff]
        %v7270 = vld [vmem:[#allocation5 + $0x198] sm:$0xff]
        %v7271 = vld [vmem:[#allocation5 + $0x1a0] sm:$0xff]
        %v7272 = vld [vmem:[#allocation5 + $0x1a8] sm:$0xff]
        %v7273 = vld [vmem:[#allocation5 + $0x1b0] sm:$0xff]
        %v7274 = vld [vmem:[#allocation5 + $0x1b8] sm:$0xff]
        %v7275 = vld [vmem:[#allocation5 + $0x1c0] sm:$0xff]
        %v7276 = vld [vmem:[#allocation5 + $0x1c8] sm:$0xff]
        %v7277 = vld [vmem:[#allocation5 + $0x1d0] sm:$0xff]
        %v7278 = vld [vmem:[#allocation5 + $0x1d8] sm:$0xff]
        %v7279 = vld [vmem:[#allocation5 + $0x1e0] sm:$0xff]
        %v7280 = vld [vmem:[#allocation5 + $0x1e8] sm:$0xff]
        %v7281 = vld [vmem:[#allocation5 + $0x1f0] sm:$0xff]
        %v7282 = vld [vmem:[#allocation5 + $0x1f8] sm:$0xff]
        %7284 = vset.pattern.permute.xlu0 0
        %7285 = vperm.xlu0 %7284, %v5939
        %v7286 = vpop.permute.xlu0 %7285
        %7289 = vset.pattern.permute.xlu0 0
        %7290 = vperm.xlu0 %7289, %v5941
        %v7291 = vpop.permute.xlu0 %7290
        %7294 = vset.pattern.permute.xlu0 0
        %7295 = vperm.xlu0 %7294, %v5943
        %v7296 = vpop.permute.xlu0 %7295
        %7299 = vset.pattern.permute.xlu0 0
        %7300 = vperm.xlu0 %7299, %v5945
        %v7301 = vpop.permute.xlu0 %7300
        %7304 = vset.pattern.permute.xlu0 0
        %7305 = vperm.xlu0 %7304, %v5947
        %v7306 = vpop.permute.xlu0 %7305
        %7309 = vset.pattern.permute.xlu0 0
        %7310 = vperm.xlu0 %7309, %v5949
        %v7311 = vpop.permute.xlu0 %7310
        %7314 = vset.pattern.permute.xlu0 0
        %7315 = vperm.xlu0 %7314, %v5951
        %v7316 = vpop.permute.xlu0 %7315
        %7319 = vset.pattern.permute.xlu0 0
        %7320 = vperm.xlu0 %7319, %v5953
        %v7321 = vpop.permute.xlu0 %7320
        %7324 = vset.pattern.permute.xlu0 0
        %7325 = vperm.xlu0 %7324, %v5955
        %v7326 = vpop.permute.xlu0 %7325
        %7329 = vset.pattern.permute.xlu0 0
        %7330 = vperm.xlu0 %7329, %v5957
        %v7331 = vpop.permute.xlu0 %7330
        %7334 = vset.pattern.permute.xlu0 0
        %7335 = vperm.xlu0 %7334, %v5959
        %v7336 = vpop.permute.xlu0 %7335
        %7339 = vset.pattern.permute.xlu0 0
        %7340 = vperm.xlu0 %7339, %v5961
        %v7341 = vpop.permute.xlu0 %7340
        %7344 = vset.pattern.permute.xlu0 0
        %7345 = vperm.xlu0 %7344, %v5963
        %v7346 = vpop.permute.xlu0 %7345
        %7349 = vset.pattern.permute.xlu0 0
        %7350 = vperm.xlu0 %7349, %v5965
        %v7351 = vpop.permute.xlu0 %7350
        %7354 = vset.pattern.permute.xlu0 0
        %7355 = vperm.xlu0 %7354, %v5967
        %v7356 = vpop.permute.xlu0 %7355
        %7359 = vset.pattern.permute.xlu0 0
        %7360 = vperm.xlu0 %7359, %v5969
        %v7361 = vpop.permute.xlu0 %7360
        %7364 = vset.pattern.permute.xlu0 0
        %7365 = vperm.xlu0 %7364, %v5971
        %v7366 = vpop.permute.xlu0 %7365
        %7369 = vset.pattern.permute.xlu0 0
        %7370 = vperm.xlu0 %7369, %v5973
        %v7371 = vpop.permute.xlu0 %7370
        %7374 = vset.pattern.permute.xlu0 0
        %7375 = vperm.xlu0 %7374, %v5975
        %v7376 = vpop.permute.xlu0 %7375
        %7379 = vset.pattern.permute.xlu0 0
        %7380 = vperm.xlu0 %7379, %v5977
        %v7381 = vpop.permute.xlu0 %7380
        %7384 = vset.pattern.permute.xlu0 0
        %7385 = vperm.xlu0 %7384, %v5979
        %v7386 = vpop.permute.xlu0 %7385
        %7389 = vset.pattern.permute.xlu0 0
        %7390 = vperm.xlu0 %7389, %v5981
        %v7391 = vpop.permute.xlu0 %7390
        %7394 = vset.pattern.permute.xlu0 0
        %7395 = vperm.xlu0 %7394, %v5983
        %v7396 = vpop.permute.xlu0 %7395
        %7399 = vset.pattern.permute.xlu0 0
        %7400 = vperm.xlu0 %7399, %v5985
        %v7401 = vpop.permute.xlu0 %7400
        %7404 = vset.pattern.permute.xlu0 0
        %7405 = vperm.xlu0 %7404, %v5987
        %v7406 = vpop.permute.xlu0 %7405
        %7409 = vset.pattern.permute.xlu0 0
        %7410 = vperm.xlu0 %7409, %v5989
        %v7411 = vpop.permute.xlu0 %7410
        %7414 = vset.pattern.permute.xlu0 0
        %7415 = vperm.xlu0 %7414, %v5991
        %v7416 = vpop.permute.xlu0 %7415
        %7419 = vset.pattern.permute.xlu0 0
        %7420 = vperm.xlu0 %7419, %v5993
        %v7421 = vpop.permute.xlu0 %7420
        %7424 = vset.pattern.permute.xlu0 0
        %7425 = vperm.xlu0 %7424, %v5995
        %v7426 = vpop.permute.xlu0 %7425
        %7429 = vset.pattern.permute.xlu0 0
        %7430 = vperm.xlu0 %7429, %v5997
        %v7431 = vpop.permute.xlu0 %7430
        %7434 = vset.pattern.permute.xlu0 0
        %7435 = vperm.xlu0 %7434, %v5999
        %v7436 = vpop.permute.xlu0 %7435
        %7439 = vset.pattern.permute.xlu0 0
        %7440 = vperm.xlu0 %7439, %v6001
        %v7441 = vpop.permute.xlu0 %7440
        %7444 = vset.pattern.permute.xlu0 0
        %7445 = vperm.xlu0 %7444, %v6003
        %v7446 = vpop.permute.xlu0 %7445
        %7449 = vset.pattern.permute.xlu0 0
        %7450 = vperm.xlu0 %7449, %v6005
        %v7451 = vpop.permute.xlu0 %7450
        %7454 = vset.pattern.permute.xlu0 0
        %7455 = vperm.xlu0 %7454, %v6007
        %v7456 = vpop.permute.xlu0 %7455
        %7459 = vset.pattern.permute.xlu0 0
        %7460 = vperm.xlu0 %7459, %v6009
        %v7461 = vpop.permute.xlu0 %7460
        %7464 = vset.pattern.permute.xlu0 0
        %7465 = vperm.xlu0 %7464, %v6011
        %v7466 = vpop.permute.xlu0 %7465
        %7469 = vset.pattern.permute.xlu0 0
        %7470 = vperm.xlu0 %7469, %v6013
        %v7471 = vpop.permute.xlu0 %7470
        %7474 = vset.pattern.permute.xlu0 0
        %7475 = vperm.xlu0 %7474, %v6015
        %v7476 = vpop.permute.xlu0 %7475
        %7479 = vset.pattern.permute.xlu0 0
        %7480 = vperm.xlu0 %7479, %v6017
        %v7481 = vpop.permute.xlu0 %7480
        %7484 = vset.pattern.permute.xlu0 0
        %7485 = vperm.xlu0 %7484, %v6019
        %v7486 = vpop.permute.xlu0 %7485
        %7489 = vset.pattern.permute.xlu0 0
        %7490 = vperm.xlu0 %7489, %v6021
        %v7491 = vpop.permute.xlu0 %7490
        %7494 = vset.pattern.permute.xlu0 0
        %7495 = vperm.xlu0 %7494, %v6023
        %v7496 = vpop.permute.xlu0 %7495
        %7499 = vset.pattern.permute.xlu0 0
        %7500 = vperm.xlu0 %7499, %v6025
        %v7501 = vpop.permute.xlu0 %7500
        %7504 = vset.pattern.permute.xlu0 0
        %7505 = vperm.xlu0 %7504, %v6027
        %v7506 = vpop.permute.xlu0 %7505
        %7509 = vset.pattern.permute.xlu0 0
        %7510 = vperm.xlu0 %7509, %v6029
        %v7511 = vpop.permute.xlu0 %7510
        %7514 = vset.pattern.permute.xlu0 0
        %7515 = vperm.xlu0 %7514, %v6031
        %v7516 = vpop.permute.xlu0 %7515
        %7519 = vset.pattern.permute.xlu0 0
        %7520 = vperm.xlu0 %7519, %v6033
        %v7521 = vpop.permute.xlu0 %7520
        %7524 = vset.pattern.permute.xlu0 0
        %7525 = vperm.xlu0 %7524, %v6035
        %v7526 = vpop.permute.xlu0 %7525
        %7529 = vset.pattern.permute.xlu0 0
        %7530 = vperm.xlu0 %7529, %v6037
        %v7531 = vpop.permute.xlu0 %7530
        %7534 = vset.pattern.permute.xlu0 0
        %7535 = vperm.xlu0 %7534, %v6039
        %v7536 = vpop.permute.xlu0 %7535
        %7539 = vset.pattern.permute.xlu0 0
        %7540 = vperm.xlu0 %7539, %v6041
        %v7541 = vpop.permute.xlu0 %7540
        %7544 = vset.pattern.permute.xlu0 0
        %7545 = vperm.xlu0 %7544, %v6043
        %v7546 = vpop.permute.xlu0 %7545
        %7549 = vset.pattern.permute.xlu0 0
        %7550 = vperm.xlu0 %7549, %v6045
        %v7551 = vpop.permute.xlu0 %7550
        %7554 = vset.pattern.permute.xlu0 0
        %7555 = vperm.xlu0 %7554, %v6047
        %v7556 = vpop.permute.xlu0 %7555
        %7559 = vset.pattern.permute.xlu0 0
        %7560 = vperm.xlu0 %7559, %v6049
        %v7561 = vpop.permute.xlu0 %7560
        %7564 = vset.pattern.permute.xlu0 0
        %7565 = vperm.xlu0 %7564, %v6051
        %v7566 = vpop.permute.xlu0 %7565
        %7569 = vset.pattern.permute.xlu0 0
        %7570 = vperm.xlu0 %7569, %v6053
        %v7571 = vpop.permute.xlu0 %7570
        %7574 = vset.pattern.permute.xlu0 0
        %7575 = vperm.xlu0 %7574, %v6055
        %v7576 = vpop.permute.xlu0 %7575
        %7579 = vset.pattern.permute.xlu0 0
        %7580 = vperm.xlu0 %7579, %v6057
        %v7581 = vpop.permute.xlu0 %7580
        %7584 = vset.pattern.permute.xlu0 0
        %7585 = vperm.xlu0 %7584, %v6059
        %v7586 = vpop.permute.xlu0 %7585
        %7589 = vset.pattern.permute.xlu0 0
        %7590 = vperm.xlu0 %7589, %v6061
        %v7591 = vpop.permute.xlu0 %7590
        %7594 = vset.pattern.permute.xlu0 0
        %7595 = vperm.xlu0 %7594, %v6063
        %v7596 = vpop.permute.xlu0 %7595
        %7599 = vset.pattern.permute.xlu0 0
        %7600 = vperm.xlu0 %7599, %v6065
        %v7601 = vpop.permute.xlu0 %7600
        %v7603 = vmul.f32 %v7286, %v7219
        %v7604 = vmul.f32 %v7291, %v7220
        %v7605 = vmul.f32 %v7296, %v7221
        %v7606 = vmul.f32 %v7301, %v7222
        %v7607 = vmul.f32 %v7306, %v7223
        %v7608 = vmul.f32 %v7311, %v7224
        %v7609 = vmul.f32 %v7316, %v7225
        %v7610 = vmul.f32 %v7321, %v7226
        %v7611 = vmul.f32 %v7326, %v7227
        %v7612 = vmul.f32 %v7331, %v7228
        %v7613 = vmul.f32 %v7336, %v7229
        %v7614 = vmul.f32 %v7341, %v7230
        %v7615 = vmul.f32 %v7346, %v7231
        %v7616 = vmul.f32 %v7351, %v7232
        %v7617 = vmul.f32 %v7356, %v7233
        %v7618 = vmul.f32 %v7361, %v7234
        %v7619 = vmul.f32 %v7366, %v7235
        %v7620 = vmul.f32 %v7371, %v7236
        %v7621 = vmul.f32 %v7376, %v7237
        %v7622 = vmul.f32 %v7381, %v7238
        %v7623 = vmul.f32 %v7386, %v7239
        %v7624 = vmul.f32 %v7391, %v7240
        %v7625 = vmul.f32 %v7396, %v7241
        %v7626 = vmul.f32 %v7401, %v7242
        %v7627 = vmul.f32 %v7406, %v7243
        %v7628 = vmul.f32 %v7411, %v7244
        %v7629 = vmul.f32 %v7416, %v7245
        %v7630 = vmul.f32 %v7421, %v7246
        %v7631 = vmul.f32 %v7426, %v7247
        %v7632 = vmul.f32 %v7431, %v7248
        %v7633 = vmul.f32 %v7436, %v7249
        %v7634 = vmul.f32 %v7441, %v7250
        %v7635 = vmul.f32 %v7446, %v7251
        %v7636 = vmul.f32 %v7451, %v7252
        %v7637 = vmul.f32 %v7456, %v7253
        %v7638 = vmul.f32 %v7461, %v7254
        %v7639 = vmul.f32 %v7466, %v7255
        %v7640 = vmul.f32 %v7471, %v7256
        %v7641 = vmul.f32 %v7476, %v7257
        %v7642 = vmul.f32 %v7481, %v7258
        %v7643 = vmul.f32 %v7486, %v7259
        %v7644 = vmul.f32 %v7491, %v7260
        %v7645 = vmul.f32 %v7496, %v7261
        %v7646 = vmul.f32 %v7501, %v7262
        %v7647 = vmul.f32 %v7506, %v7263
        %v7648 = vmul.f32 %v7511, %v7264
        %v7649 = vmul.f32 %v7516, %v7265
        %v7650 = vmul.f32 %v7521, %v7266
        %v7651 = vmul.f32 %v7526, %v7267
        %v7652 = vmul.f32 %v7531, %v7268
        %v7653 = vmul.f32 %v7536, %v7269
        %v7654 = vmul.f32 %v7541, %v7270
        %v7655 = vmul.f32 %v7546, %v7271
        %v7656 = vmul.f32 %v7551, %v7272
        %v7657 = vmul.f32 %v7556, %v7273
        %v7658 = vmul.f32 %v7561, %v7274
        %v7659 = vmul.f32 %v7566, %v7275
        %v7660 = vmul.f32 %v7571, %v7276
        %v7661 = vmul.f32 %v7576, %v7277
        %v7662 = vmul.f32 %v7581, %v7278
        %v7663 = vmul.f32 %v7586, %v7279
        %v7664 = vmul.f32 %v7591, %v7280
        %v7665 = vmul.f32 %v7596, %v7281
        %v7666 = vmul.f32 %v7601, %v7282
        %7667 = vmatprep.subr.mxu0 0.0
        %7668 = vmatpush1.msra.mxu0 %v4428
        %7669 = vmatprep.subr.mxu0 0.0
        %7670 = vmatpush1.msra.mxu0 %v4429
        %7671 = vmatprep.subr.mxu0 0.0
        %7672 = vmatpush1.msra.mxu0 %v4430
        %7673 = vmatprep.subr.mxu0 0.0
        %7674 = vmatpush1.msra.mxu0 %v4431
        %7675 = vmatprep.subr.mxu0 0.0
        %7676 = vmatpush1.msra.mxu0 %v4432
        %7677 = vmatprep.subr.mxu0 0.0
        %7678 = vmatpush1.msra.mxu0 %v4433
        %7679 = vmatprep.subr.mxu0 0.0
        %7680 = vmatpush1.msra.mxu0 %v4434
        %7681 = vmatprep.subr.mxu0 0.0
        %7682 = vmatpush1.msra.mxu0 %v4435
        %7683 = vmatprep.subr.mxu0 0.0
        %7684 = vmatpush1.msra.mxu0 %v4436
        %7685 = vmatprep.subr.mxu0 0.0
        %7686 = vmatpush1.msra.mxu0 %v4437
        %7687 = vmatprep.subr.mxu0 0.0
        %7688 = vmatpush1.msra.mxu0 %v4438
        %7689 = vmatprep.subr.mxu0 0.0
        %7690 = vmatpush1.msra.mxu0 %v4439
        %7691 = vmatprep.subr.mxu0 0.0
        %7692 = vmatpush1.msra.mxu0 %v4440
        %7693 = vmatprep.subr.mxu0 0.0
        %7694 = vmatpush1.msra.mxu0 %v4441
        %7695 = vmatprep.subr.mxu0 0.0
        %7696 = vmatpush1.msra.mxu0 %v4442
        %7697 = vmatprep.subr.mxu0 0.0
        %7698 = vmatpush1.msra.mxu0 %v4443
        %7699 = vmatprep.subr.mxu0 0.0
        %7700 = vmatpush1.msra.mxu0 %v4444
        %7701 = vmatprep.subr.mxu0 0.0
        %7702 = vmatpush1.msra.mxu0 %v4445
        %7703 = vmatprep.subr.mxu0 0.0
        %7704 = vmatpush1.msra.mxu0 %v4446
        %7705 = vmatprep.subr.mxu0 0.0
        %7706 = vmatpush1.msra.mxu0 %v4447
        %7707 = vmatprep.subr.mxu0 0.0
        %7708 = vmatpush1.msra.mxu0 %v4448
        %7709 = vmatprep.subr.mxu0 0.0
        %7710 = vmatpush1.msra.mxu0 %v4449
        %7711 = vmatprep.subr.mxu0 0.0
        %7712 = vmatpush1.msra.mxu0 %v4450
        %7713 = vmatprep.subr.mxu0 0.0
        %7714 = vmatpush1.msra.mxu0 %v4451
        %7715 = vmatprep.subr.mxu0 0.0
        %7716 = vmatpush1.msra.mxu0 %v4452
        %7717 = vmatprep.subr.mxu0 0.0
        %7718 = vmatpush1.msra.mxu0 %v4453
        %7719 = vmatprep.subr.mxu0 0.0
        %7720 = vmatpush1.msra.mxu0 %v4454
        %7721 = vmatprep.subr.mxu0 0.0
        %7722 = vmatpush1.msra.mxu0 %v4455
        %7723 = vmatprep.subr.mxu0 0.0
        %7724 = vmatpush1.msra.mxu0 %v4456
        %7725 = vmatprep.subr.mxu0 0.0
        %7726 = vmatpush1.msra.mxu0 %v4457
        %7727 = vmatprep.subr.mxu0 0.0
        %7728 = vmatpush1.msra.mxu0 %v4458
        %7729 = vmatprep.subr.mxu0 0.0
        %7730 = vmatpush1.msra.mxu0 %v4459
        %7731 = vmatprep.mubr.f32.mxu0 %v6517
        %7732 = vmatmul.mubr.f32.gmra.mrb[0].mxu0 %v6515
        %v7733 = vpop.f32.mrb[0].mxu0
        %v7734 = vadd.f32 0.0, %v7733
        %v7735 = vpop.f32.mrb[0].mxu0
        %7736 = vmatprep.mubr.f32.mxu0 %v6521
        %7737 = vmatmul.mubr.f32.gmra.mrb[0].mxu0 %v6519
        %v7738 = vpop.f32.mrb[0].mxu0
        %v7739 = vadd.f32 0.0, %v7738
        %v7740 = vpop.f32.mrb[0].mxu0
        %7741 = vmatprep.mubr.f32.mxu0 %v6525
        %7742 = vmatmul.mubr.f32.gmra.mrb[0].mxu0 %v6523
        %v7743 = vpop.f32.mrb[0].mxu0
        %v7744 = vadd.f32 0.0, %v7743
        %v7745 = vpop.f32.mrb[0].mxu0
        %7746 = vmatprep.mubr.f32.mxu0 %v6529
        %7747 = vmatmul.mubr.f32.gmra.mrb[0].mxu0 %v6527
        %v7748 = vpop.f32.mrb[0].mxu0
        %v7749 = vadd.f32 0.0, %v7748
        %v7750 = vpop.f32.mrb[0].mxu0
        %7751 = vmatprep.mubr.f32.mxu0 %v6533
        %7752 = vmatmul.mubr.f32.gmra.mrb[0].mxu0 %v6531
        %v7753 = vpop.f32.mrb[0].mxu0
        %v7754 = vadd.f32 0.0, %v7753
        %v7755 = vpop.f32.mrb[0].mxu0
        %7756 = vmatprep.mubr.f32.mxu0 %v6537
        %7757 = vmatmul.mubr.f32.gmra.mrb[0].mxu0 %v6535
        %v7758 = vpop.f32.mrb[0].mxu0
        %v7759 = vadd.f32 0.0, %v7758
        %v7760 = vpop.f32.mrb[0].mxu0
        %7761 = vmatprep.mubr.f32.mxu0 %v6541
        %7762 = vmatmul.mubr.f32.gmra.mrb[0].mxu0 %v6539
        %v7763 = vpop.f32.mrb[0].mxu0
        %v7764 = vadd.f32 0.0, %v7763
        %v7765 = vpop.f32.mrb[0].mxu0
        %7766 = vmatprep.mubr.f32.mxu0 %v6545
        %7767 = vmatmul.mubr.f32.gmra.mrb[0].mxu0 %v6543
        %v7768 = vpop.f32.mrb[0].mxu0
        %v7769 = vadd.f32 0.0, %v7768
        %v7770 = vpop.f32.mrb[0].mxu0
        %7771 = vmatprep.mubr.f32.mxu0 %v6549
        %7772 = vmatmul.mubr.f32.gmra.mrb[0].mxu0 %v6547
        %v7773 = vpop.f32.mrb[0].mxu0
        %v7774 = vadd.f32 0.0, %v7773
        %v7775 = vpop.f32.mrb[0].mxu0
        %7776 = vmatprep.mubr.f32.mxu0 %v6553
        %7777 = vmatmul.mubr.f32.gmra.mrb[0].mxu0 %v6551
        %v7778 = vpop.f32.mrb[0].mxu0
        %v7779 = vadd.f32 0.0, %v7778
        %v7780 = vpop.f32.mrb[0].mxu0
        %7781 = vmatprep.mubr.f32.mxu0 %v6557
        %7782 = vmatmul.mubr.f32.gmra.mrb[0].mxu0 %v6555
        %v7783 = vpop.f32.mrb[0].mxu0
        %v7784 = vadd.f32 0.0, %v7783
        %v7785 = vpop.f32.mrb[0].mxu0
        %7786 = vmatprep.mubr.f32.mxu0 %v6561
        %7787 = vmatmul.mubr.f32.gmra.mrb[0].mxu0 %v6559
        %v7788 = vpop.f32.mrb[0].mxu0
        %v7789 = vadd.f32 0.0, %v7788
        %v7790 = vpop.f32.mrb[0].mxu0
        %7791 = vmatprep.mubr.f32.mxu0 %v6565
        %7792 = vmatmul.mubr.f32.gmra.mrb[0].mxu0 %v6563
        %v7793 = vpop.f32.mrb[0].mxu0
        %v7794 = vadd.f32 0.0, %v7793
        %v7795 = vpop.f32.mrb[0].mxu0
        %7796 = vmatprep.mubr.f32.mxu0 %v6569
        %7797 = vmatmul.mubr.f32.gmra.mrb[0].mxu0 %v6567
        %v7798 = vpop.f32.mrb[0].mxu0
        %v7799 = vadd.f32 0.0, %v7798
        %v7800 = vpop.f32.mrb[0].mxu0
        %7801 = vmatprep.mubr.f32.mxu0 %v6573
        %7802 = vmatmul.mubr.f32.gmra.mrb[0].mxu0 %v6571
        %v7803 = vpop.f32.mrb[0].mxu0
        %v7804 = vadd.f32 0.0, %v7803
        %v7805 = vpop.f32.mrb[0].mxu0
        %7806 = vmatprep.mubr.f32.mxu0 %v6577
        %7807 = vmatmul.mubr.f32.gmra.mrb[0].mxu0 %v6575
        %v7808 = vpop.f32.mrb[0].mxu0
        %v7809 = vadd.f32 0.0, %v7808
        %v7810 = vpop.f32.mrb[0].mxu0
        %7811 = vmatprep.mubr.f32.mxu0 %v6581
        %7812 = vmatmul.mubr.f32.gmra.mrb[0].mxu0 %v6579
        %v7813 = vpop.f32.mrb[0].mxu0
        %v7814 = vadd.f32 0.0, %v7813
        %v7815 = vpop.f32.mrb[0].mxu0
        %7816 = vmatprep.mubr.f32.mxu0 %v6585
        %7817 = vmatmul.mubr.f32.gmra.mrb[0].mxu0 %v6583
        %v7818 = vpop.f32.mrb[0].mxu0
        %v7819 = vadd.f32 0.0, %v7818
        %v7820 = vpop.f32.mrb[0].mxu0
        %7821 = vmatprep.mubr.f32.mxu0 %v6589
        %7822 = vmatmul.mubr.f32.gmra.mrb[0].mxu0 %v6587
        %v7823 = vpop.f32.mrb[0].mxu0
        %v7824 = vadd.f32 0.0, %v7823
        %v7825 = vpop.f32.mrb[0].mxu0
        %7826 = vmatprep.mubr.f32.mxu0 %v6593
        %7827 = vmatmul.mubr.f32.gmra.mrb[0].mxu0 %v6591
        %v7828 = vpop.f32.mrb[0].mxu0
        %v7829 = vadd.f32 0.0, %v7828
        %v7830 = vpop.f32.mrb[0].mxu0
        %7831 = vmatprep.mubr.f32.mxu0 %v6597
        %7832 = vmatmul.mubr.f32.gmra.mrb[0].mxu0 %v6595
        %v7833 = vpop.f32.mrb[0].mxu0
        %v7834 = vadd.f32 0.0, %v7833
        %v7835 = vpop.f32.mrb[0].mxu0
        %7836 = vmatprep.mubr.f32.mxu0 %v6601
        %7837 = vmatmul.mubr.f32.gmra.mrb[0].mxu0 %v6599
        %v7838 = vpop.f32.mrb[0].mxu0
        %v7839 = vadd.f32 0.0, %v7838
        %v7840 = vpop.f32.mrb[0].mxu0
        %7841 = vmatprep.mubr.f32.mxu0 %v6605
        %7842 = vmatmul.mubr.f32.gmra.mrb[0].mxu0 %v6603
        %v7843 = vpop.f32.mrb[0].mxu0
        %v7844 = vadd.f32 0.0, %v7843
        %v7845 = vpop.f32.mrb[0].mxu0
        %7846 = vmatprep.mubr.f32.mxu0 %v6609
        %7847 = vmatmul.mubr.f32.gmra.mrb[0].mxu0 %v6607
        %v7848 = vpop.f32.mrb[0].mxu0
        %v7849 = vadd.f32 0.0, %v7848
        %v7850 = vpop.f32.mrb[0].mxu0
        %7851 = vmatprep.mubr.f32.mxu0 %v6613
        %7852 = vmatmul.mubr.f32.gmra.mrb[0].mxu0 %v6611
        %v7853 = vpop.f32.mrb[0].mxu0
        %v7854 = vadd.f32 0.0, %v7853
        %v7855 = vpop.f32.mrb[0].mxu0
        %7856 = vmatprep.mubr.f32.mxu0 %v6617
        %7857 = vmatmul.mubr.f32.gmra.mrb[0].mxu0 %v6615
        %v7858 = vpop.f32.mrb[0].mxu0
        %v7859 = vadd.f32 0.0, %v7858
        %v7860 = vpop.f32.mrb[0].mxu0
        %7861 = vmatprep.mubr.f32.mxu0 %v6621
        %7862 = vmatmul.mubr.f32.gmra.mrb[0].mxu0 %v6619
        %v7863 = vpop.f32.mrb[0].mxu0
        %v7864 = vadd.f32 0.0, %v7863
        %v7865 = vpop.f32.mrb[0].mxu0
        %7866 = vmatprep.mubr.f32.mxu0 %v6625
        %7867 = vmatmul.mubr.f32.gmra.mrb[0].mxu0 %v6623
        %v7868 = vpop.f32.mrb[0].mxu0
        %v7869 = vadd.f32 0.0, %v7868
        %v7870 = vpop.f32.mrb[0].mxu0
        %7871 = vmatprep.mubr.f32.mxu0 %v6629
        %7872 = vmatmul.mubr.f32.gmra.mrb[0].mxu0 %v6627
        %v7873 = vpop.f32.mrb[0].mxu0
        %v7874 = vadd.f32 0.0, %v7873
        %v7875 = vpop.f32.mrb[0].mxu0
        %7876 = vmatprep.mubr.f32.mxu0 %v6633
        %7877 = vmatmul.mubr.f32.gmra.mrb[0].mxu0 %v6631
        %v7878 = vpop.f32.mrb[0].mxu0
        %v7879 = vadd.f32 0.0, %v7878
        %v7880 = vpop.f32.mrb[0].mxu0
        %7881 = vmatprep.mubr.f32.mxu0 %v6637
        %7882 = vmatmul.mubr.f32.gmra.mrb[0].mxu0 %v6635
        %v7883 = vpop.f32.mrb[0].mxu0
        %v7884 = vadd.f32 0.0, %v7883
        %v7885 = vpop.f32.mrb[0].mxu0
        %7886 = vmatprep.mubr.f32.mxu0 %v6641
        %7887 = vmatmul.mubr.f32.gmra.mrb[0].mxu0 %v6639
        %v7888 = vpop.f32.mrb[0].mxu0
        %v7889 = vadd.f32 0.0, %v7888
        %v7890 = vpop.f32.mrb[0].mxu0
        %7891 = vmatprep.mubr.f32.mxu0 %v6645
        %7892 = vmatmul.mubr.f32.gmra.mrb[0].mxu0 %v6643
        %v7893 = vpop.f32.mrb[0].mxu0
        %v7894 = vadd.f32 0.0, %v7893
        %v7895 = vpop.f32.mrb[0].mxu0
        %7896 = vmatprep.mubr.f32.mxu0 %v6649
        %7897 = vmatmul.mubr.f32.gmra.mrb[0].mxu0 %v6647
        %v7898 = vpop.f32.mrb[0].mxu0
        %v7899 = vadd.f32 0.0, %v7898
        %v7900 = vpop.f32.mrb[0].mxu0
        %7901 = vmatprep.mubr.f32.mxu0 %v6653
        %7902 = vmatmul.mubr.f32.gmra.mrb[0].mxu0 %v6651
        %v7903 = vpop.f32.mrb[0].mxu0
        %v7904 = vadd.f32 0.0, %v7903
        %v7905 = vpop.f32.mrb[0].mxu0
        %7906 = vmatprep.mubr.f32.mxu0 %v6657
        %7907 = vmatmul.mubr.f32.gmra.mrb[0].mxu0 %v6655
        %v7908 = vpop.f32.mrb[0].mxu0
        %v7909 = vadd.f32 0.0, %v7908
        %v7910 = vpop.f32.mrb[0].mxu0
        %7911 = vmatprep.mubr.f32.mxu0 %v6661
        %7912 = vmatmul.mubr.f32.gmra.mrb[0].mxu0 %v6659
        %v7913 = vpop.f32.mrb[0].mxu0
        %v7914 = vadd.f32 0.0, %v7913
        %v7915 = vpop.f32.mrb[0].mxu0
        %7916 = vmatprep.mubr.f32.mxu0 %v6665
        %7917 = vmatmul.mubr.f32.gmra.mrb[0].mxu0 %v6663
        %v7918 = vpop.f32.mrb[0].mxu0
        %v7919 = vadd.f32 0.0, %v7918
        %v7920 = vpop.f32.mrb[0].mxu0
        %7921 = vmatprep.mubr.f32.mxu0 %v6669
        %7922 = vmatmul.mubr.f32.gmra.mrb[0].mxu0 %v6667
        %v7923 = vpop.f32.mrb[0].mxu0
        %v7924 = vadd.f32 0.0, %v7923
        %v7925 = vpop.f32.mrb[0].mxu0
        %7926 = vmatprep.mubr.f32.mxu0 %v6673
        %7927 = vmatmul.mubr.f32.gmra.mrb[0].mxu0 %v6671
        %v7928 = vpop.f32.mrb[0].mxu0
        %v7929 = vadd.f32 0.0, %v7928
        %v7930 = vpop.f32.mrb[0].mxu0
        %7931 = vmatprep.mubr.f32.mxu0 %v6677
        %7932 = vmatmul.mubr.f32.gmra.mrb[0].mxu0 %v6675
        %v7933 = vpop.f32.mrb[0].mxu0
        %v7934 = vadd.f32 0.0, %v7933
        %v7935 = vpop.f32.mrb[0].mxu0
        %7936 = vmatprep.mubr.f32.mxu0 %v6681
        %7937 = vmatmul.mubr.f32.gmra.mrb[0].mxu0 %v6679
        %v7938 = vpop.f32.mrb[0].mxu0
        %v7939 = vadd.f32 0.0, %v7938
        %v7940 = vpop.f32.mrb[0].mxu0
        %7941 = vmatprep.mubr.f32.mxu0 %v6685
        %7942 = vmatmul.mubr.f32.gmra.mrb[0].mxu0 %v6683
        %v7943 = vpop.f32.mrb[0].mxu0
        %v7944 = vadd.f32 0.0, %v7943
        %v7945 = vpop.f32.mrb[0].mxu0
        %7946 = vmatprep.mubr.f32.mxu0 %v6689
        %7947 = vmatmul.mubr.f32.gmra.mrb[0].mxu0 %v6687
        %v7948 = vpop.f32.mrb[0].mxu0
        %v7949 = vadd.f32 0.0, %v7948
        %v7950 = vpop.f32.mrb[0].mxu0
        %7951 = vmatprep.mubr.f32.mxu0 %v6693
        %7952 = vmatmul.mubr.f32.gmra.mrb[0].mxu0 %v6691
        %v7953 = vpop.f32.mrb[0].mxu0
        %v7954 = vadd.f32 0.0, %v7953
        %v7955 = vpop.f32.mrb[0].mxu0
        %7956 = vmatprep.mubr.f32.mxu0 %v6697
        %7957 = vmatmul.mubr.f32.gmra.mrb[0].mxu0 %v6695
        %v7958 = vpop.f32.mrb[0].mxu0
        %v7959 = vadd.f32 0.0, %v7958
        %v7960 = vpop.f32.mrb[0].mxu0
        %7961 = vmatprep.mubr.f32.mxu0 %v6701
        %7962 = vmatmul.mubr.f32.gmra.mrb[0].mxu0 %v6699
        %v7963 = vpop.f32.mrb[0].mxu0
        %v7964 = vadd.f32 0.0, %v7963
        %v7965 = vpop.f32.mrb[0].mxu0
        %7966 = vmatprep.mubr.f32.mxu0 %v6705
        %7967 = vmatmul.mubr.f32.gmra.mrb[0].mxu0 %v6703
        %v7968 = vpop.f32.mrb[0].mxu0
        %v7969 = vadd.f32 0.0, %v7968
        %v7970 = vpop.f32.mrb[0].mxu0
        %7971 = vmatprep.mubr.f32.mxu0 %v6709
        %7972 = vmatmul.mubr.f32.gmra.mrb[0].mxu0 %v6707
        %v7973 = vpop.f32.mrb[0].mxu0
        %v7974 = vadd.f32 0.0, %v7973
        %v7975 = vpop.f32.mrb[0].mxu0
        %7976 = vmatprep.mubr.f32.mxu0 %v6713
        %7977 = vmatmul.mubr.f32.gmra.mrb[0].mxu0 %v6711
        %v7978 = vpop.f32.mrb[0].mxu0
        %v7979 = vadd.f32 0.0, %v7978
        %v7980 = vpop.f32.mrb[0].mxu0
        %7981 = vmatprep.mubr.f32.mxu0 %v6717
        %7982 = vmatmul.mubr.f32.gmra.mrb[0].mxu0 %v6715
        %v7983 = vpop.f32.mrb[0].mxu0
        %v7984 = vadd.f32 0.0, %v7983
        %v7985 = vpop.f32.mrb[0].mxu0
        %7986 = vmatprep.mubr.f32.mxu0 %v6721
        %7987 = vmatmul.mubr.f32.gmra.mrb[0].mxu0 %v6719
        %v7988 = vpop.f32.mrb[0].mxu0
        %v7989 = vadd.f32 0.0, %v7988
        %v7990 = vpop.f32.mrb[0].mxu0
        %7991 = vmatprep.mubr.f32.mxu0 %v6725
        %7992 = vmatmul.mubr.f32.gmra.mrb[0].mxu0 %v6723
        %v7993 = vpop.f32.mrb[0].mxu0
        %v7994 = vadd.f32 0.0, %v7993
        %v7995 = vpop.f32.mrb[0].mxu0
        %7996 = vmatprep.mubr.f32.mxu0 %v6729
        %7997 = vmatmul.mubr.f32.gmra.mrb[0].mxu0 %v6727
        %v7998 = vpop.f32.mrb[0].mxu0
        %v7999 = vadd.f32 0.0, %v7998
        %v8000 = vpop.f32.mrb[0].mxu0
        %8001 = vmatprep.mubr.f32.mxu0 %v6733
        %8002 = vmatmul.mubr.f32.gmra.mrb[0].mxu0 %v6731
        %v8003 = vpop.f32.mrb[0].mxu0
        %v8004 = vadd.f32 0.0, %v8003
        %v8005 = vpop.f32.mrb[0].mxu0
        %8006 = vmatprep.mubr.f32.mxu0 %v6737
        %8007 = vmatmul.mubr.f32.gmra.mrb[0].mxu0 %v6735
        %v8008 = vpop.f32.mrb[0].mxu0
        %v8009 = vadd.f32 0.0, %v8008
        %v8010 = vpop.f32.mrb[0].mxu0
        %8011 = vmatprep.mubr.f32.mxu0 %v6741
        %8012 = vmatmul.mubr.f32.gmra.mrb[0].mxu0 %v6739
        %v8013 = vpop.f32.mrb[0].mxu0
        %v8014 = vadd.f32 0.0, %v8013
        %v8015 = vpop.f32.mrb[0].mxu0
        %8016 = vmatprep.mubr.f32.mxu0 %v6745
        %8017 = vmatmul.mubr.f32.gmra.mrb[0].mxu0 %v6743
        %v8018 = vpop.f32.mrb[0].mxu0
        %v8019 = vadd.f32 0.0, %v8018
        %v8020 = vpop.f32.mrb[0].mxu0
        %8021 = vmatprep.mubr.f32.mxu0 %v6749
        %8022 = vmatmul.mubr.f32.gmra.mrb[0].mxu0 %v6747
        %v8023 = vpop.f32.mrb[0].mxu0
        %v8024 = vadd.f32 0.0, %v8023
        %v8025 = vpop.f32.mrb[0].mxu0
        %8026 = vmatprep.mubr.f32.mxu0 %v6753
        %8027 = vmatmul.mubr.f32.gmra.mrb[0].mxu0 %v6751
        %v8028 = vpop.f32.mrb[0].mxu0
        %v8029 = vadd.f32 0.0, %v8028
        %v8030 = vpop.f32.mrb[0].mxu0
        %8031 = vmatprep.mubr.f32.mxu0 %v6757
        %8032 = vmatmul.mubr.f32.gmra.mrb[0].mxu0 %v6755
        %v8033 = vpop.f32.mrb[0].mxu0
        %v8034 = vadd.f32 0.0, %v8033
        %v8035 = vpop.f32.mrb[0].mxu0
        %8036 = vmatprep.mubr.f32.mxu0 %v6761
        %8037 = vmatmul.mubr.f32.gmra.mrb[0].mxu0 %v6759
        %v8038 = vpop.f32.mrb[0].mxu0
        %v8039 = vadd.f32 0.0, %v8038
        %v8040 = vpop.f32.mrb[0].mxu0
        %8041 = vmatprep.mubr.f32.mxu0 %v6765
        %8042 = vmatmul.mubr.f32.gmra.mrb[0].mxu0 %v6763
        %v8043 = vpop.f32.mrb[0].mxu0
        %v8044 = vadd.f32 0.0, %v8043
        %v8045 = vpop.f32.mrb[0].mxu0
        %8046 = vmatprep.mubr.f32.mxu0 %v6769
        %8047 = vmatmul.mubr.f32.gmra.mrb[0].mxu0 %v6767
        %v8048 = vpop.f32.mrb[0].mxu0
        %v8049 = vadd.f32 0.0, %v8048
        %v8050 = vpop.f32.mrb[0].mxu0
        %8051 = vdwg.mxu0
        %v8052 = vadd.f32 %v7603, %v7734
        %v8053 = vadd.f32 %v7604, %v7739
        %v8054 = vadd.f32 %v7605, %v7744
        %v8055 = vadd.f32 %v7606, %v7749
        %v8056 = vadd.f32 %v7607, %v7754
        %v8057 = vadd.f32 %v7608, %v7759
        %v8058 = vadd.f32 %v7609, %v7764
        %v8059 = vadd.f32 %v7610, %v7769
        %v8060 = vadd.f32 %v7611, %v7774
        %v8061 = vadd.f32 %v7612, %v7779
        %v8062 = vadd.f32 %v7613, %v7784
        %v8063 = vadd.f32 %v7614, %v7789
        %v8064 = vadd.f32 %v7615, %v7794
        %v8065 = vadd.f32 %v7616, %v7799
        %v8066 = vadd.f32 %v7617, %v7804
        %v8067 = vadd.f32 %v7618, %v7809
        %v8068 = vadd.f32 %v7619, %v7814
        %v8069 = vadd.f32 %v7620, %v7819
        %v8070 = vadd.f32 %v7621, %v7824
        %v8071 = vadd.f32 %v7622, %v7829
        %v8072 = vadd.f32 %v7623, %v7834
        %v8073 = vadd.f32 %v7624, %v7839
        %v8074 = vadd.f32 %v7625, %v7844
        %v8075 = vadd.f32 %v7626, %v7849
        %v8076 = vadd.f32 %v7627, %v7854
        %v8077 = vadd.f32 %v7628, %v7859
        %v8078 = vadd.f32 %v7629, %v7864
        %v8079 = vadd.f32 %v7630, %v7869
        %v8080 = vadd.f32 %v7631, %v7874
        %v8081 = vadd.f32 %v7632, %v7879
        %v8082 = vadd.f32 %v7633, %v7884
        %v8083 = vadd.f32 %v7634, %v7889
        %v8084 = vadd.f32 %v7635, %v7894
        %v8085 = vadd.f32 %v7636, %v7899
        %v8086 = vadd.f32 %v7637, %v7904
        %v8087 = vadd.f32 %v7638, %v7909
        %v8088 = vadd.f32 %v7639, %v7914
        %v8089 = vadd.f32 %v7640, %v7919
        %v8090 = vadd.f32 %v7641, %v7924
        %v8091 = vadd.f32 %v7642, %v7929
        %v8092 = vadd.f32 %v7643, %v7934
        %v8093 = vadd.f32 %v7644, %v7939
        %v8094 = vadd.f32 %v7645, %v7944
        %v8095 = vadd.f32 %v7646, %v7949
        %v8096 = vadd.f32 %v7647, %v7954
        %v8097 = vadd.f32 %v7648, %v7959
        %v8098 = vadd.f32 %v7649, %v7964
        %v8099 = vadd.f32 %v7650, %v7969
        %v8100 = vadd.f32 %v7651, %v7974
        %v8101 = vadd.f32 %v7652, %v7979
        %v8102 = vadd.f32 %v7653, %v7984
        %v8103 = vadd.f32 %v7654, %v7989
        %v8104 = vadd.f32 %v7655, %v7994
        %v8105 = vadd.f32 %v7656, %v7999
        %v8106 = vadd.f32 %v7657, %v8004
        %v8107 = vadd.f32 %v7658, %v8009
        %v8108 = vadd.f32 %v7659, %v8014
        %v8109 = vadd.f32 %v7660, %v8019
        %v8110 = vadd.f32 %v7661, %v8024
        %v8111 = vadd.f32 %v7662, %v8029
        %v8112 = vadd.f32 %v7663, %v8034
        %v8113 = vadd.f32 %v7664, %v8039
        %v8114 = vadd.f32 %v7665, %v8044
        %v8115 = vadd.f32 %v7666, %v8049
        %8116 = vst.msk [vmem:[#allocation5] sm:$0xff] %vm4460, %v8052
        %8117 = vst.msk [vmem:[#allocation5 + $0x8] sm:$0xff] %vm4460, %v8053
        %8118 = vst.msk [vmem:[#allocation5 + $0x10] sm:$0xff] %vm4460, %v8054
        %8119 = vst.msk [vmem:[#allocation5 + $0x18] sm:$0xff] %vm4460, %v8055
        %8120 = vst.msk [vmem:[#allocation5 + $0x20] sm:$0xff] %vm4460, %v8056
        %8121 = vst.msk [vmem:[#allocation5 + $0x28] sm:$0xff] %vm4460, %v8057
        %8122 = vst.msk [vmem:[#allocation5 + $0x30] sm:$0xff] %vm4460, %v8058
        %8123 = vst.msk [vmem:[#allocation5 + $0x38] sm:$0xff] %vm4460, %v8059
        %8124 = vst.msk [vmem:[#allocation5 + $0x40] sm:$0xff] %vm4460, %v8060
        %8125 = vst.msk [vmem:[#allocation5 + $0x48] sm:$0xff] %vm4460, %v8061
        %8126 = vst.msk [vmem:[#allocation5 + $0x50] sm:$0xff] %vm4460, %v8062
        %8127 = vst.msk [vmem:[#allocation5 + $0x58] sm:$0xff] %vm4460, %v8063
        %8128 = vst.msk [vmem:[#allocation5 + $0x60] sm:$0xff] %vm4460, %v8064
        %8129 = vst.msk [vmem:[#allocation5 + $0x68] sm:$0xff] %vm4460, %v8065
        %8130 = vst.msk [vmem:[#allocation5 + $0x70] sm:$0xff] %vm4460, %v8066
        %8131 = vst.msk [vmem:[#allocation5 + $0x78] sm:$0xff] %vm4460, %v8067
        %8132 = vst.msk [vmem:[#allocation5 + $0x80] sm:$0xff] %vm4460, %v8068
        %8133 = vst.msk [vmem:[#allocation5 + $0x88] sm:$0xff] %vm4460, %v8069
        %8134 = vst.msk [vmem:[#allocation5 + $0x90] sm:$0xff] %vm4460, %v8070
        %8135 = vst.msk [vmem:[#allocation5 + $0x98] sm:$0xff] %vm4460, %v8071
        %8136 = vst.msk [vmem:[#allocation5 + $0xa0] sm:$0xff] %vm4460, %v8072
        %8137 = vst.msk [vmem:[#allocation5 + $0xa8] sm:$0xff] %vm4460, %v8073
        %8138 = vst.msk [vmem:[#allocation5 + $0xb0] sm:$0xff] %vm4460, %v8074
        %8139 = vst.msk [vmem:[#allocation5 + $0xb8] sm:$0xff] %vm4460, %v8075
        %8140 = vst.msk [vmem:[#allocation5 + $0xc0] sm:$0xff] %vm4460, %v8076
        %8141 = vst.msk [vmem:[#allocation5 + $0xc8] sm:$0xff] %vm4460, %v8077
        %8142 = vst.msk [vmem:[#allocation5 + $0xd0] sm:$0xff] %vm4460, %v8078
        %8143 = vst.msk [vmem:[#allocation5 + $0xd8] sm:$0xff] %vm4460, %v8079
        %8144 = vst.msk [vmem:[#allocation5 + $0xe0] sm:$0xff] %vm4460, %v8080
        %8145 = vst.msk [vmem:[#allocation5 + $0xe8] sm:$0xff] %vm4460, %v8081
        %8146 = vst.msk [vmem:[#allocation5 + $0xf0] sm:$0xff] %vm4460, %v8082
        %8147 = vst.msk [vmem:[#allocation5 + $0xf8] sm:$0xff] %vm4460, %v8083
        %8148 = vst.msk [vmem:[#allocation5 + $0x100] sm:$0xff] %vm4460, %v8084
        %8149 = vst.msk [vmem:[#allocation5 + $0x108] sm:$0xff] %vm4460, %v8085
        %8150 = vst.msk [vmem:[#allocation5 + $0x110] sm:$0xff] %vm4460, %v8086
        %8151 = vst.msk [vmem:[#allocation5 + $0x118] sm:$0xff] %vm4460, %v8087
        %8152 = vst.msk [vmem:[#allocation5 + $0x120] sm:$0xff] %vm4460, %v8088
        %8153 = vst.msk [vmem:[#allocation5 + $0x128] sm:$0xff] %vm4460, %v8089
        %8154 = vst.msk [vmem:[#allocation5 + $0x130] sm:$0xff] %vm4460, %v8090
        %8155 = vst.msk [vmem:[#allocation5 + $0x138] sm:$0xff] %vm4460, %v8091
        %8156 = vst.msk [vmem:[#allocation5 + $0x140] sm:$0xff] %vm4460, %v8092
        %8157 = vst.msk [vmem:[#allocation5 + $0x148] sm:$0xff] %vm4460, %v8093
        %8158 = vst.msk [vmem:[#allocation5 + $0x150] sm:$0xff] %vm4460, %v8094
        %8159 = vst.msk [vmem:[#allocation5 + $0x158] sm:$0xff] %vm4460, %v8095
        %8160 = vst.msk [vmem:[#allocation5 + $0x160] sm:$0xff] %vm4460, %v8096
        %8161 = vst.msk [vmem:[#allocation5 + $0x168] sm:$0xff] %vm4460, %v8097
        %8162 = vst.msk [vmem:[#allocation5 + $0x170] sm:$0xff] %vm4460, %v8098
        %8163 = vst.msk [vmem:[#allocation5 + $0x178] sm:$0xff] %vm4460, %v8099
        %8164 = vst.msk [vmem:[#allocation5 + $0x180] sm:$0xff] %vm4460, %v8100
        %8165 = vst.msk [vmem:[#allocation5 + $0x188] sm:$0xff] %vm4460, %v8101
        %8166 = vst.msk [vmem:[#allocation5 + $0x190] sm:$0xff] %vm4460, %v8102
        %8167 = vst.msk [vmem:[#allocation5 + $0x198] sm:$0xff] %vm4460, %v8103
        %8168 = vst.msk [vmem:[#allocation5 + $0x1a0] sm:$0xff] %vm4460, %v8104
        %8169 = vst.msk [vmem:[#allocation5 + $0x1a8] sm:$0xff] %vm4460, %v8105
        %8170 = vst.msk [vmem:[#allocation5 + $0x1b0] sm:$0xff] %vm4460, %v8106
        %8171 = vst.msk [vmem:[#allocation5 + $0x1b8] sm:$0xff] %vm4460, %v8107
        %8172 = vst.msk [vmem:[#allocation5 + $0x1c0] sm:$0xff] %vm4460, %v8108
        %8173 = vst.msk [vmem:[#allocation5 + $0x1c8] sm:$0xff] %vm4460, %v8109
        %8174 = vst.msk [vmem:[#allocation5 + $0x1d0] sm:$0xff] %vm4460, %v8110
        %8175 = vst.msk [vmem:[#allocation5 + $0x1d8] sm:$0xff] %vm4460, %v8111
        %8176 = vst.msk [vmem:[#allocation5 + $0x1e0] sm:$0xff] %vm4460, %v8112
        %8177 = vst.msk [vmem:[#allocation5 + $0x1e8] sm:$0xff] %vm4460, %v8113
        %8178 = vst.msk [vmem:[#allocation5 + $0x1f0] sm:$0xff] %vm4460, %v8114
        %8179 = vst.msk [vmem:[#allocation5 + $0x1f8] sm:$0xff] %vm4460, %v8115
        %8180 = vst.msk [vmem:[#allocation3] sm:$0xff] %vm7154, %v5810
        %8181 = vst.msk [vmem:[#allocation3 + $0x8] sm:$0xff] %vm7154, %v5811
        %8182 = vst.msk [vmem:[#allocation3 + $0x10] sm:$0xff] %vm7154, %v5812
        %8183 = vst.msk [vmem:[#allocation3 + $0x18] sm:$0xff] %vm7154, %v5813
        %8184 = vst.msk [vmem:[#allocation3 + $0x20] sm:$0xff] %vm7154, %v5814
        %8185 = vst.msk [vmem:[#allocation3 + $0x28] sm:$0xff] %vm7154, %v5815
        %8186 = vst.msk [vmem:[#allocation3 + $0x30] sm:$0xff] %vm7154, %v5816
        %8187 = vst.msk [vmem:[#allocation3 + $0x38] sm:$0xff] %vm7154, %v5817
        %8188 = vst.msk [vmem:[#allocation3 + $0x40] sm:$0xff] %vm7154, %v5818
        %8189 = vst.msk [vmem:[#allocation3 + $0x48] sm:$0xff] %vm7154, %v5819
        %8190 = vst.msk [vmem:[#allocation3 + $0x50] sm:$0xff] %vm7154, %v5820
        %8191 = vst.msk [vmem:[#allocation3 + $0x58] sm:$0xff] %vm7154, %v5821
        %8192 = vst.msk [vmem:[#allocation3 + $0x60] sm:$0xff] %vm7154, %v5822
        %8193 = vst.msk [vmem:[#allocation3 + $0x68] sm:$0xff] %vm7154, %v5823
        %8194 = vst.msk [vmem:[#allocation3 + $0x70] sm:$0xff] %vm7154, %v5824
        %8195 = vst.msk [vmem:[#allocation3 + $0x78] sm:$0xff] %vm7154, %v5825
        %8196 = vst.msk [vmem:[#allocation3 + $0x80] sm:$0xff] %vm7154, %v5826
        %8197 = vst.msk [vmem:[#allocation3 + $0x88] sm:$0xff] %vm7154, %v5827
        %8198 = vst.msk [vmem:[#allocation3 + $0x90] sm:$0xff] %vm7154, %v5828
        %8199 = vst.msk [vmem:[#allocation3 + $0x98] sm:$0xff] %vm7154, %v5829
        %8200 = vst.msk [vmem:[#allocation3 + $0xa0] sm:$0xff] %vm7154, %v5830
        %8201 = vst.msk [vmem:[#allocation3 + $0xa8] sm:$0xff] %vm7154, %v5831
        %8202 = vst.msk [vmem:[#allocation3 + $0xb0] sm:$0xff] %vm7154, %v5832
        %8203 = vst.msk [vmem:[#allocation3 + $0xb8] sm:$0xff] %vm7154, %v5833
        %8204 = vst.msk [vmem:[#allocation3 + $0xc0] sm:$0xff] %vm7154, %v5834
        %8205 = vst.msk [vmem:[#allocation3 + $0xc8] sm:$0xff] %vm7154, %v5835
        %8206 = vst.msk [vmem:[#allocation3 + $0xd0] sm:$0xff] %vm7154, %v5836
        %8207 = vst.msk [vmem:[#allocation3 + $0xd8] sm:$0xff] %vm7154, %v5837
        %8208 = vst.msk [vmem:[#allocation3 + $0xe0] sm:$0xff] %vm7154, %v5838
        %8209 = vst.msk [vmem:[#allocation3 + $0xe8] sm:$0xff] %vm7154, %v5839
        %8210 = vst.msk [vmem:[#allocation3 + $0xf0] sm:$0xff] %vm7154, %v5840
        %8211 = vst.msk [vmem:[#allocation3 + $0xf8] sm:$0xff] %vm7154, %v5841
        %8212 = vst.msk [vmem:[#allocation3 + $0x100] sm:$0xff] %vm7154, %v5842
        %8213 = vst.msk [vmem:[#allocation3 + $0x108] sm:$0xff] %vm7154, %v5843
        %8214 = vst.msk [vmem:[#allocation3 + $0x110] sm:$0xff] %vm7154, %v5844
        %8215 = vst.msk [vmem:[#allocation3 + $0x118] sm:$0xff] %vm7154, %v5845
        %8216 = vst.msk [vmem:[#allocation3 + $0x120] sm:$0xff] %vm7154, %v5846
        %8217 = vst.msk [vmem:[#allocation3 + $0x128] sm:$0xff] %vm7154, %v5847
        %8218 = vst.msk [vmem:[#allocation3 + $0x130] sm:$0xff] %vm7154, %v5848
        %8219 = vst.msk [vmem:[#allocation3 + $0x138] sm:$0xff] %vm7154, %v5849
        %8220 = vst.msk [vmem:[#allocation3 + $0x140] sm:$0xff] %vm7154, %v5850
        %8221 = vst.msk [vmem:[#allocation3 + $0x148] sm:$0xff] %vm7154, %v5851
        %8222 = vst.msk [vmem:[#allocation3 + $0x150] sm:$0xff] %vm7154, %v5852
        %8223 = vst.msk [vmem:[#allocation3 + $0x158] sm:$0xff] %vm7154, %v5853
        %8224 = vst.msk [vmem:[#allocation3 + $0x160] sm:$0xff] %vm7154, %v5854
        %8225 = vst.msk [vmem:[#allocation3 + $0x168] sm:$0xff] %vm7154, %v5855
        %8226 = vst.msk [vmem:[#allocation3 + $0x170] sm:$0xff] %vm7154, %v5856
        %8227 = vst.msk [vmem:[#allocation3 + $0x178] sm:$0xff] %vm7154, %v5857
        %8228 = vst.msk [vmem:[#allocation3 + $0x180] sm:$0xff] %vm7154, %v5858
        %8229 = vst.msk [vmem:[#allocation3 + $0x188] sm:$0xff] %vm7154, %v5859
        %8230 = vst.msk [vmem:[#allocation3 + $0x190] sm:$0xff] %vm7154, %v5860
        %8231 = vst.msk [vmem:[#allocation3 + $0x198] sm:$0xff] %vm7154, %v5861
        %8232 = vst.msk [vmem:[#allocation3 + $0x1a0] sm:$0xff] %vm7154, %v5862
        %8233 = vst.msk [vmem:[#allocation3 + $0x1a8] sm:$0xff] %vm7154, %v5863
        %8234 = vst.msk [vmem:[#allocation3 + $0x1b0] sm:$0xff] %vm7154, %v5864
        %8235 = vst.msk [vmem:[#allocation3 + $0x1b8] sm:$0xff] %vm7154, %v5865
        %8236 = vst.msk [vmem:[#allocation3 + $0x1c0] sm:$0xff] %vm7154, %v5866
        %8237 = vst.msk [vmem:[#allocation3 + $0x1c8] sm:$0xff] %vm7154, %v5867
        %8238 = vst.msk [vmem:[#allocation3 + $0x1d0] sm:$0xff] %vm7154, %v5868
        %8239 = vst.msk [vmem:[#allocation3 + $0x1d8] sm:$0xff] %vm7154, %v5869
        %8240 = vst.msk [vmem:[#allocation3 + $0x1e0] sm:$0xff] %vm7154, %v5870
        %8241 = vst.msk [vmem:[#allocation3 + $0x1e8] sm:$0xff] %vm7154, %v5871
        %8242 = vst.msk [vmem:[#allocation3 + $0x1f0] sm:$0xff] %vm7154, %v5872
        %8243 = vst.msk [vmem:[#allocation3 + $0x1f8] sm:$0xff] %vm7154, %v5873
        %v8244 = vld [vmem:[#allocation4] sm:$0xff]
        %v8245 = vld [vmem:[#allocation4 + $0x8] sm:$0xff]
        %v8246 = vld [vmem:[#allocation4 + $0x10] sm:$0xff]
        %v8247 = vld [vmem:[#allocation4 + $0x18] sm:$0xff]
        %v8248 = vld [vmem:[#allocation4 + $0x20] sm:$0xff]
        %v8249 = vld [vmem:[#allocation4 + $0x28] sm:$0xff]
        %v8250 = vld [vmem:[#allocation4 + $0x30] sm:$0xff]
        %v8251 = vld [vmem:[#allocation4 + $0x38] sm:$0xff]
        %v8252 = vld [vmem:[#allocation4 + $0x40] sm:$0xff]
        %v8253 = vld [vmem:[#allocation4 + $0x48] sm:$0xff]
        %v8254 = vld [vmem:[#allocation4 + $0x50] sm:$0xff]
        %v8255 = vld [vmem:[#allocation4 + $0x58] sm:$0xff]
        %v8256 = vld [vmem:[#allocation4 + $0x60] sm:$0xff]
        %v8257 = vld [vmem:[#allocation4 + $0x68] sm:$0xff]
        %v8258 = vld [vmem:[#allocation4 + $0x70] sm:$0xff]
        %v8259 = vld [vmem:[#allocation4 + $0x78] sm:$0xff]
        %v8260 = vld [vmem:[#allocation4 + $0x80] sm:$0xff]
        %v8261 = vld [vmem:[#allocation4 + $0x88] sm:$0xff]
        %v8262 = vld [vmem:[#allocation4 + $0x90] sm:$0xff]
        %v8263 = vld [vmem:[#allocation4 + $0x98] sm:$0xff]
        %v8264 = vld [vmem:[#allocation4 + $0xa0] sm:$0xff]
        %v8265 = vld [vmem:[#allocation4 + $0xa8] sm:$0xff]
        %v8266 = vld [vmem:[#allocation4 + $0xb0] sm:$0xff]
        %v8267 = vld [vmem:[#allocation4 + $0xb8] sm:$0xff]
        %v8268 = vld [vmem:[#allocation4 + $0xc0] sm:$0xff]
        %v8269 = vld [vmem:[#allocation4 + $0xc8] sm:$0xff]
        %v8270 = vld [vmem:[#allocation4 + $0xd0] sm:$0xff]
        %v8271 = vld [vmem:[#allocation4 + $0xd8] sm:$0xff]
        %v8272 = vld [vmem:[#allocation4 + $0xe0] sm:$0xff]
        %v8273 = vld [vmem:[#allocation4 + $0xe8] sm:$0xff]
        %v8274 = vld [vmem:[#allocation4 + $0xf0] sm:$0xff]
        %v8275 = vld [vmem:[#allocation4 + $0xf8] sm:$0xff]
        %v8276 = vld [vmem:[#allocation4 + $0x100] sm:$0xff]
        %v8277 = vld [vmem:[#allocation4 + $0x108] sm:$0xff]
        %v8278 = vld [vmem:[#allocation4 + $0x110] sm:$0xff]
        %v8279 = vld [vmem:[#allocation4 + $0x118] sm:$0xff]
        %v8280 = vld [vmem:[#allocation4 + $0x120] sm:$0xff]
        %v8281 = vld [vmem:[#allocation4 + $0x128] sm:$0xff]
        %v8282 = vld [vmem:[#allocation4 + $0x130] sm:$0xff]
        %v8283 = vld [vmem:[#allocation4 + $0x138] sm:$0xff]
        %v8284 = vld [vmem:[#allocation4 + $0x140] sm:$0xff]
        %v8285 = vld [vmem:[#allocation4 + $0x148] sm:$0xff]
        %v8286 = vld [vmem:[#allocation4 + $0x150] sm:$0xff]
        %v8287 = vld [vmem:[#allocation4 + $0x158] sm:$0xff]
        %v8288 = vld [vmem:[#allocation4 + $0x160] sm:$0xff]
        %v8289 = vld [vmem:[#allocation4 + $0x168] sm:$0xff]
        %v8290 = vld [vmem:[#allocation4 + $0x170] sm:$0xff]
        %v8291 = vld [vmem:[#allocation4 + $0x178] sm:$0xff]
        %v8292 = vld [vmem:[#allocation4 + $0x180] sm:$0xff]
        %v8293 = vld [vmem:[#allocation4 + $0x188] sm:$0xff]
        %v8294 = vld [vmem:[#allocation4 + $0x190] sm:$0xff]
        %v8295 = vld [vmem:[#allocation4 + $0x198] sm:$0xff]
        %v8296 = vld [vmem:[#allocation4 + $0x1a0] sm:$0xff]
        %v8297 = vld [vmem:[#allocation4 + $0x1a8] sm:$0xff]
        %v8298 = vld [vmem:[#allocation4 + $0x1b0] sm:$0xff]
        %v8299 = vld [vmem:[#allocation4 + $0x1b8] sm:$0xff]
        %v8300 = vld [vmem:[#allocation4 + $0x1c0] sm:$0xff]
        %v8301 = vld [vmem:[#allocation4 + $0x1c8] sm:$0xff]
        %v8302 = vld [vmem:[#allocation4 + $0x1d0] sm:$0xff]
        %v8303 = vld [vmem:[#allocation4 + $0x1d8] sm:$0xff]
        %v8304 = vld [vmem:[#allocation4 + $0x1e0] sm:$0xff]
        %v8305 = vld [vmem:[#allocation4 + $0x1e8] sm:$0xff]
        %v8306 = vld [vmem:[#allocation4 + $0x1f0] sm:$0xff]
        %v8307 = vld [vmem:[#allocation4 + $0x1f8] sm:$0xff]
        %v8308 = vrcp.pop %v8244
        %v8309 = vrcp.pop %v8245
        %v8310 = vrcp.pop %v8246
        %v8311 = vrcp.pop %v8247
        %v8312 = vrcp.pop %v8248
        %v8313 = vrcp.pop %v8249
        %v8314 = vrcp.pop %v8250
        %v8315 = vrcp.pop %v8251
        %v8316 = vrcp.pop %v8252
        %v8317 = vrcp.pop %v8253
        %v8318 = vrcp.pop %v8254
        %v8319 = vrcp.pop %v8255
        %v8320 = vrcp.pop %v8256
        %v8321 = vrcp.pop %v8257
        %v8322 = vrcp.pop %v8258
        %v8323 = vrcp.pop %v8259
        %v8324 = vrcp.pop %v8260
        %v8325 = vrcp.pop %v8261
        %v8326 = vrcp.pop %v8262
        %v8327 = vrcp.pop %v8263
        %v8328 = vrcp.pop %v8264
        %v8329 = vrcp.pop %v8265
        %v8330 = vrcp.pop %v8266
        %v8331 = vrcp.pop %v8267
        %v8332 = vrcp.pop %v8268
        %v8333 = vrcp.pop %v8269
        %v8334 = vrcp.pop %v8270
        %v8335 = vrcp.pop %v8271
        %v8336 = vrcp.pop %v8272
        %v8337 = vrcp.pop %v8273
        %v8338 = vrcp.pop %v8274
        %v8339 = vrcp.pop %v8275
        %v8340 = vrcp.pop %v8276
        %v8341 = vrcp.pop %v8277
        %v8342 = vrcp.pop %v8278
        %v8343 = vrcp.pop %v8279
        %v8344 = vrcp.pop %v8280
        %v8345 = vrcp.pop %v8281
        %v8346 = vrcp.pop %v8282
        %v8347 = vrcp.pop %v8283
        %v8348 = vrcp.pop %v8284
        %v8349 = vrcp.pop %v8285
        %v8350 = vrcp.pop %v8286
        %v8351 = vrcp.pop %v8287
        %v8352 = vrcp.pop %v8288
        %v8353 = vrcp.pop %v8289
        %v8354 = vrcp.pop %v8290
        %v8355 = vrcp.pop %v8291
        %v8356 = vrcp.pop %v8292
        %v8357 = vrcp.pop %v8293
        %v8358 = vrcp.pop %v8294
        %v8359 = vrcp.pop %v8295
        %v8360 = vrcp.pop %v8296
        %v8361 = vrcp.pop %v8297
        %v8362 = vrcp.pop %v8298
        %v8363 = vrcp.pop %v8299
        %v8364 = vrcp.pop %v8300
        %v8365 = vrcp.pop %v8301
        %v8366 = vrcp.pop %v8302
        %v8367 = vrcp.pop %v8303
        %v8368 = vrcp.pop %v8304
        %v8369 = vrcp.pop %v8305
        %v8370 = vrcp.pop %v8306
        %v8371 = vrcp.pop %v8307
        %v8372 = vld [vmem:[#allocation5] sm:$0xff]
        %v8373 = vld [vmem:[#allocation5 + $0x8] sm:$0xff]
        %v8374 = vld [vmem:[#allocation5 + $0x10] sm:$0xff]
        %v8375 = vld [vmem:[#allocation5 + $0x18] sm:$0xff]
        %v8376 = vld [vmem:[#allocation5 + $0x20] sm:$0xff]
        %v8377 = vld [vmem:[#allocation5 + $0x28] sm:$0xff]
        %v8378 = vld [vmem:[#allocation5 + $0x30] sm:$0xff]
        %v8379 = vld [vmem:[#allocation5 + $0x38] sm:$0xff]
        %v8380 = vld [vmem:[#allocation5 + $0x40] sm:$0xff]
        %v8381 = vld [vmem:[#allocation5 + $0x48] sm:$0xff]
        %v8382 = vld [vmem:[#allocation5 + $0x50] sm:$0xff]
        %v8383 = vld [vmem:[#allocation5 + $0x58] sm:$0xff]
        %v8384 = vld [vmem:[#allocation5 + $0x60] sm:$0xff]
        %v8385 = vld [vmem:[#allocation5 + $0x68] sm:$0xff]
        %v8386 = vld [vmem:[#allocation5 + $0x70] sm:$0xff]
        %v8387 = vld [vmem:[#allocation5 + $0x78] sm:$0xff]
        %v8388 = vld [vmem:[#allocation5 + $0x80] sm:$0xff]
        %v8389 = vld [vmem:[#allocation5 + $0x88] sm:$0xff]
        %v8390 = vld [vmem:[#allocation5 + $0x90] sm:$0xff]
        %v8391 = vld [vmem:[#allocation5 + $0x98] sm:$0xff]
        %v8392 = vld [vmem:[#allocation5 + $0xa0] sm:$0xff]
        %v8393 = vld [vmem:[#allocation5 + $0xa8] sm:$0xff]
        %v8394 = vld [vmem:[#allocation5 + $0xb0] sm:$0xff]
        %v8395 = vld [vmem:[#allocation5 + $0xb8] sm:$0xff]
        %v8396 = vld [vmem:[#allocation5 + $0xc0] sm:$0xff]
        %v8397 = vld [vmem:[#allocation5 + $0xc8] sm:$0xff]
        %v8398 = vld [vmem:[#allocation5 + $0xd0] sm:$0xff]
        %v8399 = vld [vmem:[#allocation5 + $0xd8] sm:$0xff]
        %v8400 = vld [vmem:[#allocation5 + $0xe0] sm:$0xff]
        %v8401 = vld [vmem:[#allocation5 + $0xe8] sm:$0xff]
        %v8402 = vld [vmem:[#allocation5 + $0xf0] sm:$0xff]
        %v8403 = vld [vmem:[#allocation5 + $0xf8] sm:$0xff]
        %v8404 = vld [vmem:[#allocation5 + $0x100] sm:$0xff]
        %v8405 = vld [vmem:[#allocation5 + $0x108] sm:$0xff]
        %v8406 = vld [vmem:[#allocation5 + $0x110] sm:$0xff]
        %v8407 = vld [vmem:[#allocation5 + $0x118] sm:$0xff]
        %v8408 = vld [vmem:[#allocation5 + $0x120] sm:$0xff]
        %v8409 = vld [vmem:[#allocation5 + $0x128] sm:$0xff]
        %v8410 = vld [vmem:[#allocation5 + $0x130] sm:$0xff]
        %v8411 = vld [vmem:[#allocation5 + $0x138] sm:$0xff]
        %v8412 = vld [vmem:[#allocation5 + $0x140] sm:$0xff]
        %v8413 = vld [vmem:[#allocation5 + $0x148] sm:$0xff]
        %v8414 = vld [vmem:[#allocation5 + $0x150] sm:$0xff]
        %v8415 = vld [vmem:[#allocation5 + $0x158] sm:$0xff]
        %v8416 = vld [vmem:[#allocation5 + $0x160] sm:$0xff]
        %v8417 = vld [vmem:[#allocation5 + $0x168] sm:$0xff]
        %v8418 = vld [vmem:[#allocation5 + $0x170] sm:$0xff]
        %v8419 = vld [vmem:[#allocation5 + $0x178] sm:$0xff]
        %v8420 = vld [vmem:[#allocation5 + $0x180] sm:$0xff]
        %v8421 = vld [vmem:[#allocation5 + $0x188] sm:$0xff]
        %v8422 = vld [vmem:[#allocation5 + $0x190] sm:$0xff]
        %v8423 = vld [vmem:[#allocation5 + $0x198] sm:$0xff]
        %v8424 = vld [vmem:[#allocation5 + $0x1a0] sm:$0xff]
        %v8425 = vld [vmem:[#allocation5 + $0x1a8] sm:$0xff]
        %v8426 = vld [vmem:[#allocation5 + $0x1b0] sm:$0xff]
        %v8427 = vld [vmem:[#allocation5 + $0x1b8] sm:$0xff]
        %v8428 = vld [vmem:[#allocation5 + $0x1c0] sm:$0xff]
        %v8429 = vld [vmem:[#allocation5 + $0x1c8] sm:$0xff]
        %v8430 = vld [vmem:[#allocation5 + $0x1d0] sm:$0xff]
        %v8431 = vld [vmem:[#allocation5 + $0x1d8] sm:$0xff]
        %v8432 = vld [vmem:[#allocation5 + $0x1e0] sm:$0xff]
        %v8433 = vld [vmem:[#allocation5 + $0x1e8] sm:$0xff]
        %v8434 = vld [vmem:[#allocation5 + $0x1f0] sm:$0xff]
        %v8435 = vld [vmem:[#allocation5 + $0x1f8] sm:$0xff]
        %8437 = vset.pattern.permute.xlu0 0
        %8438 = vperm.xlu0 %8437, %v8308
        %v8439 = vpop.permute.xlu0 %8438
        %8442 = vset.pattern.permute.xlu0 0
        %8443 = vperm.xlu0 %8442, %v8309
        %v8444 = vpop.permute.xlu0 %8443
        %8447 = vset.pattern.permute.xlu0 0
        %8448 = vperm.xlu0 %8447, %v8310
        %v8449 = vpop.permute.xlu0 %8448
        %8452 = vset.pattern.permute.xlu0 0
        %8453 = vperm.xlu0 %8452, %v8311
        %v8454 = vpop.permute.xlu0 %8453
        %8457 = vset.pattern.permute.xlu0 0
        %8458 = vperm.xlu0 %8457, %v8312
        %v8459 = vpop.permute.xlu0 %8458
        %8462 = vset.pattern.permute.xlu0 0
        %8463 = vperm.xlu0 %8462, %v8313
        %v8464 = vpop.permute.xlu0 %8463
        %8467 = vset.pattern.permute.xlu0 0
        %8468 = vperm.xlu0 %8467, %v8314
        %v8469 = vpop.permute.xlu0 %8468
        %8472 = vset.pattern.permute.xlu0 0
        %8473 = vperm.xlu0 %8472, %v8315
        %v8474 = vpop.permute.xlu0 %8473
        %8477 = vset.pattern.permute.xlu0 0
        %8478 = vperm.xlu0 %8477, %v8316
        %v8479 = vpop.permute.xlu0 %8478
        %8482 = vset.pattern.permute.xlu0 0
        %8483 = vperm.xlu0 %8482, %v8317
        %v8484 = vpop.permute.xlu0 %8483
        %8487 = vset.pattern.permute.xlu0 0
        %8488 = vperm.xlu0 %8487, %v8318
        %v8489 = vpop.permute.xlu0 %8488
        %8492 = vset.pattern.permute.xlu0 0
        %8493 = vperm.xlu0 %8492, %v8319
        %v8494 = vpop.permute.xlu0 %8493
        %8497 = vset.pattern.permute.xlu0 0
        %8498 = vperm.xlu0 %8497, %v8320
        %v8499 = vpop.permute.xlu0 %8498
        %8502 = vset.pattern.permute.xlu0 0
        %8503 = vperm.xlu0 %8502, %v8321
        %v8504 = vpop.permute.xlu0 %8503
        %8507 = vset.pattern.permute.xlu0 0
        %8508 = vperm.xlu0 %8507, %v8322
        %v8509 = vpop.permute.xlu0 %8508
        %8512 = vset.pattern.permute.xlu0 0
        %8513 = vperm.xlu0 %8512, %v8323
        %v8514 = vpop.permute.xlu0 %8513
        %8517 = vset.pattern.permute.xlu0 0
        %8518 = vperm.xlu0 %8517, %v8324
        %v8519 = vpop.permute.xlu0 %8518
        %8522 = vset.pattern.permute.xlu0 0
        %8523 = vperm.xlu0 %8522, %v8325
        %v8524 = vpop.permute.xlu0 %8523
        %8527 = vset.pattern.permute.xlu0 0
        %8528 = vperm.xlu0 %8527, %v8326
        %v8529 = vpop.permute.xlu0 %8528
        %8532 = vset.pattern.permute.xlu0 0
        %8533 = vperm.xlu0 %8532, %v8327
        %v8534 = vpop.permute.xlu0 %8533
        %8537 = vset.pattern.permute.xlu0 0
        %8538 = vperm.xlu0 %8537, %v8328
        %v8539 = vpop.permute.xlu0 %8538
        %8542 = vset.pattern.permute.xlu0 0
        %8543 = vperm.xlu0 %8542, %v8329
        %v8544 = vpop.permute.xlu0 %8543
        %8547 = vset.pattern.permute.xlu0 0
        %8548 = vperm.xlu0 %8547, %v8330
        %v8549 = vpop.permute.xlu0 %8548
        %8552 = vset.pattern.permute.xlu0 0
        %8553 = vperm.xlu0 %8552, %v8331
        %v8554 = vpop.permute.xlu0 %8553
        %8557 = vset.pattern.permute.xlu0 0
        %8558 = vperm.xlu0 %8557, %v8332
        %v8559 = vpop.permute.xlu0 %8558
        %8562 = vset.pattern.permute.xlu0 0
        %8563 = vperm.xlu0 %8562, %v8333
        %v8564 = vpop.permute.xlu0 %8563
        %8567 = vset.pattern.permute.xlu0 0
        %8568 = vperm.xlu0 %8567, %v8334
        %v8569 = vpop.permute.xlu0 %8568
        %8572 = vset.pattern.permute.xlu0 0
        %8573 = vperm.xlu0 %8572, %v8335
        %v8574 = vpop.permute.xlu0 %8573
        %8577 = vset.pattern.permute.xlu0 0
        %8578 = vperm.xlu0 %8577, %v8336
        %v8579 = vpop.permute.xlu0 %8578
        %8582 = vset.pattern.permute.xlu0 0
        %8583 = vperm.xlu0 %8582, %v8337
        %v8584 = vpop.permute.xlu0 %8583
        %8587 = vset.pattern.permute.xlu0 0
        %8588 = vperm.xlu0 %8587, %v8338
        %v8589 = vpop.permute.xlu0 %8588
        %8592 = vset.pattern.permute.xlu0 0
        %8593 = vperm.xlu0 %8592, %v8339
        %v8594 = vpop.permute.xlu0 %8593
        %8597 = vset.pattern.permute.xlu0 0
        %8598 = vperm.xlu0 %8597, %v8340
        %v8599 = vpop.permute.xlu0 %8598
        %8602 = vset.pattern.permute.xlu0 0
        %8603 = vperm.xlu0 %8602, %v8341
        %v8604 = vpop.permute.xlu0 %8603
        %8607 = vset.pattern.permute.xlu0 0
        %8608 = vperm.xlu0 %8607, %v8342
        %v8609 = vpop.permute.xlu0 %8608
        %8612 = vset.pattern.permute.xlu0 0
        %8613 = vperm.xlu0 %8612, %v8343
        %v8614 = vpop.permute.xlu0 %8613
        %8617 = vset.pattern.permute.xlu0 0
        %8618 = vperm.xlu0 %8617, %v8344
        %v8619 = vpop.permute.xlu0 %8618
        %8622 = vset.pattern.permute.xlu0 0
        %8623 = vperm.xlu0 %8622, %v8345
        %v8624 = vpop.permute.xlu0 %8623
        %8627 = vset.pattern.permute.xlu0 0
        %8628 = vperm.xlu0 %8627, %v8346
        %v8629 = vpop.permute.xlu0 %8628
        %8632 = vset.pattern.permute.xlu0 0
        %8633 = vperm.xlu0 %8632, %v8347
        %v8634 = vpop.permute.xlu0 %8633
        %8637 = vset.pattern.permute.xlu0 0
        %8638 = vperm.xlu0 %8637, %v8348
        %v8639 = vpop.permute.xlu0 %8638
        %8642 = vset.pattern.permute.xlu0 0
        %8643 = vperm.xlu0 %8642, %v8349
        %v8644 = vpop.permute.xlu0 %8643
        %8647 = vset.pattern.permute.xlu0 0
        %8648 = vperm.xlu0 %8647, %v8350
        %v8649 = vpop.permute.xlu0 %8648
        %8652 = vset.pattern.permute.xlu0 0
        %8653 = vperm.xlu0 %8652, %v8351
        %v8654 = vpop.permute.xlu0 %8653
        %8657 = vset.pattern.permute.xlu0 0
        %8658 = vperm.xlu0 %8657, %v8352
        %v8659 = vpop.permute.xlu0 %8658
        %8662 = vset.pattern.permute.xlu0 0
        %8663 = vperm.xlu0 %8662, %v8353
        %v8664 = vpop.permute.xlu0 %8663
        %8667 = vset.pattern.permute.xlu0 0
        %8668 = vperm.xlu0 %8667, %v8354
        %v8669 = vpop.permute.xlu0 %8668
        %8672 = vset.pattern.permute.xlu0 0
        %8673 = vperm.xlu0 %8672, %v8355
        %v8674 = vpop.permute.xlu0 %8673
        %8677 = vset.pattern.permute.xlu0 0
        %8678 = vperm.xlu0 %8677, %v8356
        %v8679 = vpop.permute.xlu0 %8678
        %8682 = vset.pattern.permute.xlu0 0
        %8683 = vperm.xlu0 %8682, %v8357
        %v8684 = vpop.permute.xlu0 %8683
        %8687 = vset.pattern.permute.xlu0 0
        %8688 = vperm.xlu0 %8687, %v8358
        %v8689 = vpop.permute.xlu0 %8688
        %8692 = vset.pattern.permute.xlu0 0
        %8693 = vperm.xlu0 %8692, %v8359
        %v8694 = vpop.permute.xlu0 %8693
        %8697 = vset.pattern.permute.xlu0 0
        %8698 = vperm.xlu0 %8697, %v8360
        %v8699 = vpop.permute.xlu0 %8698
        %8702 = vset.pattern.permute.xlu0 0
        %8703 = vperm.xlu0 %8702, %v8361
        %v8704 = vpop.permute.xlu0 %8703
        %8707 = vset.pattern.permute.xlu0 0
        %8708 = vperm.xlu0 %8707, %v8362
        %v8709 = vpop.permute.xlu0 %8708
        %8712 = vset.pattern.permute.xlu0 0
        %8713 = vperm.xlu0 %8712, %v8363
        %v8714 = vpop.permute.xlu0 %8713
        %8717 = vset.pattern.permute.xlu0 0
        %8718 = vperm.xlu0 %8717, %v8364
        %v8719 = vpop.permute.xlu0 %8718
        %8722 = vset.pattern.permute.xlu0 0
        %8723 = vperm.xlu0 %8722, %v8365
        %v8724 = vpop.permute.xlu0 %8723
        %8727 = vset.pattern.permute.xlu0 0
        %8728 = vperm.xlu0 %8727, %v8366
        %v8729 = vpop.permute.xlu0 %8728
        %8732 = vset.pattern.permute.xlu0 0
        %8733 = vperm.xlu0 %8732, %v8367
        %v8734 = vpop.permute.xlu0 %8733
        %8737 = vset.pattern.permute.xlu0 0
        %8738 = vperm.xlu0 %8737, %v8368
        %v8739 = vpop.permute.xlu0 %8738
        %8742 = vset.pattern.permute.xlu0 0
        %8743 = vperm.xlu0 %8742, %v8369
        %v8744 = vpop.permute.xlu0 %8743
        %8747 = vset.pattern.permute.xlu0 0
        %8748 = vperm.xlu0 %8747, %v8370
        %v8749 = vpop.permute.xlu0 %8748
        %8752 = vset.pattern.permute.xlu0 0
        %8753 = vperm.xlu0 %8752, %v8371
        %v8754 = vpop.permute.xlu0 %8753
        %v8756 = vmul.f32 %v8372, %v8439
        %v8757 = vmul.f32 %v8373, %v8444
        %v8758 = vmul.f32 %v8374, %v8449
        %v8759 = vmul.f32 %v8375, %v8454
        %v8760 = vmul.f32 %v8376, %v8459
        %v8761 = vmul.f32 %v8377, %v8464
        %v8762 = vmul.f32 %v8378, %v8469
        %v8763 = vmul.f32 %v8379, %v8474
        %v8764 = vmul.f32 %v8380, %v8479
        %v8765 = vmul.f32 %v8381, %v8484
        %v8766 = vmul.f32 %v8382, %v8489
        %v8767 = vmul.f32 %v8383, %v8494
        %v8768 = vmul.f32 %v8384, %v8499
        %v8769 = vmul.f32 %v8385, %v8504
        %v8770 = vmul.f32 %v8386, %v8509
        %v8771 = vmul.f32 %v8387, %v8514
        %v8772 = vmul.f32 %v8388, %v8519
        %v8773 = vmul.f32 %v8389, %v8524
        %v8774 = vmul.f32 %v8390, %v8529
        %v8775 = vmul.f32 %v8391, %v8534
        %v8776 = vmul.f32 %v8392, %v8539
        %v8777 = vmul.f32 %v8393, %v8544
        %v8778 = vmul.f32 %v8394, %v8549
        %v8779 = vmul.f32 %v8395, %v8554
        %v8780 = vmul.f32 %v8396, %v8559
        %v8781 = vmul.f32 %v8397, %v8564
        %v8782 = vmul.f32 %v8398, %v8569
        %v8783 = vmul.f32 %v8399, %v8574
        %v8784 = vmul.f32 %v8400, %v8579
        %v8785 = vmul.f32 %v8401, %v8584
        %v8786 = vmul.f32 %v8402, %v8589
        %v8787 = vmul.f32 %v8403, %v8594
        %v8788 = vmul.f32 %v8404, %v8599
        %v8789 = vmul.f32 %v8405, %v8604
        %v8790 = vmul.f32 %v8406, %v8609
        %v8791 = vmul.f32 %v8407, %v8614
        %v8792 = vmul.f32 %v8408, %v8619
        %v8793 = vmul.f32 %v8409, %v8624
        %v8794 = vmul.f32 %v8410, %v8629
        %v8795 = vmul.f32 %v8411, %v8634
        %v8796 = vmul.f32 %v8412, %v8639
        %v8797 = vmul.f32 %v8413, %v8644
        %v8798 = vmul.f32 %v8414, %v8649
        %v8799 = vmul.f32 %v8415, %v8654
        %v8800 = vmul.f32 %v8416, %v8659
        %v8801 = vmul.f32 %v8417, %v8664
        %v8802 = vmul.f32 %v8418, %v8669
        %v8803 = vmul.f32 %v8419, %v8674
        %v8804 = vmul.f32 %v8420, %v8679
        %v8805 = vmul.f32 %v8421, %v8684
        %v8806 = vmul.f32 %v8422, %v8689
        %v8807 = vmul.f32 %v8423, %v8694
        %v8808 = vmul.f32 %v8424, %v8699
        %v8809 = vmul.f32 %v8425, %v8704
        %v8810 = vmul.f32 %v8426, %v8709
        %v8811 = vmul.f32 %v8427, %v8714
        %v8812 = vmul.f32 %v8428, %v8719
        %v8813 = vmul.f32 %v8429, %v8724
        %v8814 = vmul.f32 %v8430, %v8729
        %v8815 = vmul.f32 %v8431, %v8734
        %v8816 = vmul.f32 %v8432, %v8739
        %v8817 = vmul.f32 %v8433, %v8744
        %v8818 = vmul.f32 %v8434, %v8749
        %v8819 = vmul.f32 %v8435, %v8754
        %8820 = vst.msk [vmem:[%s373] sm:$0xff] %vm4460, %v8756
        %8821 = vst.msk [vmem:[%s373 + $0x8] sm:$0xff] %vm4460, %v8757
        %8822 = vst.msk [vmem:[%s373 + $0x10] sm:$0xff] %vm4460, %v8758
        %8823 = vst.msk [vmem:[%s373 + $0x18] sm:$0xff] %vm4460, %v8759
        %8824 = vst.msk [vmem:[%s373 + $0x20] sm:$0xff] %vm4460, %v8760
        %8825 = vst.msk [vmem:[%s373 + $0x28] sm:$0xff] %vm4460, %v8761
        %8826 = vst.msk [vmem:[%s373 + $0x30] sm:$0xff] %vm4460, %v8762
        %8827 = vst.msk [vmem:[%s373 + $0x38] sm:$0xff] %vm4460, %v8763
        %8828 = vst.msk [vmem:[%s373 + $0x40] sm:$0xff] %vm4460, %v8764
        %8829 = vst.msk [vmem:[%s373 + $0x48] sm:$0xff] %vm4460, %v8765
        %8830 = vst.msk [vmem:[%s373 + $0x50] sm:$0xff] %vm4460, %v8766
        %8831 = vst.msk [vmem:[%s373 + $0x58] sm:$0xff] %vm4460, %v8767
        %8832 = vst.msk [vmem:[%s373 + $0x60] sm:$0xff] %vm4460, %v8768
        %8833 = vst.msk [vmem:[%s373 + $0x68] sm:$0xff] %vm4460, %v8769
        %8834 = vst.msk [vmem:[%s373 + $0x70] sm:$0xff] %vm4460, %v8770
        %8835 = vst.msk [vmem:[%s373 + $0x78] sm:$0xff] %vm4460, %v8771
        %8836 = vst.msk [vmem:[%s373 + $0x80] sm:$0xff] %vm4460, %v8772
        %8837 = vst.msk [vmem:[%s373 + $0x88] sm:$0xff] %vm4460, %v8773
        %8838 = vst.msk [vmem:[%s373 + $0x90] sm:$0xff] %vm4460, %v8774
        %8839 = vst.msk [vmem:[%s373 + $0x98] sm:$0xff] %vm4460, %v8775
        %8840 = vst.msk [vmem:[%s373 + $0xa0] sm:$0xff] %vm4460, %v8776
        %8841 = vst.msk [vmem:[%s373 + $0xa8] sm:$0xff] %vm4460, %v8777
        %8842 = vst.msk [vmem:[%s373 + $0xb0] sm:$0xff] %vm4460, %v8778
        %8843 = vst.msk [vmem:[%s373 + $0xb8] sm:$0xff] %vm4460, %v8779
        %8844 = vst.msk [vmem:[%s373 + $0xc0] sm:$0xff] %vm4460, %v8780
        %8845 = vst.msk [vmem:[%s373 + $0xc8] sm:$0xff] %vm4460, %v8781
        %8846 = vst.msk [vmem:[%s373 + $0xd0] sm:$0xff] %vm4460, %v8782
        %8847 = vst.msk [vmem:[%s373 + $0xd8] sm:$0xff] %vm4460, %v8783
        %8848 = vst.msk [vmem:[%s373 + $0xe0] sm:$0xff] %vm4460, %v8784
        %8849 = vst.msk [vmem:[%s373 + $0xe8] sm:$0xff] %vm4460, %v8785
        %8850 = vst.msk [vmem:[%s373 + $0xf0] sm:$0xff] %vm4460, %v8786
        %8851 = vst.msk [vmem:[%s373 + $0xf8] sm:$0xff] %vm4460, %v8787
        %8884 = vrot.lane.b32.xlu0 %v8788, 32
        %v8885 = vpop.permute.xlu0 %8884
        %8886 = vrot.lane.b32.xlu0 %v8789, 32
        %v8887 = vpop.permute.xlu0 %8886
        %8888 = vrot.lane.b32.xlu0 %v8790, 32
        %v8889 = vpop.permute.xlu0 %8888
        %8890 = vrot.lane.b32.xlu0 %v8791, 32
        %v8891 = vpop.permute.xlu0 %8890
        %8892 = vrot.lane.b32.xlu0 %v8792, 32
        %v8893 = vpop.permute.xlu0 %8892
        %8894 = vrot.lane.b32.xlu0 %v8793, 32
        %v8895 = vpop.permute.xlu0 %8894
        %8896 = vrot.lane.b32.xlu0 %v8794, 32
        %v8897 = vpop.permute.xlu0 %8896
        %8898 = vrot.lane.b32.xlu0 %v8795, 32
        %v8899 = vpop.permute.xlu0 %8898
        %8900 = vrot.lane.b32.xlu0 %v8796, 32
        %v8901 = vpop.permute.xlu0 %8900
        %8902 = vrot.lane.b32.xlu0 %v8797, 32
        %v8903 = vpop.permute.xlu0 %8902
        %8904 = vrot.lane.b32.xlu0 %v8798, 32
        %v8905 = vpop.permute.xlu0 %8904
        %8906 = vrot.lane.b32.xlu0 %v8799, 32
        %v8907 = vpop.permute.xlu0 %8906
        %8908 = vrot.lane.b32.xlu0 %v8800, 32
        %v8909 = vpop.permute.xlu0 %8908
        %8910 = vrot.lane.b32.xlu0 %v8801, 32
        %v8911 = vpop.permute.xlu0 %8910
        %8912 = vrot.lane.b32.xlu0 %v8802, 32
        %v8913 = vpop.permute.xlu0 %8912
        %8914 = vrot.lane.b32.xlu0 %v8803, 32
        %v8915 = vpop.permute.xlu0 %8914
        %8916 = vrot.lane.b32.xlu0 %v8804, 32
        %v8917 = vpop.permute.xlu0 %8916
        %8918 = vrot.lane.b32.xlu0 %v8805, 32
        %v8919 = vpop.permute.xlu0 %8918
        %8920 = vrot.lane.b32.xlu0 %v8806, 32
        %v8921 = vpop.permute.xlu0 %8920
        %8922 = vrot.lane.b32.xlu0 %v8807, 32
        %v8923 = vpop.permute.xlu0 %8922
        %8924 = vrot.lane.b32.xlu0 %v8808, 32
        %v8925 = vpop.permute.xlu0 %8924
        %8926 = vrot.lane.b32.xlu0 %v8809, 32
        %v8927 = vpop.permute.xlu0 %8926
        %8928 = vrot.lane.b32.xlu0 %v8810, 32
        %v8929 = vpop.permute.xlu0 %8928
        %8930 = vrot.lane.b32.xlu0 %v8811, 32
        %v8931 = vpop.permute.xlu0 %8930
        %8932 = vrot.lane.b32.xlu0 %v8812, 32
        %v8933 = vpop.permute.xlu0 %8932
        %8934 = vrot.lane.b32.xlu0 %v8813, 32
        %v8935 = vpop.permute.xlu0 %8934
        %8936 = vrot.lane.b32.xlu0 %v8814, 32
        %v8937 = vpop.permute.xlu0 %8936
        %8938 = vrot.lane.b32.xlu0 %v8815, 32
        %v8939 = vpop.permute.xlu0 %8938
        %8940 = vrot.lane.b32.xlu0 %v8816, 32
        %v8941 = vpop.permute.xlu0 %8940
        %8942 = vrot.lane.b32.xlu0 %v8817, 32
        %v8943 = vpop.permute.xlu0 %8942
        %8944 = vrot.lane.b32.xlu0 %v8818, 32
        %v8945 = vpop.permute.xlu0 %8944
        %8946 = vrot.lane.b32.xlu0 %v8819, 32
        %v8947 = vpop.permute.xlu0 %8946
        %vm8980 = vcmask 523520
        %8981 = vst.msk [vmem:[%s373] sm:$0xff] %vm8980, %v8885
        %8982 = vst.msk [vmem:[%s373 + $0x8] sm:$0xff] %vm8980, %v8887
        %8983 = vst.msk [vmem:[%s373 + $0x10] sm:$0xff] %vm8980, %v8889
        %8984 = vst.msk [vmem:[%s373 + $0x18] sm:$0xff] %vm8980, %v8891
        %8985 = vst.msk [vmem:[%s373 + $0x20] sm:$0xff] %vm8980, %v8893
        %8986 = vst.msk [vmem:[%s373 + $0x28] sm:$0xff] %vm8980, %v8895
        %8987 = vst.msk [vmem:[%s373 + $0x30] sm:$0xff] %vm8980, %v8897
        %8988 = vst.msk [vmem:[%s373 + $0x38] sm:$0xff] %vm8980, %v8899
        %8989 = vst.msk [vmem:[%s373 + $0x40] sm:$0xff] %vm8980, %v8901
        %8990 = vst.msk [vmem:[%s373 + $0x48] sm:$0xff] %vm8980, %v8903
        %8991 = vst.msk [vmem:[%s373 + $0x50] sm:$0xff] %vm8980, %v8905
        %8992 = vst.msk [vmem:[%s373 + $0x58] sm:$0xff] %vm8980, %v8907
        %8993 = vst.msk [vmem:[%s373 + $0x60] sm:$0xff] %vm8980, %v8909
        %8994 = vst.msk [vmem:[%s373 + $0x68] sm:$0xff] %vm8980, %v8911
        %8995 = vst.msk [vmem:[%s373 + $0x70] sm:$0xff] %vm8980, %v8913
        %8996 = vst.msk [vmem:[%s373 + $0x78] sm:$0xff] %vm8980, %v8915
        %8997 = vst.msk [vmem:[%s373 + $0x80] sm:$0xff] %vm8980, %v8917
        %8998 = vst.msk [vmem:[%s373 + $0x88] sm:$0xff] %vm8980, %v8919
        %8999 = vst.msk [vmem:[%s373 + $0x90] sm:$0xff] %vm8980, %v8921
        %9000 = vst.msk [vmem:[%s373 + $0x98] sm:$0xff] %vm8980, %v8923
        %9001 = vst.msk [vmem:[%s373 + $0xa0] sm:$0xff] %vm8980, %v8925
        %9002 = vst.msk [vmem:[%s373 + $0xa8] sm:$0xff] %vm8980, %v8927
        %9003 = vst.msk [vmem:[%s373 + $0xb0] sm:$0xff] %vm8980, %v8929
        %9004 = vst.msk [vmem:[%s373 + $0xb8] sm:$0xff] %vm8980, %v8931
        %9005 = vst.msk [vmem:[%s373 + $0xc0] sm:$0xff] %vm8980, %v8933
        %9006 = vst.msk [vmem:[%s373 + $0xc8] sm:$0xff] %vm8980, %v8935
        %9007 = vst.msk [vmem:[%s373 + $0xd0] sm:$0xff] %vm8980, %v8937
        %9008 = vst.msk [vmem:[%s373 + $0xd8] sm:$0xff] %vm8980, %v8939
        %9009 = vst.msk [vmem:[%s373 + $0xe0] sm:$0xff] %vm8980, %v8941
        %9010 = vst.msk [vmem:[%s373 + $0xe8] sm:$0xff] %vm8980, %v8943
        %9011 = vst.msk [vmem:[%s373 + $0xf0] sm:$0xff] %vm8980, %v8945
        %9012 = vst.msk [vmem:[%s373 + $0xf8] sm:$0xff] %vm8980, %v8947
      $region44: #{tpu_custom_call.1} parent=31 // pred_fallthru
        _
      %s9013 = sld [smem:[#allocation7 + %s25]]
      %s9014 = smul.u32 32, %s9013
      %p9015 = scmp.lt.s32.totalorder %s23, 1
      %s9016 = scalar_select %p9015, %s23, 1
      %p9017 = scmp.lt.s32.totalorder %s24, 1
      %s9018 = scalar_select %p9017, %s24, 1
      %p9019 = scmp.lt.s32.totalorder %s9014, 31
      %s9020 = scalar_select %p9019, %s9014, 31
      %s9021 = smul.addr %s9018, 32
      %s9022 = sadd.s32 %s9020, %s9021
      %s9023 = smul.addr %s9016, 64
      %s9024 = sadd.s32 %s9022, %s9023
      %s9025 = smul.addr %s9024, 8
      %s9026 = scalar_lea.vmem %s5, %s9025
      // Predicated region
      $region45: #{tpu_custom_call.1} parent=31 // pred_check
        %p9027 = pneg %p157
      $region46: #{tpu_custom_call.1} parent=31 // pred_check_branch
        %9029 = sbr.rel (%p9027) target = $region48
      $region47: #{tpu_custom_call.1} parent=31 // pred_region
        %s9030 = sld [smem:[#allocation7 + %s25]]
        %s9031 = smul.u32 32, %s9030
      $region48: #{tpu_custom_call.1} parent=31 // pred_fallthru
        _
    $region32: #{tpu_custom_call.1} parent=5 // pred_fallthru
      _
    %p9032 = scmp.le.s32.totalorder 2, %s13
    // Predicated region
    $region49: #{tpu_custom_call.1} parent=5 // pred_check
      %p9033 = pneg %p9032
    $region50: #{tpu_custom_call.1} parent=5 // pred_check_branch
      %9035 = sbr.rel (%p9033) target = $region52
    $region51: #{tpu_custom_call.1} parent=5 // pred_region
      %s9036 = ssub.s32 %s13, 2
      // Predicated region
      $region53: #{tpu_custom_call.1} parent=51 // pred_check
        %p9037 = pneg %p163
      $region54: #{tpu_custom_call.1} parent=51 // pred_check_branch
        %9039 = sbr.rel (%p9037) target = $region56
      $region55: #{tpu_custom_call.1} parent=51 // pred_region
        %s9040 = sld [smem:[#allocation7 + %s28]]
        %s9041 = smul.u32 32, %s9040
        %p9042 = scmp.lt.s32.totalorder %s26, 1
        %s9043 = scalar_select %p9042, %s26, 1
        %p9044 = scmp.lt.s32.totalorder %s27, 1
        %s9045 = scalar_select %p9044, %s27, 1
        %p9046 = scmp.lt.s32.totalorder %s9041, 31
        %s9047 = scalar_select %p9046, %s9041, 31
        %s9048 = smul.addr %s9045, 32
        %s9049 = sadd.s32 %s9047, %s9048
        %s9050 = smul.addr %s9043, 64
        %s9051 = sadd.s32 %s9049, %s9050
        %s9052 = smul.addr %s9051, 8
        %s9053 = scalar_lea.vmem %s5, %s9052
      $region56: #{tpu_custom_call.1} parent=51 // pred_fallthru
        _
    $region52: #{tpu_custom_call.1} parent=5 // pred_fallthru
      _
  $region6: #{tpu_custom_call.1} parent=0 // loop_footer
    %s17 = sadd.s32 1, %s13
  $region7: #{tpu_custom_call.1} parent=0 // loop_footer_branch
    %12 = sbr.rel target = $region3
  $region8: #{tpu_custom_call.1} parent=0 // loop_exit
    _

</llo_original>
